<compile_context>
chip_gen: v7x
topology: tpu7x:2x2x1
jax: 0.10.0
libtpu: 0.0.40
codegen_flags: <defaults>
</compile_context>

<pallas_src>
import functools

import jax
import jax.numpy as jnp
from jax.experimental import pallas as pl
from jax.experimental.pallas import tpu as pltpu

# VGG19 "configuration E" feature stack.
VGG19_CFG = [64, 64, "M", 128, 128, "M", 256, 256, 256, 256, "M",
             512, 512, 512, 512, "M", 512, 512, 512, 512, "M"]


# ------------------------- Pallas kernels -------------------------

def _conv3x3_relu_kernel(x_ref, w_ref, b_ref, o_ref, *, L, W2):
    # x_ref: (1, (H+3)*(W+2), Cin) bf16 -- zero-padded image with rows flattened
    # w_ref: (9, Cin, Cout) bf16, tap-major (t = dy*3 + dx)
    # b_ref: (1, Cout) f32
    # o_ref: (1, L, Cout) bf16 with L = H*(W+2); 2 wrap columns/row are discarded outside.
    # Tap (dy, dx) of output position p is just row p + dy*(W+2) + dx of the flat image,
    # so each tap is a contiguous row-slice -> 9 MXU dots accumulated in fp32, no HBM
    # im2col and no in-kernel spatial reshuffling.
    acc = jnp.dot(x_ref[0, 0:L, :], w_ref[0],
                  preferred_element_type=jnp.float32)
    for t in range(1, 9):
        off = (t // 3) * W2 + (t % 3)
        acc = acc + jnp.dot(x_ref[0, off:off + L, :], w_ref[t],
                            preferred_element_type=jnp.float32)
    o_ref[0] = jnp.maximum(acc + b_ref[...], 0.0).astype(o_ref.dtype)


def conv3x3_relu(x_nhwc, w_taps, b):
    """3x3 conv, stride 1, pad 1, fused ReLU.  x: (N,H,W,Cin) bf16, w_taps: (9,Cin,Cout) bf16."""
    N, H, W, Cin = x_nhwc.shape
    Cout = w_taps.shape[-1]
    W2 = W + 2
    R = (H + 3) * W2          # pad: top 1, bottom 2 (1 conv pad + 1 guard row for last taps)
    L = H * W2                # rows computed per image (includes 2 wrap columns per row)
    # Layout glue only (cheap, no 9x inflation): pad once and flatten the spatial rows.
    xp = jnp.pad(x_nhwc, ((0, 0), (1, 2), (1, 1), (0, 0))).reshape(N, R, Cin)
    kern = functools.partial(_conv3x3_relu_kernel, L=L, W2=W2)
    out = pl.pallas_call(
        kern,
        out_shape=jax.ShapeDtypeStruct((N, L, Cout), jnp.bfloat16),
        grid_spec=pltpu.PrefetchScalarGridSpec(
            num_scalar_prefetch=0,
            grid=(N,),
            in_specs=[
                pl.BlockSpec((1, R, Cin), lambda n: (n, 0, 0)),
                pl.BlockSpec((9, Cin, Cout), lambda n: (0, 0, 0)),
                pl.BlockSpec((1, Cout), lambda n: (0, 0)),
            ],
            out_specs=pl.BlockSpec((1, L, Cout), lambda n: (n, 0, 0)),
        ),
        compiler_params=pltpu.CompilerParams(
            dimension_semantics=("parallel",),          # batch axis -> v7x 2-TC sharding
            vmem_limit_bytes=32 * 1024 * 1024),
    )(xp, w_taps, b.reshape(1, Cout))
    # Drop the 2 wrap columns of each output row (pure layout slice).
    return out.reshape(N, H, W2, Cout)[:, :, :W, :]


def _max4_kernel(a_ref, b_ref, c_ref, d_ref, o_ref):
    o_ref[...] = jnp.maximum(jnp.maximum(a_ref[...], b_ref[...]),
                             jnp.maximum(c_ref[...], d_ref[...]))


def maxpool2x2(x_nhwc):
    """MaxPool2d(kernel=2, stride=2) via a 4-way elementwise-max kernel."""
    # TODO(synk): could be fused into the preceding conv epilogue to save one activation
    # round-trip; at these activation sizes the traffic is negligible vs. weight streaming.
    x00 = x_nhwc[:, 0::2, 0::2, :]
    x01 = x_nhwc[:, 0::2, 1::2, :]
    x10 = x_nhwc[:, 1::2, 0::2, :]
    x11 = x_nhwc[:, 1::2, 1::2, :]
    return pl.pallas_call(
        _max4_kernel,
        out_shape=jax.ShapeDtypeStruct(x00.shape, x00.dtype),
    )(x00, x01, x10, x11)


def _linear_kernel(x_ref, w_ref, b_ref, o_ref, acc_ref, *, relu):
    @pl.when(pl.program_id(1) == 0)
    def _():
        acc_ref[...] = jnp.zeros_like(acc_ref)

    acc_ref[...] += jnp.dot(x_ref[...], w_ref[...],
                            preferred_element_type=jnp.float32)

    @pl.when(pl.program_id(1) == pl.num_programs(1) - 1)
    def _():
        r = acc_ref[...] + b_ref[...]
        if relu:
            r = jnp.maximum(r, 0.0)
        o_ref[...] = r.astype(o_ref.dtype)


def linear(x, w, b, *, relu, out_dtype=jnp.float32):
    """y = x @ w + b (optionally ReLU).  x: (M,K), w: (K,N) bf16, b: (N,) f32."""
    M, K = x.shape
    Nout = w.shape[1]
    tn = min(Nout, 1024)          # >=4 parallel output tiles for the 4096-wide fcs (v7x)
    tk = min(K, 4096)             # big K blocks -> few grid steps, weight blocks <= 8 MiB bf16
    assert K % tk == 0 and Nout % tn == 0
    b2 = b.reshape(1, Nout)
    kern = functools.partial(_linear_kernel, relu=relu)
    return pl.pallas_call(
        kern,
        out_shape=jax.ShapeDtypeStruct((M, Nout), out_dtype),
        grid_spec=pltpu.PrefetchScalarGridSpec(
            num_scalar_prefetch=0,
            grid=(Nout // tn, K // tk),
            in_specs=[
                pl.BlockSpec((M, tk), lambda j, k: (0, k)),
                pl.BlockSpec((tk, tn), lambda j, k: (k, j)),
                pl.BlockSpec((1, tn), lambda j, k: (0, j)),
            ],
            out_specs=pl.BlockSpec((M, tn), lambda j, k: (0, j)),
            scratch_shapes=[pltpu.VMEM((M, tn), jnp.float32)],
        ),
        compiler_params=pltpu.CompilerParams(
            dimension_semantics=("parallel", "arbitrary"),
            vmem_limit_bytes=32 * 1024 * 1024),   # <= half of v7x's 64 MiB physical VMEM
    )(x.astype(jnp.bfloat16), w, b2)


# ------------------------- parameters (synthetic, deterministic) -------------------------

def init_params(key):
    # TODO(synk): pretrained torchvision VGG19 weights cannot be loaded here; synthetic init.
    params = {"convs": []}
    cin = 3
    for v in VGG19_CFG:
        if v == "M":
            continue
        key, kw = jax.random.split(key)
        # conv weight kept directly in (9, Cin, Cout) tap-major layout, stored bf16.
        w = (jax.random.normal(kw, (9, cin, v), jnp.float32)
             * jnp.sqrt(2.0 / (9 * cin))).astype(jnp.bfloat16)
        params["convs"].append((w, jnp.zeros((v,), jnp.float32)))
        cin = v

    key, k1, k2, k3 = jax.random.split(key, 4)

    # fc1 = vgg.classifier[0]: Linear(25088, 4096).  For 32x32 inputs the feature map is
    # 1x1x512 before AdaptiveAvgPool2d((7,7)), so the 7x7 replication + NCHW flatten gives
    #   flat(25088) @ W1 == feat(512) @ W1_folded,  W1_folded[c] = sum_i W1[c*49 + i]
    # which is exact under the H==W==1 assert in the forward. Fold once here.
    w1 = (jax.random.normal(k1, (512 * 7 * 7, 4096), jnp.float32)
          * jnp.sqrt(2.0 / (512 * 7 * 7)))
    w1_folded = w1.reshape(512, 49, 4096).sum(axis=1).astype(jnp.bfloat16)
    params["fc1"] = (w1_folded, jnp.zeros((4096,), jnp.float32))

    # fc2 = vgg.classifier[3]: Linear(4096, 4096)
    w2 = (jax.random.normal(k2, (4096, 4096), jnp.float32)
          * jnp.sqrt(2.0 / 4096)).astype(jnp.bfloat16)
    params["fc2"] = (w2, jnp.zeros((4096,), jnp.float32))

    # new_layers[0]: Linear(4096, 10) -- padded to a lane-dense width of 128, sliced later.
    w3 = jax.random.normal(k3, (4096, 10), jnp.float32) * jnp.sqrt(2.0 / 4096)
    w3p = jnp.pad(w3, ((0, 0), (0, 118))).astype(jnp.bfloat16)
    params["head"] = (w3p, jnp.zeros((128,), jnp.float32))
    return params


# ------------------------- forward -------------------------

def new_vgg_forward(x_nchw, params):
    # NCHW (PyTorch) -> NHWC bf16 for the kernels.
    x = jnp.transpose(x_nchw, (0, 2, 3, 1)).astype(jnp.bfloat16)

    ci = 0
    for v in VGG19_CFG:
        if v == "M":
            x = maxpool2x2(x)
        else:
            w, b = params["convs"][ci]
            x = conv3x3_relu(x, w, b)
            ci += 1

    # AdaptiveAvgPool2d((7,7)): a 32x32 input is 1x1 after the 5 maxpools, so the adaptive
    # pool is pure replication to 7x7; that replication + NCHW flatten is folded exactly
    # into fc1's weights in init_params.
    # TODO(synk): general AdaptiveAvgPool2d (arbitrary input size) not implemented.
    N, H, W, C = x.shape
    assert H == 1 and W == 1, "use a 32x32 input so adaptive pooling is replication"
    feat = x.reshape(N, C)

    # classifier[:-1]: Linear -> ReLU -> Dropout(id) -> Linear -> ReLU -> Dropout(id)
    w, b = params["fc1"]
    h = linear(feat, w, b, relu=True, out_dtype=jnp.bfloat16)
    w, b = params["fc2"]
    h = linear(h, w, b, relu=True, out_dtype=jnp.bfloat16)
    # new_layers: Linear(4096, 10) computed at padded width 128, then sliced.
    w, b = params["head"]
    logits = linear(h, w, b, relu=False, out_dtype=jnp.float32)
    return logits[:, :10]


if __name__ == "__main__":
    key = jax.random.PRNGKey(0)
    kp, kx = jax.random.split(key)
    params = init_params(kp)
    # PyTorch-convention NCHW input; 32x32 spatial keeps the classifier's
    # 25088 (= 512*7*7) input features exact via the 7x7 adaptive-pool replication.
    x = jax.random.normal(kx, (2, 3, 32, 32), jnp.float32)
    out = new_vgg_forward(x, params)
    out = jax.block_until_ready(out)
    assert out.shape == (2, 10)
    print("KERNEL_OK")
</pallas_src>

<mosaic_0001>
module attributes {stable_mosaic.version = 11 : i64} {
  func.func @_conv3x3_relu_kernel(%arg0: i32, %arg1: memref<1x1190x3xbf16, #tpu.memory_space<vmem>>, %arg2: memref<9x3x64xbf16, #tpu.memory_space<vmem>>, %arg3: memref<1x64xf32, #tpu.memory_space<vmem>>, %arg4: memref<1x1088x64xbf16, #tpu.memory_space<vmem>>) attributes {dimension_semantics = [#tpu.dimension_semantics<parallel>], iteration_bounds = array<i64: 2>, scalar_prefetch = 0 : i64, scratch_operands = 0 : i64, tpu.core_type = #tpu.core_type<tc>, window_params = [{transform_indices = @transform_0, window_bounds = array<i64: 1, 1190, 3>}, {pipeline_mode = #tpu.pipeline_mode<synchronous>, transform_indices = @transform_1, window_bounds = array<i64: 9, 3, 64>}, {pipeline_mode = #tpu.pipeline_mode<synchronous>, transform_indices = @transform_2, window_bounds = array<i64: 1, 64>}, {transform_indices = @transform_3, window_bounds = array<i64: 1, 1088, 64>}]} {
    %c0 = arith.constant 0 : index
    %c0_0 = arith.constant 0 : index
    %c0_1 = arith.constant 0 : index
    %0 = vector.load %arg1[%c0, %c0_0, %c0_1] : memref<1x1190x3xbf16, #tpu.memory_space<vmem>>, vector<1x1088x3xbf16>
    %1 = vector.shape_cast %0 : vector<1x1088x3xbf16> to vector<1088x3xbf16>
    %c0_2 = arith.constant 0 : index
    %c0_3 = arith.constant 0 : index
    %c0_4 = arith.constant 0 : index
    %2 = vector.load %arg2[%c0_2, %c0_3, %c0_4] : memref<9x3x64xbf16, #tpu.memory_space<vmem>>, vector<1x3x64xbf16>
    %3 = vector.shape_cast %2 : vector<1x3x64xbf16> to vector<3x64xbf16>
    %cst = arith.constant dense<0.000000e+00> : vector<1088x64xf32>
    %4 = tpu.matmul %1, %3, %cst {dimension_numbers = #tpu.dot_dimension_numbers<[1], [0], [0], [1], [0, 0, 1, 1], [], []>} : vector<1088x3xbf16>, vector<3x64xbf16>, vector<1088x64xf32> -> vector<1088x64xf32>
    %c0_5 = arith.constant 0 : index
    %c1 = arith.constant 1 : index
    %c0_6 = arith.constant 0 : index
    %5 = vector.load %arg1[%c0_5, %c1, %c0_6] : memref<1x1190x3xbf16, #tpu.memory_space<vmem>>, vector<1x1088x3xbf16>
    %6 = vector.shape_cast %5 : vector<1x1088x3xbf16> to vector<1088x3xbf16>
    %c1_7 = arith.constant 1 : index
    %c0_8 = arith.constant 0 : index
    %c0_9 = arith.constant 0 : index
    %7 = vector.load %arg2[%c1_7, %c0_8, %c0_9] : memref<9x3x64xbf16, #tpu.memory_space<vmem>>, vector<1x3x64xbf16>
    %8 = vector.shape_cast %7 : vector<1x3x64xbf16> to vector<3x64xbf16>
    %cst_10 = arith.constant dense<0.000000e+00> : vector<1088x64xf32>
    %9 = tpu.matmul %6, %8, %cst_10 {dimension_numbers = #tpu.dot_dimension_numbers<[1], [0], [0], [1], [0, 0, 1, 1], [], []>} : vector<1088x3xbf16>, vector<3x64xbf16>, vector<1088x64xf32> -> vector<1088x64xf32>
    %10 = arith.addf %4, %9 : vector<1088x64xf32>
    %c0_11 = arith.constant 0 : index
    %c2 = arith.constant 2 : index
    %c0_12 = arith.constant 0 : index
    %11 = vector.load %arg1[%c0_11, %c2, %c0_12] : memref<1x1190x3xbf16, #tpu.memory_space<vmem>>, vector<1x1088x3xbf16>
    %12 = vector.shape_cast %11 : vector<1x1088x3xbf16> to vector<1088x3xbf16>
    %c2_13 = arith.constant 2 : index
    %c0_14 = arith.constant 0 : index
    %c0_15 = arith.constant 0 : index
    %13 = vector.load %arg2[%c2_13, %c0_14, %c0_15] : memref<9x3x64xbf16, #tpu.memory_space<vmem>>, vector<1x3x64xbf16>
    %14 = vector.shape_cast %13 : vector<1x3x64xbf16> to vector<3x64xbf16>
    %cst_16 = arith.constant dense<0.000000e+00> : vector<1088x64xf32>
    %15 = tpu.matmul %12, %14, %cst_16 {dimension_numbers = #tpu.dot_dimension_numbers<[1], [0], [0], [1], [0, 0, 1, 1], [], []>} : vector<1088x3xbf16>, vector<3x64xbf16>, vector<1088x64xf32> -> vector<1088x64xf32>
    %16 = arith.addf %10, %15 : vector<1088x64xf32>
    %c0_17 = arith.constant 0 : index
    %c34 = arith.constant 34 : index
    %c0_18 = arith.constant 0 : index
    %17 = vector.load %arg1[%c0_17, %c34, %c0_18] : memref<1x1190x3xbf16, #tpu.memory_space<vmem>>, vector<1x1088x3xbf16>
    %18 = vector.shape_cast %17 : vector<1x1088x3xbf16> to vector<1088x3xbf16>
    %c3 = arith.constant 3 : index
    %c0_19 = arith.constant 0 : index
    %c0_20 = arith.constant 0 : index
    %19 = vector.load %arg2[%c3, %c0_19, %c0_20] : memref<9x3x64xbf16, #tpu.memory_space<vmem>>, vector<1x3x64xbf16>
    %20 = vector.shape_cast %19 : vector<1x3x64xbf16> to vector<3x64xbf16>
    %cst_21 = arith.constant dense<0.000000e+00> : vector<1088x64xf32>
    %21 = tpu.matmul %18, %20, %cst_21 {dimension_numbers = #tpu.dot_dimension_numbers<[1], [0], [0], [1], [0, 0, 1, 1], [], []>} : vector<1088x3xbf16>, vector<3x64xbf16>, vector<1088x64xf32> -> vector<1088x64xf32>
    %22 = arith.addf %16, %21 : vector<1088x64xf32>
    %c0_22 = arith.constant 0 : index
    %c35 = arith.constant 35 : index
    %c0_23 = arith.constant 0 : index
    %23 = vector.load %arg1[%c0_22, %c35, %c0_23] : memref<1x1190x3xbf16, #tpu.memory_space<vmem>>, vector<1x1088x3xbf16>
    %24 = vector.shape_cast %23 : vector<1x1088x3xbf16> to vector<1088x3xbf16>
    %c4 = arith.constant 4 : index
    %c0_24 = arith.constant 0 : index
    %c0_25 = arith.constant 0 : index
    %25 = vector.load %arg2[%c4, %c0_24, %c0_25] : memref<9x3x64xbf16, #tpu.memory_space<vmem>>, vector<1x3x64xbf16>
    %26 = vector.shape_cast %25 : vector<1x3x64xbf16> to vector<3x64xbf16>
    %cst_26 = arith.constant dense<0.000000e+00> : vector<1088x64xf32>
    %27 = tpu.matmul %24, %26, %cst_26 {dimension_numbers = #tpu.dot_dimension_numbers<[1], [0], [0], [1], [0, 0, 1, 1], [], []>} : vector<1088x3xbf16>, vector<3x64xbf16>, vector<1088x64xf32> -> vector<1088x64xf32>
    %28 = arith.addf %22, %27 : vector<1088x64xf32>
    %c0_27 = arith.constant 0 : index
    %c36 = arith.constant 36 : index
    %c0_28 = arith.constant 0 : index
    %29 = vector.load %arg1[%c0_27, %c36, %c0_28] : memref<1x1190x3xbf16, #tpu.memory_space<vmem>>, vector<1x1088x3xbf16>
    %30 = vector.shape_cast %29 : vector<1x1088x3xbf16> to vector<1088x3xbf16>
    %c5 = arith.constant 5 : index
    %c0_29 = arith.constant 0 : index
    %c0_30 = arith.constant 0 : index
    %31 = vector.load %arg2[%c5, %c0_29, %c0_30] : memref<9x3x64xbf16, #tpu.memory_space<vmem>>, vector<1x3x64xbf16>
    %32 = vector.shape_cast %31 : vector<1x3x64xbf16> to vector<3x64xbf16>
    %cst_31 = arith.constant dense<0.000000e+00> : vector<1088x64xf32>
    %33 = tpu.matmul %30, %32, %cst_31 {dimension_numbers = #tpu.dot_dimension_numbers<[1], [0], [0], [1], [0, 0, 1, 1], [], []>} : vector<1088x3xbf16>, vector<3x64xbf16>, vector<1088x64xf32> -> vector<1088x64xf32>
    %34 = arith.addf %28, %33 : vector<1088x64xf32>
    %c0_32 = arith.constant 0 : index
    %c68 = arith.constant 68 : index
    %c0_33 = arith.constant 0 : index
    %35 = vector.load %arg1[%c0_32, %c68, %c0_33] : memref<1x1190x3xbf16, #tpu.memory_space<vmem>>, vector<1x1088x3xbf16>
    %36 = vector.shape_cast %35 : vector<1x1088x3xbf16> to vector<1088x3xbf16>
    %c6 = arith.constant 6 : index
    %c0_34 = arith.constant 0 : index
    %c0_35 = arith.constant 0 : index
    %37 = vector.load %arg2[%c6, %c0_34, %c0_35] : memref<9x3x64xbf16, #tpu.memory_space<vmem>>, vector<1x3x64xbf16>
    %38 = vector.shape_cast %37 : vector<1x3x64xbf16> to vector<3x64xbf16>
    %cst_36 = arith.constant dense<0.000000e+00> : vector<1088x64xf32>
    %39 = tpu.matmul %36, %38, %cst_36 {dimension_numbers = #tpu.dot_dimension_numbers<[1], [0], [0], [1], [0, 0, 1, 1], [], []>} : vector<1088x3xbf16>, vector<3x64xbf16>, vector<1088x64xf32> -> vector<1088x64xf32>
    %40 = arith.addf %34, %39 : vector<1088x64xf32>
    %c0_37 = arith.constant 0 : index
    %c69 = arith.constant 69 : index
    %c0_38 = arith.constant 0 : index
    %41 = vector.load %arg1[%c0_37, %c69, %c0_38] : memref<1x1190x3xbf16, #tpu.memory_space<vmem>>, vector<1x1088x3xbf16>
    %42 = vector.shape_cast %41 : vector<1x1088x3xbf16> to vector<1088x3xbf16>
    %c7 = arith.constant 7 : index
    %c0_39 = arith.constant 0 : index
    %c0_40 = arith.constant 0 : index
    %43 = vector.load %arg2[%c7, %c0_39, %c0_40] : memref<9x3x64xbf16, #tpu.memory_space<vmem>>, vector<1x3x64xbf16>
    %44 = vector.shape_cast %43 : vector<1x3x64xbf16> to vector<3x64xbf16>
    %cst_41 = arith.constant dense<0.000000e+00> : vector<1088x64xf32>
    %45 = tpu.matmul %42, %44, %cst_41 {dimension_numbers = #tpu.dot_dimension_numbers<[1], [0], [0], [1], [0, 0, 1, 1], [], []>} : vector<1088x3xbf16>, vector<3x64xbf16>, vector<1088x64xf32> -> vector<1088x64xf32>
    %46 = arith.addf %40, %45 : vector<1088x64xf32>
    %c0_42 = arith.constant 0 : index
    %c70 = arith.constant 70 : index
    %c0_43 = arith.constant 0 : index
    %47 = vector.load %arg1[%c0_42, %c70, %c0_43] : memref<1x1190x3xbf16, #tpu.memory_space<vmem>>, vector<1x1088x3xbf16>
    %48 = vector.shape_cast %47 : vector<1x1088x3xbf16> to vector<1088x3xbf16>
    %c8 = arith.constant 8 : index
    %c0_44 = arith.constant 0 : index
    %c0_45 = arith.constant 0 : index
    %49 = vector.load %arg2[%c8, %c0_44, %c0_45] : memref<9x3x64xbf16, #tpu.memory_space<vmem>>, vector<1x3x64xbf16>
    %50 = vector.shape_cast %49 : vector<1x3x64xbf16> to vector<3x64xbf16>
    %cst_46 = arith.constant dense<0.000000e+00> : vector<1088x64xf32>
    %51 = tpu.matmul %48, %50, %cst_46 {dimension_numbers = #tpu.dot_dimension_numbers<[1], [0], [0], [1], [0, 0, 1, 1], [], []>} : vector<1088x3xbf16>, vector<3x64xbf16>, vector<1088x64xf32> -> vector<1088x64xf32>
    %52 = arith.addf %46, %51 : vector<1088x64xf32>
    %c0_47 = arith.constant 0 : index
    %c0_48 = arith.constant 0 : index
    %53 = vector.load %arg3[%c0_47, %c0_48] : memref<1x64xf32, #tpu.memory_space<vmem>>, vector<1x64xf32>
    %54 = vector.broadcast %53 : vector<1x64xf32> to vector<1088x64xf32>
    %55 = arith.addf %52, %54 : vector<1088x64xf32>
    %cst_49 = arith.constant 0.000000e+00 : f32
    %56 = vector.broadcast %cst_49 : f32 to vector<1088x64xf32>
    %57 = arith.maximumf %55, %56 : vector<1088x64xf32>
    %58 = arith.truncf %57 : vector<1088x64xf32> to vector<1088x64xbf16>
    %c0_50 = arith.constant 0 : index
    %c0_51 = arith.constant 0 : index
    %c0_52 = arith.constant 0 : index
    %59 = vector.load %arg4[%c0_50, %c0_51, %c0_52] : memref<1x1088x64xbf16, #tpu.memory_space<vmem>>, vector<1x1088x64xbf16>
    %60 = vector.shape_cast %59 : vector<1x1088x64xbf16> to vector<1088x64xbf16>
    %61 = vector.shape_cast %58 : vector<1088x64xbf16> to vector<1x1088x64xbf16>
    tpu.vector_store %arg4[%c0_50, %c0_51, %c0_52], %61 {strides = array<i32>} : memref<1x1088x64xbf16, #tpu.memory_space<vmem>>, vector<1x1088x64xbf16>,
    return
  }
  func.func @transform_0(%arg0: i32) -> (i32, i32, i32) {
    %c0_i32 = arith.constant 0 : i32
    %c0_i32_0 = arith.constant 0 : i32
    %c0_i32_1 = arith.constant 0 : i32
    return %arg0, %c0_i32, %c0_i32_0 : i32, i32, i32
  }
  func.func @transform_1(%arg0: i32) -> (i32, i32, i32) {
    %c0_i32 = arith.constant 0 : i32
    %c0_i32_0 = arith.constant 0 : i32
    %c0_i32_1 = arith.constant 0 : i32
    %c0_i32_2 = arith.constant 0 : i32
    return %c0_i32, %c0_i32_0, %c0_i32_1 : i32, i32, i32
  }
  func.func @transform_2(%arg0: i32) -> (i32, i32) {
    %c0_i32 = arith.constant 0 : i32
    %c0_i32_0 = arith.constant 0 : i32
    %c0_i32_1 = arith.constant 0 : i32
    return %c0_i32, %c0_i32_0 : i32, i32
  }
  func.func @transform_3(%arg0: i32) -> (i32, i32, i32) {
    %c0_i32 = arith.constant 0 : i32
    %c0_i32_0 = arith.constant 0 : i32
    %c0_i32_1 = arith.constant 0 : i32
    return %arg0, %c0_i32, %c0_i32_0 : i32, i32, i32
  }
}

</mosaic_0001>

<llo_original>
// kernel: tpu_custom_call.1
$region0: #{tpu_custom_call.1}
  #allocation0 [shape = 'u32[]', space=smem, size = 0x4, offset = 0x4, fixed_abs, tag = 'smem constant byte address 0x4 - core index']
  #allocation1 [shape = 'u32[144,128]{1,0:T(1,128)}', space=vmem, size = 0x12000, scoped, tag = 'internal scratch']
  %s0 = inlined_call_operand.vmem [shape: bf16[2,1190,3], index: 0, kind: input, shape index: {}]
  %s1 = inlined_call_operand.vmem [shape: bf16[9,3,64], index: 1, kind: input, shape index: {}]
  %s2 = inlined_call_operand.vmem [shape: f32[1,64], index: 2, kind: input, shape index: {}]
  %s3 = inlined_call_operand.vmem [shape: bf16[2,1088,64], index: 3, kind: output, shape index: {}]
  %s4 = sld [smem:[#allocation0]]
  $region45: #{tpu_custom_call.1} parent=0
    _
  %s6 = ssub.s32 1, %s4
  %s7 = scalar_select 0, %s6, %s4
  loop: start=0, step=1, limit=4
  $region2: #{tpu_custom_call.1} parent=0 // loop_pre_header
    _
  $region3: #{tpu_custom_call.1} parent=0 // loop_header
    %s9 = sphi 0, %s13
    %p10 = scmp.ge.s32.totalorder %s9, 4
    %s19 = sphi 0, %s21
    %s22 = sphi 0, %s19
    %s23 = sphi 0, %s22
    %s39 = sphi 0, %s23
    %s43 = sphi 0, %s43
    %s45 = sphi 0, %s43
    %s46 = sphi 0, %s45
    %s60 = sphi 0, %s46
    %s64 = sphi 0, %s64
    %s66 = sphi 0, %s64
    %s67 = sphi 0, %s66
    %s81 = sphi 0, %s67
    %s87 = sphi 0, %s89
    %s90 = sphi 0, %s87
    %s91 = sphi 0, %s90
    %s107 = sphi 0, %s91
  $region4: #{tpu_custom_call.1} parent=0 // loop_header_branch
    %12 = sbr.rel (%p10) target = $region8
  $region5: #{tpu_custom_call.1} parent=0 // loop_body
    %s14 = ssub.s32 %s9, 1
    %s15 = ssub.s32 %s9, 2
    %s16 = sadd.s32 %s9, 1
    %s17 = ssub.s32 %s9, %s16
    %p18 = scmp.eq.s32.totalorder %s17, 0
    %s20 = sadd.s32 %s19, 1
    %s21 = scalar_select %p18, %s19, %s20
    %p24 = pneg %p18
    %p25 = scmp.eq.s32.totalorder %s9, 1
    %p26 = por %p24, %p25
    %p27 = scmp.ne.s32.totalorder %s19, %s22
    %p28 = scmp.eq.s32.totalorder %s9, 0
    %p29 = por %p27, %p28
    %p30 = scmp.ne.s32.totalorder %s19, %s22
    %p31 = scmp.eq.s32.totalorder %s14, 1
    %p32 = por %p30, %p31
    %p33 = scmp.ne.s32.totalorder %s22, %s23
    %p34 = scmp.eq.s32.totalorder %s14, 0
    %p35 = por %p33, %p34
    %p36 = scmp.ne.s32.totalorder %s22, %s23
    %p37 = scmp.eq.s32.totalorder %s15, 1
    %p38 = por %p36, %p37
    %p40 = scmp.ne.s32.totalorder %s23, %s39
    %p41 = scmp.eq.s32.totalorder %s15, 0
    %p42 = por %p40, %p41
    %s44 = sadd.s32 %s43, 1
    %p47 = scmp.eq.s32.totalorder %s9, 1
    %p48 = scmp.ne.s32.totalorder %s43, %s45
    %p49 = scmp.eq.s32.totalorder %s9, 0
    %p50 = por %p48, %p49
    %p51 = scmp.ne.s32.totalorder %s43, %s45
    %p52 = scmp.eq.s32.totalorder %s14, 1
    %p53 = por %p51, %p52
    %p54 = scmp.ne.s32.totalorder %s45, %s46
    %p55 = scmp.eq.s32.totalorder %s14, 0
    %p56 = por %p54, %p55
    %p57 = scmp.ne.s32.totalorder %s45, %s46
    %p58 = scmp.eq.s32.totalorder %s15, 1
    %p59 = por %p57, %p58
    %p61 = scmp.ne.s32.totalorder %s46, %s60
    %p62 = scmp.eq.s32.totalorder %s15, 0
    %p63 = por %p61, %p62
    %s65 = sadd.s32 %s64, 1
    %p68 = scmp.eq.s32.totalorder %s9, 1
    %p69 = scmp.ne.s32.totalorder %s64, %s66
    %p70 = scmp.eq.s32.totalorder %s9, 0
    %p71 = por %p69, %p70
    %p72 = scmp.ne.s32.totalorder %s64, %s66
    %p73 = scmp.eq.s32.totalorder %s14, 1
    %p74 = por %p72, %p73
    %p75 = scmp.ne.s32.totalorder %s66, %s67
    %p76 = scmp.eq.s32.totalorder %s14, 0
    %p77 = por %p75, %p76
    %p78 = scmp.ne.s32.totalorder %s66, %s67
    %p79 = scmp.eq.s32.totalorder %s15, 1
    %p80 = por %p78, %p79
    %p82 = scmp.ne.s32.totalorder %s67, %s81
    %p83 = scmp.eq.s32.totalorder %s15, 0
    %p84 = por %p82, %p83
    %s85 = ssub.s32 %s9, %s16
    %p86 = scmp.eq.s32.totalorder %s85, 0
    %s88 = sadd.s32 %s87, 1
    %s89 = scalar_select %p86, %s87, %s88
    %p92 = pneg %p86
    %p93 = scmp.eq.s32.totalorder %s9, 1
    %p94 = por %p92, %p93
    %p95 = scmp.ne.s32.totalorder %s87, %s90
    %p96 = scmp.eq.s32.totalorder %s9, 0
    %p97 = por %p95, %p96
    %p98 = scmp.ne.s32.totalorder %s87, %s90
    %p99 = scmp.eq.s32.totalorder %s14, 1
    %p100 = por %p98, %p99
    %p101 = scmp.ne.s32.totalorder %s90, %s91
    %p102 = scmp.eq.s32.totalorder %s14, 0
    %p103 = por %p101, %p102
    %p104 = scmp.ne.s32.totalorder %s90, %s91
    %p105 = scmp.eq.s32.totalorder %s15, 1
    %p106 = por %p104, %p105
    %p108 = scmp.ne.s32.totalorder %s91, %s107
    %p109 = scmp.eq.s32.totalorder %s15, 0
    %p110 = por %p108, %p109
    %p111 = scmp.le.s32.totalorder 1, %s9
    %p112 = scmp.lt.s32.totalorder %s9, 3
    %p113 = pnand %p111, %p112
    %p114 = pneg %p113
    // Predicated region
    $region9: #{tpu_custom_call.1} parent=5 // pred_check
      _
    $region10: #{tpu_custom_call.1} parent=5 // pred_check_branch
      %116 = sbr.rel (%p113) target = $region12
    $region11: #{tpu_custom_call.1} parent=5 // pred_region
      %s117 = ssub.s32 %s9, 1
      // Predicated region
      $region13: #{tpu_custom_call.1} parent=11 // pred_check
        %p118 = pneg %p56
      $region14: #{tpu_custom_call.1} parent=11 // pred_check_branch
        %120 = sbr.rel (%p118) target = $region16
      $region15: #{tpu_custom_call.1} parent=11 // pred_region
        _
      $region16: #{tpu_custom_call.1} parent=11 // pred_fallthru
        _
      // Predicated region
      $region17: #{tpu_custom_call.1} parent=11 // pred_check
        %p121 = pneg %p77
      $region18: #{tpu_custom_call.1} parent=11 // pred_check_branch
        %123 = sbr.rel (%p121) target = $region20
      $region19: #{tpu_custom_call.1} parent=11 // pred_region
        _
      $region20: #{tpu_custom_call.1} parent=11 // pred_fallthru
        _
    $region12: #{tpu_custom_call.1} parent=5 // pred_fallthru
      _
    %p124 = scmp.lt.s32.totalorder %s9, 2
    // Predicated region
    $region21: #{tpu_custom_call.1} parent=5 // pred_check
      %p125 = pneg %p124
    $region22: #{tpu_custom_call.1} parent=5 // pred_check_branch
      %127 = sbr.rel (%p125) target = $region24
    $region23: #{tpu_custom_call.1} parent=5 // pred_region
      // Predicated region
      $region25: #{tpu_custom_call.1} parent=23 // pred_check
        %p128 = pneg %p29
      $region26: #{tpu_custom_call.1} parent=23 // pred_check_branch
        %130 = sbr.rel (%p128) target = $region28
      $region27: #{tpu_custom_call.1} parent=23 // pred_region
        %p131 = scmp.lt.s32.totalorder %s9, 1
        %s132 = scalar_select %p131, %s9, 1
        %s133 = smul.addr %s132, 149
        %s134 = smul.addr %s133, 4
        %s135 = scalar_lea.vmem %s0, %s134
      $region28: #{tpu_custom_call.1} parent=23 // pred_fallthru
        _
    $region24: #{tpu_custom_call.1} parent=5 // pred_fallthru
      _
    %p136 = scmp.le.s32.totalorder 1, %s9
    %p137 = scmp.lt.s32.totalorder %s9, 3
    %p138 = pnand %p136, %p137
    %p139 = pneg %p138
    // Predicated region
    $region29: #{tpu_custom_call.1} parent=5 // pred_check
      _
    $region30: #{tpu_custom_call.1} parent=5 // pred_check_branch
      %141 = sbr.rel (%p138) target = $region32
    $region31: #{tpu_custom_call.1} parent=5 // pred_region
      %s142 = ssub.s32 %s9, 1
      %p143 = scmp.lt.s32.totalorder %s14, 1
      %s144 = scalar_select %p143, %s14, 1
      %s145 = smul.addr %s144, 149
      %s146 = smul.addr %s145, 4
      %s147 = scalar_lea.vmem %s0, %s146
      %p148 = pneg %p35
      %p149 = pneg %p32
      %p150 = pneg %p56
      %p151 = pneg %p53
      %p152 = pneg %p77
      %p153 = pneg %p74
      %p154 = pneg %p103
      %p155 = pneg %p100
      %p156 = scmp.lt.s32.totalorder %s14, 1
      %s157 = scalar_select %p156, %s14, 1
      %s158 = smul.addr %s157, 136
      %s159 = smul.addr %s158, 4
      %s160 = scalar_lea.vmem %s3, %s159
      %p161 = scmp.lt.s32.totalorder %s14, 1
      %s162 = scalar_select %p161, %s14, 1
      %s163 = smul.addr %s162, 149
      %s164 = smul.addr %s163, 4
      %s165 = scalar_lea.vmem %s0, %s164
      %p166 = scmp.lt.s32.totalorder %s14, 1
      %s167 = scalar_select %p166, %s14, 1
      %s168 = smul.addr %s167, 136
      %s169 = smul.addr %s168, 4
      %s170 = scalar_lea.vmem %s3, %s169
      %v172 = vld [vmem:[%s165] sm:$0xf]
      %v173 = vld [vmem:[%s165 + $0x4] sm:$0xf]
      %v174 = vld [vmem:[%s165 + $0x8] sm:$0xf]
      %v175 = vld [vmem:[%s165 + $0xc] sm:$0xf]
      %v176 = vld [vmem:[%s165 + $0x10] sm:$0xf]
      %v177 = vld [vmem:[%s165 + $0x14] sm:$0xf]
      %v178 = vld [vmem:[%s165 + $0x18] sm:$0xf]
      %v179 = vld [vmem:[%s165 + $0x1c] sm:$0xf]
      %v180 = vld [vmem:[%s165 + $0x20] sm:$0xf]
      %v181 = vld [vmem:[%s165 + $0x24] sm:$0xf]
      %v182 = vld [vmem:[%s165 + $0x28] sm:$0xf]
      %v183 = vld [vmem:[%s165 + $0x2c] sm:$0xf]
      %v184 = vld [vmem:[%s165 + $0x30] sm:$0xf]
      %v185 = vld [vmem:[%s165 + $0x34] sm:$0xf]
      %v186 = vld [vmem:[%s165 + $0x38] sm:$0xf]
      %v187 = vld [vmem:[%s165 + $0x3c] sm:$0xf]
      %v188 = vld [vmem:[%s165 + $0x40] sm:$0xf]
      %v189 = vld [vmem:[%s165 + $0x44] sm:$0xf]
      %v190 = vld [vmem:[%s165 + $0x48] sm:$0xf]
      %v191 = vld [vmem:[%s165 + $0x4c] sm:$0xf]
      %v192 = vld [vmem:[%s165 + $0x50] sm:$0xf]
      %v193 = vld [vmem:[%s165 + $0x54] sm:$0xf]
      %v194 = vld [vmem:[%s165 + $0x58] sm:$0xf]
      %v195 = vld [vmem:[%s165 + $0x5c] sm:$0xf]
      %v196 = vld [vmem:[%s165 + $0x60] sm:$0xf]
      %v197 = vld [vmem:[%s165 + $0x64] sm:$0xf]
      %v198 = vld [vmem:[%s165 + $0x68] sm:$0xf]
      %v199 = vld [vmem:[%s165 + $0x6c] sm:$0xf]
      %v200 = vld [vmem:[%s165 + $0x70] sm:$0xf]
      %v201 = vld [vmem:[%s165 + $0x74] sm:$0xf]
      %v202 = vld [vmem:[%s165 + $0x78] sm:$0xf]
      %v203 = vld [vmem:[%s165 + $0x7c] sm:$0xf]
      %v204 = vld [vmem:[%s165 + $0x80] sm:$0xf]
      %v205 = vld [vmem:[%s165 + $0x84] sm:$0xf]
      %v206 = vld [vmem:[%s165 + $0x88] sm:$0xf]
      %v207 = vld [vmem:[%s165 + $0x8c] sm:$0xf]
      %v208 = vld [vmem:[%s165 + $0x90] sm:$0xf]
      %v209 = vld [vmem:[%s165 + $0x94] sm:$0xf]
      %v210 = vld [vmem:[%s165 + $0x98] sm:$0xf]
      %v211 = vld [vmem:[%s165 + $0x9c] sm:$0xf]
      %v212 = vld [vmem:[%s165 + $0xa0] sm:$0xf]
      %v213 = vld [vmem:[%s165 + $0xa4] sm:$0xf]
      %v214 = vld [vmem:[%s165 + $0xa8] sm:$0xf]
      %v215 = vld [vmem:[%s165 + $0xac] sm:$0xf]
      %v216 = vld [vmem:[%s165 + $0xb0] sm:$0xf]
      %v217 = vld [vmem:[%s165 + $0xb4] sm:$0xf]
      %v218 = vld [vmem:[%s165 + $0xb8] sm:$0xf]
      %v219 = vld [vmem:[%s165 + $0xbc] sm:$0xf]
      %v220 = vld [vmem:[%s165 + $0xc0] sm:$0xf]
      %v221 = vld [vmem:[%s165 + $0xc4] sm:$0xf]
      %v222 = vld [vmem:[%s165 + $0xc8] sm:$0xf]
      %v223 = vld [vmem:[%s165 + $0xcc] sm:$0xf]
      %v224 = vld [vmem:[%s165 + $0xd0] sm:$0xf]
      %v225 = vld [vmem:[%s165 + $0xd4] sm:$0xf]
      %v226 = vld [vmem:[%s165 + $0xd8] sm:$0xf]
      %v227 = vld [vmem:[%s165 + $0xdc] sm:$0xf]
      %v228 = vld [vmem:[%s165 + $0xe0] sm:$0xf]
      %v229 = vld [vmem:[%s165 + $0xe4] sm:$0xf]
      %v230 = vld [vmem:[%s165 + $0xe8] sm:$0xf]
      %v231 = vld [vmem:[%s165 + $0xec] sm:$0xf]
      %v232 = vld [vmem:[%s165 + $0xf0] sm:$0xf]
      %v233 = vld [vmem:[%s165 + $0xf4] sm:$0xf]
      %v234 = vld [vmem:[%s165 + $0xf8] sm:$0xf]
      %v235 = vld [vmem:[%s165 + $0xfc] sm:$0xf]
      %v236 = vld [vmem:[%s165 + $0x100] sm:$0xf]
      %v237 = vld [vmem:[%s165 + $0x104] sm:$0xf]
      %v238 = vld [vmem:[%s165 + $0x108] sm:$0xf]
      %v239 = vld [vmem:[%s165 + $0x10c] sm:$0xf]
      %v240 = vld [vmem:[%s165 + $0x110] sm:$0xf]
      %v241 = vld [vmem:[%s165 + $0x114] sm:$0xf]
      %v242 = vld [vmem:[%s165 + $0x118] sm:$0xf]
      %v243 = vld [vmem:[%s165 + $0x11c] sm:$0xf]
      %v244 = vld [vmem:[%s165 + $0x120] sm:$0xf]
      %v245 = vld [vmem:[%s165 + $0x124] sm:$0xf]
      %v246 = vld [vmem:[%s165 + $0x128] sm:$0xf]
      %v247 = vld [vmem:[%s165 + $0x12c] sm:$0xf]
      %v248 = vld [vmem:[%s165 + $0x130] sm:$0xf]
      %v249 = vld [vmem:[%s165 + $0x134] sm:$0xf]
      %v250 = vld [vmem:[%s165 + $0x138] sm:$0xf]
      %v251 = vld [vmem:[%s165 + $0x13c] sm:$0xf]
      %v252 = vld [vmem:[%s165 + $0x140] sm:$0xf]
      %v253 = vld [vmem:[%s165 + $0x144] sm:$0xf]
      %v254 = vld [vmem:[%s165 + $0x148] sm:$0xf]
      %v255 = vld [vmem:[%s165 + $0x14c] sm:$0xf]
      %v256 = vld [vmem:[%s165 + $0x150] sm:$0xf]
      %v257 = vld [vmem:[%s165 + $0x154] sm:$0xf]
      %v258 = vld [vmem:[%s165 + $0x158] sm:$0xf]
      %v259 = vld [vmem:[%s165 + $0x15c] sm:$0xf]
      %v260 = vld [vmem:[%s165 + $0x160] sm:$0xf]
      %v261 = vld [vmem:[%s165 + $0x164] sm:$0xf]
      %v262 = vld [vmem:[%s165 + $0x168] sm:$0xf]
      %v263 = vld [vmem:[%s165 + $0x16c] sm:$0xf]
      %v264 = vld [vmem:[%s165 + $0x170] sm:$0xf]
      %v265 = vld [vmem:[%s165 + $0x174] sm:$0xf]
      %v266 = vld [vmem:[%s165 + $0x178] sm:$0xf]
      %v267 = vld [vmem:[%s165 + $0x17c] sm:$0xf]
      %v268 = vld [vmem:[%s165 + $0x180] sm:$0xf]
      %v269 = vld [vmem:[%s165 + $0x184] sm:$0xf]
      %v270 = vld [vmem:[%s165 + $0x188] sm:$0xf]
      %v271 = vld [vmem:[%s165 + $0x18c] sm:$0xf]
      %v272 = vld [vmem:[%s165 + $0x190] sm:$0xf]
      %v273 = vld [vmem:[%s165 + $0x194] sm:$0xf]
      %v274 = vld [vmem:[%s165 + $0x198] sm:$0xf]
      %v275 = vld [vmem:[%s165 + $0x19c] sm:$0xf]
      %v276 = vld [vmem:[%s165 + $0x1a0] sm:$0xf]
      %v277 = vld [vmem:[%s165 + $0x1a4] sm:$0xf]
      %v278 = vld [vmem:[%s165 + $0x1a8] sm:$0xf]
      %v279 = vld [vmem:[%s165 + $0x1ac] sm:$0xf]
      %v280 = vld [vmem:[%s165 + $0x1b0] sm:$0xf]
      %v281 = vld [vmem:[%s165 + $0x1b4] sm:$0xf]
      %v282 = vld [vmem:[%s165 + $0x1b8] sm:$0xf]
      %v283 = vld [vmem:[%s165 + $0x1bc] sm:$0xf]
      %v284 = vld [vmem:[%s165 + $0x1c0] sm:$0xf]
      %v285 = vld [vmem:[%s165 + $0x1c4] sm:$0xf]
      %v286 = vld [vmem:[%s165 + $0x1c8] sm:$0xf]
      %v287 = vld [vmem:[%s165 + $0x1cc] sm:$0xf]
      %v288 = vld [vmem:[%s165 + $0x1d0] sm:$0xf]
      %v289 = vld [vmem:[%s165 + $0x1d4] sm:$0xf]
      %v290 = vld [vmem:[%s165 + $0x1d8] sm:$0xf]
      %v291 = vld [vmem:[%s165 + $0x1dc] sm:$0xf]
      %v292 = vld [vmem:[%s165 + $0x1e0] sm:$0xf]
      %v293 = vld [vmem:[%s165 + $0x1e4] sm:$0xf]
      %v294 = vld [vmem:[%s165 + $0x1e8] sm:$0xf]
      %v295 = vld [vmem:[%s165 + $0x1ec] sm:$0xf]
      %v296 = vld [vmem:[%s165 + $0x1f0] sm:$0xf]
      %v297 = vld [vmem:[%s165 + $0x1f4] sm:$0xf]
      %v298 = vld [vmem:[%s165 + $0x1f8] sm:$0xf]
      %v299 = vld [vmem:[%s165 + $0x1fc] sm:$0xf]
      %v300 = vld [vmem:[%s165 + $0x200] sm:$0xf]
      %v301 = vld [vmem:[%s165 + $0x204] sm:$0xf]
      %v302 = vld [vmem:[%s165 + $0x208] sm:$0xf]
      %v303 = vld [vmem:[%s165 + $0x20c] sm:$0xf]
      %v304 = vld [vmem:[%s165 + $0x210] sm:$0xf]
      %v305 = vld [vmem:[%s165 + $0x214] sm:$0xf]
      %v306 = vld [vmem:[%s165 + $0x218] sm:$0xf]
      %v307 = vld [vmem:[%s165 + $0x21c] sm:$0xf]
      %v308 = vld [vmem:[%s1] sm:$0x3]
      %v309 = vld [vmem:[%s165 + $0x220] sm:$0x1]
      %s310 = scalar_lea.vmem %s1, 2
      %v311 = vld [vmem:[%s310] sm:$0x3]
      %v449 = vunpack.c.l.b16 %v172
      %v450 = vunpack.c.l.b16 %v173
      %v451 = vunpack.c.l.b16 %v174
      %v452 = vunpack.c.l.b16 %v175
      %v453 = vunpack.c.l.b16 %v176
      %v454 = vunpack.c.l.b16 %v177
      %v455 = vunpack.c.l.b16 %v178
      %v456 = vunpack.c.l.b16 %v179
      %v457 = vunpack.c.l.b16 %v180
      %v458 = vunpack.c.l.b16 %v181
      %v459 = vunpack.c.l.b16 %v182
      %v460 = vunpack.c.l.b16 %v183
      %v461 = vunpack.c.l.b16 %v184
      %v462 = vunpack.c.l.b16 %v185
      %v463 = vunpack.c.l.b16 %v186
      %v464 = vunpack.c.l.b16 %v187
      %v465 = vunpack.c.l.b16 %v188
      %v466 = vunpack.c.l.b16 %v189
      %v467 = vunpack.c.l.b16 %v190
      %v468 = vunpack.c.l.b16 %v191
      %v469 = vunpack.c.l.b16 %v192
      %v470 = vunpack.c.l.b16 %v193
      %v471 = vunpack.c.l.b16 %v194
      %v472 = vunpack.c.l.b16 %v195
      %v473 = vunpack.c.l.b16 %v196
      %v474 = vunpack.c.l.b16 %v197
      %v475 = vunpack.c.l.b16 %v198
      %v476 = vunpack.c.l.b16 %v199
      %v477 = vunpack.c.l.b16 %v200
      %v478 = vunpack.c.l.b16 %v201
      %v479 = vunpack.c.l.b16 %v202
      %v480 = vunpack.c.l.b16 %v203
      %v481 = vunpack.c.l.b16 %v204
      %v482 = vunpack.c.l.b16 %v205
      %v483 = vunpack.c.l.b16 %v206
      %v484 = vunpack.c.l.b16 %v207
      %v485 = vunpack.c.l.b16 %v208
      %v486 = vunpack.c.l.b16 %v209
      %v487 = vunpack.c.l.b16 %v210
      %v488 = vunpack.c.l.b16 %v211
      %v489 = vunpack.c.l.b16 %v212
      %v490 = vunpack.c.l.b16 %v213
      %v491 = vunpack.c.l.b16 %v214
      %v492 = vunpack.c.l.b16 %v215
      %v493 = vunpack.c.l.b16 %v216
      %v494 = vunpack.c.l.b16 %v217
      %v495 = vunpack.c.l.b16 %v218
      %v496 = vunpack.c.l.b16 %v219
      %v497 = vunpack.c.l.b16 %v220
      %v498 = vunpack.c.l.b16 %v221
      %v499 = vunpack.c.l.b16 %v222
      %v500 = vunpack.c.l.b16 %v223
      %v501 = vunpack.c.l.b16 %v224
      %v502 = vunpack.c.l.b16 %v225
      %v503 = vunpack.c.l.b16 %v226
      %v504 = vunpack.c.l.b16 %v227
      %v505 = vunpack.c.l.b16 %v228
      %v506 = vunpack.c.l.b16 %v229
      %v507 = vunpack.c.l.b16 %v230
      %v508 = vunpack.c.l.b16 %v231
      %v509 = vunpack.c.l.b16 %v232
      %v510 = vunpack.c.l.b16 %v233
      %v511 = vunpack.c.l.b16 %v234
      %v512 = vunpack.c.l.b16 %v235
      %v513 = vunpack.c.l.b16 %v236
      %v514 = vunpack.c.l.b16 %v237
      %v515 = vunpack.c.l.b16 %v238
      %v516 = vunpack.c.l.b16 %v239
      %v517 = vunpack.c.l.b16 %v240
      %v518 = vunpack.c.l.b16 %v241
      %v519 = vunpack.c.l.b16 %v242
      %v520 = vunpack.c.l.b16 %v243
      %v521 = vunpack.c.l.b16 %v244
      %v522 = vunpack.c.l.b16 %v245
      %v523 = vunpack.c.l.b16 %v246
      %v524 = vunpack.c.l.b16 %v247
      %v525 = vunpack.c.l.b16 %v248
      %v526 = vunpack.c.l.b16 %v249
      %v527 = vunpack.c.l.b16 %v250
      %v528 = vunpack.c.l.b16 %v251
      %v529 = vunpack.c.l.b16 %v252
      %v530 = vunpack.c.l.b16 %v253
      %v531 = vunpack.c.l.b16 %v254
      %v532 = vunpack.c.l.b16 %v255
      %v533 = vunpack.c.l.b16 %v256
      %v534 = vunpack.c.l.b16 %v257
      %v535 = vunpack.c.l.b16 %v258
      %v536 = vunpack.c.l.b16 %v259
      %v537 = vunpack.c.l.b16 %v260
      %v538 = vunpack.c.l.b16 %v261
      %v539 = vunpack.c.l.b16 %v262
      %v540 = vunpack.c.l.b16 %v263
      %v541 = vunpack.c.l.b16 %v264
      %v542 = vunpack.c.l.b16 %v265
      %v543 = vunpack.c.l.b16 %v266
      %v544 = vunpack.c.l.b16 %v267
      %v545 = vunpack.c.l.b16 %v268
      %v546 = vunpack.c.l.b16 %v269
      %v547 = vunpack.c.l.b16 %v270
      %v548 = vunpack.c.l.b16 %v271
      %v549 = vunpack.c.l.b16 %v272
      %v550 = vunpack.c.l.b16 %v273
      %v551 = vunpack.c.l.b16 %v274
      %v552 = vunpack.c.l.b16 %v275
      %v553 = vunpack.c.l.b16 %v276
      %v554 = vunpack.c.l.b16 %v277
      %v555 = vunpack.c.l.b16 %v278
      %v556 = vunpack.c.l.b16 %v279
      %v557 = vunpack.c.l.b16 %v280
      %v558 = vunpack.c.l.b16 %v281
      %v559 = vunpack.c.l.b16 %v282
      %v560 = vunpack.c.l.b16 %v283
      %v561 = vunpack.c.l.b16 %v284
      %v562 = vunpack.c.l.b16 %v285
      %v563 = vunpack.c.l.b16 %v286
      %v564 = vunpack.c.l.b16 %v287
      %v565 = vunpack.c.l.b16 %v288
      %v566 = vunpack.c.l.b16 %v289
      %v567 = vunpack.c.l.b16 %v290
      %v568 = vunpack.c.l.b16 %v291
      %v569 = vunpack.c.l.b16 %v292
      %v570 = vunpack.c.l.b16 %v293
      %v571 = vunpack.c.l.b16 %v294
      %v572 = vunpack.c.l.b16 %v295
      %v573 = vunpack.c.l.b16 %v296
      %v574 = vunpack.c.l.b16 %v297
      %v575 = vunpack.c.l.b16 %v298
      %v576 = vunpack.c.l.b16 %v299
      %v577 = vunpack.c.l.b16 %v300
      %v578 = vunpack.c.l.b16 %v301
      %v579 = vunpack.c.l.b16 %v302
      %v580 = vunpack.c.l.b16 %v303
      %v581 = vunpack.c.l.b16 %v304
      %v582 = vunpack.c.l.b16 %v305
      %v583 = vunpack.c.l.b16 %v306
      %v584 = vunpack.c.l.b16 %v307
      %v585 = vunpack.c.l.b16 %v309
      %v586 = vpack.c.b16 %v450, %v449
      %v587 = vpack.c.b16 %v452, %v451
      %v588 = vpack.c.b16 %v454, %v453
      %v589 = vpack.c.b16 %v456, %v455
      %v590 = vpack.c.b16 %v458, %v457
      %v591 = vpack.c.b16 %v460, %v459
      %v592 = vpack.c.b16 %v462, %v461
      %v593 = vpack.c.b16 %v464, %v463
      %v594 = vpack.c.b16 %v466, %v465
      %v595 = vpack.c.b16 %v468, %v467
      %v596 = vpack.c.b16 %v470, %v469
      %v597 = vpack.c.b16 %v472, %v471
      %v598 = vpack.c.b16 %v474, %v473
      %v599 = vpack.c.b16 %v476, %v475
      %v600 = vpack.c.b16 %v478, %v477
      %v601 = vpack.c.b16 %v480, %v479
      %v602 = vpack.c.b16 %v482, %v481
      %v603 = vpack.c.b16 %v484, %v483
      %v604 = vpack.c.b16 %v486, %v485
      %v605 = vpack.c.b16 %v488, %v487
      %v606 = vpack.c.b16 %v490, %v489
      %v607 = vpack.c.b16 %v492, %v491
      %v608 = vpack.c.b16 %v494, %v493
      %v609 = vpack.c.b16 %v496, %v495
      %v610 = vpack.c.b16 %v498, %v497
      %v611 = vpack.c.b16 %v500, %v499
      %v612 = vpack.c.b16 %v502, %v501
      %v613 = vpack.c.b16 %v504, %v503
      %v614 = vpack.c.b16 %v506, %v505
      %v615 = vpack.c.b16 %v508, %v507
      %v616 = vpack.c.b16 %v510, %v509
      %v617 = vpack.c.b16 %v512, %v511
      %v618 = vpack.c.b16 %v514, %v513
      %v619 = vpack.c.b16 %v516, %v515
      %v620 = vpack.c.b16 %v518, %v517
      %v621 = vpack.c.b16 %v520, %v519
      %v622 = vpack.c.b16 %v522, %v521
      %v623 = vpack.c.b16 %v524, %v523
      %v624 = vpack.c.b16 %v526, %v525
      %v625 = vpack.c.b16 %v528, %v527
      %v626 = vpack.c.b16 %v530, %v529
      %v627 = vpack.c.b16 %v532, %v531
      %v628 = vpack.c.b16 %v534, %v533
      %v629 = vpack.c.b16 %v536, %v535
      %v630 = vpack.c.b16 %v538, %v537
      %v631 = vpack.c.b16 %v540, %v539
      %v632 = vpack.c.b16 %v542, %v541
      %v633 = vpack.c.b16 %v544, %v543
      %v634 = vpack.c.b16 %v546, %v545
      %v635 = vpack.c.b16 %v548, %v547
      %v636 = vpack.c.b16 %v550, %v549
      %v637 = vpack.c.b16 %v552, %v551
      %v638 = vpack.c.b16 %v554, %v553
      %v639 = vpack.c.b16 %v556, %v555
      %v640 = vpack.c.b16 %v558, %v557
      %v641 = vpack.c.b16 %v560, %v559
      %v642 = vpack.c.b16 %v562, %v561
      %v643 = vpack.c.b16 %v564, %v563
      %v644 = vpack.c.b16 %v566, %v565
      %v645 = vpack.c.b16 %v568, %v567
      %v646 = vpack.c.b16 %v570, %v569
      %v647 = vpack.c.b16 %v572, %v571
      %v648 = vpack.c.b16 %v574, %v573
      %v649 = vpack.c.b16 %v576, %v575
      %v650 = vpack.c.b16 %v578, %v577
      %v651 = vpack.c.b16 %v580, %v579
      %v652 = vpack.c.b16 %v582, %v581
      %v653 = vpack.c.b16 %v584, %v583
      %v654 = vpack.c.b16 %v585, %v585
      %vm655 = vsmask.f32 7424
      %v657 = vshrl.u32 %v586, 16
      %v659 = vshll.u32 %v586, 16
      %v661 = vrot.slane %v659, 1
      %v662 = vor.u32 %v657, %v661
      %v664 = vshll.u32 %v587, 16
      %v666 = vrot.slane %v664, 1
      %v667 = vsel %vm655, %v662, %v666
      %v668 = vshrl.u32 %v587, 16
      %v670 = vor.u32 %v668, %v666
      %v672 = vshll.u32 %v588, 16
      %v674 = vrot.slane %v672, 1
      %v675 = vsel %vm655, %v670, %v674
      %v676 = vshrl.u32 %v588, 16
      %v678 = vor.u32 %v676, %v674
      %v680 = vshll.u32 %v589, 16
      %v682 = vrot.slane %v680, 1
      %v683 = vsel %vm655, %v678, %v682
      %v684 = vshrl.u32 %v589, 16
      %v686 = vor.u32 %v684, %v682
      %v688 = vshll.u32 %v590, 16
      %v690 = vrot.slane %v688, 1
      %v691 = vsel %vm655, %v686, %v690
      %v692 = vshrl.u32 %v590, 16
      %v694 = vor.u32 %v692, %v690
      %v696 = vshll.u32 %v591, 16
      %v698 = vrot.slane %v696, 1
      %v699 = vsel %vm655, %v694, %v698
      %v700 = vshrl.u32 %v591, 16
      %v702 = vor.u32 %v700, %v698
      %v704 = vshll.u32 %v592, 16
      %v706 = vrot.slane %v704, 1
      %v707 = vsel %vm655, %v702, %v706
      %v708 = vshrl.u32 %v592, 16
      %v710 = vor.u32 %v708, %v706
      %v712 = vshll.u32 %v593, 16
      %v714 = vrot.slane %v712, 1
      %v715 = vsel %vm655, %v710, %v714
      %v716 = vshrl.u32 %v593, 16
      %v718 = vor.u32 %v716, %v714
      %v720 = vshll.u32 %v594, 16
      %v722 = vrot.slane %v720, 1
      %v723 = vsel %vm655, %v718, %v722
      %v724 = vshrl.u32 %v594, 16
      %v726 = vor.u32 %v724, %v722
      %v728 = vshll.u32 %v595, 16
      %v730 = vrot.slane %v728, 1
      %v731 = vsel %vm655, %v726, %v730
      %v732 = vshrl.u32 %v595, 16
      %v734 = vor.u32 %v732, %v730
      %v736 = vshll.u32 %v596, 16
      %v738 = vrot.slane %v736, 1
      %v739 = vsel %vm655, %v734, %v738
      %v740 = vshrl.u32 %v596, 16
      %v742 = vor.u32 %v740, %v738
      %v744 = vshll.u32 %v597, 16
      %v746 = vrot.slane %v744, 1
      %v747 = vsel %vm655, %v742, %v746
      %v748 = vshrl.u32 %v597, 16
      %v750 = vor.u32 %v748, %v746
      %v752 = vshll.u32 %v598, 16
      %v754 = vrot.slane %v752, 1
      %v755 = vsel %vm655, %v750, %v754
      %v756 = vshrl.u32 %v598, 16
      %v758 = vor.u32 %v756, %v754
      %v760 = vshll.u32 %v599, 16
      %v762 = vrot.slane %v760, 1
      %v763 = vsel %vm655, %v758, %v762
      %v764 = vshrl.u32 %v599, 16
      %v766 = vor.u32 %v764, %v762
      %v768 = vshll.u32 %v600, 16
      %v770 = vrot.slane %v768, 1
      %v771 = vsel %vm655, %v766, %v770
      %v772 = vshrl.u32 %v600, 16
      %v774 = vor.u32 %v772, %v770
      %v776 = vshll.u32 %v601, 16
      %v778 = vrot.slane %v776, 1
      %v779 = vsel %vm655, %v774, %v778
      %v780 = vshrl.u32 %v601, 16
      %v782 = vor.u32 %v780, %v778
      %v784 = vshll.u32 %v602, 16
      %v786 = vrot.slane %v784, 1
      %v787 = vsel %vm655, %v782, %v786
      %v788 = vshrl.u32 %v602, 16
      %v790 = vor.u32 %v788, %v786
      %v792 = vshll.u32 %v603, 16
      %v794 = vrot.slane %v792, 1
      %v795 = vsel %vm655, %v790, %v794
      %v796 = vshrl.u32 %v603, 16
      %v798 = vor.u32 %v796, %v794
      %v800 = vshll.u32 %v604, 16
      %v802 = vrot.slane %v800, 1
      %v803 = vsel %vm655, %v798, %v802
      %v804 = vshrl.u32 %v604, 16
      %v806 = vor.u32 %v804, %v802
      %v808 = vshll.u32 %v605, 16
      %v810 = vrot.slane %v808, 1
      %v811 = vsel %vm655, %v806, %v810
      %v812 = vshrl.u32 %v605, 16
      %v814 = vor.u32 %v812, %v810
      %v816 = vshll.u32 %v606, 16
      %v818 = vrot.slane %v816, 1
      %v819 = vsel %vm655, %v814, %v818
      %v820 = vshrl.u32 %v606, 16
      %v822 = vor.u32 %v820, %v818
      %v824 = vshll.u32 %v607, 16
      %v826 = vrot.slane %v824, 1
      %v827 = vsel %vm655, %v822, %v826
      %v828 = vshrl.u32 %v607, 16
      %v830 = vor.u32 %v828, %v826
      %v832 = vshll.u32 %v608, 16
      %v834 = vrot.slane %v832, 1
      %v835 = vsel %vm655, %v830, %v834
      %v836 = vshrl.u32 %v608, 16
      %v838 = vor.u32 %v836, %v834
      %v840 = vshll.u32 %v609, 16
      %v842 = vrot.slane %v840, 1
      %v843 = vsel %vm655, %v838, %v842
      %v844 = vshrl.u32 %v609, 16
      %v846 = vor.u32 %v844, %v842
      %v848 = vshll.u32 %v610, 16
      %v850 = vrot.slane %v848, 1
      %v851 = vsel %vm655, %v846, %v850
      %v852 = vshrl.u32 %v610, 16
      %v854 = vor.u32 %v852, %v850
      %v856 = vshll.u32 %v611, 16
      %v858 = vrot.slane %v856, 1
      %v859 = vsel %vm655, %v854, %v858
      %v860 = vshrl.u32 %v611, 16
      %v862 = vor.u32 %v860, %v858
      %v864 = vshll.u32 %v612, 16
      %v866 = vrot.slane %v864, 1
      %v867 = vsel %vm655, %v862, %v866
      %v868 = vshrl.u32 %v612, 16
      %v870 = vor.u32 %v868, %v866
      %v872 = vshll.u32 %v613, 16
      %v874 = vrot.slane %v872, 1
      %v875 = vsel %vm655, %v870, %v874
      %v876 = vshrl.u32 %v613, 16
      %v878 = vor.u32 %v876, %v874
      %v880 = vshll.u32 %v614, 16
      %v882 = vrot.slane %v880, 1
      %v883 = vsel %vm655, %v878, %v882
      %v884 = vshrl.u32 %v614, 16
      %v886 = vor.u32 %v884, %v882
      %v888 = vshll.u32 %v615, 16
      %v890 = vrot.slane %v888, 1
      %v891 = vsel %vm655, %v886, %v890
      %v892 = vshrl.u32 %v615, 16
      %v894 = vor.u32 %v892, %v890
      %v896 = vshll.u32 %v616, 16
      %v898 = vrot.slane %v896, 1
      %v899 = vsel %vm655, %v894, %v898
      %v900 = vshrl.u32 %v616, 16
      %v902 = vor.u32 %v900, %v898
      %v904 = vshll.u32 %v617, 16
      %v906 = vrot.slane %v904, 1
      %v907 = vsel %vm655, %v902, %v906
      %v908 = vshrl.u32 %v617, 16
      %v910 = vor.u32 %v908, %v906
      %v912 = vshll.u32 %v618, 16
      %v914 = vrot.slane %v912, 1
      %v915 = vsel %vm655, %v910, %v914
      %v916 = vshrl.u32 %v618, 16
      %v918 = vor.u32 %v916, %v914
      %v920 = vshll.u32 %v619, 16
      %v922 = vrot.slane %v920, 1
      %v923 = vsel %vm655, %v918, %v922
      %v924 = vshrl.u32 %v619, 16
      %v926 = vor.u32 %v924, %v922
      %v928 = vshll.u32 %v620, 16
      %v930 = vrot.slane %v928, 1
      %v931 = vsel %vm655, %v926, %v930
      %v932 = vshrl.u32 %v620, 16
      %v934 = vor.u32 %v932, %v930
      %v936 = vshll.u32 %v621, 16
      %v938 = vrot.slane %v936, 1
      %v939 = vsel %vm655, %v934, %v938
      %v940 = vshrl.u32 %v621, 16
      %v942 = vor.u32 %v940, %v938
      %v944 = vshll.u32 %v622, 16
      %v946 = vrot.slane %v944, 1
      %v947 = vsel %vm655, %v942, %v946
      %v948 = vshrl.u32 %v622, 16
      %v950 = vor.u32 %v948, %v946
      %v952 = vshll.u32 %v623, 16
      %v954 = vrot.slane %v952, 1
      %v955 = vsel %vm655, %v950, %v954
      %v956 = vshrl.u32 %v623, 16
      %v958 = vor.u32 %v956, %v954
      %v960 = vshll.u32 %v624, 16
      %v962 = vrot.slane %v960, 1
      %v963 = vsel %vm655, %v958, %v962
      %v964 = vshrl.u32 %v624, 16
      %v966 = vor.u32 %v964, %v962
      %v968 = vshll.u32 %v625, 16
      %v970 = vrot.slane %v968, 1
      %v971 = vsel %vm655, %v966, %v970
      %v972 = vshrl.u32 %v625, 16
      %v974 = vor.u32 %v972, %v970
      %v976 = vshll.u32 %v626, 16
      %v978 = vrot.slane %v976, 1
      %v979 = vsel %vm655, %v974, %v978
      %v980 = vshrl.u32 %v626, 16
      %v982 = vor.u32 %v980, %v978
      %v984 = vshll.u32 %v627, 16
      %v986 = vrot.slane %v984, 1
      %v987 = vsel %vm655, %v982, %v986
      %v988 = vshrl.u32 %v627, 16
      %v990 = vor.u32 %v988, %v986
      %v992 = vshll.u32 %v628, 16
      %v994 = vrot.slane %v992, 1
      %v995 = vsel %vm655, %v990, %v994
      %v996 = vshrl.u32 %v628, 16
      %v998 = vor.u32 %v996, %v994
      %v1000 = vshll.u32 %v629, 16
      %v1002 = vrot.slane %v1000, 1
      %v1003 = vsel %vm655, %v998, %v1002
      %v1004 = vshrl.u32 %v629, 16
      %v1006 = vor.u32 %v1004, %v1002
      %v1008 = vshll.u32 %v630, 16
      %v1010 = vrot.slane %v1008, 1
      %v1011 = vsel %vm655, %v1006, %v1010
      %v1012 = vshrl.u32 %v630, 16
      %v1014 = vor.u32 %v1012, %v1010
      %v1016 = vshll.u32 %v631, 16
      %v1018 = vrot.slane %v1016, 1
      %v1019 = vsel %vm655, %v1014, %v1018
      %v1020 = vshrl.u32 %v631, 16
      %v1022 = vor.u32 %v1020, %v1018
      %v1024 = vshll.u32 %v632, 16
      %v1026 = vrot.slane %v1024, 1
      %v1027 = vsel %vm655, %v1022, %v1026
      %v1028 = vshrl.u32 %v632, 16
      %v1030 = vor.u32 %v1028, %v1026
      %v1032 = vshll.u32 %v633, 16
      %v1034 = vrot.slane %v1032, 1
      %v1035 = vsel %vm655, %v1030, %v1034
      %v1036 = vshrl.u32 %v633, 16
      %v1038 = vor.u32 %v1036, %v1034
      %v1040 = vshll.u32 %v634, 16
      %v1042 = vrot.slane %v1040, 1
      %v1043 = vsel %vm655, %v1038, %v1042
      %v1044 = vshrl.u32 %v634, 16
      %v1046 = vor.u32 %v1044, %v1042
      %v1048 = vshll.u32 %v635, 16
      %v1050 = vrot.slane %v1048, 1
      %v1051 = vsel %vm655, %v1046, %v1050
      %v1052 = vshrl.u32 %v635, 16
      %v1054 = vor.u32 %v1052, %v1050
      %v1056 = vshll.u32 %v636, 16
      %v1058 = vrot.slane %v1056, 1
      %v1059 = vsel %vm655, %v1054, %v1058
      %v1060 = vshrl.u32 %v636, 16
      %v1062 = vor.u32 %v1060, %v1058
      %v1064 = vshll.u32 %v637, 16
      %v1066 = vrot.slane %v1064, 1
      %v1067 = vsel %vm655, %v1062, %v1066
      %v1068 = vshrl.u32 %v637, 16
      %v1070 = vor.u32 %v1068, %v1066
      %v1072 = vshll.u32 %v638, 16
      %v1074 = vrot.slane %v1072, 1
      %v1075 = vsel %vm655, %v1070, %v1074
      %v1076 = vshrl.u32 %v638, 16
      %v1078 = vor.u32 %v1076, %v1074
      %v1080 = vshll.u32 %v639, 16
      %v1082 = vrot.slane %v1080, 1
      %v1083 = vsel %vm655, %v1078, %v1082
      %v1084 = vshrl.u32 %v639, 16
      %v1086 = vor.u32 %v1084, %v1082
      %v1088 = vshll.u32 %v640, 16
      %v1090 = vrot.slane %v1088, 1
      %v1091 = vsel %vm655, %v1086, %v1090
      %v1092 = vshrl.u32 %v640, 16
      %v1094 = vor.u32 %v1092, %v1090
      %v1096 = vshll.u32 %v641, 16
      %v1098 = vrot.slane %v1096, 1
      %v1099 = vsel %vm655, %v1094, %v1098
      %v1100 = vshrl.u32 %v641, 16
      %v1102 = vor.u32 %v1100, %v1098
      %v1104 = vshll.u32 %v642, 16
      %v1106 = vrot.slane %v1104, 1
      %v1107 = vsel %vm655, %v1102, %v1106
      %v1108 = vshrl.u32 %v642, 16
      %v1110 = vor.u32 %v1108, %v1106
      %v1112 = vshll.u32 %v643, 16
      %v1114 = vrot.slane %v1112, 1
      %v1115 = vsel %vm655, %v1110, %v1114
      %v1116 = vshrl.u32 %v643, 16
      %v1118 = vor.u32 %v1116, %v1114
      %v1120 = vshll.u32 %v644, 16
      %v1122 = vrot.slane %v1120, 1
      %v1123 = vsel %vm655, %v1118, %v1122
      %v1124 = vshrl.u32 %v644, 16
      %v1126 = vor.u32 %v1124, %v1122
      %v1128 = vshll.u32 %v645, 16
      %v1130 = vrot.slane %v1128, 1
      %v1131 = vsel %vm655, %v1126, %v1130
      %v1132 = vshrl.u32 %v645, 16
      %v1134 = vor.u32 %v1132, %v1130
      %v1136 = vshll.u32 %v646, 16
      %v1138 = vrot.slane %v1136, 1
      %v1139 = vsel %vm655, %v1134, %v1138
      %v1140 = vshrl.u32 %v646, 16
      %v1142 = vor.u32 %v1140, %v1138
      %v1144 = vshll.u32 %v647, 16
      %v1146 = vrot.slane %v1144, 1
      %v1147 = vsel %vm655, %v1142, %v1146
      %v1148 = vshrl.u32 %v647, 16
      %v1150 = vor.u32 %v1148, %v1146
      %v1152 = vshll.u32 %v648, 16
      %v1154 = vrot.slane %v1152, 1
      %v1155 = vsel %vm655, %v1150, %v1154
      %v1156 = vshrl.u32 %v648, 16
      %v1158 = vor.u32 %v1156, %v1154
      %v1160 = vshll.u32 %v649, 16
      %v1162 = vrot.slane %v1160, 1
      %v1163 = vsel %vm655, %v1158, %v1162
      %v1164 = vshrl.u32 %v649, 16
      %v1166 = vor.u32 %v1164, %v1162
      %v1168 = vshll.u32 %v650, 16
      %v1170 = vrot.slane %v1168, 1
      %v1171 = vsel %vm655, %v1166, %v1170
      %v1172 = vshrl.u32 %v650, 16
      %v1174 = vor.u32 %v1172, %v1170
      %v1176 = vshll.u32 %v651, 16
      %v1178 = vrot.slane %v1176, 1
      %v1179 = vsel %vm655, %v1174, %v1178
      %v1180 = vshrl.u32 %v651, 16
      %v1182 = vor.u32 %v1180, %v1178
      %v1184 = vshll.u32 %v652, 16
      %v1186 = vrot.slane %v1184, 1
      %v1187 = vsel %vm655, %v1182, %v1186
      %v1188 = vshrl.u32 %v652, 16
      %v1190 = vor.u32 %v1188, %v1186
      %v1192 = vshll.u32 %v653, 16
      %v1194 = vrot.slane %v1192, 1
      %v1195 = vsel %vm655, %v1190, %v1194
      %v1196 = vshrl.u32 %v653, 16
      %v1198 = vor.u32 %v1196, %v1194
      %v1200 = vshll.u32 %v654, 16
      %v1202 = vrot.slane %v1200, 1
      %v1203 = vsel %vm655, %v1198, %v1202
      %vm1204 = vcmask 23552
      %v1206 = vsel %vm1204, %v667, 0
      %v1209 = vsel %vm1204, %v675, 0
      %v1212 = vsel %vm1204, %v683, 0
      %v1215 = vsel %vm1204, %v691, 0
      %v1218 = vsel %vm1204, %v699, 0
      %v1221 = vsel %vm1204, %v707, 0
      %v1224 = vsel %vm1204, %v715, 0
      %v1227 = vsel %vm1204, %v723, 0
      %v1230 = vsel %vm1204, %v731, 0
      %v1233 = vsel %vm1204, %v739, 0
      %v1236 = vsel %vm1204, %v747, 0
      %v1239 = vsel %vm1204, %v755, 0
      %v1242 = vsel %vm1204, %v763, 0
      %v1245 = vsel %vm1204, %v771, 0
      %v1248 = vsel %vm1204, %v779, 0
      %v1251 = vsel %vm1204, %v787, 0
      %v1254 = vsel %vm1204, %v795, 0
      %v1257 = vsel %vm1204, %v803, 0
      %v1260 = vsel %vm1204, %v811, 0
      %v1263 = vsel %vm1204, %v819, 0
      %v1266 = vsel %vm1204, %v827, 0
      %v1269 = vsel %vm1204, %v835, 0
      %v1272 = vsel %vm1204, %v843, 0
      %v1275 = vsel %vm1204, %v851, 0
      %v1278 = vsel %vm1204, %v859, 0
      %v1281 = vsel %vm1204, %v867, 0
      %v1284 = vsel %vm1204, %v875, 0
      %v1287 = vsel %vm1204, %v883, 0
      %v1290 = vsel %vm1204, %v891, 0
      %v1293 = vsel %vm1204, %v899, 0
      %v1296 = vsel %vm1204, %v907, 0
      %v1299 = vsel %vm1204, %v915, 0
      %v1302 = vsel %vm1204, %v923, 0
      %v1305 = vsel %vm1204, %v931, 0
      %v1308 = vsel %vm1204, %v939, 0
      %v1311 = vsel %vm1204, %v947, 0
      %v1314 = vsel %vm1204, %v955, 0
      %v1317 = vsel %vm1204, %v963, 0
      %v1320 = vsel %vm1204, %v971, 0
      %v1323 = vsel %vm1204, %v979, 0
      %v1326 = vsel %vm1204, %v987, 0
      %v1329 = vsel %vm1204, %v995, 0
      %v1332 = vsel %vm1204, %v1003, 0
      %v1335 = vsel %vm1204, %v1011, 0
      %v1338 = vsel %vm1204, %v1019, 0
      %v1341 = vsel %vm1204, %v1027, 0
      %v1344 = vsel %vm1204, %v1035, 0
      %v1347 = vsel %vm1204, %v1043, 0
      %v1350 = vsel %vm1204, %v1051, 0
      %v1353 = vsel %vm1204, %v1059, 0
      %v1356 = vsel %vm1204, %v1067, 0
      %v1359 = vsel %vm1204, %v1075, 0
      %v1362 = vsel %vm1204, %v1083, 0
      %v1365 = vsel %vm1204, %v1091, 0
      %v1368 = vsel %vm1204, %v1099, 0
      %v1371 = vsel %vm1204, %v1107, 0
      %v1374 = vsel %vm1204, %v1115, 0
      %v1377 = vsel %vm1204, %v1123, 0
      %v1380 = vsel %vm1204, %v1131, 0
      %v1383 = vsel %vm1204, %v1139, 0
      %v1386 = vsel %vm1204, %v1147, 0
      %v1389 = vsel %vm1204, %v1155, 0
      %v1392 = vsel %vm1204, %v1163, 0
      %v1395 = vsel %vm1204, %v1171, 0
      %v1398 = vsel %vm1204, %v1179, 0
      %v1401 = vsel %vm1204, %v1187, 0
      %v1404 = vsel %vm1204, %v1195, 0
      %v1407 = vsel %vm1204, %v1203, 0
      %vm1409 = vcmask 1040384
      %vm1410 = vcmask 1041408
      %v1411 = vsel %vm1409, 4294967295, 65535
      %v1412 = vsel %vm1410, %v1411, 0
      %v1414 = vand.u32 %v311, %v1412
      %1416 = vmatprep.subr.bf16.mxu0 0
      %1417 = vmatpush1.bf16.msra.mxu0 %v1414
      %1418 = vmatprep.subr.bf16.mxu0 0
      %1419 = vmatpush1.bf16.msra.mxu0 0
      %1420 = vmatprep.subr.bf16.mxu0 0
      %1421 = vmatpush1.bf16.msra.mxu0 0
      %1422 = vmatprep.subr.bf16.mxu0 0
      %1423 = vmatpush1.bf16.msra.mxu0 0
      %1424 = vmatprep.subr.bf16.mxu0 0
      %1425 = vmatpush1.bf16.msra.mxu0 0
      %1426 = vmatprep.subr.bf16.mxu0 0
      %1427 = vmatpush1.bf16.msra.mxu0 0
      %1428 = vmatprep.subr.bf16.mxu0 0
      %1429 = vmatpush1.bf16.msra.mxu0 0
      %1430 = vmatprep.subr.bf16.mxu0 0
      %1431 = vmatpush1.bf16.msra.mxu0 0
      %1432 = vmatprep.subr.bf16.mxu0 0
      %1433 = vmatpush1.bf16.msra.mxu0 0
      %1434 = vmatprep.subr.bf16.mxu0 0
      %1435 = vmatpush1.bf16.msra.mxu0 0
      %1436 = vmatprep.subr.bf16.mxu0 0
      %1437 = vmatpush1.bf16.msra.mxu0 0
      %1438 = vmatprep.subr.bf16.mxu0 0
      %1439 = vmatpush1.bf16.msra.mxu0 0
      %1440 = vmatprep.subr.bf16.mxu0 0
      %1441 = vmatpush1.bf16.msra.mxu0 0
      %1442 = vmatprep.subr.bf16.mxu0 0
      %1443 = vmatpush1.bf16.msra.mxu0 0
      %1444 = vmatprep.subr.bf16.mxu0 0
      %1445 = vmatpush1.bf16.msra.mxu0 0
      %1446 = vmatprep.subr.bf16.mxu0 0
      %1447 = vmatpush1.bf16.msra.mxu0 0
      %1448 = vmatprep.mubr.bf16.mxu0 0
      %1449 = vmatmul.mubr.bf16.gmra.mrb[0].mxu0 %v1206
      %v1450 = vpop.f32.mrb[0].mxu0
      %v1451 = vadd.f32 0.0, %v1450
      %v1452 = vpop.f32.mrb[0].mxu0
      %v1453 = vpop.f32.mrb[0].mxu0
      %v1454 = vadd.f32 0.0, %v1453
      %v1455 = vpop.f32.mrb[0].mxu0
      %1456 = vmatprep.mubr.bf16.mxu0 0
      %1457 = vmatmul.mubr.bf16.gmra.mrb[0].mxu0 %v1209
      %v1458 = vpop.f32.mrb[0].mxu0
      %v1459 = vadd.f32 0.0, %v1458
      %v1460 = vpop.f32.mrb[0].mxu0
      %v1461 = vpop.f32.mrb[0].mxu0
      %v1462 = vadd.f32 0.0, %v1461
      %v1463 = vpop.f32.mrb[0].mxu0
      %1464 = vmatprep.mubr.bf16.mxu0 0
      %1465 = vmatmul.mubr.bf16.gmra.mrb[0].mxu0 %v1212
      %v1466 = vpop.f32.mrb[0].mxu0
      %v1467 = vadd.f32 0.0, %v1466
      %v1468 = vpop.f32.mrb[0].mxu0
      %v1469 = vpop.f32.mrb[0].mxu0
      %v1470 = vadd.f32 0.0, %v1469
      %v1471 = vpop.f32.mrb[0].mxu0
      %1472 = vmatprep.mubr.bf16.mxu0 0
      %1473 = vmatmul.mubr.bf16.gmra.mrb[0].mxu0 %v1215
      %v1474 = vpop.f32.mrb[0].mxu0
      %v1475 = vadd.f32 0.0, %v1474
      %v1476 = vpop.f32.mrb[0].mxu0
      %v1477 = vpop.f32.mrb[0].mxu0
      %v1478 = vadd.f32 0.0, %v1477
      %v1479 = vpop.f32.mrb[0].mxu0
      %1480 = vmatprep.mubr.bf16.mxu0 0
      %1481 = vmatmul.mubr.bf16.gmra.mrb[0].mxu0 %v1218
      %v1482 = vpop.f32.mrb[0].mxu0
      %v1483 = vadd.f32 0.0, %v1482
      %v1484 = vpop.f32.mrb[0].mxu0
      %v1485 = vpop.f32.mrb[0].mxu0
      %v1486 = vadd.f32 0.0, %v1485
      %v1487 = vpop.f32.mrb[0].mxu0
      %1488 = vmatprep.mubr.bf16.mxu0 0
      %1489 = vmatmul.mubr.bf16.gmra.mrb[0].mxu0 %v1221
      %v1490 = vpop.f32.mrb[0].mxu0
      %v1491 = vadd.f32 0.0, %v1490
      %v1492 = vpop.f32.mrb[0].mxu0
      %v1493 = vpop.f32.mrb[0].mxu0
      %v1494 = vadd.f32 0.0, %v1493
      %v1495 = vpop.f32.mrb[0].mxu0
      %1496 = vmatprep.mubr.bf16.mxu0 0
      %1497 = vmatmul.mubr.bf16.gmra.mrb[0].mxu0 %v1224
      %v1498 = vpop.f32.mrb[0].mxu0
      %v1499 = vadd.f32 0.0, %v1498
      %v1500 = vpop.f32.mrb[0].mxu0
      %v1501 = vpop.f32.mrb[0].mxu0
      %v1502 = vadd.f32 0.0, %v1501
      %v1503 = vpop.f32.mrb[0].mxu0
      %1504 = vmatprep.mubr.bf16.mxu0 0
      %1505 = vmatmul.mubr.bf16.gmra.mrb[0].mxu0 %v1227
      %v1506 = vpop.f32.mrb[0].mxu0
      %v1507 = vadd.f32 0.0, %v1506
      %v1508 = vpop.f32.mrb[0].mxu0
      %v1509 = vpop.f32.mrb[0].mxu0
      %v1510 = vadd.f32 0.0, %v1509
      %v1511 = vpop.f32.mrb[0].mxu0
      %1512 = vmatprep.mubr.bf16.mxu0 0
      %1513 = vmatmul.mubr.bf16.gmra.mrb[0].mxu0 %v1230
      %v1514 = vpop.f32.mrb[0].mxu0
      %v1515 = vadd.f32 0.0, %v1514
      %v1516 = vpop.f32.mrb[0].mxu0
      %v1517 = vpop.f32.mrb[0].mxu0
      %v1518 = vadd.f32 0.0, %v1517
      %v1519 = vpop.f32.mrb[0].mxu0
      %1520 = vmatprep.mubr.bf16.mxu0 0
      %1521 = vmatmul.mubr.bf16.gmra.mrb[0].mxu0 %v1233
      %v1522 = vpop.f32.mrb[0].mxu0
      %v1523 = vadd.f32 0.0, %v1522
      %v1524 = vpop.f32.mrb[0].mxu0
      %v1525 = vpop.f32.mrb[0].mxu0
      %v1526 = vadd.f32 0.0, %v1525
      %v1527 = vpop.f32.mrb[0].mxu0
      %1528 = vmatprep.mubr.bf16.mxu0 0
      %1529 = vmatmul.mubr.bf16.gmra.mrb[0].mxu0 %v1236
      %v1530 = vpop.f32.mrb[0].mxu0
      %v1531 = vadd.f32 0.0, %v1530
      %v1532 = vpop.f32.mrb[0].mxu0
      %v1533 = vpop.f32.mrb[0].mxu0
      %v1534 = vadd.f32 0.0, %v1533
      %v1535 = vpop.f32.mrb[0].mxu0
      %1536 = vmatprep.mubr.bf16.mxu0 0
      %1537 = vmatmul.mubr.bf16.gmra.mrb[0].mxu0 %v1239
      %v1538 = vpop.f32.mrb[0].mxu0
      %v1539 = vadd.f32 0.0, %v1538
      %v1540 = vpop.f32.mrb[0].mxu0
      %v1541 = vpop.f32.mrb[0].mxu0
      %v1542 = vadd.f32 0.0, %v1541
      %v1543 = vpop.f32.mrb[0].mxu0
      %1544 = vmatprep.mubr.bf16.mxu0 0
      %1545 = vmatmul.mubr.bf16.gmra.mrb[0].mxu0 %v1242
      %v1546 = vpop.f32.mrb[0].mxu0
      %v1547 = vadd.f32 0.0, %v1546
      %v1548 = vpop.f32.mrb[0].mxu0
      %v1549 = vpop.f32.mrb[0].mxu0
      %v1550 = vadd.f32 0.0, %v1549
      %v1551 = vpop.f32.mrb[0].mxu0
      %1552 = vmatprep.mubr.bf16.mxu0 0
      %1553 = vmatmul.mubr.bf16.gmra.mrb[0].mxu0 %v1245
      %v1554 = vpop.f32.mrb[0].mxu0
      %v1555 = vadd.f32 0.0, %v1554
      %v1556 = vpop.f32.mrb[0].mxu0
      %v1557 = vpop.f32.mrb[0].mxu0
      %v1558 = vadd.f32 0.0, %v1557
      %v1559 = vpop.f32.mrb[0].mxu0
      %1560 = vmatprep.mubr.bf16.mxu0 0
      %1561 = vmatmul.mubr.bf16.gmra.mrb[0].mxu0 %v1248
      %v1562 = vpop.f32.mrb[0].mxu0
      %v1563 = vadd.f32 0.0, %v1562
      %v1564 = vpop.f32.mrb[0].mxu0
      %v1565 = vpop.f32.mrb[0].mxu0
      %v1566 = vadd.f32 0.0, %v1565
      %v1567 = vpop.f32.mrb[0].mxu0
      %1568 = vmatprep.mubr.bf16.mxu0 0
      %1569 = vmatmul.mubr.bf16.gmra.mrb[0].mxu0 %v1251
      %v1570 = vpop.f32.mrb[0].mxu0
      %v1571 = vadd.f32 0.0, %v1570
      %v1572 = vpop.f32.mrb[0].mxu0
      %v1573 = vpop.f32.mrb[0].mxu0
      %v1574 = vadd.f32 0.0, %v1573
      %v1575 = vpop.f32.mrb[0].mxu0
      %1576 = vmatprep.mubr.bf16.mxu0 0
      %1577 = vmatmul.mubr.bf16.gmra.mrb[0].mxu0 %v1254
      %v1578 = vpop.f32.mrb[0].mxu0
      %v1579 = vadd.f32 0.0, %v1578
      %v1580 = vpop.f32.mrb[0].mxu0
      %v1581 = vpop.f32.mrb[0].mxu0
      %v1582 = vadd.f32 0.0, %v1581
      %v1583 = vpop.f32.mrb[0].mxu0
      %1584 = vmatprep.mubr.bf16.mxu0 0
      %1585 = vmatmul.mubr.bf16.gmra.mrb[0].mxu0 %v1257
      %v1586 = vpop.f32.mrb[0].mxu0
      %v1587 = vadd.f32 0.0, %v1586
      %v1588 = vpop.f32.mrb[0].mxu0
      %v1589 = vpop.f32.mrb[0].mxu0
      %v1590 = vadd.f32 0.0, %v1589
      %v1591 = vpop.f32.mrb[0].mxu0
      %1592 = vmatprep.mubr.bf16.mxu0 0
      %1593 = vmatmul.mubr.bf16.gmra.mrb[0].mxu0 %v1260
      %v1594 = vpop.f32.mrb[0].mxu0
      %v1595 = vadd.f32 0.0, %v1594
      %v1596 = vpop.f32.mrb[0].mxu0
      %v1597 = vpop.f32.mrb[0].mxu0
      %v1598 = vadd.f32 0.0, %v1597
      %v1599 = vpop.f32.mrb[0].mxu0
      %1600 = vmatprep.mubr.bf16.mxu0 0
      %1601 = vmatmul.mubr.bf16.gmra.mrb[0].mxu0 %v1263
      %v1602 = vpop.f32.mrb[0].mxu0
      %v1603 = vadd.f32 0.0, %v1602
      %v1604 = vpop.f32.mrb[0].mxu0
      %v1605 = vpop.f32.mrb[0].mxu0
      %v1606 = vadd.f32 0.0, %v1605
      %v1607 = vpop.f32.mrb[0].mxu0
      %1608 = vmatprep.mubr.bf16.mxu0 0
      %1609 = vmatmul.mubr.bf16.gmra.mrb[0].mxu0 %v1266
      %v1610 = vpop.f32.mrb[0].mxu0
      %v1611 = vadd.f32 0.0, %v1610
      %v1612 = vpop.f32.mrb[0].mxu0
      %v1613 = vpop.f32.mrb[0].mxu0
      %v1614 = vadd.f32 0.0, %v1613
      %v1615 = vpop.f32.mrb[0].mxu0
      %1616 = vmatprep.mubr.bf16.mxu0 0
      %1617 = vmatmul.mubr.bf16.gmra.mrb[0].mxu0 %v1269
      %v1618 = vpop.f32.mrb[0].mxu0
      %v1619 = vadd.f32 0.0, %v1618
      %v1620 = vpop.f32.mrb[0].mxu0
      %v1621 = vpop.f32.mrb[0].mxu0
      %v1622 = vadd.f32 0.0, %v1621
      %v1623 = vpop.f32.mrb[0].mxu0
      %1624 = vmatprep.mubr.bf16.mxu0 0
      %1625 = vmatmul.mubr.bf16.gmra.mrb[0].mxu0 %v1272
      %v1626 = vpop.f32.mrb[0].mxu0
      %v1627 = vadd.f32 0.0, %v1626
      %v1628 = vpop.f32.mrb[0].mxu0
      %v1629 = vpop.f32.mrb[0].mxu0
      %v1630 = vadd.f32 0.0, %v1629
      %v1631 = vpop.f32.mrb[0].mxu0
      %1632 = vmatprep.mubr.bf16.mxu0 0
      %1633 = vmatmul.mubr.bf16.gmra.mrb[0].mxu0 %v1275
      %v1634 = vpop.f32.mrb[0].mxu0
      %v1635 = vadd.f32 0.0, %v1634
      %v1636 = vpop.f32.mrb[0].mxu0
      %v1637 = vpop.f32.mrb[0].mxu0
      %v1638 = vadd.f32 0.0, %v1637
      %v1639 = vpop.f32.mrb[0].mxu0
      %1640 = vmatprep.mubr.bf16.mxu0 0
      %1641 = vmatmul.mubr.bf16.gmra.mrb[0].mxu0 %v1278
      %v1642 = vpop.f32.mrb[0].mxu0
      %v1643 = vadd.f32 0.0, %v1642
      %v1644 = vpop.f32.mrb[0].mxu0
      %v1645 = vpop.f32.mrb[0].mxu0
      %v1646 = vadd.f32 0.0, %v1645
      %v1647 = vpop.f32.mrb[0].mxu0
      %1648 = vmatprep.mubr.bf16.mxu0 0
      %1649 = vmatmul.mubr.bf16.gmra.mrb[0].mxu0 %v1281
      %v1650 = vpop.f32.mrb[0].mxu0
      %v1651 = vadd.f32 0.0, %v1650
      %v1652 = vpop.f32.mrb[0].mxu0
      %v1653 = vpop.f32.mrb[0].mxu0
      %v1654 = vadd.f32 0.0, %v1653
      %v1655 = vpop.f32.mrb[0].mxu0
      %1656 = vmatprep.mubr.bf16.mxu0 0
      %1657 = vmatmul.mubr.bf16.gmra.mrb[0].mxu0 %v1284
      %v1658 = vpop.f32.mrb[0].mxu0
      %v1659 = vadd.f32 0.0, %v1658
      %v1660 = vpop.f32.mrb[0].mxu0
      %v1661 = vpop.f32.mrb[0].mxu0
      %v1662 = vadd.f32 0.0, %v1661
      %v1663 = vpop.f32.mrb[0].mxu0
      %1664 = vmatprep.mubr.bf16.mxu0 0
      %1665 = vmatmul.mubr.bf16.gmra.mrb[0].mxu0 %v1287
      %v1666 = vpop.f32.mrb[0].mxu0
      %v1667 = vadd.f32 0.0, %v1666
      %v1668 = vpop.f32.mrb[0].mxu0
      %v1669 = vpop.f32.mrb[0].mxu0
      %v1670 = vadd.f32 0.0, %v1669
      %v1671 = vpop.f32.mrb[0].mxu0
      %1672 = vmatprep.mubr.bf16.mxu0 0
      %1673 = vmatmul.mubr.bf16.gmra.mrb[0].mxu0 %v1290
      %v1674 = vpop.f32.mrb[0].mxu0
      %v1675 = vadd.f32 0.0, %v1674
      %v1676 = vpop.f32.mrb[0].mxu0
      %v1677 = vpop.f32.mrb[0].mxu0
      %v1678 = vadd.f32 0.0, %v1677
      %v1679 = vpop.f32.mrb[0].mxu0
      %1680 = vmatprep.mubr.bf16.mxu0 0
      %1681 = vmatmul.mubr.bf16.gmra.mrb[0].mxu0 %v1293
      %v1682 = vpop.f32.mrb[0].mxu0
      %v1683 = vadd.f32 0.0, %v1682
      %v1684 = vpop.f32.mrb[0].mxu0
      %v1685 = vpop.f32.mrb[0].mxu0
      %v1686 = vadd.f32 0.0, %v1685
      %v1687 = vpop.f32.mrb[0].mxu0
      %1688 = vmatprep.mubr.bf16.mxu0 0
      %1689 = vmatmul.mubr.bf16.gmra.mrb[0].mxu0 %v1296
      %v1690 = vpop.f32.mrb[0].mxu0
      %v1691 = vadd.f32 0.0, %v1690
      %v1692 = vpop.f32.mrb[0].mxu0
      %v1693 = vpop.f32.mrb[0].mxu0
      %v1694 = vadd.f32 0.0, %v1693
      %v1695 = vpop.f32.mrb[0].mxu0
      %1696 = vmatprep.mubr.bf16.mxu0 0
      %1697 = vmatmul.mubr.bf16.gmra.mrb[0].mxu0 %v1299
      %v1698 = vpop.f32.mrb[0].mxu0
      %v1699 = vadd.f32 0.0, %v1698
      %v1700 = vpop.f32.mrb[0].mxu0
      %v1701 = vpop.f32.mrb[0].mxu0
      %v1702 = vadd.f32 0.0, %v1701
      %v1703 = vpop.f32.mrb[0].mxu0
      %1704 = vmatprep.mubr.bf16.mxu0 0
      %1705 = vmatmul.mubr.bf16.gmra.mrb[0].mxu0 %v1302
      %v1706 = vpop.f32.mrb[0].mxu0
      %v1707 = vadd.f32 0.0, %v1706
      %v1708 = vpop.f32.mrb[0].mxu0
      %v1709 = vpop.f32.mrb[0].mxu0
      %v1710 = vadd.f32 0.0, %v1709
      %v1711 = vpop.f32.mrb[0].mxu0
      %1712 = vmatprep.mubr.bf16.mxu0 0
      %1713 = vmatmul.mubr.bf16.gmra.mrb[0].mxu0 %v1305
      %v1714 = vpop.f32.mrb[0].mxu0
      %v1715 = vadd.f32 0.0, %v1714
      %v1716 = vpop.f32.mrb[0].mxu0
      %v1717 = vpop.f32.mrb[0].mxu0
      %v1718 = vadd.f32 0.0, %v1717
      %v1719 = vpop.f32.mrb[0].mxu0
      %1720 = vmatprep.mubr.bf16.mxu0 0
      %1721 = vmatmul.mubr.bf16.gmra.mrb[0].mxu0 %v1308
      %v1722 = vpop.f32.mrb[0].mxu0
      %v1723 = vadd.f32 0.0, %v1722
      %v1724 = vpop.f32.mrb[0].mxu0
      %v1725 = vpop.f32.mrb[0].mxu0
      %v1726 = vadd.f32 0.0, %v1725
      %v1727 = vpop.f32.mrb[0].mxu0
      %1728 = vmatprep.mubr.bf16.mxu0 0
      %1729 = vmatmul.mubr.bf16.gmra.mrb[0].mxu0 %v1311
      %v1730 = vpop.f32.mrb[0].mxu0
      %v1731 = vadd.f32 0.0, %v1730
      %v1732 = vpop.f32.mrb[0].mxu0
      %v1733 = vpop.f32.mrb[0].mxu0
      %v1734 = vadd.f32 0.0, %v1733
      %v1735 = vpop.f32.mrb[0].mxu0
      %1736 = vmatprep.mubr.bf16.mxu0 0
      %1737 = vmatmul.mubr.bf16.gmra.mrb[0].mxu0 %v1314
      %v1738 = vpop.f32.mrb[0].mxu0
      %v1739 = vadd.f32 0.0, %v1738
      %v1740 = vpop.f32.mrb[0].mxu0
      %v1741 = vpop.f32.mrb[0].mxu0
      %v1742 = vadd.f32 0.0, %v1741
      %v1743 = vpop.f32.mrb[0].mxu0
      %1744 = vmatprep.mubr.bf16.mxu0 0
      %1745 = vmatmul.mubr.bf16.gmra.mrb[0].mxu0 %v1317
      %v1746 = vpop.f32.mrb[0].mxu0
      %v1747 = vadd.f32 0.0, %v1746
      %v1748 = vpop.f32.mrb[0].mxu0
      %v1749 = vpop.f32.mrb[0].mxu0
      %v1750 = vadd.f32 0.0, %v1749
      %v1751 = vpop.f32.mrb[0].mxu0
      %1752 = vmatprep.mubr.bf16.mxu0 0
      %1753 = vmatmul.mubr.bf16.gmra.mrb[0].mxu0 %v1320
      %v1754 = vpop.f32.mrb[0].mxu0
      %v1755 = vadd.f32 0.0, %v1754
      %v1756 = vpop.f32.mrb[0].mxu0
      %v1757 = vpop.f32.mrb[0].mxu0
      %v1758 = vadd.f32 0.0, %v1757
      %v1759 = vpop.f32.mrb[0].mxu0
      %1760 = vmatprep.mubr.bf16.mxu0 0
      %1761 = vmatmul.mubr.bf16.gmra.mrb[0].mxu0 %v1323
      %v1762 = vpop.f32.mrb[0].mxu0
      %v1763 = vadd.f32 0.0, %v1762
      %v1764 = vpop.f32.mrb[0].mxu0
      %v1765 = vpop.f32.mrb[0].mxu0
      %v1766 = vadd.f32 0.0, %v1765
      %v1767 = vpop.f32.mrb[0].mxu0
      %1768 = vmatprep.mubr.bf16.mxu0 0
      %1769 = vmatmul.mubr.bf16.gmra.mrb[0].mxu0 %v1326
      %v1770 = vpop.f32.mrb[0].mxu0
      %v1771 = vadd.f32 0.0, %v1770
      %v1772 = vpop.f32.mrb[0].mxu0
      %v1773 = vpop.f32.mrb[0].mxu0
      %v1774 = vadd.f32 0.0, %v1773
      %v1775 = vpop.f32.mrb[0].mxu0
      %1776 = vmatprep.mubr.bf16.mxu0 0
      %1777 = vmatmul.mubr.bf16.gmra.mrb[0].mxu0 %v1329
      %v1778 = vpop.f32.mrb[0].mxu0
      %v1779 = vadd.f32 0.0, %v1778
      %v1780 = vpop.f32.mrb[0].mxu0
      %v1781 = vpop.f32.mrb[0].mxu0
      %v1782 = vadd.f32 0.0, %v1781
      %v1783 = vpop.f32.mrb[0].mxu0
      %1784 = vmatprep.mubr.bf16.mxu0 0
      %1785 = vmatmul.mubr.bf16.gmra.mrb[0].mxu0 %v1332
      %v1786 = vpop.f32.mrb[0].mxu0
      %v1787 = vadd.f32 0.0, %v1786
      %v1788 = vpop.f32.mrb[0].mxu0
      %v1789 = vpop.f32.mrb[0].mxu0
      %v1790 = vadd.f32 0.0, %v1789
      %v1791 = vpop.f32.mrb[0].mxu0
      %1792 = vmatprep.mubr.bf16.mxu0 0
      %1793 = vmatmul.mubr.bf16.gmra.mrb[0].mxu0 %v1335
      %v1794 = vpop.f32.mrb[0].mxu0
      %v1795 = vadd.f32 0.0, %v1794
      %v1796 = vpop.f32.mrb[0].mxu0
      %v1797 = vpop.f32.mrb[0].mxu0
      %v1798 = vadd.f32 0.0, %v1797
      %v1799 = vpop.f32.mrb[0].mxu0
      %1800 = vmatprep.mubr.bf16.mxu0 0
      %1801 = vmatmul.mubr.bf16.gmra.mrb[0].mxu0 %v1338
      %v1802 = vpop.f32.mrb[0].mxu0
      %v1803 = vadd.f32 0.0, %v1802
      %v1804 = vpop.f32.mrb[0].mxu0
      %v1805 = vpop.f32.mrb[0].mxu0
      %v1806 = vadd.f32 0.0, %v1805
      %v1807 = vpop.f32.mrb[0].mxu0
      %1808 = vmatprep.mubr.bf16.mxu0 0
      %1809 = vmatmul.mubr.bf16.gmra.mrb[0].mxu0 %v1341
      %v1810 = vpop.f32.mrb[0].mxu0
      %v1811 = vadd.f32 0.0, %v1810
      %v1812 = vpop.f32.mrb[0].mxu0
      %v1813 = vpop.f32.mrb[0].mxu0
      %v1814 = vadd.f32 0.0, %v1813
      %v1815 = vpop.f32.mrb[0].mxu0
      %1816 = vmatprep.mubr.bf16.mxu0 0
      %1817 = vmatmul.mubr.bf16.gmra.mrb[0].mxu0 %v1344
      %v1818 = vpop.f32.mrb[0].mxu0
      %v1819 = vadd.f32 0.0, %v1818
      %v1820 = vpop.f32.mrb[0].mxu0
      %v1821 = vpop.f32.mrb[0].mxu0
      %v1822 = vadd.f32 0.0, %v1821
      %v1823 = vpop.f32.mrb[0].mxu0
      %1824 = vmatprep.mubr.bf16.mxu0 0
      %1825 = vmatmul.mubr.bf16.gmra.mrb[0].mxu0 %v1347
      %v1826 = vpop.f32.mrb[0].mxu0
      %v1827 = vadd.f32 0.0, %v1826
      %v1828 = vpop.f32.mrb[0].mxu0
      %v1829 = vpop.f32.mrb[0].mxu0
      %v1830 = vadd.f32 0.0, %v1829
      %v1831 = vpop.f32.mrb[0].mxu0
      %1832 = vmatprep.mubr.bf16.mxu0 0
      %1833 = vmatmul.mubr.bf16.gmra.mrb[0].mxu0 %v1350
      %v1834 = vpop.f32.mrb[0].mxu0
      %v1835 = vadd.f32 0.0, %v1834
      %v1836 = vpop.f32.mrb[0].mxu0
      %v1837 = vpop.f32.mrb[0].mxu0
      %v1838 = vadd.f32 0.0, %v1837
      %v1839 = vpop.f32.mrb[0].mxu0
      %1840 = vmatprep.mubr.bf16.mxu0 0
      %1841 = vmatmul.mubr.bf16.gmra.mrb[0].mxu0 %v1353
      %v1842 = vpop.f32.mrb[0].mxu0
      %v1843 = vadd.f32 0.0, %v1842
      %v1844 = vpop.f32.mrb[0].mxu0
      %v1845 = vpop.f32.mrb[0].mxu0
      %v1846 = vadd.f32 0.0, %v1845
      %v1847 = vpop.f32.mrb[0].mxu0
      %1848 = vmatprep.mubr.bf16.mxu0 0
      %1849 = vmatmul.mubr.bf16.gmra.mrb[0].mxu0 %v1356
      %v1850 = vpop.f32.mrb[0].mxu0
      %v1851 = vadd.f32 0.0, %v1850
      %v1852 = vpop.f32.mrb[0].mxu0
      %v1853 = vpop.f32.mrb[0].mxu0
      %v1854 = vadd.f32 0.0, %v1853
      %v1855 = vpop.f32.mrb[0].mxu0
      %1856 = vmatprep.mubr.bf16.mxu0 0
      %1857 = vmatmul.mubr.bf16.gmra.mrb[0].mxu0 %v1359
      %v1858 = vpop.f32.mrb[0].mxu0
      %v1859 = vadd.f32 0.0, %v1858
      %v1860 = vpop.f32.mrb[0].mxu0
      %v1861 = vpop.f32.mrb[0].mxu0
      %v1862 = vadd.f32 0.0, %v1861
      %v1863 = vpop.f32.mrb[0].mxu0
      %1864 = vmatprep.mubr.bf16.mxu0 0
      %1865 = vmatmul.mubr.bf16.gmra.mrb[0].mxu0 %v1362
      %v1866 = vpop.f32.mrb[0].mxu0
      %v1867 = vadd.f32 0.0, %v1866
      %v1868 = vpop.f32.mrb[0].mxu0
      %v1869 = vpop.f32.mrb[0].mxu0
      %v1870 = vadd.f32 0.0, %v1869
      %v1871 = vpop.f32.mrb[0].mxu0
      %1872 = vmatprep.mubr.bf16.mxu0 0
      %1873 = vmatmul.mubr.bf16.gmra.mrb[0].mxu0 %v1365
      %v1874 = vpop.f32.mrb[0].mxu0
      %v1875 = vadd.f32 0.0, %v1874
      %v1876 = vpop.f32.mrb[0].mxu0
      %v1877 = vpop.f32.mrb[0].mxu0
      %v1878 = vadd.f32 0.0, %v1877
      %v1879 = vpop.f32.mrb[0].mxu0
      %1880 = vmatprep.mubr.bf16.mxu0 0
      %1881 = vmatmul.mubr.bf16.gmra.mrb[0].mxu0 %v1368
      %v1882 = vpop.f32.mrb[0].mxu0
      %v1883 = vadd.f32 0.0, %v1882
      %v1884 = vpop.f32.mrb[0].mxu0
      %v1885 = vpop.f32.mrb[0].mxu0
      %v1886 = vadd.f32 0.0, %v1885
      %v1887 = vpop.f32.mrb[0].mxu0
      %1888 = vmatprep.mubr.bf16.mxu0 0
      %1889 = vmatmul.mubr.bf16.gmra.mrb[0].mxu0 %v1371
      %v1890 = vpop.f32.mrb[0].mxu0
      %v1891 = vadd.f32 0.0, %v1890
      %v1892 = vpop.f32.mrb[0].mxu0
      %v1893 = vpop.f32.mrb[0].mxu0
      %v1894 = vadd.f32 0.0, %v1893
      %v1895 = vpop.f32.mrb[0].mxu0
      %1896 = vmatprep.mubr.bf16.mxu0 0
      %1897 = vmatmul.mubr.bf16.gmra.mrb[0].mxu0 %v1374
      %v1898 = vpop.f32.mrb[0].mxu0
      %v1899 = vadd.f32 0.0, %v1898
      %v1900 = vpop.f32.mrb[0].mxu0
      %v1901 = vpop.f32.mrb[0].mxu0
      %v1902 = vadd.f32 0.0, %v1901
      %v1903 = vpop.f32.mrb[0].mxu0
      %1904 = vmatprep.mubr.bf16.mxu0 0
      %1905 = vmatmul.mubr.bf16.gmra.mrb[0].mxu0 %v1377
      %v1906 = vpop.f32.mrb[0].mxu0
      %v1907 = vadd.f32 0.0, %v1906
      %v1908 = vpop.f32.mrb[0].mxu0
      %v1909 = vpop.f32.mrb[0].mxu0
      %v1910 = vadd.f32 0.0, %v1909
      %v1911 = vpop.f32.mrb[0].mxu0
      %1912 = vmatprep.mubr.bf16.mxu0 0
      %1913 = vmatmul.mubr.bf16.gmra.mrb[0].mxu0 %v1380
      %v1914 = vpop.f32.mrb[0].mxu0
      %v1915 = vadd.f32 0.0, %v1914
      %v1916 = vpop.f32.mrb[0].mxu0
      %v1917 = vpop.f32.mrb[0].mxu0
      %v1918 = vadd.f32 0.0, %v1917
      %v1919 = vpop.f32.mrb[0].mxu0
      %1920 = vmatprep.mubr.bf16.mxu0 0
      %1921 = vmatmul.mubr.bf16.gmra.mrb[0].mxu0 %v1383
      %v1922 = vpop.f32.mrb[0].mxu0
      %v1923 = vadd.f32 0.0, %v1922
      %v1924 = vpop.f32.mrb[0].mxu0
      %v1925 = vpop.f32.mrb[0].mxu0
      %v1926 = vadd.f32 0.0, %v1925
      %v1927 = vpop.f32.mrb[0].mxu0
      %1928 = vmatprep.mubr.bf16.mxu0 0
      %1929 = vmatmul.mubr.bf16.gmra.mrb[0].mxu0 %v1386
      %v1930 = vpop.f32.mrb[0].mxu0
      %v1931 = vadd.f32 0.0, %v1930
      %v1932 = vpop.f32.mrb[0].mxu0
      %v1933 = vpop.f32.mrb[0].mxu0
      %v1934 = vadd.f32 0.0, %v1933
      %v1935 = vpop.f32.mrb[0].mxu0
      %1936 = vmatprep.mubr.bf16.mxu0 0
      %1937 = vmatmul.mubr.bf16.gmra.mrb[0].mxu0 %v1389
      %v1938 = vpop.f32.mrb[0].mxu0
      %v1939 = vadd.f32 0.0, %v1938
      %v1940 = vpop.f32.mrb[0].mxu0
      %v1941 = vpop.f32.mrb[0].mxu0
      %v1942 = vadd.f32 0.0, %v1941
      %v1943 = vpop.f32.mrb[0].mxu0
      %1944 = vmatprep.mubr.bf16.mxu0 0
      %1945 = vmatmul.mubr.bf16.gmra.mrb[0].mxu0 %v1392
      %v1946 = vpop.f32.mrb[0].mxu0
      %v1947 = vadd.f32 0.0, %v1946
      %v1948 = vpop.f32.mrb[0].mxu0
      %v1949 = vpop.f32.mrb[0].mxu0
      %v1950 = vadd.f32 0.0, %v1949
      %v1951 = vpop.f32.mrb[0].mxu0
      %1952 = vmatprep.mubr.bf16.mxu0 0
      %1953 = vmatmul.mubr.bf16.gmra.mrb[0].mxu0 %v1395
      %v1954 = vpop.f32.mrb[0].mxu0
      %v1955 = vadd.f32 0.0, %v1954
      %v1956 = vpop.f32.mrb[0].mxu0
      %v1957 = vpop.f32.mrb[0].mxu0
      %v1958 = vadd.f32 0.0, %v1957
      %v1959 = vpop.f32.mrb[0].mxu0
      %1960 = vmatprep.mubr.bf16.mxu0 0
      %1961 = vmatmul.mubr.bf16.gmra.mrb[0].mxu0 %v1398
      %v1962 = vpop.f32.mrb[0].mxu0
      %v1963 = vadd.f32 0.0, %v1962
      %v1964 = vpop.f32.mrb[0].mxu0
      %v1965 = vpop.f32.mrb[0].mxu0
      %v1966 = vadd.f32 0.0, %v1965
      %v1967 = vpop.f32.mrb[0].mxu0
      %1968 = vmatprep.mubr.bf16.mxu0 0
      %1969 = vmatmul.mubr.bf16.gmra.mrb[0].mxu0 %v1401
      %v1970 = vpop.f32.mrb[0].mxu0
      %v1971 = vadd.f32 0.0, %v1970
      %v1972 = vpop.f32.mrb[0].mxu0
      %v1973 = vpop.f32.mrb[0].mxu0
      %v1974 = vadd.f32 0.0, %v1973
      %v1975 = vpop.f32.mrb[0].mxu0
      %1976 = vmatprep.mubr.bf16.mxu0 0
      %1977 = vmatmul.mubr.bf16.gmra.mrb[0].mxu0 %v1404
      %v1978 = vpop.f32.mrb[0].mxu0
      %v1979 = vadd.f32 0.0, %v1978
      %v1980 = vpop.f32.mrb[0].mxu0
      %v1981 = vpop.f32.mrb[0].mxu0
      %v1982 = vadd.f32 0.0, %v1981
      %v1983 = vpop.f32.mrb[0].mxu0
      %1984 = vmatprep.mubr.bf16.mxu0 0
      %1985 = vmatmul.mubr.bf16.gmra.mrb[0].mxu0 %v1407
      %v1986 = vpop.f32.mrb[0].mxu0
      %v1987 = vadd.f32 0.0, %v1986
      %v1988 = vpop.f32.mrb[0].mxu0
      %v1989 = vpop.f32.mrb[0].mxu0
      %v1990 = vadd.f32 0.0, %v1989
      %v1991 = vpop.f32.mrb[0].mxu0
      %1992 = vdwg.mxu0
      %v1993 = vsel %vm1204, %v586, 0
      %v1995 = vsel %vm1204, %v587, 0
      %v1997 = vsel %vm1204, %v588, 0
      %v1999 = vsel %vm1204, %v589, 0
      %v2001 = vsel %vm1204, %v590, 0
      %v2003 = vsel %vm1204, %v591, 0
      %v2005 = vsel %vm1204, %v592, 0
      %v2007 = vsel %vm1204, %v593, 0
      %v2009 = vsel %vm1204, %v594, 0
      %v2011 = vsel %vm1204, %v595, 0
      %v2013 = vsel %vm1204, %v596, 0
      %v2015 = vsel %vm1204, %v597, 0
      %v2017 = vsel %vm1204, %v598, 0
      %v2019 = vsel %vm1204, %v599, 0
      %v2021 = vsel %vm1204, %v600, 0
      %v2023 = vsel %vm1204, %v601, 0
      %v2025 = vsel %vm1204, %v602, 0
      %v2027 = vsel %vm1204, %v603, 0
      %v2029 = vsel %vm1204, %v604, 0
      %v2031 = vsel %vm1204, %v605, 0
      %v2033 = vsel %vm1204, %v606, 0
      %v2035 = vsel %vm1204, %v607, 0
      %v2037 = vsel %vm1204, %v608, 0
      %v2039 = vsel %vm1204, %v609, 0
      %v2041 = vsel %vm1204, %v610, 0
      %v2043 = vsel %vm1204, %v611, 0
      %v2045 = vsel %vm1204, %v612, 0
      %v2047 = vsel %vm1204, %v613, 0
      %v2049 = vsel %vm1204, %v614, 0
      %v2051 = vsel %vm1204, %v615, 0
      %v2053 = vsel %vm1204, %v616, 0
      %v2055 = vsel %vm1204, %v617, 0
      %v2057 = vsel %vm1204, %v618, 0
      %v2059 = vsel %vm1204, %v619, 0
      %v2061 = vsel %vm1204, %v620, 0
      %v2063 = vsel %vm1204, %v621, 0
      %v2065 = vsel %vm1204, %v622, 0
      %v2067 = vsel %vm1204, %v623, 0
      %v2069 = vsel %vm1204, %v624, 0
      %v2071 = vsel %vm1204, %v625, 0
      %v2073 = vsel %vm1204, %v626, 0
      %v2075 = vsel %vm1204, %v627, 0
      %v2077 = vsel %vm1204, %v628, 0
      %v2079 = vsel %vm1204, %v629, 0
      %v2081 = vsel %vm1204, %v630, 0
      %v2083 = vsel %vm1204, %v631, 0
      %v2085 = vsel %vm1204, %v632, 0
      %v2087 = vsel %vm1204, %v633, 0
      %v2089 = vsel %vm1204, %v634, 0
      %v2091 = vsel %vm1204, %v635, 0
      %v2093 = vsel %vm1204, %v636, 0
      %v2095 = vsel %vm1204, %v637, 0
      %v2097 = vsel %vm1204, %v638, 0
      %v2099 = vsel %vm1204, %v639, 0
      %v2101 = vsel %vm1204, %v640, 0
      %v2103 = vsel %vm1204, %v641, 0
      %v2105 = vsel %vm1204, %v642, 0
      %v2107 = vsel %vm1204, %v643, 0
      %v2109 = vsel %vm1204, %v644, 0
      %v2111 = vsel %vm1204, %v645, 0
      %v2113 = vsel %vm1204, %v646, 0
      %v2115 = vsel %vm1204, %v647, 0
      %v2117 = vsel %vm1204, %v648, 0
      %v2119 = vsel %vm1204, %v649, 0
      %v2121 = vsel %vm1204, %v650, 0
      %v2123 = vsel %vm1204, %v651, 0
      %v2125 = vsel %vm1204, %v652, 0
      %v2127 = vsel %vm1204, %v653, 0
      %v2130 = vand.u32 %v308, %v1412
      %2132 = vmatprep.subr.bf16.mxu0 0
      %2133 = vmatpush1.bf16.msra.mxu0 %v2130
      %2134 = vmatprep.subr.bf16.mxu0 0
      %2135 = vmatpush1.bf16.msra.mxu0 0
      %2136 = vmatprep.subr.bf16.mxu0 0
      %2137 = vmatpush1.bf16.msra.mxu0 0
      %2138 = vmatprep.subr.bf16.mxu0 0
      %2139 = vmatpush1.bf16.msra.mxu0 0
      %2140 = vmatprep.subr.bf16.mxu0 0
      %2141 = vmatpush1.bf16.msra.mxu0 0
      %2142 = vmatprep.subr.bf16.mxu0 0
      %2143 = vmatpush1.bf16.msra.mxu0 0
      %2144 = vmatprep.subr.bf16.mxu0 0
      %2145 = vmatpush1.bf16.msra.mxu0 0
      %2146 = vmatprep.subr.bf16.mxu0 0
      %2147 = vmatpush1.bf16.msra.mxu0 0
      %2148 = vmatprep.subr.bf16.mxu0 0
      %2149 = vmatpush1.bf16.msra.mxu0 0
      %2150 = vmatprep.subr.bf16.mxu0 0
      %2151 = vmatpush1.bf16.msra.mxu0 0
      %2152 = vmatprep.subr.bf16.mxu0 0
      %2153 = vmatpush1.bf16.msra.mxu0 0
      %2154 = vmatprep.subr.bf16.mxu0 0
      %2155 = vmatpush1.bf16.msra.mxu0 0
      %2156 = vmatprep.subr.bf16.mxu0 0
      %2157 = vmatpush1.bf16.msra.mxu0 0
      %2158 = vmatprep.subr.bf16.mxu0 0
      %2159 = vmatpush1.bf16.msra.mxu0 0
      %2160 = vmatprep.subr.bf16.mxu0 0
      %2161 = vmatpush1.bf16.msra.mxu0 0
      %2162 = vmatprep.subr.bf16.mxu0 0
      %2163 = vmatpush1.bf16.msra.mxu0 0
      %2164 = vmatprep.mubr.bf16.mxu0 0
      %2165 = vmatmul.mubr.bf16.gmra.mrb[0].mxu0 %v1993
      %v2166 = vpop.f32.mrb[0].mxu0
      %v2167 = vadd.f32 %v1451, %v2166
      %v2168 = vpop.f32.mrb[0].mxu0
      %v2169 = vpop.f32.mrb[0].mxu0
      %v2170 = vadd.f32 %v1454, %v2169
      %v2171 = vpop.f32.mrb[0].mxu0
      %2172 = vmatprep.mubr.bf16.mxu0 0
      %2173 = vmatmul.mubr.bf16.gmra.mrb[0].mxu0 %v1995
      %v2174 = vpop.f32.mrb[0].mxu0
      %v2175 = vadd.f32 %v1459, %v2174
      %v2176 = vpop.f32.mrb[0].mxu0
      %v2177 = vpop.f32.mrb[0].mxu0
      %v2178 = vadd.f32 %v1462, %v2177
      %v2179 = vpop.f32.mrb[0].mxu0
      %2180 = vmatprep.mubr.bf16.mxu0 0
      %2181 = vmatmul.mubr.bf16.gmra.mrb[0].mxu0 %v1997
      %v2182 = vpop.f32.mrb[0].mxu0
      %v2183 = vadd.f32 %v1467, %v2182
      %v2184 = vpop.f32.mrb[0].mxu0
      %v2185 = vpop.f32.mrb[0].mxu0
      %v2186 = vadd.f32 %v1470, %v2185
      %v2187 = vpop.f32.mrb[0].mxu0
      %2188 = vmatprep.mubr.bf16.mxu0 0
      %2189 = vmatmul.mubr.bf16.gmra.mrb[0].mxu0 %v1999
      %v2190 = vpop.f32.mrb[0].mxu0
      %v2191 = vadd.f32 %v1475, %v2190
      %v2192 = vpop.f32.mrb[0].mxu0
      %v2193 = vpop.f32.mrb[0].mxu0
      %v2194 = vadd.f32 %v1478, %v2193
      %v2195 = vpop.f32.mrb[0].mxu0
      %2196 = vmatprep.mubr.bf16.mxu0 0
      %2197 = vmatmul.mubr.bf16.gmra.mrb[0].mxu0 %v2001
      %v2198 = vpop.f32.mrb[0].mxu0
      %v2199 = vadd.f32 %v1483, %v2198
      %v2200 = vpop.f32.mrb[0].mxu0
      %v2201 = vpop.f32.mrb[0].mxu0
      %v2202 = vadd.f32 %v1486, %v2201
      %v2203 = vpop.f32.mrb[0].mxu0
      %2204 = vmatprep.mubr.bf16.mxu0 0
      %2205 = vmatmul.mubr.bf16.gmra.mrb[0].mxu0 %v2003
      %v2206 = vpop.f32.mrb[0].mxu0
      %v2207 = vadd.f32 %v1491, %v2206
      %v2208 = vpop.f32.mrb[0].mxu0
      %v2209 = vpop.f32.mrb[0].mxu0
      %v2210 = vadd.f32 %v1494, %v2209
      %v2211 = vpop.f32.mrb[0].mxu0
      %2212 = vmatprep.mubr.bf16.mxu0 0
      %2213 = vmatmul.mubr.bf16.gmra.mrb[0].mxu0 %v2005
      %v2214 = vpop.f32.mrb[0].mxu0
      %v2215 = vadd.f32 %v1499, %v2214
      %v2216 = vpop.f32.mrb[0].mxu0
      %v2217 = vpop.f32.mrb[0].mxu0
      %v2218 = vadd.f32 %v1502, %v2217
      %v2219 = vpop.f32.mrb[0].mxu0
      %2220 = vmatprep.mubr.bf16.mxu0 0
      %2221 = vmatmul.mubr.bf16.gmra.mrb[0].mxu0 %v2007
      %v2222 = vpop.f32.mrb[0].mxu0
      %v2223 = vadd.f32 %v1507, %v2222
      %v2224 = vpop.f32.mrb[0].mxu0
      %v2225 = vpop.f32.mrb[0].mxu0
      %v2226 = vadd.f32 %v1510, %v2225
      %v2227 = vpop.f32.mrb[0].mxu0
      %2228 = vmatprep.mubr.bf16.mxu0 0
      %2229 = vmatmul.mubr.bf16.gmra.mrb[0].mxu0 %v2009
      %v2230 = vpop.f32.mrb[0].mxu0
      %v2231 = vadd.f32 %v1515, %v2230
      %v2232 = vpop.f32.mrb[0].mxu0
      %v2233 = vpop.f32.mrb[0].mxu0
      %v2234 = vadd.f32 %v1518, %v2233
      %v2235 = vpop.f32.mrb[0].mxu0
      %2236 = vmatprep.mubr.bf16.mxu0 0
      %2237 = vmatmul.mubr.bf16.gmra.mrb[0].mxu0 %v2011
      %v2238 = vpop.f32.mrb[0].mxu0
      %v2239 = vadd.f32 %v1523, %v2238
      %v2240 = vpop.f32.mrb[0].mxu0
      %v2241 = vpop.f32.mrb[0].mxu0
      %v2242 = vadd.f32 %v1526, %v2241
      %v2243 = vpop.f32.mrb[0].mxu0
      %2244 = vmatprep.mubr.bf16.mxu0 0
      %2245 = vmatmul.mubr.bf16.gmra.mrb[0].mxu0 %v2013
      %v2246 = vpop.f32.mrb[0].mxu0
      %v2247 = vadd.f32 %v1531, %v2246
      %v2248 = vpop.f32.mrb[0].mxu0
      %v2249 = vpop.f32.mrb[0].mxu0
      %v2250 = vadd.f32 %v1534, %v2249
      %v2251 = vpop.f32.mrb[0].mxu0
      %2252 = vmatprep.mubr.bf16.mxu0 0
      %2253 = vmatmul.mubr.bf16.gmra.mrb[0].mxu0 %v2015
      %v2254 = vpop.f32.mrb[0].mxu0
      %v2255 = vadd.f32 %v1539, %v2254
      %v2256 = vpop.f32.mrb[0].mxu0
      %v2257 = vpop.f32.mrb[0].mxu0
      %v2258 = vadd.f32 %v1542, %v2257
      %v2259 = vpop.f32.mrb[0].mxu0
      %2260 = vmatprep.mubr.bf16.mxu0 0
      %2261 = vmatmul.mubr.bf16.gmra.mrb[0].mxu0 %v2017
      %v2262 = vpop.f32.mrb[0].mxu0
      %v2263 = vadd.f32 %v1547, %v2262
      %v2264 = vpop.f32.mrb[0].mxu0
      %v2265 = vpop.f32.mrb[0].mxu0
      %v2266 = vadd.f32 %v1550, %v2265
      %v2267 = vpop.f32.mrb[0].mxu0
      %2268 = vmatprep.mubr.bf16.mxu0 0
      %2269 = vmatmul.mubr.bf16.gmra.mrb[0].mxu0 %v2019
      %v2270 = vpop.f32.mrb[0].mxu0
      %v2271 = vadd.f32 %v1555, %v2270
      %v2272 = vpop.f32.mrb[0].mxu0
      %v2273 = vpop.f32.mrb[0].mxu0
      %v2274 = vadd.f32 %v1558, %v2273
      %v2275 = vpop.f32.mrb[0].mxu0
      %2276 = vmatprep.mubr.bf16.mxu0 0
      %2277 = vmatmul.mubr.bf16.gmra.mrb[0].mxu0 %v2021
      %v2278 = vpop.f32.mrb[0].mxu0
      %v2279 = vadd.f32 %v1563, %v2278
      %v2280 = vpop.f32.mrb[0].mxu0
      %v2281 = vpop.f32.mrb[0].mxu0
      %v2282 = vadd.f32 %v1566, %v2281
      %v2283 = vpop.f32.mrb[0].mxu0
      %2284 = vmatprep.mubr.bf16.mxu0 0
      %2285 = vmatmul.mubr.bf16.gmra.mrb[0].mxu0 %v2023
      %v2286 = vpop.f32.mrb[0].mxu0
      %v2287 = vadd.f32 %v1571, %v2286
      %v2288 = vpop.f32.mrb[0].mxu0
      %v2289 = vpop.f32.mrb[0].mxu0
      %v2290 = vadd.f32 %v1574, %v2289
      %v2291 = vpop.f32.mrb[0].mxu0
      %2292 = vmatprep.mubr.bf16.mxu0 0
      %2293 = vmatmul.mubr.bf16.gmra.mrb[0].mxu0 %v2025
      %v2294 = vpop.f32.mrb[0].mxu0
      %v2295 = vadd.f32 %v1579, %v2294
      %v2296 = vpop.f32.mrb[0].mxu0
      %v2297 = vpop.f32.mrb[0].mxu0
      %v2298 = vadd.f32 %v1582, %v2297
      %v2299 = vpop.f32.mrb[0].mxu0
      %2300 = vmatprep.mubr.bf16.mxu0 0
      %2301 = vmatmul.mubr.bf16.gmra.mrb[0].mxu0 %v2027
      %v2302 = vpop.f32.mrb[0].mxu0
      %v2303 = vadd.f32 %v1587, %v2302
      %v2304 = vpop.f32.mrb[0].mxu0
      %v2305 = vpop.f32.mrb[0].mxu0
      %v2306 = vadd.f32 %v1590, %v2305
      %v2307 = vpop.f32.mrb[0].mxu0
      %2308 = vmatprep.mubr.bf16.mxu0 0
      %2309 = vmatmul.mubr.bf16.gmra.mrb[0].mxu0 %v2029
      %v2310 = vpop.f32.mrb[0].mxu0
      %v2311 = vadd.f32 %v1595, %v2310
      %v2312 = vpop.f32.mrb[0].mxu0
      %v2313 = vpop.f32.mrb[0].mxu0
      %v2314 = vadd.f32 %v1598, %v2313
      %v2315 = vpop.f32.mrb[0].mxu0
      %2316 = vmatprep.mubr.bf16.mxu0 0
      %2317 = vmatmul.mubr.bf16.gmra.mrb[0].mxu0 %v2031
      %v2318 = vpop.f32.mrb[0].mxu0
      %v2319 = vadd.f32 %v1603, %v2318
      %v2320 = vpop.f32.mrb[0].mxu0
      %v2321 = vpop.f32.mrb[0].mxu0
      %v2322 = vadd.f32 %v1606, %v2321
      %v2323 = vpop.f32.mrb[0].mxu0
      %2324 = vmatprep.mubr.bf16.mxu0 0
      %2325 = vmatmul.mubr.bf16.gmra.mrb[0].mxu0 %v2033
      %v2326 = vpop.f32.mrb[0].mxu0
      %v2327 = vadd.f32 %v1611, %v2326
      %v2328 = vpop.f32.mrb[0].mxu0
      %v2329 = vpop.f32.mrb[0].mxu0
      %v2330 = vadd.f32 %v1614, %v2329
      %v2331 = vpop.f32.mrb[0].mxu0
      %2332 = vmatprep.mubr.bf16.mxu0 0
      %2333 = vmatmul.mubr.bf16.gmra.mrb[0].mxu0 %v2035
      %v2334 = vpop.f32.mrb[0].mxu0
      %v2335 = vadd.f32 %v1619, %v2334
      %v2336 = vpop.f32.mrb[0].mxu0
      %v2337 = vpop.f32.mrb[0].mxu0
      %v2338 = vadd.f32 %v1622, %v2337
      %v2339 = vpop.f32.mrb[0].mxu0
      %2340 = vmatprep.mubr.bf16.mxu0 0
      %2341 = vmatmul.mubr.bf16.gmra.mrb[0].mxu0 %v2037
      %v2342 = vpop.f32.mrb[0].mxu0
      %v2343 = vadd.f32 %v1627, %v2342
      %v2344 = vpop.f32.mrb[0].mxu0
      %v2345 = vpop.f32.mrb[0].mxu0
      %v2346 = vadd.f32 %v1630, %v2345
      %v2347 = vpop.f32.mrb[0].mxu0
      %2348 = vmatprep.mubr.bf16.mxu0 0
      %2349 = vmatmul.mubr.bf16.gmra.mrb[0].mxu0 %v2039
      %v2350 = vpop.f32.mrb[0].mxu0
      %v2351 = vadd.f32 %v1635, %v2350
      %v2352 = vpop.f32.mrb[0].mxu0
      %v2353 = vpop.f32.mrb[0].mxu0
      %v2354 = vadd.f32 %v1638, %v2353
      %v2355 = vpop.f32.mrb[0].mxu0
      %2356 = vmatprep.mubr.bf16.mxu0 0
      %2357 = vmatmul.mubr.bf16.gmra.mrb[0].mxu0 %v2041
      %v2358 = vpop.f32.mrb[0].mxu0
      %v2359 = vadd.f32 %v1643, %v2358
      %v2360 = vpop.f32.mrb[0].mxu0
      %v2361 = vpop.f32.mrb[0].mxu0
      %v2362 = vadd.f32 %v1646, %v2361
      %v2363 = vpop.f32.mrb[0].mxu0
      %2364 = vmatprep.mubr.bf16.mxu0 0
      %2365 = vmatmul.mubr.bf16.gmra.mrb[0].mxu0 %v2043
      %v2366 = vpop.f32.mrb[0].mxu0
      %v2367 = vadd.f32 %v1651, %v2366
      %v2368 = vpop.f32.mrb[0].mxu0
      %v2369 = vpop.f32.mrb[0].mxu0
      %v2370 = vadd.f32 %v1654, %v2369
      %v2371 = vpop.f32.mrb[0].mxu0
      %2372 = vmatprep.mubr.bf16.mxu0 0
      %2373 = vmatmul.mubr.bf16.gmra.mrb[0].mxu0 %v2045
      %v2374 = vpop.f32.mrb[0].mxu0
      %v2375 = vadd.f32 %v1659, %v2374
      %v2376 = vpop.f32.mrb[0].mxu0
      %v2377 = vpop.f32.mrb[0].mxu0
      %v2378 = vadd.f32 %v1662, %v2377
      %v2379 = vpop.f32.mrb[0].mxu0
      %2380 = vmatprep.mubr.bf16.mxu0 0
      %2381 = vmatmul.mubr.bf16.gmra.mrb[0].mxu0 %v2047
      %v2382 = vpop.f32.mrb[0].mxu0
      %v2383 = vadd.f32 %v1667, %v2382
      %v2384 = vpop.f32.mrb[0].mxu0
      %v2385 = vpop.f32.mrb[0].mxu0
      %v2386 = vadd.f32 %v1670, %v2385
      %v2387 = vpop.f32.mrb[0].mxu0
      %2388 = vmatprep.mubr.bf16.mxu0 0
      %2389 = vmatmul.mubr.bf16.gmra.mrb[0].mxu0 %v2049
      %v2390 = vpop.f32.mrb[0].mxu0
      %v2391 = vadd.f32 %v1675, %v2390
      %v2392 = vpop.f32.mrb[0].mxu0
      %v2393 = vpop.f32.mrb[0].mxu0
      %v2394 = vadd.f32 %v1678, %v2393
      %v2395 = vpop.f32.mrb[0].mxu0
      %2396 = vmatprep.mubr.bf16.mxu0 0
      %2397 = vmatmul.mubr.bf16.gmra.mrb[0].mxu0 %v2051
      %v2398 = vpop.f32.mrb[0].mxu0
      %v2399 = vadd.f32 %v1683, %v2398
      %v2400 = vpop.f32.mrb[0].mxu0
      %v2401 = vpop.f32.mrb[0].mxu0
      %v2402 = vadd.f32 %v1686, %v2401
      %v2403 = vpop.f32.mrb[0].mxu0
      %2404 = vmatprep.mubr.bf16.mxu0 0
      %2405 = vmatmul.mubr.bf16.gmra.mrb[0].mxu0 %v2053
      %v2406 = vpop.f32.mrb[0].mxu0
      %v2407 = vadd.f32 %v1691, %v2406
      %v2408 = vpop.f32.mrb[0].mxu0
      %v2409 = vpop.f32.mrb[0].mxu0
      %v2410 = vadd.f32 %v1694, %v2409
      %v2411 = vpop.f32.mrb[0].mxu0
      %2412 = vmatprep.mubr.bf16.mxu0 0
      %2413 = vmatmul.mubr.bf16.gmra.mrb[0].mxu0 %v2055
      %v2414 = vpop.f32.mrb[0].mxu0
      %v2415 = vadd.f32 %v1699, %v2414
      %v2416 = vpop.f32.mrb[0].mxu0
      %v2417 = vpop.f32.mrb[0].mxu0
      %v2418 = vadd.f32 %v1702, %v2417
      %v2419 = vpop.f32.mrb[0].mxu0
      %2420 = vmatprep.mubr.bf16.mxu0 0
      %2421 = vmatmul.mubr.bf16.gmra.mrb[0].mxu0 %v2057
      %v2422 = vpop.f32.mrb[0].mxu0
      %v2423 = vadd.f32 %v1707, %v2422
      %v2424 = vpop.f32.mrb[0].mxu0
      %v2425 = vpop.f32.mrb[0].mxu0
      %v2426 = vadd.f32 %v1710, %v2425
      %v2427 = vpop.f32.mrb[0].mxu0
      %2428 = vmatprep.mubr.bf16.mxu0 0
      %2429 = vmatmul.mubr.bf16.gmra.mrb[0].mxu0 %v2059
      %v2430 = vpop.f32.mrb[0].mxu0
      %v2431 = vadd.f32 %v1715, %v2430
      %v2432 = vpop.f32.mrb[0].mxu0
      %v2433 = vpop.f32.mrb[0].mxu0
      %v2434 = vadd.f32 %v1718, %v2433
      %v2435 = vpop.f32.mrb[0].mxu0
      %2436 = vmatprep.mubr.bf16.mxu0 0
      %2437 = vmatmul.mubr.bf16.gmra.mrb[0].mxu0 %v2061
      %v2438 = vpop.f32.mrb[0].mxu0
      %v2439 = vadd.f32 %v1723, %v2438
      %v2440 = vpop.f32.mrb[0].mxu0
      %v2441 = vpop.f32.mrb[0].mxu0
      %v2442 = vadd.f32 %v1726, %v2441
      %v2443 = vpop.f32.mrb[0].mxu0
      %2444 = vmatprep.mubr.bf16.mxu0 0
      %2445 = vmatmul.mubr.bf16.gmra.mrb[0].mxu0 %v2063
      %v2446 = vpop.f32.mrb[0].mxu0
      %v2447 = vadd.f32 %v1731, %v2446
      %v2448 = vpop.f32.mrb[0].mxu0
      %v2449 = vpop.f32.mrb[0].mxu0
      %v2450 = vadd.f32 %v1734, %v2449
      %v2451 = vpop.f32.mrb[0].mxu0
      %2452 = vmatprep.mubr.bf16.mxu0 0
      %2453 = vmatmul.mubr.bf16.gmra.mrb[0].mxu0 %v2065
      %v2454 = vpop.f32.mrb[0].mxu0
      %v2455 = vadd.f32 %v1739, %v2454
      %v2456 = vpop.f32.mrb[0].mxu0
      %v2457 = vpop.f32.mrb[0].mxu0
      %v2458 = vadd.f32 %v1742, %v2457
      %v2459 = vpop.f32.mrb[0].mxu0
      %2460 = vmatprep.mubr.bf16.mxu0 0
      %2461 = vmatmul.mubr.bf16.gmra.mrb[0].mxu0 %v2067
      %v2462 = vpop.f32.mrb[0].mxu0
      %v2463 = vadd.f32 %v1747, %v2462
      %v2464 = vpop.f32.mrb[0].mxu0
      %v2465 = vpop.f32.mrb[0].mxu0
      %v2466 = vadd.f32 %v1750, %v2465
      %v2467 = vpop.f32.mrb[0].mxu0
      %2468 = vmatprep.mubr.bf16.mxu0 0
      %2469 = vmatmul.mubr.bf16.gmra.mrb[0].mxu0 %v2069
      %v2470 = vpop.f32.mrb[0].mxu0
      %v2471 = vadd.f32 %v1755, %v2470
      %v2472 = vpop.f32.mrb[0].mxu0
      %v2473 = vpop.f32.mrb[0].mxu0
      %v2474 = vadd.f32 %v1758, %v2473
      %v2475 = vpop.f32.mrb[0].mxu0
      %2476 = vmatprep.mubr.bf16.mxu0 0
      %2477 = vmatmul.mubr.bf16.gmra.mrb[0].mxu0 %v2071
      %v2478 = vpop.f32.mrb[0].mxu0
      %v2479 = vadd.f32 %v1763, %v2478
      %v2480 = vpop.f32.mrb[0].mxu0
      %v2481 = vpop.f32.mrb[0].mxu0
      %v2482 = vadd.f32 %v1766, %v2481
      %v2483 = vpop.f32.mrb[0].mxu0
      %2484 = vmatprep.mubr.bf16.mxu0 0
      %2485 = vmatmul.mubr.bf16.gmra.mrb[0].mxu0 %v2073
      %v2486 = vpop.f32.mrb[0].mxu0
      %v2487 = vadd.f32 %v1771, %v2486
      %v2488 = vpop.f32.mrb[0].mxu0
      %v2489 = vpop.f32.mrb[0].mxu0
      %v2490 = vadd.f32 %v1774, %v2489
      %v2491 = vpop.f32.mrb[0].mxu0
      %2492 = vmatprep.mubr.bf16.mxu0 0
      %2493 = vmatmul.mubr.bf16.gmra.mrb[0].mxu0 %v2075
      %v2494 = vpop.f32.mrb[0].mxu0
      %v2495 = vadd.f32 %v1779, %v2494
      %v2496 = vpop.f32.mrb[0].mxu0
      %v2497 = vpop.f32.mrb[0].mxu0
      %v2498 = vadd.f32 %v1782, %v2497
      %v2499 = vpop.f32.mrb[0].mxu0
      %2500 = vmatprep.mubr.bf16.mxu0 0
      %2501 = vmatmul.mubr.bf16.gmra.mrb[0].mxu0 %v2077
      %v2502 = vpop.f32.mrb[0].mxu0
      %v2503 = vadd.f32 %v1787, %v2502
      %v2504 = vpop.f32.mrb[0].mxu0
      %v2505 = vpop.f32.mrb[0].mxu0
      %v2506 = vadd.f32 %v1790, %v2505
      %v2507 = vpop.f32.mrb[0].mxu0
      %2508 = vmatprep.mubr.bf16.mxu0 0
      %2509 = vmatmul.mubr.bf16.gmra.mrb[0].mxu0 %v2079
      %v2510 = vpop.f32.mrb[0].mxu0
      %v2511 = vadd.f32 %v1795, %v2510
      %v2512 = vpop.f32.mrb[0].mxu0
      %v2513 = vpop.f32.mrb[0].mxu0
      %v2514 = vadd.f32 %v1798, %v2513
      %v2515 = vpop.f32.mrb[0].mxu0
      %2516 = vmatprep.mubr.bf16.mxu0 0
      %2517 = vmatmul.mubr.bf16.gmra.mrb[0].mxu0 %v2081
      %v2518 = vpop.f32.mrb[0].mxu0
      %v2519 = vadd.f32 %v1803, %v2518
      %v2520 = vpop.f32.mrb[0].mxu0
      %v2521 = vpop.f32.mrb[0].mxu0
      %v2522 = vadd.f32 %v1806, %v2521
      %v2523 = vpop.f32.mrb[0].mxu0
      %2524 = vmatprep.mubr.bf16.mxu0 0
      %2525 = vmatmul.mubr.bf16.gmra.mrb[0].mxu0 %v2083
      %v2526 = vpop.f32.mrb[0].mxu0
      %v2527 = vadd.f32 %v1811, %v2526
      %v2528 = vpop.f32.mrb[0].mxu0
      %v2529 = vpop.f32.mrb[0].mxu0
      %v2530 = vadd.f32 %v1814, %v2529
      %v2531 = vpop.f32.mrb[0].mxu0
      %2532 = vmatprep.mubr.bf16.mxu0 0
      %2533 = vmatmul.mubr.bf16.gmra.mrb[0].mxu0 %v2085
      %v2534 = vpop.f32.mrb[0].mxu0
      %v2535 = vadd.f32 %v1819, %v2534
      %v2536 = vpop.f32.mrb[0].mxu0
      %v2537 = vpop.f32.mrb[0].mxu0
      %v2538 = vadd.f32 %v1822, %v2537
      %v2539 = vpop.f32.mrb[0].mxu0
      %2540 = vmatprep.mubr.bf16.mxu0 0
      %2541 = vmatmul.mubr.bf16.gmra.mrb[0].mxu0 %v2087
      %v2542 = vpop.f32.mrb[0].mxu0
      %v2543 = vadd.f32 %v1827, %v2542
      %v2544 = vpop.f32.mrb[0].mxu0
      %v2545 = vpop.f32.mrb[0].mxu0
      %v2546 = vadd.f32 %v1830, %v2545
      %v2547 = vpop.f32.mrb[0].mxu0
      %2548 = vmatprep.mubr.bf16.mxu0 0
      %2549 = vmatmul.mubr.bf16.gmra.mrb[0].mxu0 %v2089
      %v2550 = vpop.f32.mrb[0].mxu0
      %v2551 = vadd.f32 %v1835, %v2550
      %v2552 = vpop.f32.mrb[0].mxu0
      %v2553 = vpop.f32.mrb[0].mxu0
      %v2554 = vadd.f32 %v1838, %v2553
      %v2555 = vpop.f32.mrb[0].mxu0
      %2556 = vmatprep.mubr.bf16.mxu0 0
      %2557 = vmatmul.mubr.bf16.gmra.mrb[0].mxu0 %v2091
      %v2558 = vpop.f32.mrb[0].mxu0
      %v2559 = vadd.f32 %v1843, %v2558
      %v2560 = vpop.f32.mrb[0].mxu0
      %v2561 = vpop.f32.mrb[0].mxu0
      %v2562 = vadd.f32 %v1846, %v2561
      %v2563 = vpop.f32.mrb[0].mxu0
      %2564 = vmatprep.mubr.bf16.mxu0 0
      %2565 = vmatmul.mubr.bf16.gmra.mrb[0].mxu0 %v2093
      %v2566 = vpop.f32.mrb[0].mxu0
      %v2567 = vadd.f32 %v1851, %v2566
      %v2568 = vpop.f32.mrb[0].mxu0
      %v2569 = vpop.f32.mrb[0].mxu0
      %v2570 = vadd.f32 %v1854, %v2569
      %v2571 = vpop.f32.mrb[0].mxu0
      %2572 = vmatprep.mubr.bf16.mxu0 0
      %2573 = vmatmul.mubr.bf16.gmra.mrb[0].mxu0 %v2095
      %v2574 = vpop.f32.mrb[0].mxu0
      %v2575 = vadd.f32 %v1859, %v2574
      %v2576 = vpop.f32.mrb[0].mxu0
      %v2577 = vpop.f32.mrb[0].mxu0
      %v2578 = vadd.f32 %v1862, %v2577
      %v2579 = vpop.f32.mrb[0].mxu0
      %2580 = vmatprep.mubr.bf16.mxu0 0
      %2581 = vmatmul.mubr.bf16.gmra.mrb[0].mxu0 %v2097
      %v2582 = vpop.f32.mrb[0].mxu0
      %v2583 = vadd.f32 %v1867, %v2582
      %v2584 = vpop.f32.mrb[0].mxu0
      %v2585 = vpop.f32.mrb[0].mxu0
      %v2586 = vadd.f32 %v1870, %v2585
      %v2587 = vpop.f32.mrb[0].mxu0
      %2588 = vmatprep.mubr.bf16.mxu0 0
      %2589 = vmatmul.mubr.bf16.gmra.mrb[0].mxu0 %v2099
      %v2590 = vpop.f32.mrb[0].mxu0
      %v2591 = vadd.f32 %v1875, %v2590
      %v2592 = vpop.f32.mrb[0].mxu0
      %v2593 = vpop.f32.mrb[0].mxu0
      %v2594 = vadd.f32 %v1878, %v2593
      %v2595 = vpop.f32.mrb[0].mxu0
      %2596 = vmatprep.mubr.bf16.mxu0 0
      %2597 = vmatmul.mubr.bf16.gmra.mrb[0].mxu0 %v2101
      %v2598 = vpop.f32.mrb[0].mxu0
      %v2599 = vadd.f32 %v1883, %v2598
      %v2600 = vpop.f32.mrb[0].mxu0
      %v2601 = vpop.f32.mrb[0].mxu0
      %v2602 = vadd.f32 %v1886, %v2601
      %v2603 = vpop.f32.mrb[0].mxu0
      %2604 = vmatprep.mubr.bf16.mxu0 0
      %2605 = vmatmul.mubr.bf16.gmra.mrb[0].mxu0 %v2103
      %v2606 = vpop.f32.mrb[0].mxu0
      %v2607 = vadd.f32 %v1891, %v2606
      %v2608 = vpop.f32.mrb[0].mxu0
      %v2609 = vpop.f32.mrb[0].mxu0
      %v2610 = vadd.f32 %v1894, %v2609
      %v2611 = vpop.f32.mrb[0].mxu0
      %2612 = vmatprep.mubr.bf16.mxu0 0
      %2613 = vmatmul.mubr.bf16.gmra.mrb[0].mxu0 %v2105
      %v2614 = vpop.f32.mrb[0].mxu0
      %v2615 = vadd.f32 %v1899, %v2614
      %v2616 = vpop.f32.mrb[0].mxu0
      %v2617 = vpop.f32.mrb[0].mxu0
      %v2618 = vadd.f32 %v1902, %v2617
      %v2619 = vpop.f32.mrb[0].mxu0
      %2620 = vmatprep.mubr.bf16.mxu0 0
      %2621 = vmatmul.mubr.bf16.gmra.mrb[0].mxu0 %v2107
      %v2622 = vpop.f32.mrb[0].mxu0
      %v2623 = vadd.f32 %v1907, %v2622
      %v2624 = vpop.f32.mrb[0].mxu0
      %v2625 = vpop.f32.mrb[0].mxu0
      %v2626 = vadd.f32 %v1910, %v2625
      %v2627 = vpop.f32.mrb[0].mxu0
      %2628 = vmatprep.mubr.bf16.mxu0 0
      %2629 = vmatmul.mubr.bf16.gmra.mrb[0].mxu0 %v2109
      %v2630 = vpop.f32.mrb[0].mxu0
      %v2631 = vadd.f32 %v1915, %v2630
      %v2632 = vpop.f32.mrb[0].mxu0
      %v2633 = vpop.f32.mrb[0].mxu0
      %v2634 = vadd.f32 %v1918, %v2633
      %v2635 = vpop.f32.mrb[0].mxu0
      %2636 = vmatprep.mubr.bf16.mxu0 0
      %2637 = vmatmul.mubr.bf16.gmra.mrb[0].mxu0 %v2111
      %v2638 = vpop.f32.mrb[0].mxu0
      %v2639 = vadd.f32 %v1923, %v2638
      %v2640 = vpop.f32.mrb[0].mxu0
      %v2641 = vpop.f32.mrb[0].mxu0
      %v2642 = vadd.f32 %v1926, %v2641
      %v2643 = vpop.f32.mrb[0].mxu0
      %2644 = vmatprep.mubr.bf16.mxu0 0
      %2645 = vmatmul.mubr.bf16.gmra.mrb[0].mxu0 %v2113
      %v2646 = vpop.f32.mrb[0].mxu0
      %v2647 = vadd.f32 %v1931, %v2646
      %v2648 = vpop.f32.mrb[0].mxu0
      %v2649 = vpop.f32.mrb[0].mxu0
      %v2650 = vadd.f32 %v1934, %v2649
      %v2651 = vpop.f32.mrb[0].mxu0
      %2652 = vmatprep.mubr.bf16.mxu0 0
      %2653 = vmatmul.mubr.bf16.gmra.mrb[0].mxu0 %v2115
      %v2654 = vpop.f32.mrb[0].mxu0
      %v2655 = vadd.f32 %v1939, %v2654
      %v2656 = vpop.f32.mrb[0].mxu0
      %v2657 = vpop.f32.mrb[0].mxu0
      %v2658 = vadd.f32 %v1942, %v2657
      %v2659 = vpop.f32.mrb[0].mxu0
      %2660 = vmatprep.mubr.bf16.mxu0 0
      %2661 = vmatmul.mubr.bf16.gmra.mrb[0].mxu0 %v2117
      %v2662 = vpop.f32.mrb[0].mxu0
      %v2663 = vadd.f32 %v1947, %v2662
      %v2664 = vpop.f32.mrb[0].mxu0
      %v2665 = vpop.f32.mrb[0].mxu0
      %v2666 = vadd.f32 %v1950, %v2665
      %v2667 = vpop.f32.mrb[0].mxu0
      %2668 = vmatprep.mubr.bf16.mxu0 0
      %2669 = vmatmul.mubr.bf16.gmra.mrb[0].mxu0 %v2119
      %v2670 = vpop.f32.mrb[0].mxu0
      %v2671 = vadd.f32 %v1955, %v2670
      %v2672 = vpop.f32.mrb[0].mxu0
      %v2673 = vpop.f32.mrb[0].mxu0
      %v2674 = vadd.f32 %v1958, %v2673
      %v2675 = vpop.f32.mrb[0].mxu0
      %2676 = vmatprep.mubr.bf16.mxu0 0
      %2677 = vmatmul.mubr.bf16.gmra.mrb[0].mxu0 %v2121
      %v2678 = vpop.f32.mrb[0].mxu0
      %v2679 = vadd.f32 %v1963, %v2678
      %v2680 = vpop.f32.mrb[0].mxu0
      %v2681 = vpop.f32.mrb[0].mxu0
      %v2682 = vadd.f32 %v1966, %v2681
      %v2683 = vpop.f32.mrb[0].mxu0
      %2684 = vmatprep.mubr.bf16.mxu0 0
      %2685 = vmatmul.mubr.bf16.gmra.mrb[0].mxu0 %v2123
      %v2686 = vpop.f32.mrb[0].mxu0
      %v2687 = vadd.f32 %v1971, %v2686
      %v2688 = vpop.f32.mrb[0].mxu0
      %v2689 = vpop.f32.mrb[0].mxu0
      %v2690 = vadd.f32 %v1974, %v2689
      %v2691 = vpop.f32.mrb[0].mxu0
      %2692 = vmatprep.mubr.bf16.mxu0 0
      %2693 = vmatmul.mubr.bf16.gmra.mrb[0].mxu0 %v2125
      %v2694 = vpop.f32.mrb[0].mxu0
      %v2695 = vadd.f32 %v1979, %v2694
      %v2696 = vpop.f32.mrb[0].mxu0
      %v2697 = vpop.f32.mrb[0].mxu0
      %v2698 = vadd.f32 %v1982, %v2697
      %v2699 = vpop.f32.mrb[0].mxu0
      %2700 = vmatprep.mubr.bf16.mxu0 0
      %2701 = vmatmul.mubr.bf16.gmra.mrb[0].mxu0 %v2127
      %v2702 = vpop.f32.mrb[0].mxu0
      %v2703 = vadd.f32 %v1987, %v2702
      %v2704 = vpop.f32.mrb[0].mxu0
      %v2705 = vpop.f32.mrb[0].mxu0
      %v2706 = vadd.f32 %v1990, %v2705
      %v2707 = vpop.f32.mrb[0].mxu0
      %2708 = vdwg.mxu0
      %v2709 = vld [vmem:[%s165] sm:$0xe]
      %s2710 = scalar_lea.vmem %s1, 4
      %v2711 = vld [vmem:[%s2710] sm:$0x3]
      %v2713 = vunpack.c.l.b16 %v2709
      %v2714 = vpack.c.b16 %v450, %v2713
      %vm2715 = vcmask 1046528
      %v2716 = vrot.slane %v2714, 1
      %v2717 = vrot.slane %v587, 1
      %v2718 = vsel %vm2715, %v2716, %v2717
      %v2719 = vrot.slane %v588, 1
      %v2720 = vsel %vm2715, %v2717, %v2719
      %v2721 = vrot.slane %v589, 1
      %v2722 = vsel %vm2715, %v2719, %v2721
      %v2723 = vrot.slane %v590, 1
      %v2724 = vsel %vm2715, %v2721, %v2723
      %v2725 = vrot.slane %v591, 1
      %v2726 = vsel %vm2715, %v2723, %v2725
      %v2727 = vrot.slane %v592, 1
      %v2728 = vsel %vm2715, %v2725, %v2727
      %v2729 = vrot.slane %v593, 1
      %v2730 = vsel %vm2715, %v2727, %v2729
      %v2731 = vrot.slane %v594, 1
      %v2732 = vsel %vm2715, %v2729, %v2731
      %v2733 = vrot.slane %v595, 1
      %v2734 = vsel %vm2715, %v2731, %v2733
      %v2735 = vrot.slane %v596, 1
      %v2736 = vsel %vm2715, %v2733, %v2735
      %v2737 = vrot.slane %v597, 1
      %v2738 = vsel %vm2715, %v2735, %v2737
      %v2739 = vrot.slane %v598, 1
      %v2740 = vsel %vm2715, %v2737, %v2739
      %v2741 = vrot.slane %v599, 1
      %v2742 = vsel %vm2715, %v2739, %v2741
      %v2743 = vrot.slane %v600, 1
      %v2744 = vsel %vm2715, %v2741, %v2743
      %v2745 = vrot.slane %v601, 1
      %v2746 = vsel %vm2715, %v2743, %v2745
      %v2747 = vrot.slane %v602, 1
      %v2748 = vsel %vm2715, %v2745, %v2747
      %v2749 = vrot.slane %v603, 1
      %v2750 = vsel %vm2715, %v2747, %v2749
      %v2751 = vrot.slane %v604, 1
      %v2752 = vsel %vm2715, %v2749, %v2751
      %v2753 = vrot.slane %v605, 1
      %v2754 = vsel %vm2715, %v2751, %v2753
      %v2755 = vrot.slane %v606, 1
      %v2756 = vsel %vm2715, %v2753, %v2755
      %v2757 = vrot.slane %v607, 1
      %v2758 = vsel %vm2715, %v2755, %v2757
      %v2759 = vrot.slane %v608, 1
      %v2760 = vsel %vm2715, %v2757, %v2759
      %v2761 = vrot.slane %v609, 1
      %v2762 = vsel %vm2715, %v2759, %v2761
      %v2763 = vrot.slane %v610, 1
      %v2764 = vsel %vm2715, %v2761, %v2763
      %v2765 = vrot.slane %v611, 1
      %v2766 = vsel %vm2715, %v2763, %v2765
      %v2767 = vrot.slane %v612, 1
      %v2768 = vsel %vm2715, %v2765, %v2767
      %v2769 = vrot.slane %v613, 1
      %v2770 = vsel %vm2715, %v2767, %v2769
      %v2771 = vrot.slane %v614, 1
      %v2772 = vsel %vm2715, %v2769, %v2771
      %v2773 = vrot.slane %v615, 1
      %v2774 = vsel %vm2715, %v2771, %v2773
      %v2775 = vrot.slane %v616, 1
      %v2776 = vsel %vm2715, %v2773, %v2775
      %v2777 = vrot.slane %v617, 1
      %v2778 = vsel %vm2715, %v2775, %v2777
      %v2779 = vrot.slane %v618, 1
      %v2780 = vsel %vm2715, %v2777, %v2779
      %v2781 = vrot.slane %v619, 1
      %v2782 = vsel %vm2715, %v2779, %v2781
      %v2783 = vrot.slane %v620, 1
      %v2784 = vsel %vm2715, %v2781, %v2783
      %v2785 = vrot.slane %v621, 1
      %v2786 = vsel %vm2715, %v2783, %v2785
      %v2787 = vrot.slane %v622, 1
      %v2788 = vsel %vm2715, %v2785, %v2787
      %v2789 = vrot.slane %v623, 1
      %v2790 = vsel %vm2715, %v2787, %v2789
      %v2791 = vrot.slane %v624, 1
      %v2792 = vsel %vm2715, %v2789, %v2791
      %v2793 = vrot.slane %v625, 1
      %v2794 = vsel %vm2715, %v2791, %v2793
      %v2795 = vrot.slane %v626, 1
      %v2796 = vsel %vm2715, %v2793, %v2795
      %v2797 = vrot.slane %v627, 1
      %v2798 = vsel %vm2715, %v2795, %v2797
      %v2799 = vrot.slane %v628, 1
      %v2800 = vsel %vm2715, %v2797, %v2799
      %v2801 = vrot.slane %v629, 1
      %v2802 = vsel %vm2715, %v2799, %v2801
      %v2803 = vrot.slane %v630, 1
      %v2804 = vsel %vm2715, %v2801, %v2803
      %v2805 = vrot.slane %v631, 1
      %v2806 = vsel %vm2715, %v2803, %v2805
      %v2807 = vrot.slane %v632, 1
      %v2808 = vsel %vm2715, %v2805, %v2807
      %v2809 = vrot.slane %v633, 1
      %v2810 = vsel %vm2715, %v2807, %v2809
      %v2811 = vrot.slane %v634, 1
      %v2812 = vsel %vm2715, %v2809, %v2811
      %v2813 = vrot.slane %v635, 1
      %v2814 = vsel %vm2715, %v2811, %v2813
      %v2815 = vrot.slane %v636, 1
      %v2816 = vsel %vm2715, %v2813, %v2815
      %v2817 = vrot.slane %v637, 1
      %v2818 = vsel %vm2715, %v2815, %v2817
      %v2819 = vrot.slane %v638, 1
      %v2820 = vsel %vm2715, %v2817, %v2819
      %v2821 = vrot.slane %v639, 1
      %v2822 = vsel %vm2715, %v2819, %v2821
      %v2823 = vrot.slane %v640, 1
      %v2824 = vsel %vm2715, %v2821, %v2823
      %v2825 = vrot.slane %v641, 1
      %v2826 = vsel %vm2715, %v2823, %v2825
      %v2827 = vrot.slane %v642, 1
      %v2828 = vsel %vm2715, %v2825, %v2827
      %v2829 = vrot.slane %v643, 1
      %v2830 = vsel %vm2715, %v2827, %v2829
      %v2831 = vrot.slane %v644, 1
      %v2832 = vsel %vm2715, %v2829, %v2831
      %v2833 = vrot.slane %v645, 1
      %v2834 = vsel %vm2715, %v2831, %v2833
      %v2835 = vrot.slane %v646, 1
      %v2836 = vsel %vm2715, %v2833, %v2835
      %v2837 = vrot.slane %v647, 1
      %v2838 = vsel %vm2715, %v2835, %v2837
      %v2839 = vrot.slane %v648, 1
      %v2840 = vsel %vm2715, %v2837, %v2839
      %v2841 = vrot.slane %v649, 1
      %v2842 = vsel %vm2715, %v2839, %v2841
      %v2843 = vrot.slane %v650, 1
      %v2844 = vsel %vm2715, %v2841, %v2843
      %v2845 = vrot.slane %v651, 1
      %v2846 = vsel %vm2715, %v2843, %v2845
      %v2847 = vrot.slane %v652, 1
      %v2848 = vsel %vm2715, %v2845, %v2847
      %v2849 = vrot.slane %v653, 1
      %v2850 = vsel %vm2715, %v2847, %v2849
      %v2851 = vrot.slane %v654, 1
      %v2852 = vsel %vm2715, %v2849, %v2851
      %v2854 = vsel %vm1204, %v2718, 0
      %v2857 = vsel %vm1204, %v2720, 0
      %v2860 = vsel %vm1204, %v2722, 0
      %v2863 = vsel %vm1204, %v2724, 0
      %v2866 = vsel %vm1204, %v2726, 0
      %v2869 = vsel %vm1204, %v2728, 0
      %v2872 = vsel %vm1204, %v2730, 0
      %v2875 = vsel %vm1204, %v2732, 0
      %v2878 = vsel %vm1204, %v2734, 0
      %v2881 = vsel %vm1204, %v2736, 0
      %v2884 = vsel %vm1204, %v2738, 0
      %v2887 = vsel %vm1204, %v2740, 0
      %v2890 = vsel %vm1204, %v2742, 0
      %v2893 = vsel %vm1204, %v2744, 0
      %v2896 = vsel %vm1204, %v2746, 0
      %v2899 = vsel %vm1204, %v2748, 0
      %v2902 = vsel %vm1204, %v2750, 0
      %v2905 = vsel %vm1204, %v2752, 0
      %v2908 = vsel %vm1204, %v2754, 0
      %v2911 = vsel %vm1204, %v2756, 0
      %v2914 = vsel %vm1204, %v2758, 0
      %v2917 = vsel %vm1204, %v2760, 0
      %v2920 = vsel %vm1204, %v2762, 0
      %v2923 = vsel %vm1204, %v2764, 0
      %v2926 = vsel %vm1204, %v2766, 0
      %v2929 = vsel %vm1204, %v2768, 0
      %v2932 = vsel %vm1204, %v2770, 0
      %v2935 = vsel %vm1204, %v2772, 0
      %v2938 = vsel %vm1204, %v2774, 0
      %v2941 = vsel %vm1204, %v2776, 0
      %v2944 = vsel %vm1204, %v2778, 0
      %v2947 = vsel %vm1204, %v2780, 0
      %v2950 = vsel %vm1204, %v2782, 0
      %v2953 = vsel %vm1204, %v2784, 0
      %v2956 = vsel %vm1204, %v2786, 0
      %v2959 = vsel %vm1204, %v2788, 0
      %v2962 = vsel %vm1204, %v2790, 0
      %v2965 = vsel %vm1204, %v2792, 0
      %v2968 = vsel %vm1204, %v2794, 0
      %v2971 = vsel %vm1204, %v2796, 0
      %v2974 = vsel %vm1204, %v2798, 0
      %v2977 = vsel %vm1204, %v2800, 0
      %v2980 = vsel %vm1204, %v2802, 0
      %v2983 = vsel %vm1204, %v2804, 0
      %v2986 = vsel %vm1204, %v2806, 0
      %v2989 = vsel %vm1204, %v2808, 0
      %v2992 = vsel %vm1204, %v2810, 0
      %v2995 = vsel %vm1204, %v2812, 0
      %v2998 = vsel %vm1204, %v2814, 0
      %v3001 = vsel %vm1204, %v2816, 0
      %v3004 = vsel %vm1204, %v2818, 0
      %v3007 = vsel %vm1204, %v2820, 0
      %v3010 = vsel %vm1204, %v2822, 0
      %v3013 = vsel %vm1204, %v2824, 0
      %v3016 = vsel %vm1204, %v2826, 0
      %v3019 = vsel %vm1204, %v2828, 0
      %v3022 = vsel %vm1204, %v2830, 0
      %v3025 = vsel %vm1204, %v2832, 0
      %v3028 = vsel %vm1204, %v2834, 0
      %v3031 = vsel %vm1204, %v2836, 0
      %v3034 = vsel %vm1204, %v2838, 0
      %v3037 = vsel %vm1204, %v2840, 0
      %v3040 = vsel %vm1204, %v2842, 0
      %v3043 = vsel %vm1204, %v2844, 0
      %v3046 = vsel %vm1204, %v2846, 0
      %v3049 = vsel %vm1204, %v2848, 0
      %v3052 = vsel %vm1204, %v2850, 0
      %v3055 = vsel %vm1204, %v2852, 0
      %v3058 = vand.u32 %v2711, %v1412
      %3060 = vmatprep.subr.bf16.mxu0 0
      %3061 = vmatpush1.bf16.msra.mxu0 %v3058
      %3062 = vmatprep.subr.bf16.mxu0 0
      %3063 = vmatpush1.bf16.msra.mxu0 0
      %3064 = vmatprep.subr.bf16.mxu0 0
      %3065 = vmatpush1.bf16.msra.mxu0 0
      %3066 = vmatprep.subr.bf16.mxu0 0
      %3067 = vmatpush1.bf16.msra.mxu0 0
      %3068 = vmatprep.subr.bf16.mxu0 0
      %3069 = vmatpush1.bf16.msra.mxu0 0
      %3070 = vmatprep.subr.bf16.mxu0 0
      %3071 = vmatpush1.bf16.msra.mxu0 0
      %3072 = vmatprep.subr.bf16.mxu0 0
      %3073 = vmatpush1.bf16.msra.mxu0 0
      %3074 = vmatprep.subr.bf16.mxu0 0
      %3075 = vmatpush1.bf16.msra.mxu0 0
      %3076 = vmatprep.subr.bf16.mxu0 0
      %3077 = vmatpush1.bf16.msra.mxu0 0
      %3078 = vmatprep.subr.bf16.mxu0 0
      %3079 = vmatpush1.bf16.msra.mxu0 0
      %3080 = vmatprep.subr.bf16.mxu0 0
      %3081 = vmatpush1.bf16.msra.mxu0 0
      %3082 = vmatprep.subr.bf16.mxu0 0
      %3083 = vmatpush1.bf16.msra.mxu0 0
      %3084 = vmatprep.subr.bf16.mxu0 0
      %3085 = vmatpush1.bf16.msra.mxu0 0
      %3086 = vmatprep.subr.bf16.mxu0 0
      %3087 = vmatpush1.bf16.msra.mxu0 0
      %3088 = vmatprep.subr.bf16.mxu0 0
      %3089 = vmatpush1.bf16.msra.mxu0 0
      %3090 = vmatprep.subr.bf16.mxu0 0
      %3091 = vmatpush1.bf16.msra.mxu0 0
      %3092 = vmatprep.mubr.bf16.mxu0 0
      %3093 = vmatmul.mubr.bf16.gmra.mrb[0].mxu0 %v2854
      %v3094 = vpop.f32.mrb[0].mxu0
      %v3095 = vadd.f32 0.0, %v3094
      %v3096 = vpop.f32.mrb[0].mxu0
      %v3097 = vpop.f32.mrb[0].mxu0
      %v3098 = vadd.f32 0.0, %v3097
      %v3099 = vpop.f32.mrb[0].mxu0
      %3100 = vmatprep.mubr.bf16.mxu0 0
      %3101 = vmatmul.mubr.bf16.gmra.mrb[0].mxu0 %v2857
      %v3102 = vpop.f32.mrb[0].mxu0
      %v3103 = vadd.f32 0.0, %v3102
      %v3104 = vpop.f32.mrb[0].mxu0
      %v3105 = vpop.f32.mrb[0].mxu0
      %v3106 = vadd.f32 0.0, %v3105
      %v3107 = vpop.f32.mrb[0].mxu0
      %3108 = vmatprep.mubr.bf16.mxu0 0
      %3109 = vmatmul.mubr.bf16.gmra.mrb[0].mxu0 %v2860
      %v3110 = vpop.f32.mrb[0].mxu0
      %v3111 = vadd.f32 0.0, %v3110
      %v3112 = vpop.f32.mrb[0].mxu0
      %v3113 = vpop.f32.mrb[0].mxu0
      %v3114 = vadd.f32 0.0, %v3113
      %v3115 = vpop.f32.mrb[0].mxu0
      %3116 = vmatprep.mubr.bf16.mxu0 0
      %3117 = vmatmul.mubr.bf16.gmra.mrb[0].mxu0 %v2863
      %v3118 = vpop.f32.mrb[0].mxu0
      %v3119 = vadd.f32 0.0, %v3118
      %v3120 = vpop.f32.mrb[0].mxu0
      %v3121 = vpop.f32.mrb[0].mxu0
      %v3122 = vadd.f32 0.0, %v3121
      %v3123 = vpop.f32.mrb[0].mxu0
      %3124 = vmatprep.mubr.bf16.mxu0 0
      %3125 = vmatmul.mubr.bf16.gmra.mrb[0].mxu0 %v2866
      %v3126 = vpop.f32.mrb[0].mxu0
      %v3127 = vadd.f32 0.0, %v3126
      %v3128 = vpop.f32.mrb[0].mxu0
      %v3129 = vpop.f32.mrb[0].mxu0
      %v3130 = vadd.f32 0.0, %v3129
      %v3131 = vpop.f32.mrb[0].mxu0
      %3132 = vmatprep.mubr.bf16.mxu0 0
      %3133 = vmatmul.mubr.bf16.gmra.mrb[0].mxu0 %v2869
      %v3134 = vpop.f32.mrb[0].mxu0
      %v3135 = vadd.f32 0.0, %v3134
      %v3136 = vpop.f32.mrb[0].mxu0
      %v3137 = vpop.f32.mrb[0].mxu0
      %v3138 = vadd.f32 0.0, %v3137
      %v3139 = vpop.f32.mrb[0].mxu0
      %3140 = vmatprep.mubr.bf16.mxu0 0
      %3141 = vmatmul.mubr.bf16.gmra.mrb[0].mxu0 %v2872
      %v3142 = vpop.f32.mrb[0].mxu0
      %v3143 = vadd.f32 0.0, %v3142
      %v3144 = vpop.f32.mrb[0].mxu0
      %v3145 = vpop.f32.mrb[0].mxu0
      %v3146 = vadd.f32 0.0, %v3145
      %v3147 = vpop.f32.mrb[0].mxu0
      %3148 = vmatprep.mubr.bf16.mxu0 0
      %3149 = vmatmul.mubr.bf16.gmra.mrb[0].mxu0 %v2875
      %v3150 = vpop.f32.mrb[0].mxu0
      %v3151 = vadd.f32 0.0, %v3150
      %v3152 = vpop.f32.mrb[0].mxu0
      %v3153 = vpop.f32.mrb[0].mxu0
      %v3154 = vadd.f32 0.0, %v3153
      %v3155 = vpop.f32.mrb[0].mxu0
      %3156 = vmatprep.mubr.bf16.mxu0 0
      %3157 = vmatmul.mubr.bf16.gmra.mrb[0].mxu0 %v2878
      %v3158 = vpop.f32.mrb[0].mxu0
      %v3159 = vadd.f32 0.0, %v3158
      %v3160 = vpop.f32.mrb[0].mxu0
      %v3161 = vpop.f32.mrb[0].mxu0
      %v3162 = vadd.f32 0.0, %v3161
      %v3163 = vpop.f32.mrb[0].mxu0
      %3164 = vmatprep.mubr.bf16.mxu0 0
      %3165 = vmatmul.mubr.bf16.gmra.mrb[0].mxu0 %v2881
      %v3166 = vpop.f32.mrb[0].mxu0
      %v3167 = vadd.f32 0.0, %v3166
      %v3168 = vpop.f32.mrb[0].mxu0
      %v3169 = vpop.f32.mrb[0].mxu0
      %v3170 = vadd.f32 0.0, %v3169
      %v3171 = vpop.f32.mrb[0].mxu0
      %3172 = vmatprep.mubr.bf16.mxu0 0
      %3173 = vmatmul.mubr.bf16.gmra.mrb[0].mxu0 %v2884
      %v3174 = vpop.f32.mrb[0].mxu0
      %v3175 = vadd.f32 0.0, %v3174
      %v3176 = vpop.f32.mrb[0].mxu0
      %v3177 = vpop.f32.mrb[0].mxu0
      %v3178 = vadd.f32 0.0, %v3177
      %v3179 = vpop.f32.mrb[0].mxu0
      %3180 = vmatprep.mubr.bf16.mxu0 0
      %3181 = vmatmul.mubr.bf16.gmra.mrb[0].mxu0 %v2887
      %v3182 = vpop.f32.mrb[0].mxu0
      %v3183 = vadd.f32 0.0, %v3182
      %v3184 = vpop.f32.mrb[0].mxu0
      %v3185 = vpop.f32.mrb[0].mxu0
      %v3186 = vadd.f32 0.0, %v3185
      %v3187 = vpop.f32.mrb[0].mxu0
      %3188 = vmatprep.mubr.bf16.mxu0 0
      %3189 = vmatmul.mubr.bf16.gmra.mrb[0].mxu0 %v2890
      %v3190 = vpop.f32.mrb[0].mxu0
      %v3191 = vadd.f32 0.0, %v3190
      %v3192 = vpop.f32.mrb[0].mxu0
      %v3193 = vpop.f32.mrb[0].mxu0
      %v3194 = vadd.f32 0.0, %v3193
      %v3195 = vpop.f32.mrb[0].mxu0
      %3196 = vmatprep.mubr.bf16.mxu0 0
      %3197 = vmatmul.mubr.bf16.gmra.mrb[0].mxu0 %v2893
      %v3198 = vpop.f32.mrb[0].mxu0
      %v3199 = vadd.f32 0.0, %v3198
      %v3200 = vpop.f32.mrb[0].mxu0
      %v3201 = vpop.f32.mrb[0].mxu0
      %v3202 = vadd.f32 0.0, %v3201
      %v3203 = vpop.f32.mrb[0].mxu0
      %3204 = vmatprep.mubr.bf16.mxu0 0
      %3205 = vmatmul.mubr.bf16.gmra.mrb[0].mxu0 %v2896
      %v3206 = vpop.f32.mrb[0].mxu0
      %v3207 = vadd.f32 0.0, %v3206
      %v3208 = vpop.f32.mrb[0].mxu0
      %v3209 = vpop.f32.mrb[0].mxu0
      %v3210 = vadd.f32 0.0, %v3209
      %v3211 = vpop.f32.mrb[0].mxu0
      %3212 = vmatprep.mubr.bf16.mxu0 0
      %3213 = vmatmul.mubr.bf16.gmra.mrb[0].mxu0 %v2899
      %v3214 = vpop.f32.mrb[0].mxu0
      %v3215 = vadd.f32 0.0, %v3214
      %v3216 = vpop.f32.mrb[0].mxu0
      %v3217 = vpop.f32.mrb[0].mxu0
      %v3218 = vadd.f32 0.0, %v3217
      %v3219 = vpop.f32.mrb[0].mxu0
      %3220 = vmatprep.mubr.bf16.mxu0 0
      %3221 = vmatmul.mubr.bf16.gmra.mrb[0].mxu0 %v2902
      %v3222 = vpop.f32.mrb[0].mxu0
      %v3223 = vadd.f32 0.0, %v3222
      %v3224 = vpop.f32.mrb[0].mxu0
      %v3225 = vpop.f32.mrb[0].mxu0
      %v3226 = vadd.f32 0.0, %v3225
      %v3227 = vpop.f32.mrb[0].mxu0
      %3228 = vmatprep.mubr.bf16.mxu0 0
      %3229 = vmatmul.mubr.bf16.gmra.mrb[0].mxu0 %v2905
      %v3230 = vpop.f32.mrb[0].mxu0
      %v3231 = vadd.f32 0.0, %v3230
      %v3232 = vpop.f32.mrb[0].mxu0
      %v3233 = vpop.f32.mrb[0].mxu0
      %v3234 = vadd.f32 0.0, %v3233
      %v3235 = vpop.f32.mrb[0].mxu0
      %3236 = vmatprep.mubr.bf16.mxu0 0
      %3237 = vmatmul.mubr.bf16.gmra.mrb[0].mxu0 %v2908
      %v3238 = vpop.f32.mrb[0].mxu0
      %v3239 = vadd.f32 0.0, %v3238
      %v3240 = vpop.f32.mrb[0].mxu0
      %v3241 = vpop.f32.mrb[0].mxu0
      %v3242 = vadd.f32 0.0, %v3241
      %v3243 = vpop.f32.mrb[0].mxu0
      %3244 = vmatprep.mubr.bf16.mxu0 0
      %3245 = vmatmul.mubr.bf16.gmra.mrb[0].mxu0 %v2911
      %v3246 = vpop.f32.mrb[0].mxu0
      %v3247 = vadd.f32 0.0, %v3246
      %v3248 = vpop.f32.mrb[0].mxu0
      %v3249 = vpop.f32.mrb[0].mxu0
      %v3250 = vadd.f32 0.0, %v3249
      %v3251 = vpop.f32.mrb[0].mxu0
      %3252 = vmatprep.mubr.bf16.mxu0 0
      %3253 = vmatmul.mubr.bf16.gmra.mrb[0].mxu0 %v2914
      %v3254 = vpop.f32.mrb[0].mxu0
      %v3255 = vadd.f32 0.0, %v3254
      %v3256 = vpop.f32.mrb[0].mxu0
      %v3257 = vpop.f32.mrb[0].mxu0
      %v3258 = vadd.f32 0.0, %v3257
      %v3259 = vpop.f32.mrb[0].mxu0
      %3260 = vmatprep.mubr.bf16.mxu0 0
      %3261 = vmatmul.mubr.bf16.gmra.mrb[0].mxu0 %v2917
      %v3262 = vpop.f32.mrb[0].mxu0
      %v3263 = vadd.f32 0.0, %v3262
      %v3264 = vpop.f32.mrb[0].mxu0
      %v3265 = vpop.f32.mrb[0].mxu0
      %v3266 = vadd.f32 0.0, %v3265
      %v3267 = vpop.f32.mrb[0].mxu0
      %3268 = vmatprep.mubr.bf16.mxu0 0
      %3269 = vmatmul.mubr.bf16.gmra.mrb[0].mxu0 %v2920
      %v3270 = vpop.f32.mrb[0].mxu0
      %v3271 = vadd.f32 0.0, %v3270
      %v3272 = vpop.f32.mrb[0].mxu0
      %v3273 = vpop.f32.mrb[0].mxu0
      %v3274 = vadd.f32 0.0, %v3273
      %v3275 = vpop.f32.mrb[0].mxu0
      %3276 = vmatprep.mubr.bf16.mxu0 0
      %3277 = vmatmul.mubr.bf16.gmra.mrb[0].mxu0 %v2923
      %v3278 = vpop.f32.mrb[0].mxu0
      %v3279 = vadd.f32 0.0, %v3278
      %v3280 = vpop.f32.mrb[0].mxu0
      %v3281 = vpop.f32.mrb[0].mxu0
      %v3282 = vadd.f32 0.0, %v3281
      %v3283 = vpop.f32.mrb[0].mxu0
      %3284 = vmatprep.mubr.bf16.mxu0 0
      %3285 = vmatmul.mubr.bf16.gmra.mrb[0].mxu0 %v2926
      %v3286 = vpop.f32.mrb[0].mxu0
      %v3287 = vadd.f32 0.0, %v3286
      %v3288 = vpop.f32.mrb[0].mxu0
      %v3289 = vpop.f32.mrb[0].mxu0
      %v3290 = vadd.f32 0.0, %v3289
      %v3291 = vpop.f32.mrb[0].mxu0
      %3292 = vmatprep.mubr.bf16.mxu0 0
      %3293 = vmatmul.mubr.bf16.gmra.mrb[0].mxu0 %v2929
      %v3294 = vpop.f32.mrb[0].mxu0
      %v3295 = vadd.f32 0.0, %v3294
      %v3296 = vpop.f32.mrb[0].mxu0
      %v3297 = vpop.f32.mrb[0].mxu0
      %v3298 = vadd.f32 0.0, %v3297
      %v3299 = vpop.f32.mrb[0].mxu0
      %3300 = vmatprep.mubr.bf16.mxu0 0
      %3301 = vmatmul.mubr.bf16.gmra.mrb[0].mxu0 %v2932
      %v3302 = vpop.f32.mrb[0].mxu0
      %v3303 = vadd.f32 0.0, %v3302
      %v3304 = vpop.f32.mrb[0].mxu0
      %v3305 = vpop.f32.mrb[0].mxu0
      %v3306 = vadd.f32 0.0, %v3305
      %v3307 = vpop.f32.mrb[0].mxu0
      %3308 = vmatprep.mubr.bf16.mxu0 0
      %3309 = vmatmul.mubr.bf16.gmra.mrb[0].mxu0 %v2935
      %v3310 = vpop.f32.mrb[0].mxu0
      %v3311 = vadd.f32 0.0, %v3310
      %v3312 = vpop.f32.mrb[0].mxu0
      %v3313 = vpop.f32.mrb[0].mxu0
      %v3314 = vadd.f32 0.0, %v3313
      %v3315 = vpop.f32.mrb[0].mxu0
      %3316 = vmatprep.mubr.bf16.mxu0 0
      %3317 = vmatmul.mubr.bf16.gmra.mrb[0].mxu0 %v2938
      %v3318 = vpop.f32.mrb[0].mxu0
      %v3319 = vadd.f32 0.0, %v3318
      %v3320 = vpop.f32.mrb[0].mxu0
      %v3321 = vpop.f32.mrb[0].mxu0
      %v3322 = vadd.f32 0.0, %v3321
      %v3323 = vpop.f32.mrb[0].mxu0
      %3324 = vmatprep.mubr.bf16.mxu0 0
      %3325 = vmatmul.mubr.bf16.gmra.mrb[0].mxu0 %v2941
      %v3326 = vpop.f32.mrb[0].mxu0
      %v3327 = vadd.f32 0.0, %v3326
      %v3328 = vpop.f32.mrb[0].mxu0
      %v3329 = vpop.f32.mrb[0].mxu0
      %v3330 = vadd.f32 0.0, %v3329
      %v3331 = vpop.f32.mrb[0].mxu0
      %3332 = vmatprep.mubr.bf16.mxu0 0
      %3333 = vmatmul.mubr.bf16.gmra.mrb[0].mxu0 %v2944
      %v3334 = vpop.f32.mrb[0].mxu0
      %v3335 = vadd.f32 0.0, %v3334
      %v3336 = vpop.f32.mrb[0].mxu0
      %v3337 = vpop.f32.mrb[0].mxu0
      %v3338 = vadd.f32 0.0, %v3337
      %v3339 = vpop.f32.mrb[0].mxu0
      %3340 = vmatprep.mubr.bf16.mxu0 0
      %3341 = vmatmul.mubr.bf16.gmra.mrb[0].mxu0 %v2947
      %v3342 = vpop.f32.mrb[0].mxu0
      %v3343 = vadd.f32 0.0, %v3342
      %v3344 = vpop.f32.mrb[0].mxu0
      %v3345 = vpop.f32.mrb[0].mxu0
      %v3346 = vadd.f32 0.0, %v3345
      %v3347 = vpop.f32.mrb[0].mxu0
      %3348 = vmatprep.mubr.bf16.mxu0 0
      %3349 = vmatmul.mubr.bf16.gmra.mrb[0].mxu0 %v2950
      %v3350 = vpop.f32.mrb[0].mxu0
      %v3351 = vadd.f32 0.0, %v3350
      %v3352 = vpop.f32.mrb[0].mxu0
      %v3353 = vpop.f32.mrb[0].mxu0
      %v3354 = vadd.f32 0.0, %v3353
      %v3355 = vpop.f32.mrb[0].mxu0
      %3356 = vmatprep.mubr.bf16.mxu0 0
      %3357 = vmatmul.mubr.bf16.gmra.mrb[0].mxu0 %v2953
      %v3358 = vpop.f32.mrb[0].mxu0
      %v3359 = vadd.f32 0.0, %v3358
      %v3360 = vpop.f32.mrb[0].mxu0
      %v3361 = vpop.f32.mrb[0].mxu0
      %v3362 = vadd.f32 0.0, %v3361
      %v3363 = vpop.f32.mrb[0].mxu0
      %3364 = vmatprep.mubr.bf16.mxu0 0
      %3365 = vmatmul.mubr.bf16.gmra.mrb[0].mxu0 %v2956
      %v3366 = vpop.f32.mrb[0].mxu0
      %v3367 = vadd.f32 0.0, %v3366
      %v3368 = vpop.f32.mrb[0].mxu0
      %v3369 = vpop.f32.mrb[0].mxu0
      %v3370 = vadd.f32 0.0, %v3369
      %v3371 = vpop.f32.mrb[0].mxu0
      %3372 = vmatprep.mubr.bf16.mxu0 0
      %3373 = vmatmul.mubr.bf16.gmra.mrb[0].mxu0 %v2959
      %v3374 = vpop.f32.mrb[0].mxu0
      %v3375 = vadd.f32 0.0, %v3374
      %v3376 = vpop.f32.mrb[0].mxu0
      %v3377 = vpop.f32.mrb[0].mxu0
      %v3378 = vadd.f32 0.0, %v3377
      %v3379 = vpop.f32.mrb[0].mxu0
      %3380 = vmatprep.mubr.bf16.mxu0 0
      %3381 = vmatmul.mubr.bf16.gmra.mrb[0].mxu0 %v2962
      %v3382 = vpop.f32.mrb[0].mxu0
      %v3383 = vadd.f32 0.0, %v3382
      %v3384 = vpop.f32.mrb[0].mxu0
      %v3385 = vpop.f32.mrb[0].mxu0
      %v3386 = vadd.f32 0.0, %v3385
      %v3387 = vpop.f32.mrb[0].mxu0
      %3388 = vmatprep.mubr.bf16.mxu0 0
      %3389 = vmatmul.mubr.bf16.gmra.mrb[0].mxu0 %v2965
      %v3390 = vpop.f32.mrb[0].mxu0
      %v3391 = vadd.f32 0.0, %v3390
      %v3392 = vpop.f32.mrb[0].mxu0
      %v3393 = vpop.f32.mrb[0].mxu0
      %v3394 = vadd.f32 0.0, %v3393
      %v3395 = vpop.f32.mrb[0].mxu0
      %3396 = vmatprep.mubr.bf16.mxu0 0
      %3397 = vmatmul.mubr.bf16.gmra.mrb[0].mxu0 %v2968
      %v3398 = vpop.f32.mrb[0].mxu0
      %v3399 = vadd.f32 0.0, %v3398
      %v3400 = vpop.f32.mrb[0].mxu0
      %v3401 = vpop.f32.mrb[0].mxu0
      %v3402 = vadd.f32 0.0, %v3401
      %v3403 = vpop.f32.mrb[0].mxu0
      %3404 = vmatprep.mubr.bf16.mxu0 0
      %3405 = vmatmul.mubr.bf16.gmra.mrb[0].mxu0 %v2971
      %v3406 = vpop.f32.mrb[0].mxu0
      %v3407 = vadd.f32 0.0, %v3406
      %v3408 = vpop.f32.mrb[0].mxu0
      %v3409 = vpop.f32.mrb[0].mxu0
      %v3410 = vadd.f32 0.0, %v3409
      %v3411 = vpop.f32.mrb[0].mxu0
      %3412 = vmatprep.mubr.bf16.mxu0 0
      %3413 = vmatmul.mubr.bf16.gmra.mrb[0].mxu0 %v2974
      %v3414 = vpop.f32.mrb[0].mxu0
      %v3415 = vadd.f32 0.0, %v3414
      %v3416 = vpop.f32.mrb[0].mxu0
      %v3417 = vpop.f32.mrb[0].mxu0
      %v3418 = vadd.f32 0.0, %v3417
      %v3419 = vpop.f32.mrb[0].mxu0
      %3420 = vmatprep.mubr.bf16.mxu0 0
      %3421 = vmatmul.mubr.bf16.gmra.mrb[0].mxu0 %v2977
      %v3422 = vpop.f32.mrb[0].mxu0
      %v3423 = vadd.f32 0.0, %v3422
      %v3424 = vpop.f32.mrb[0].mxu0
      %v3425 = vpop.f32.mrb[0].mxu0
      %v3426 = vadd.f32 0.0, %v3425
      %v3427 = vpop.f32.mrb[0].mxu0
      %3428 = vmatprep.mubr.bf16.mxu0 0
      %3429 = vmatmul.mubr.bf16.gmra.mrb[0].mxu0 %v2980
      %v3430 = vpop.f32.mrb[0].mxu0
      %v3431 = vadd.f32 0.0, %v3430
      %v3432 = vpop.f32.mrb[0].mxu0
      %v3433 = vpop.f32.mrb[0].mxu0
      %v3434 = vadd.f32 0.0, %v3433
      %v3435 = vpop.f32.mrb[0].mxu0
      %3436 = vmatprep.mubr.bf16.mxu0 0
      %3437 = vmatmul.mubr.bf16.gmra.mrb[0].mxu0 %v2983
      %v3438 = vpop.f32.mrb[0].mxu0
      %v3439 = vadd.f32 0.0, %v3438
      %v3440 = vpop.f32.mrb[0].mxu0
      %v3441 = vpop.f32.mrb[0].mxu0
      %v3442 = vadd.f32 0.0, %v3441
      %v3443 = vpop.f32.mrb[0].mxu0
      %3444 = vmatprep.mubr.bf16.mxu0 0
      %3445 = vmatmul.mubr.bf16.gmra.mrb[0].mxu0 %v2986
      %v3446 = vpop.f32.mrb[0].mxu0
      %v3447 = vadd.f32 0.0, %v3446
      %v3448 = vpop.f32.mrb[0].mxu0
      %v3449 = vpop.f32.mrb[0].mxu0
      %v3450 = vadd.f32 0.0, %v3449
      %v3451 = vpop.f32.mrb[0].mxu0
      %3452 = vmatprep.mubr.bf16.mxu0 0
      %3453 = vmatmul.mubr.bf16.gmra.mrb[0].mxu0 %v2989
      %v3454 = vpop.f32.mrb[0].mxu0
      %v3455 = vadd.f32 0.0, %v3454
      %v3456 = vpop.f32.mrb[0].mxu0
      %v3457 = vpop.f32.mrb[0].mxu0
      %v3458 = vadd.f32 0.0, %v3457
      %v3459 = vpop.f32.mrb[0].mxu0
      %3460 = vmatprep.mubr.bf16.mxu0 0
      %3461 = vmatmul.mubr.bf16.gmra.mrb[0].mxu0 %v2992
      %v3462 = vpop.f32.mrb[0].mxu0
      %v3463 = vadd.f32 0.0, %v3462
      %v3464 = vpop.f32.mrb[0].mxu0
      %v3465 = vpop.f32.mrb[0].mxu0
      %v3466 = vadd.f32 0.0, %v3465
      %v3467 = vpop.f32.mrb[0].mxu0
      %3468 = vmatprep.mubr.bf16.mxu0 0
      %3469 = vmatmul.mubr.bf16.gmra.mrb[0].mxu0 %v2995
      %v3470 = vpop.f32.mrb[0].mxu0
      %v3471 = vadd.f32 0.0, %v3470
      %v3472 = vpop.f32.mrb[0].mxu0
      %v3473 = vpop.f32.mrb[0].mxu0
      %v3474 = vadd.f32 0.0, %v3473
      %v3475 = vpop.f32.mrb[0].mxu0
      %3476 = vmatprep.mubr.bf16.mxu0 0
      %3477 = vmatmul.mubr.bf16.gmra.mrb[0].mxu0 %v2998
      %v3478 = vpop.f32.mrb[0].mxu0
      %v3479 = vadd.f32 0.0, %v3478
      %v3480 = vpop.f32.mrb[0].mxu0
      %v3481 = vpop.f32.mrb[0].mxu0
      %v3482 = vadd.f32 0.0, %v3481
      %v3483 = vpop.f32.mrb[0].mxu0
      %3484 = vmatprep.mubr.bf16.mxu0 0
      %3485 = vmatmul.mubr.bf16.gmra.mrb[0].mxu0 %v3001
      %v3486 = vpop.f32.mrb[0].mxu0
      %v3487 = vadd.f32 0.0, %v3486
      %v3488 = vpop.f32.mrb[0].mxu0
      %v3489 = vpop.f32.mrb[0].mxu0
      %v3490 = vadd.f32 0.0, %v3489
      %v3491 = vpop.f32.mrb[0].mxu0
      %3492 = vmatprep.mubr.bf16.mxu0 0
      %3493 = vmatmul.mubr.bf16.gmra.mrb[0].mxu0 %v3004
      %v3494 = vpop.f32.mrb[0].mxu0
      %v3495 = vadd.f32 0.0, %v3494
      %v3496 = vpop.f32.mrb[0].mxu0
      %v3497 = vpop.f32.mrb[0].mxu0
      %v3498 = vadd.f32 0.0, %v3497
      %v3499 = vpop.f32.mrb[0].mxu0
      %3500 = vmatprep.mubr.bf16.mxu0 0
      %3501 = vmatmul.mubr.bf16.gmra.mrb[0].mxu0 %v3007
      %v3502 = vpop.f32.mrb[0].mxu0
      %v3503 = vadd.f32 0.0, %v3502
      %v3504 = vpop.f32.mrb[0].mxu0
      %v3505 = vpop.f32.mrb[0].mxu0
      %v3506 = vadd.f32 0.0, %v3505
      %v3507 = vpop.f32.mrb[0].mxu0
      %3508 = vmatprep.mubr.bf16.mxu0 0
      %3509 = vmatmul.mubr.bf16.gmra.mrb[0].mxu0 %v3010
      %v3510 = vpop.f32.mrb[0].mxu0
      %v3511 = vadd.f32 0.0, %v3510
      %v3512 = vpop.f32.mrb[0].mxu0
      %v3513 = vpop.f32.mrb[0].mxu0
      %v3514 = vadd.f32 0.0, %v3513
      %v3515 = vpop.f32.mrb[0].mxu0
      %3516 = vmatprep.mubr.bf16.mxu0 0
      %3517 = vmatmul.mubr.bf16.gmra.mrb[0].mxu0 %v3013
      %v3518 = vpop.f32.mrb[0].mxu0
      %v3519 = vadd.f32 0.0, %v3518
      %v3520 = vpop.f32.mrb[0].mxu0
      %v3521 = vpop.f32.mrb[0].mxu0
      %v3522 = vadd.f32 0.0, %v3521
      %v3523 = vpop.f32.mrb[0].mxu0
      %3524 = vmatprep.mubr.bf16.mxu0 0
      %3525 = vmatmul.mubr.bf16.gmra.mrb[0].mxu0 %v3016
      %v3526 = vpop.f32.mrb[0].mxu0
      %v3527 = vadd.f32 0.0, %v3526
      %v3528 = vpop.f32.mrb[0].mxu0
      %v3529 = vpop.f32.mrb[0].mxu0
      %v3530 = vadd.f32 0.0, %v3529
      %v3531 = vpop.f32.mrb[0].mxu0
      %3532 = vmatprep.mubr.bf16.mxu0 0
      %3533 = vmatmul.mubr.bf16.gmra.mrb[0].mxu0 %v3019
      %v3534 = vpop.f32.mrb[0].mxu0
      %v3535 = vadd.f32 0.0, %v3534
      %v3536 = vpop.f32.mrb[0].mxu0
      %v3537 = vpop.f32.mrb[0].mxu0
      %v3538 = vadd.f32 0.0, %v3537
      %v3539 = vpop.f32.mrb[0].mxu0
      %3540 = vmatprep.mubr.bf16.mxu0 0
      %3541 = vmatmul.mubr.bf16.gmra.mrb[0].mxu0 %v3022
      %v3542 = vpop.f32.mrb[0].mxu0
      %v3543 = vadd.f32 0.0, %v3542
      %v3544 = vpop.f32.mrb[0].mxu0
      %v3545 = vpop.f32.mrb[0].mxu0
      %v3546 = vadd.f32 0.0, %v3545
      %v3547 = vpop.f32.mrb[0].mxu0
      %3548 = vmatprep.mubr.bf16.mxu0 0
      %3549 = vmatmul.mubr.bf16.gmra.mrb[0].mxu0 %v3025
      %v3550 = vpop.f32.mrb[0].mxu0
      %v3551 = vadd.f32 0.0, %v3550
      %v3552 = vpop.f32.mrb[0].mxu0
      %v3553 = vpop.f32.mrb[0].mxu0
      %v3554 = vadd.f32 0.0, %v3553
      %v3555 = vpop.f32.mrb[0].mxu0
      %3556 = vmatprep.mubr.bf16.mxu0 0
      %3557 = vmatmul.mubr.bf16.gmra.mrb[0].mxu0 %v3028
      %v3558 = vpop.f32.mrb[0].mxu0
      %v3559 = vadd.f32 0.0, %v3558
      %v3560 = vpop.f32.mrb[0].mxu0
      %v3561 = vpop.f32.mrb[0].mxu0
      %v3562 = vadd.f32 0.0, %v3561
      %v3563 = vpop.f32.mrb[0].mxu0
      %3564 = vmatprep.mubr.bf16.mxu0 0
      %3565 = vmatmul.mubr.bf16.gmra.mrb[0].mxu0 %v3031
      %v3566 = vpop.f32.mrb[0].mxu0
      %v3567 = vadd.f32 0.0, %v3566
      %v3568 = vpop.f32.mrb[0].mxu0
      %v3569 = vpop.f32.mrb[0].mxu0
      %v3570 = vadd.f32 0.0, %v3569
      %v3571 = vpop.f32.mrb[0].mxu0
      %3572 = vmatprep.mubr.bf16.mxu0 0
      %3573 = vmatmul.mubr.bf16.gmra.mrb[0].mxu0 %v3034
      %v3574 = vpop.f32.mrb[0].mxu0
      %v3575 = vadd.f32 0.0, %v3574
      %v3576 = vpop.f32.mrb[0].mxu0
      %v3577 = vpop.f32.mrb[0].mxu0
      %v3578 = vadd.f32 0.0, %v3577
      %v3579 = vpop.f32.mrb[0].mxu0
      %3580 = vmatprep.mubr.bf16.mxu0 0
      %3581 = vmatmul.mubr.bf16.gmra.mrb[0].mxu0 %v3037
      %v3582 = vpop.f32.mrb[0].mxu0
      %v3583 = vadd.f32 0.0, %v3582
      %v3584 = vpop.f32.mrb[0].mxu0
      %v3585 = vpop.f32.mrb[0].mxu0
      %v3586 = vadd.f32 0.0, %v3585
      %v3587 = vpop.f32.mrb[0].mxu0
      %3588 = vmatprep.mubr.bf16.mxu0 0
      %3589 = vmatmul.mubr.bf16.gmra.mrb[0].mxu0 %v3040
      %v3590 = vpop.f32.mrb[0].mxu0
      %v3591 = vadd.f32 0.0, %v3590
      %v3592 = vpop.f32.mrb[0].mxu0
      %v3593 = vpop.f32.mrb[0].mxu0
      %v3594 = vadd.f32 0.0, %v3593
      %v3595 = vpop.f32.mrb[0].mxu0
      %3596 = vmatprep.mubr.bf16.mxu0 0
      %3597 = vmatmul.mubr.bf16.gmra.mrb[0].mxu0 %v3043
      %v3598 = vpop.f32.mrb[0].mxu0
      %v3599 = vadd.f32 0.0, %v3598
      %v3600 = vpop.f32.mrb[0].mxu0
      %v3601 = vpop.f32.mrb[0].mxu0
      %v3602 = vadd.f32 0.0, %v3601
      %v3603 = vpop.f32.mrb[0].mxu0
      %3604 = vmatprep.mubr.bf16.mxu0 0
      %3605 = vmatmul.mubr.bf16.gmra.mrb[0].mxu0 %v3046
      %v3606 = vpop.f32.mrb[0].mxu0
      %v3607 = vadd.f32 0.0, %v3606
      %v3608 = vpop.f32.mrb[0].mxu0
      %v3609 = vpop.f32.mrb[0].mxu0
      %v3610 = vadd.f32 0.0, %v3609
      %v3611 = vpop.f32.mrb[0].mxu0
      %3612 = vmatprep.mubr.bf16.mxu0 0
      %3613 = vmatmul.mubr.bf16.gmra.mrb[0].mxu0 %v3049
      %v3614 = vpop.f32.mrb[0].mxu0
      %v3615 = vadd.f32 0.0, %v3614
      %v3616 = vpop.f32.mrb[0].mxu0
      %v3617 = vpop.f32.mrb[0].mxu0
      %v3618 = vadd.f32 0.0, %v3617
      %v3619 = vpop.f32.mrb[0].mxu0
      %3620 = vmatprep.mubr.bf16.mxu0 0
      %3621 = vmatmul.mubr.bf16.gmra.mrb[0].mxu0 %v3052
      %v3622 = vpop.f32.mrb[0].mxu0
      %v3623 = vadd.f32 0.0, %v3622
      %v3624 = vpop.f32.mrb[0].mxu0
      %v3625 = vpop.f32.mrb[0].mxu0
      %v3626 = vadd.f32 0.0, %v3625
      %v3627 = vpop.f32.mrb[0].mxu0
      %3628 = vmatprep.mubr.bf16.mxu0 0
      %3629 = vmatmul.mubr.bf16.gmra.mrb[0].mxu0 %v3055
      %v3630 = vpop.f32.mrb[0].mxu0
      %v3631 = vadd.f32 0.0, %v3630
      %v3632 = vpop.f32.mrb[0].mxu0
      %v3633 = vpop.f32.mrb[0].mxu0
      %v3634 = vadd.f32 0.0, %v3633
      %v3635 = vpop.f32.mrb[0].mxu0
      %3636 = vdwg.mxu0
      %v3637 = vadd.f32 %v2167, %v3095
      %v3638 = vadd.f32 %v2170, %v3098
      %v3639 = vadd.f32 %v2175, %v3103
      %v3640 = vadd.f32 %v2178, %v3106
      %v3641 = vadd.f32 %v2183, %v3111
      %v3642 = vadd.f32 %v2186, %v3114
      %v3643 = vadd.f32 %v2191, %v3119
      %v3644 = vadd.f32 %v2194, %v3122
      %v3645 = vadd.f32 %v2199, %v3127
      %v3646 = vadd.f32 %v2202, %v3130
      %v3647 = vadd.f32 %v2207, %v3135
      %v3648 = vadd.f32 %v2210, %v3138
      %v3649 = vadd.f32 %v2215, %v3143
      %v3650 = vadd.f32 %v2218, %v3146
      %v3651 = vadd.f32 %v2223, %v3151
      %v3652 = vadd.f32 %v2226, %v3154
      %v3653 = vadd.f32 %v2231, %v3159
      %v3654 = vadd.f32 %v2234, %v3162
      %v3655 = vadd.f32 %v2239, %v3167
      %v3656 = vadd.f32 %v2242, %v3170
      %v3657 = vadd.f32 %v2247, %v3175
      %v3658 = vadd.f32 %v2250, %v3178
      %v3659 = vadd.f32 %v2255, %v3183
      %v3660 = vadd.f32 %v2258, %v3186
      %v3661 = vadd.f32 %v2263, %v3191
      %v3662 = vadd.f32 %v2266, %v3194
      %v3663 = vadd.f32 %v2271, %v3199
      %v3664 = vadd.f32 %v2274, %v3202
      %v3665 = vadd.f32 %v2279, %v3207
      %v3666 = vadd.f32 %v2282, %v3210
      %v3667 = vadd.f32 %v2287, %v3215
      %v3668 = vadd.f32 %v2290, %v3218
      %v3669 = vadd.f32 %v2295, %v3223
      %v3670 = vadd.f32 %v2298, %v3226
      %v3671 = vadd.f32 %v2303, %v3231
      %v3672 = vadd.f32 %v2306, %v3234
      %v3673 = vadd.f32 %v2311, %v3239
      %v3674 = vadd.f32 %v2314, %v3242
      %v3675 = vadd.f32 %v2319, %v3247
      %v3676 = vadd.f32 %v2322, %v3250
      %v3677 = vadd.f32 %v2327, %v3255
      %v3678 = vadd.f32 %v2330, %v3258
      %v3679 = vadd.f32 %v2335, %v3263
      %v3680 = vadd.f32 %v2338, %v3266
      %v3681 = vadd.f32 %v2343, %v3271
      %v3682 = vadd.f32 %v2346, %v3274
      %v3683 = vadd.f32 %v2351, %v3279
      %v3684 = vadd.f32 %v2354, %v3282
      %v3685 = vadd.f32 %v2359, %v3287
      %v3686 = vadd.f32 %v2362, %v3290
      %v3687 = vadd.f32 %v2367, %v3295
      %v3688 = vadd.f32 %v2370, %v3298
      %v3689 = vadd.f32 %v2375, %v3303
      %v3690 = vadd.f32 %v2378, %v3306
      %v3691 = vadd.f32 %v2383, %v3311
      %v3692 = vadd.f32 %v2386, %v3314
      %v3693 = vadd.f32 %v2391, %v3319
      %v3694 = vadd.f32 %v2394, %v3322
      %v3695 = vadd.f32 %v2399, %v3327
      %v3696 = vadd.f32 %v2402, %v3330
      %v3697 = vadd.f32 %v2407, %v3335
      %v3698 = vadd.f32 %v2410, %v3338
      %v3699 = vadd.f32 %v2415, %v3343
      %v3700 = vadd.f32 %v2418, %v3346
      %v3701 = vadd.f32 %v2423, %v3351
      %v3702 = vadd.f32 %v2426, %v3354
      %v3703 = vadd.f32 %v2431, %v3359
      %v3704 = vadd.f32 %v2434, %v3362
      %v3705 = vadd.f32 %v2439, %v3367
      %v3706 = vadd.f32 %v2442, %v3370
      %v3707 = vadd.f32 %v2447, %v3375
      %v3708 = vadd.f32 %v2450, %v3378
      %v3709 = vadd.f32 %v2455, %v3383
      %v3710 = vadd.f32 %v2458, %v3386
      %v3711 = vadd.f32 %v2463, %v3391
      %v3712 = vadd.f32 %v2466, %v3394
      %v3713 = vadd.f32 %v2471, %v3399
      %v3714 = vadd.f32 %v2474, %v3402
      %v3715 = vadd.f32 %v2479, %v3407
      %v3716 = vadd.f32 %v2482, %v3410
      %v3717 = vadd.f32 %v2487, %v3415
      %v3718 = vadd.f32 %v2490, %v3418
      %v3719 = vadd.f32 %v2495, %v3423
      %v3720 = vadd.f32 %v2498, %v3426
      %v3721 = vadd.f32 %v2503, %v3431
      %v3722 = vadd.f32 %v2506, %v3434
      %v3723 = vadd.f32 %v2511, %v3439
      %v3724 = vadd.f32 %v2514, %v3442
      %v3725 = vadd.f32 %v2519, %v3447
      %v3726 = vadd.f32 %v2522, %v3450
      %v3727 = vadd.f32 %v2527, %v3455
      %v3728 = vadd.f32 %v2530, %v3458
      %v3729 = vadd.f32 %v2535, %v3463
      %v3730 = vadd.f32 %v2538, %v3466
      %v3731 = vadd.f32 %v2543, %v3471
      %v3732 = vadd.f32 %v2546, %v3474
      %v3733 = vadd.f32 %v2551, %v3479
      %v3734 = vadd.f32 %v2554, %v3482
      %v3735 = vadd.f32 %v2559, %v3487
      %v3736 = vadd.f32 %v2562, %v3490
      %v3737 = vadd.f32 %v2567, %v3495
      %v3738 = vadd.f32 %v2570, %v3498
      %v3739 = vadd.f32 %v2575, %v3503
      %v3740 = vadd.f32 %v2578, %v3506
      %v3741 = vadd.f32 %v2583, %v3511
      %v3742 = vadd.f32 %v2586, %v3514
      %v3743 = vadd.f32 %v2591, %v3519
      %v3744 = vadd.f32 %v2594, %v3522
      %v3745 = vadd.f32 %v2599, %v3527
      %v3746 = vadd.f32 %v2602, %v3530
      %v3747 = vadd.f32 %v2607, %v3535
      %v3748 = vadd.f32 %v2610, %v3538
      %v3749 = vadd.f32 %v2615, %v3543
      %v3750 = vadd.f32 %v2618, %v3546
      %v3751 = vadd.f32 %v2623, %v3551
      %v3752 = vadd.f32 %v2626, %v3554
      %v3753 = vadd.f32 %v2631, %v3559
      %v3754 = vadd.f32 %v2634, %v3562
      %v3755 = vadd.f32 %v2639, %v3567
      %v3756 = vadd.f32 %v2642, %v3570
      %v3757 = vadd.f32 %v2647, %v3575
      %v3758 = vadd.f32 %v2650, %v3578
      %v3759 = vadd.f32 %v2655, %v3583
      %v3760 = vadd.f32 %v2658, %v3586
      %v3761 = vadd.f32 %v2663, %v3591
      %v3762 = vadd.f32 %v2666, %v3594
      %v3763 = vadd.f32 %v2671, %v3599
      %v3764 = vadd.f32 %v2674, %v3602
      %v3765 = vadd.f32 %v2679, %v3607
      %v3766 = vadd.f32 %v2682, %v3610
      %v3767 = vadd.f32 %v2687, %v3615
      %v3768 = vadd.f32 %v2690, %v3618
      %v3769 = vadd.f32 %v2695, %v3623
      %v3770 = vadd.f32 %v2698, %v3626
      %v3771 = vadd.f32 %v2703, %v3631
      %v3772 = vadd.f32 %v2706, %v3634
      %v3773 = vld [vmem:[%s165 + $0x10] sm:$0xe]
      %v3774 = vld [vmem:[%s165 + $0x14] sm:$0xf]
      %v3775 = vld [vmem:[%s165 + $0x18] sm:$0xf]
      %v3776 = vld [vmem:[%s165 + $0x1c] sm:$0xf]
      %v3777 = vld [vmem:[%s165 + $0x20] sm:$0xf]
      %v3778 = vld [vmem:[%s165 + $0x24] sm:$0xf]
      %v3779 = vld [vmem:[%s165 + $0x28] sm:$0xf]
      %v3780 = vld [vmem:[%s165 + $0x2c] sm:$0xf]
      %v3781 = vld [vmem:[%s165 + $0x30] sm:$0xf]
      %v3782 = vld [vmem:[%s165 + $0x34] sm:$0xf]
      %v3783 = vld [vmem:[%s165 + $0x38] sm:$0xf]
      %v3784 = vld [vmem:[%s165 + $0x3c] sm:$0xf]
      %v3785 = vld [vmem:[%s165 + $0x40] sm:$0xf]
      %v3786 = vld [vmem:[%s165 + $0x44] sm:$0xf]
      %v3787 = vld [vmem:[%s165 + $0x48] sm:$0xf]
      %v3788 = vld [vmem:[%s165 + $0x4c] sm:$0xf]
      %v3789 = vld [vmem:[%s165 + $0x50] sm:$0xf]
      %v3790 = vld [vmem:[%s165 + $0x54] sm:$0xf]
      %v3791 = vld [vmem:[%s165 + $0x58] sm:$0xf]
      %v3792 = vld [vmem:[%s165 + $0x5c] sm:$0xf]
      %v3793 = vld [vmem:[%s165 + $0x60] sm:$0xf]
      %v3794 = vld [vmem:[%s165 + $0x64] sm:$0xf]
      %v3795 = vld [vmem:[%s165 + $0x68] sm:$0xf]
      %v3796 = vld [vmem:[%s165 + $0x6c] sm:$0xf]
      %v3797 = vld [vmem:[%s165 + $0x70] sm:$0xf]
      %v3798 = vld [vmem:[%s165 + $0x74] sm:$0xf]
      %v3799 = vld [vmem:[%s165 + $0x78] sm:$0xf]
      %v3800 = vld [vmem:[%s165 + $0x7c] sm:$0xf]
      %v3801 = vld [vmem:[%s165 + $0x80] sm:$0xf]
      %v3802 = vld [vmem:[%s165 + $0x84] sm:$0xf]
      %v3803 = vld [vmem:[%s165 + $0x88] sm:$0xf]
      %v3804 = vld [vmem:[%s165 + $0x8c] sm:$0xf]
      %v3805 = vld [vmem:[%s165 + $0x90] sm:$0xf]
      %v3806 = vld [vmem:[%s165 + $0x94] sm:$0xf]
      %v3807 = vld [vmem:[%s165 + $0x98] sm:$0xf]
      %v3808 = vld [vmem:[%s165 + $0x9c] sm:$0xf]
      %v3809 = vld [vmem:[%s165 + $0xa0] sm:$0xf]
      %v3810 = vld [vmem:[%s165 + $0xa4] sm:$0xf]
      %v3811 = vld [vmem:[%s165 + $0xa8] sm:$0xf]
      %v3812 = vld [vmem:[%s165 + $0xac] sm:$0xf]
      %v3813 = vld [vmem:[%s165 + $0xb0] sm:$0xf]
      %v3814 = vld [vmem:[%s165 + $0xb4] sm:$0xf]
      %v3815 = vld [vmem:[%s165 + $0xb8] sm:$0xf]
      %v3816 = vld [vmem:[%s165 + $0xbc] sm:$0xf]
      %v3817 = vld [vmem:[%s165 + $0xc0] sm:$0xf]
      %v3818 = vld [vmem:[%s165 + $0xc4] sm:$0xf]
      %v3819 = vld [vmem:[%s165 + $0xc8] sm:$0xf]
      %v3820 = vld [vmem:[%s165 + $0xcc] sm:$0xf]
      %v3821 = vld [vmem:[%s165 + $0xd0] sm:$0xf]
      %v3822 = vld [vmem:[%s165 + $0xd4] sm:$0xf]
      %v3823 = vld [vmem:[%s165 + $0xd8] sm:$0xf]
      %v3824 = vld [vmem:[%s165 + $0xdc] sm:$0xf]
      %v3825 = vld [vmem:[%s165 + $0xe0] sm:$0xf]
      %v3826 = vld [vmem:[%s165 + $0xe4] sm:$0xf]
      %v3827 = vld [vmem:[%s165 + $0xe8] sm:$0xf]
      %v3828 = vld [vmem:[%s165 + $0xec] sm:$0xf]
      %v3829 = vld [vmem:[%s165 + $0xf0] sm:$0xf]
      %v3830 = vld [vmem:[%s165 + $0xf4] sm:$0xf]
      %v3831 = vld [vmem:[%s165 + $0xf8] sm:$0xf]
      %v3832 = vld [vmem:[%s165 + $0xfc] sm:$0xf]
      %v3833 = vld [vmem:[%s165 + $0x100] sm:$0xf]
      %v3834 = vld [vmem:[%s165 + $0x104] sm:$0xf]
      %v3835 = vld [vmem:[%s165 + $0x108] sm:$0xf]
      %v3836 = vld [vmem:[%s165 + $0x10c] sm:$0xf]
      %v3837 = vld [vmem:[%s165 + $0x110] sm:$0xf]
      %v3838 = vld [vmem:[%s165 + $0x114] sm:$0xf]
      %v3839 = vld [vmem:[%s165 + $0x118] sm:$0xf]
      %v3840 = vld [vmem:[%s165 + $0x11c] sm:$0xf]
      %v3841 = vld [vmem:[%s165 + $0x120] sm:$0xf]
      %v3842 = vld [vmem:[%s165 + $0x124] sm:$0xf]
      %v3843 = vld [vmem:[%s165 + $0x128] sm:$0xf]
      %v3844 = vld [vmem:[%s165 + $0x12c] sm:$0xf]
      %v3845 = vld [vmem:[%s165 + $0x130] sm:$0xf]
      %v3846 = vld [vmem:[%s165 + $0x134] sm:$0xf]
      %v3847 = vld [vmem:[%s165 + $0x138] sm:$0xf]
      %v3848 = vld [vmem:[%s165 + $0x13c] sm:$0xf]
      %v3849 = vld [vmem:[%s165 + $0x140] sm:$0xf]
      %v3850 = vld [vmem:[%s165 + $0x144] sm:$0xf]
      %v3851 = vld [vmem:[%s165 + $0x148] sm:$0xf]
      %v3852 = vld [vmem:[%s165 + $0x14c] sm:$0xf]
      %v3853 = vld [vmem:[%s165 + $0x150] sm:$0xf]
      %v3854 = vld [vmem:[%s165 + $0x154] sm:$0xf]
      %v3855 = vld [vmem:[%s165 + $0x158] sm:$0xf]
      %v3856 = vld [vmem:[%s165 + $0x15c] sm:$0xf]
      %v3857 = vld [vmem:[%s165 + $0x160] sm:$0xf]
      %v3858 = vld [vmem:[%s165 + $0x164] sm:$0xf]
      %v3859 = vld [vmem:[%s165 + $0x168] sm:$0xf]
      %v3860 = vld [vmem:[%s165 + $0x16c] sm:$0xf]
      %v3861 = vld [vmem:[%s165 + $0x170] sm:$0xf]
      %v3862 = vld [vmem:[%s165 + $0x174] sm:$0xf]
      %v3863 = vld [vmem:[%s165 + $0x178] sm:$0xf]
      %v3864 = vld [vmem:[%s165 + $0x17c] sm:$0xf]
      %v3865 = vld [vmem:[%s165 + $0x180] sm:$0xf]
      %v3866 = vld [vmem:[%s165 + $0x184] sm:$0xf]
      %v3867 = vld [vmem:[%s165 + $0x188] sm:$0xf]
      %v3868 = vld [vmem:[%s165 + $0x18c] sm:$0xf]
      %v3869 = vld [vmem:[%s165 + $0x190] sm:$0xf]
      %v3870 = vld [vmem:[%s165 + $0x194] sm:$0xf]
      %v3871 = vld [vmem:[%s165 + $0x198] sm:$0xf]
      %v3872 = vld [vmem:[%s165 + $0x19c] sm:$0xf]
      %v3873 = vld [vmem:[%s165 + $0x1a0] sm:$0xf]
      %v3874 = vld [vmem:[%s165 + $0x1a4] sm:$0xf]
      %v3875 = vld [vmem:[%s165 + $0x1a8] sm:$0xf]
      %v3876 = vld [vmem:[%s165 + $0x1ac] sm:$0xf]
      %v3877 = vld [vmem:[%s165 + $0x1b0] sm:$0xf]
      %v3878 = vld [vmem:[%s165 + $0x1b4] sm:$0xf]
      %v3879 = vld [vmem:[%s165 + $0x1b8] sm:$0xf]
      %v3880 = vld [vmem:[%s165 + $0x1bc] sm:$0xf]
      %v3881 = vld [vmem:[%s165 + $0x1c0] sm:$0xf]
      %v3882 = vld [vmem:[%s165 + $0x1c4] sm:$0xf]
      %v3883 = vld [vmem:[%s165 + $0x1c8] sm:$0xf]
      %v3884 = vld [vmem:[%s165 + $0x1cc] sm:$0xf]
      %v3885 = vld [vmem:[%s165 + $0x1d0] sm:$0xf]
      %v3886 = vld [vmem:[%s165 + $0x1d4] sm:$0xf]
      %v3887 = vld [vmem:[%s165 + $0x1d8] sm:$0xf]
      %v3888 = vld [vmem:[%s165 + $0x1dc] sm:$0xf]
      %v3889 = vld [vmem:[%s165 + $0x1e0] sm:$0xf]
      %v3890 = vld [vmem:[%s165 + $0x1e4] sm:$0xf]
      %v3891 = vld [vmem:[%s165 + $0x1e8] sm:$0xf]
      %v3892 = vld [vmem:[%s165 + $0x1ec] sm:$0xf]
      %v3893 = vld [vmem:[%s165 + $0x1f0] sm:$0xf]
      %v3894 = vld [vmem:[%s165 + $0x1f4] sm:$0xf]
      %v3895 = vld [vmem:[%s165 + $0x1f8] sm:$0xf]
      %v3896 = vld [vmem:[%s165 + $0x1fc] sm:$0xf]
      %v3897 = vld [vmem:[%s165 + $0x200] sm:$0xf]
      %v3898 = vld [vmem:[%s165 + $0x204] sm:$0xf]
      %v3899 = vld [vmem:[%s165 + $0x208] sm:$0xf]
      %v3900 = vld [vmem:[%s165 + $0x20c] sm:$0xf]
      %v3901 = vld [vmem:[%s165 + $0x210] sm:$0xf]
      %v3902 = vld [vmem:[%s165 + $0x214] sm:$0xf]
      %v3903 = vld [vmem:[%s165 + $0x218] sm:$0xf]
      %v3904 = vld [vmem:[%s165 + $0x21c] sm:$0xf]
      %v3905 = vld [vmem:[%s165 + $0x220] sm:$0xf]
      %v3906 = vld [vmem:[%s165 + $0x224] sm:$0xf]
      %v3907 = vld [vmem:[%s165 + $0x228] sm:$0xf]
      %v3908 = vld [vmem:[%s165 + $0x22c] sm:$0xf]
      %v3909 = vld [vmem:[%s165 + $0x230] sm:$0x1]
      %s3910 = scalar_lea.vmem %s1, 6
      %v3911 = vld [vmem:[%s3910] sm:$0x3]
      %v4049 = vunpack.c.l.b16 %v3773
      %v4050 = vunpack.c.l.b16 %v3774
      %v4051 = vunpack.c.l.b16 %v3775
      %v4052 = vunpack.c.l.b16 %v3776
      %v4053 = vunpack.c.l.b16 %v3777
      %v4054 = vunpack.c.l.b16 %v3778
      %v4055 = vunpack.c.l.b16 %v3779
      %v4056 = vunpack.c.l.b16 %v3780
      %v4057 = vunpack.c.l.b16 %v3781
      %v4058 = vunpack.c.l.b16 %v3782
      %v4059 = vunpack.c.l.b16 %v3783
      %v4060 = vunpack.c.l.b16 %v3784
      %v4061 = vunpack.c.l.b16 %v3785
      %v4062 = vunpack.c.l.b16 %v3786
      %v4063 = vunpack.c.l.b16 %v3787
      %v4064 = vunpack.c.l.b16 %v3788
      %v4065 = vunpack.c.l.b16 %v3789
      %v4066 = vunpack.c.l.b16 %v3790
      %v4067 = vunpack.c.l.b16 %v3791
      %v4068 = vunpack.c.l.b16 %v3792
      %v4069 = vunpack.c.l.b16 %v3793
      %v4070 = vunpack.c.l.b16 %v3794
      %v4071 = vunpack.c.l.b16 %v3795
      %v4072 = vunpack.c.l.b16 %v3796
      %v4073 = vunpack.c.l.b16 %v3797
      %v4074 = vunpack.c.l.b16 %v3798
      %v4075 = vunpack.c.l.b16 %v3799
      %v4076 = vunpack.c.l.b16 %v3800
      %v4077 = vunpack.c.l.b16 %v3801
      %v4078 = vunpack.c.l.b16 %v3802
      %v4079 = vunpack.c.l.b16 %v3803
      %v4080 = vunpack.c.l.b16 %v3804
      %v4081 = vunpack.c.l.b16 %v3805
      %v4082 = vunpack.c.l.b16 %v3806
      %v4083 = vunpack.c.l.b16 %v3807
      %v4084 = vunpack.c.l.b16 %v3808
      %v4085 = vunpack.c.l.b16 %v3809
      %v4086 = vunpack.c.l.b16 %v3810
      %v4087 = vunpack.c.l.b16 %v3811
      %v4088 = vunpack.c.l.b16 %v3812
      %v4089 = vunpack.c.l.b16 %v3813
      %v4090 = vunpack.c.l.b16 %v3814
      %v4091 = vunpack.c.l.b16 %v3815
      %v4092 = vunpack.c.l.b16 %v3816
      %v4093 = vunpack.c.l.b16 %v3817
      %v4094 = vunpack.c.l.b16 %v3818
      %v4095 = vunpack.c.l.b16 %v3819
      %v4096 = vunpack.c.l.b16 %v3820
      %v4097 = vunpack.c.l.b16 %v3821
      %v4098 = vunpack.c.l.b16 %v3822
      %v4099 = vunpack.c.l.b16 %v3823
      %v4100 = vunpack.c.l.b16 %v3824
      %v4101 = vunpack.c.l.b16 %v3825
      %v4102 = vunpack.c.l.b16 %v3826
      %v4103 = vunpack.c.l.b16 %v3827
      %v4104 = vunpack.c.l.b16 %v3828
      %v4105 = vunpack.c.l.b16 %v3829
      %v4106 = vunpack.c.l.b16 %v3830
      %v4107 = vunpack.c.l.b16 %v3831
      %v4108 = vunpack.c.l.b16 %v3832
      %v4109 = vunpack.c.l.b16 %v3833
      %v4110 = vunpack.c.l.b16 %v3834
      %v4111 = vunpack.c.l.b16 %v3835
      %v4112 = vunpack.c.l.b16 %v3836
      %v4113 = vunpack.c.l.b16 %v3837
      %v4114 = vunpack.c.l.b16 %v3838
      %v4115 = vunpack.c.l.b16 %v3839
      %v4116 = vunpack.c.l.b16 %v3840
      %v4117 = vunpack.c.l.b16 %v3841
      %v4118 = vunpack.c.l.b16 %v3842
      %v4119 = vunpack.c.l.b16 %v3843
      %v4120 = vunpack.c.l.b16 %v3844
      %v4121 = vunpack.c.l.b16 %v3845
      %v4122 = vunpack.c.l.b16 %v3846
      %v4123 = vunpack.c.l.b16 %v3847
      %v4124 = vunpack.c.l.b16 %v3848
      %v4125 = vunpack.c.l.b16 %v3849
      %v4126 = vunpack.c.l.b16 %v3850
      %v4127 = vunpack.c.l.b16 %v3851
      %v4128 = vunpack.c.l.b16 %v3852
      %v4129 = vunpack.c.l.b16 %v3853
      %v4130 = vunpack.c.l.b16 %v3854
      %v4131 = vunpack.c.l.b16 %v3855
      %v4132 = vunpack.c.l.b16 %v3856
      %v4133 = vunpack.c.l.b16 %v3857
      %v4134 = vunpack.c.l.b16 %v3858
      %v4135 = vunpack.c.l.b16 %v3859
      %v4136 = vunpack.c.l.b16 %v3860
      %v4137 = vunpack.c.l.b16 %v3861
      %v4138 = vunpack.c.l.b16 %v3862
      %v4139 = vunpack.c.l.b16 %v3863
      %v4140 = vunpack.c.l.b16 %v3864
      %v4141 = vunpack.c.l.b16 %v3865
      %v4142 = vunpack.c.l.b16 %v3866
      %v4143 = vunpack.c.l.b16 %v3867
      %v4144 = vunpack.c.l.b16 %v3868
      %v4145 = vunpack.c.l.b16 %v3869
      %v4146 = vunpack.c.l.b16 %v3870
      %v4147 = vunpack.c.l.b16 %v3871
      %v4148 = vunpack.c.l.b16 %v3872
      %v4149 = vunpack.c.l.b16 %v3873
      %v4150 = vunpack.c.l.b16 %v3874
      %v4151 = vunpack.c.l.b16 %v3875
      %v4152 = vunpack.c.l.b16 %v3876
      %v4153 = vunpack.c.l.b16 %v3877
      %v4154 = vunpack.c.l.b16 %v3878
      %v4155 = vunpack.c.l.b16 %v3879
      %v4156 = vunpack.c.l.b16 %v3880
      %v4157 = vunpack.c.l.b16 %v3881
      %v4158 = vunpack.c.l.b16 %v3882
      %v4159 = vunpack.c.l.b16 %v3883
      %v4160 = vunpack.c.l.b16 %v3884
      %v4161 = vunpack.c.l.b16 %v3885
      %v4162 = vunpack.c.l.b16 %v3886
      %v4163 = vunpack.c.l.b16 %v3887
      %v4164 = vunpack.c.l.b16 %v3888
      %v4165 = vunpack.c.l.b16 %v3889
      %v4166 = vunpack.c.l.b16 %v3890
      %v4167 = vunpack.c.l.b16 %v3891
      %v4168 = vunpack.c.l.b16 %v3892
      %v4169 = vunpack.c.l.b16 %v3893
      %v4170 = vunpack.c.l.b16 %v3894
      %v4171 = vunpack.c.l.b16 %v3895
      %v4172 = vunpack.c.l.b16 %v3896
      %v4173 = vunpack.c.l.b16 %v3897
      %v4174 = vunpack.c.l.b16 %v3898
      %v4175 = vunpack.c.l.b16 %v3899
      %v4176 = vunpack.c.l.b16 %v3900
      %v4177 = vunpack.c.l.b16 %v3901
      %v4178 = vunpack.c.l.b16 %v3902
      %v4179 = vunpack.c.l.b16 %v3903
      %v4180 = vunpack.c.l.b16 %v3904
      %v4181 = vunpack.c.l.b16 %v3905
      %v4182 = vunpack.c.l.b16 %v3906
      %v4183 = vunpack.c.l.b16 %v3907
      %v4184 = vunpack.c.l.b16 %v3908
      %v4185 = vunpack.c.l.b16 %v3909
      %v4186 = vpack.c.b16 %v4050, %v4049
      %v4187 = vpack.c.b16 %v4052, %v4051
      %v4188 = vpack.c.b16 %v4054, %v4053
      %v4189 = vpack.c.b16 %v4056, %v4055
      %v4190 = vpack.c.b16 %v4058, %v4057
      %v4191 = vpack.c.b16 %v4060, %v4059
      %v4192 = vpack.c.b16 %v4062, %v4061
      %v4193 = vpack.c.b16 %v4064, %v4063
      %v4194 = vpack.c.b16 %v4066, %v4065
      %v4195 = vpack.c.b16 %v4068, %v4067
      %v4196 = vpack.c.b16 %v4070, %v4069
      %v4197 = vpack.c.b16 %v4072, %v4071
      %v4198 = vpack.c.b16 %v4074, %v4073
      %v4199 = vpack.c.b16 %v4076, %v4075
      %v4200 = vpack.c.b16 %v4078, %v4077
      %v4201 = vpack.c.b16 %v4080, %v4079
      %v4202 = vpack.c.b16 %v4082, %v4081
      %v4203 = vpack.c.b16 %v4084, %v4083
      %v4204 = vpack.c.b16 %v4086, %v4085
      %v4205 = vpack.c.b16 %v4088, %v4087
      %v4206 = vpack.c.b16 %v4090, %v4089
      %v4207 = vpack.c.b16 %v4092, %v4091
      %v4208 = vpack.c.b16 %v4094, %v4093
      %v4209 = vpack.c.b16 %v4096, %v4095
      %v4210 = vpack.c.b16 %v4098, %v4097
      %v4211 = vpack.c.b16 %v4100, %v4099
      %v4212 = vpack.c.b16 %v4102, %v4101
      %v4213 = vpack.c.b16 %v4104, %v4103
      %v4214 = vpack.c.b16 %v4106, %v4105
      %v4215 = vpack.c.b16 %v4108, %v4107
      %v4216 = vpack.c.b16 %v4110, %v4109
      %v4217 = vpack.c.b16 %v4112, %v4111
      %v4218 = vpack.c.b16 %v4114, %v4113
      %v4219 = vpack.c.b16 %v4116, %v4115
      %v4220 = vpack.c.b16 %v4118, %v4117
      %v4221 = vpack.c.b16 %v4120, %v4119
      %v4222 = vpack.c.b16 %v4122, %v4121
      %v4223 = vpack.c.b16 %v4124, %v4123
      %v4224 = vpack.c.b16 %v4126, %v4125
      %v4225 = vpack.c.b16 %v4128, %v4127
      %v4226 = vpack.c.b16 %v4130, %v4129
      %v4227 = vpack.c.b16 %v4132, %v4131
      %v4228 = vpack.c.b16 %v4134, %v4133
      %v4229 = vpack.c.b16 %v4136, %v4135
      %v4230 = vpack.c.b16 %v4138, %v4137
      %v4231 = vpack.c.b16 %v4140, %v4139
      %v4232 = vpack.c.b16 %v4142, %v4141
      %v4233 = vpack.c.b16 %v4144, %v4143
      %v4234 = vpack.c.b16 %v4146, %v4145
      %v4235 = vpack.c.b16 %v4148, %v4147
      %v4236 = vpack.c.b16 %v4150, %v4149
      %v4237 = vpack.c.b16 %v4152, %v4151
      %v4238 = vpack.c.b16 %v4154, %v4153
      %v4239 = vpack.c.b16 %v4156, %v4155
      %v4240 = vpack.c.b16 %v4158, %v4157
      %v4241 = vpack.c.b16 %v4160, %v4159
      %v4242 = vpack.c.b16 %v4162, %v4161
      %v4243 = vpack.c.b16 %v4164, %v4163
      %v4244 = vpack.c.b16 %v4166, %v4165
      %v4245 = vpack.c.b16 %v4168, %v4167
      %v4246 = vpack.c.b16 %v4170, %v4169
      %v4247 = vpack.c.b16 %v4172, %v4171
      %v4248 = vpack.c.b16 %v4174, %v4173
      %v4249 = vpack.c.b16 %v4176, %v4175
      %v4250 = vpack.c.b16 %v4178, %v4177
      %v4251 = vpack.c.b16 %v4180, %v4179
      %v4252 = vpack.c.b16 %v4182, %v4181
      %v4253 = vpack.c.b16 %v4184, %v4183
      %v4254 = vpack.c.b16 %v4185, %v4185
      %v4255 = vrot.slane %v4186, 1
      %v4256 = vrot.slane %v4187, 1
      %v4257 = vsel %vm2715, %v4255, %v4256
      %v4258 = vrot.slane %v4188, 1
      %v4259 = vsel %vm2715, %v4256, %v4258
      %v4260 = vrot.slane %v4189, 1
      %v4261 = vsel %vm2715, %v4258, %v4260
      %v4262 = vrot.slane %v4190, 1
      %v4263 = vsel %vm2715, %v4260, %v4262
      %v4264 = vrot.slane %v4191, 1
      %v4265 = vsel %vm2715, %v4262, %v4264
      %v4266 = vrot.slane %v4192, 1
      %v4267 = vsel %vm2715, %v4264, %v4266
      %v4268 = vrot.slane %v4193, 1
      %v4269 = vsel %vm2715, %v4266, %v4268
      %v4270 = vrot.slane %v4194, 1
      %v4271 = vsel %vm2715, %v4268, %v4270
      %v4272 = vrot.slane %v4195, 1
      %v4273 = vsel %vm2715, %v4270, %v4272
      %v4274 = vrot.slane %v4196, 1
      %v4275 = vsel %vm2715, %v4272, %v4274
      %v4276 = vrot.slane %v4197, 1
      %v4277 = vsel %vm2715, %v4274, %v4276
      %v4278 = vrot.slane %v4198, 1
      %v4279 = vsel %vm2715, %v4276, %v4278
      %v4280 = vrot.slane %v4199, 1
      %v4281 = vsel %vm2715, %v4278, %v4280
      %v4282 = vrot.slane %v4200, 1
      %v4283 = vsel %vm2715, %v4280, %v4282
      %v4284 = vrot.slane %v4201, 1
      %v4285 = vsel %vm2715, %v4282, %v4284
      %v4286 = vrot.slane %v4202, 1
      %v4287 = vsel %vm2715, %v4284, %v4286
      %v4288 = vrot.slane %v4203, 1
      %v4289 = vsel %vm2715, %v4286, %v4288
      %v4290 = vrot.slane %v4204, 1
      %v4291 = vsel %vm2715, %v4288, %v4290
      %v4292 = vrot.slane %v4205, 1
      %v4293 = vsel %vm2715, %v4290, %v4292
      %v4294 = vrot.slane %v4206, 1
      %v4295 = vsel %vm2715, %v4292, %v4294
      %v4296 = vrot.slane %v4207, 1
      %v4297 = vsel %vm2715, %v4294, %v4296
      %v4298 = vrot.slane %v4208, 1
      %v4299 = vsel %vm2715, %v4296, %v4298
      %v4300 = vrot.slane %v4209, 1
      %v4301 = vsel %vm2715, %v4298, %v4300
      %v4302 = vrot.slane %v4210, 1
      %v4303 = vsel %vm2715, %v4300, %v4302
      %v4304 = vrot.slane %v4211, 1
      %v4305 = vsel %vm2715, %v4302, %v4304
      %v4306 = vrot.slane %v4212, 1
      %v4307 = vsel %vm2715, %v4304, %v4306
      %v4308 = vrot.slane %v4213, 1
      %v4309 = vsel %vm2715, %v4306, %v4308
      %v4310 = vrot.slane %v4214, 1
      %v4311 = vsel %vm2715, %v4308, %v4310
      %v4312 = vrot.slane %v4215, 1
      %v4313 = vsel %vm2715, %v4310, %v4312
      %v4314 = vrot.slane %v4216, 1
      %v4315 = vsel %vm2715, %v4312, %v4314
      %v4316 = vrot.slane %v4217, 1
      %v4317 = vsel %vm2715, %v4314, %v4316
      %v4318 = vrot.slane %v4218, 1
      %v4319 = vsel %vm2715, %v4316, %v4318
      %v4320 = vrot.slane %v4219, 1
      %v4321 = vsel %vm2715, %v4318, %v4320
      %v4322 = vrot.slane %v4220, 1
      %v4323 = vsel %vm2715, %v4320, %v4322
      %v4324 = vrot.slane %v4221, 1
      %v4325 = vsel %vm2715, %v4322, %v4324
      %v4326 = vrot.slane %v4222, 1
      %v4327 = vsel %vm2715, %v4324, %v4326
      %v4328 = vrot.slane %v4223, 1
      %v4329 = vsel %vm2715, %v4326, %v4328
      %v4330 = vrot.slane %v4224, 1
      %v4331 = vsel %vm2715, %v4328, %v4330
      %v4332 = vrot.slane %v4225, 1
      %v4333 = vsel %vm2715, %v4330, %v4332
      %v4334 = vrot.slane %v4226, 1
      %v4335 = vsel %vm2715, %v4332, %v4334
      %v4336 = vrot.slane %v4227, 1
      %v4337 = vsel %vm2715, %v4334, %v4336
      %v4338 = vrot.slane %v4228, 1
      %v4339 = vsel %vm2715, %v4336, %v4338
      %v4340 = vrot.slane %v4229, 1
      %v4341 = vsel %vm2715, %v4338, %v4340
      %v4342 = vrot.slane %v4230, 1
      %v4343 = vsel %vm2715, %v4340, %v4342
      %v4344 = vrot.slane %v4231, 1
      %v4345 = vsel %vm2715, %v4342, %v4344
      %v4346 = vrot.slane %v4232, 1
      %v4347 = vsel %vm2715, %v4344, %v4346
      %v4348 = vrot.slane %v4233, 1
      %v4349 = vsel %vm2715, %v4346, %v4348
      %v4350 = vrot.slane %v4234, 1
      %v4351 = vsel %vm2715, %v4348, %v4350
      %v4352 = vrot.slane %v4235, 1
      %v4353 = vsel %vm2715, %v4350, %v4352
      %v4354 = vrot.slane %v4236, 1
      %v4355 = vsel %vm2715, %v4352, %v4354
      %v4356 = vrot.slane %v4237, 1
      %v4357 = vsel %vm2715, %v4354, %v4356
      %v4358 = vrot.slane %v4238, 1
      %v4359 = vsel %vm2715, %v4356, %v4358
      %v4360 = vrot.slane %v4239, 1
      %v4361 = vsel %vm2715, %v4358, %v4360
      %v4362 = vrot.slane %v4240, 1
      %v4363 = vsel %vm2715, %v4360, %v4362
      %v4364 = vrot.slane %v4241, 1
      %v4365 = vsel %vm2715, %v4362, %v4364
      %v4366 = vrot.slane %v4242, 1
      %v4367 = vsel %vm2715, %v4364, %v4366
      %v4368 = vrot.slane %v4243, 1
      %v4369 = vsel %vm2715, %v4366, %v4368
      %v4370 = vrot.slane %v4244, 1
      %v4371 = vsel %vm2715, %v4368, %v4370
      %v4372 = vrot.slane %v4245, 1
      %v4373 = vsel %vm2715, %v4370, %v4372
      %v4374 = vrot.slane %v4246, 1
      %v4375 = vsel %vm2715, %v4372, %v4374
      %v4376 = vrot.slane %v4247, 1
      %v4377 = vsel %vm2715, %v4374, %v4376
      %v4378 = vrot.slane %v4248, 1
      %v4379 = vsel %vm2715, %v4376, %v4378
      %v4380 = vrot.slane %v4249, 1
      %v4381 = vsel %vm2715, %v4378, %v4380
      %v4382 = vrot.slane %v4250, 1
      %v4383 = vsel %vm2715, %v4380, %v4382
      %v4384 = vrot.slane %v4251, 1
      %v4385 = vsel %vm2715, %v4382, %v4384
      %v4386 = vrot.slane %v4252, 1
      %v4387 = vsel %vm2715, %v4384, %v4386
      %v4388 = vrot.slane %v4253, 1
      %v4389 = vsel %vm2715, %v4386, %v4388
      %v4390 = vrot.slane %v4254, 1
      %v4391 = vsel %vm2715, %v4388, %v4390
      %v4393 = vsel %vm1204, %v4257, 0
      %v4396 = vsel %vm1204, %v4259, 0
      %v4399 = vsel %vm1204, %v4261, 0
      %v4402 = vsel %vm1204, %v4263, 0
      %v4405 = vsel %vm1204, %v4265, 0
      %v4408 = vsel %vm1204, %v4267, 0
      %v4411 = vsel %vm1204, %v4269, 0
      %v4414 = vsel %vm1204, %v4271, 0
      %v4417 = vsel %vm1204, %v4273, 0
      %v4420 = vsel %vm1204, %v4275, 0
      %v4423 = vsel %vm1204, %v4277, 0
      %v4426 = vsel %vm1204, %v4279, 0
      %v4429 = vsel %vm1204, %v4281, 0
      %v4432 = vsel %vm1204, %v4283, 0
      %v4435 = vsel %vm1204, %v4285, 0
      %v4438 = vsel %vm1204, %v4287, 0
      %v4441 = vsel %vm1204, %v4289, 0
      %v4444 = vsel %vm1204, %v4291, 0
      %v4447 = vsel %vm1204, %v4293, 0
      %v4450 = vsel %vm1204, %v4295, 0
      %v4453 = vsel %vm1204, %v4297, 0
      %v4456 = vsel %vm1204, %v4299, 0
      %v4459 = vsel %vm1204, %v4301, 0
      %v4462 = vsel %vm1204, %v4303, 0
      %v4465 = vsel %vm1204, %v4305, 0
      %v4468 = vsel %vm1204, %v4307, 0
      %v4471 = vsel %vm1204, %v4309, 0
      %v4474 = vsel %vm1204, %v4311, 0
      %v4477 = vsel %vm1204, %v4313, 0
      %v4480 = vsel %vm1204, %v4315, 0
      %v4483 = vsel %vm1204, %v4317, 0
      %v4486 = vsel %vm1204, %v4319, 0
      %v4489 = vsel %vm1204, %v4321, 0
      %v4492 = vsel %vm1204, %v4323, 0
      %v4495 = vsel %vm1204, %v4325, 0
      %v4498 = vsel %vm1204, %v4327, 0
      %v4501 = vsel %vm1204, %v4329, 0
      %v4504 = vsel %vm1204, %v4331, 0
      %v4507 = vsel %vm1204, %v4333, 0
      %v4510 = vsel %vm1204, %v4335, 0
      %v4513 = vsel %vm1204, %v4337, 0
      %v4516 = vsel %vm1204, %v4339, 0
      %v4519 = vsel %vm1204, %v4341, 0
      %v4522 = vsel %vm1204, %v4343, 0
      %v4525 = vsel %vm1204, %v4345, 0
      %v4528 = vsel %vm1204, %v4347, 0
      %v4531 = vsel %vm1204, %v4349, 0
      %v4534 = vsel %vm1204, %v4351, 0
      %v4537 = vsel %vm1204, %v4353, 0
      %v4540 = vsel %vm1204, %v4355, 0
      %v4543 = vsel %vm1204, %v4357, 0
      %v4546 = vsel %vm1204, %v4359, 0
      %v4549 = vsel %vm1204, %v4361, 0
      %v4552 = vsel %vm1204, %v4363, 0
      %v4555 = vsel %vm1204, %v4365, 0
      %v4558 = vsel %vm1204, %v4367, 0
      %v4561 = vsel %vm1204, %v4369, 0
      %v4564 = vsel %vm1204, %v4371, 0
      %v4567 = vsel %vm1204, %v4373, 0
      %v4570 = vsel %vm1204, %v4375, 0
      %v4573 = vsel %vm1204, %v4377, 0
      %v4576 = vsel %vm1204, %v4379, 0
      %v4579 = vsel %vm1204, %v4381, 0
      %v4582 = vsel %vm1204, %v4383, 0
      %v4585 = vsel %vm1204, %v4385, 0
      %v4588 = vsel %vm1204, %v4387, 0
      %v4591 = vsel %vm1204, %v4389, 0
      %v4594 = vsel %vm1204, %v4391, 0
      %v4597 = vand.u32 %v3911, %v1412
      %4599 = vmatprep.subr.bf16.mxu0 0
      %4600 = vmatpush1.bf16.msra.mxu0 %v4597
      %4601 = vmatprep.subr.bf16.mxu0 0
      %4602 = vmatpush1.bf16.msra.mxu0 0
      %4603 = vmatprep.subr.bf16.mxu0 0
      %4604 = vmatpush1.bf16.msra.mxu0 0
      %4605 = vmatprep.subr.bf16.mxu0 0
      %4606 = vmatpush1.bf16.msra.mxu0 0
      %4607 = vmatprep.subr.bf16.mxu0 0
      %4608 = vmatpush1.bf16.msra.mxu0 0
      %4609 = vmatprep.subr.bf16.mxu0 0
      %4610 = vmatpush1.bf16.msra.mxu0 0
      %4611 = vmatprep.subr.bf16.mxu0 0
      %4612 = vmatpush1.bf16.msra.mxu0 0
      %4613 = vmatprep.subr.bf16.mxu0 0
      %4614 = vmatpush1.bf16.msra.mxu0 0
      %4615 = vmatprep.subr.bf16.mxu0 0
      %4616 = vmatpush1.bf16.msra.mxu0 0
      %4617 = vmatprep.subr.bf16.mxu0 0
      %4618 = vmatpush1.bf16.msra.mxu0 0
      %4619 = vmatprep.subr.bf16.mxu0 0
      %4620 = vmatpush1.bf16.msra.mxu0 0
      %4621 = vmatprep.subr.bf16.mxu0 0
      %4622 = vmatpush1.bf16.msra.mxu0 0
      %4623 = vmatprep.subr.bf16.mxu0 0
      %4624 = vmatpush1.bf16.msra.mxu0 0
      %4625 = vmatprep.subr.bf16.mxu0 0
      %4626 = vmatpush1.bf16.msra.mxu0 0
      %4627 = vmatprep.subr.bf16.mxu0 0
      %4628 = vmatpush1.bf16.msra.mxu0 0
      %4629 = vmatprep.subr.bf16.mxu0 0
      %4630 = vmatpush1.bf16.msra.mxu0 0
      %4631 = vmatprep.mubr.bf16.mxu0 0
      %4632 = vmatmul.mubr.bf16.gmra.mrb[0].mxu0 %v4393
      %v4633 = vpop.f32.mrb[0].mxu0
      %v4634 = vadd.f32 0.0, %v4633
      %v4635 = vpop.f32.mrb[0].mxu0
      %v4636 = vpop.f32.mrb[0].mxu0
      %v4637 = vadd.f32 0.0, %v4636
      %v4638 = vpop.f32.mrb[0].mxu0
      %4639 = vmatprep.mubr.bf16.mxu0 0
      %4640 = vmatmul.mubr.bf16.gmra.mrb[0].mxu0 %v4396
      %v4641 = vpop.f32.mrb[0].mxu0
      %v4642 = vadd.f32 0.0, %v4641
      %v4643 = vpop.f32.mrb[0].mxu0
      %v4644 = vpop.f32.mrb[0].mxu0
      %v4645 = vadd.f32 0.0, %v4644
      %v4646 = vpop.f32.mrb[0].mxu0
      %4647 = vmatprep.mubr.bf16.mxu0 0
      %4648 = vmatmul.mubr.bf16.gmra.mrb[0].mxu0 %v4399
      %v4649 = vpop.f32.mrb[0].mxu0
      %v4650 = vadd.f32 0.0, %v4649
      %v4651 = vpop.f32.mrb[0].mxu0
      %v4652 = vpop.f32.mrb[0].mxu0
      %v4653 = vadd.f32 0.0, %v4652
      %v4654 = vpop.f32.mrb[0].mxu0
      %4655 = vmatprep.mubr.bf16.mxu0 0
      %4656 = vmatmul.mubr.bf16.gmra.mrb[0].mxu0 %v4402
      %v4657 = vpop.f32.mrb[0].mxu0
      %v4658 = vadd.f32 0.0, %v4657
      %v4659 = vpop.f32.mrb[0].mxu0
      %v4660 = vpop.f32.mrb[0].mxu0
      %v4661 = vadd.f32 0.0, %v4660
      %v4662 = vpop.f32.mrb[0].mxu0
      %4663 = vmatprep.mubr.bf16.mxu0 0
      %4664 = vmatmul.mubr.bf16.gmra.mrb[0].mxu0 %v4405
      %v4665 = vpop.f32.mrb[0].mxu0
      %v4666 = vadd.f32 0.0, %v4665
      %v4667 = vpop.f32.mrb[0].mxu0
      %v4668 = vpop.f32.mrb[0].mxu0
      %v4669 = vadd.f32 0.0, %v4668
      %v4670 = vpop.f32.mrb[0].mxu0
      %4671 = vmatprep.mubr.bf16.mxu0 0
      %4672 = vmatmul.mubr.bf16.gmra.mrb[0].mxu0 %v4408
      %v4673 = vpop.f32.mrb[0].mxu0
      %v4674 = vadd.f32 0.0, %v4673
      %v4675 = vpop.f32.mrb[0].mxu0
      %v4676 = vpop.f32.mrb[0].mxu0
      %v4677 = vadd.f32 0.0, %v4676
      %v4678 = vpop.f32.mrb[0].mxu0
      %4679 = vmatprep.mubr.bf16.mxu0 0
      %4680 = vmatmul.mubr.bf16.gmra.mrb[0].mxu0 %v4411
      %v4681 = vpop.f32.mrb[0].mxu0
      %v4682 = vadd.f32 0.0, %v4681
      %v4683 = vpop.f32.mrb[0].mxu0
      %v4684 = vpop.f32.mrb[0].mxu0
      %v4685 = vadd.f32 0.0, %v4684
      %v4686 = vpop.f32.mrb[0].mxu0
      %4687 = vmatprep.mubr.bf16.mxu0 0
      %4688 = vmatmul.mubr.bf16.gmra.mrb[0].mxu0 %v4414
      %v4689 = vpop.f32.mrb[0].mxu0
      %v4690 = vadd.f32 0.0, %v4689
      %v4691 = vpop.f32.mrb[0].mxu0
      %v4692 = vpop.f32.mrb[0].mxu0
      %v4693 = vadd.f32 0.0, %v4692
      %v4694 = vpop.f32.mrb[0].mxu0
      %4695 = vmatprep.mubr.bf16.mxu0 0
      %4696 = vmatmul.mubr.bf16.gmra.mrb[0].mxu0 %v4417
      %v4697 = vpop.f32.mrb[0].mxu0
      %v4698 = vadd.f32 0.0, %v4697
      %v4699 = vpop.f32.mrb[0].mxu0
      %v4700 = vpop.f32.mrb[0].mxu0
      %v4701 = vadd.f32 0.0, %v4700
      %v4702 = vpop.f32.mrb[0].mxu0
      %4703 = vmatprep.mubr.bf16.mxu0 0
      %4704 = vmatmul.mubr.bf16.gmra.mrb[0].mxu0 %v4420
      %v4705 = vpop.f32.mrb[0].mxu0
      %v4706 = vadd.f32 0.0, %v4705
      %v4707 = vpop.f32.mrb[0].mxu0
      %v4708 = vpop.f32.mrb[0].mxu0
      %v4709 = vadd.f32 0.0, %v4708
      %v4710 = vpop.f32.mrb[0].mxu0
      %4711 = vmatprep.mubr.bf16.mxu0 0
      %4712 = vmatmul.mubr.bf16.gmra.mrb[0].mxu0 %v4423
      %v4713 = vpop.f32.mrb[0].mxu0
      %v4714 = vadd.f32 0.0, %v4713
      %v4715 = vpop.f32.mrb[0].mxu0
      %v4716 = vpop.f32.mrb[0].mxu0
      %v4717 = vadd.f32 0.0, %v4716
      %v4718 = vpop.f32.mrb[0].mxu0
      %4719 = vmatprep.mubr.bf16.mxu0 0
      %4720 = vmatmul.mubr.bf16.gmra.mrb[0].mxu0 %v4426
      %v4721 = vpop.f32.mrb[0].mxu0
      %v4722 = vadd.f32 0.0, %v4721
      %v4723 = vpop.f32.mrb[0].mxu0
      %v4724 = vpop.f32.mrb[0].mxu0
      %v4725 = vadd.f32 0.0, %v4724
      %v4726 = vpop.f32.mrb[0].mxu0
      %4727 = vmatprep.mubr.bf16.mxu0 0
      %4728 = vmatmul.mubr.bf16.gmra.mrb[0].mxu0 %v4429
      %v4729 = vpop.f32.mrb[0].mxu0
      %v4730 = vadd.f32 0.0, %v4729
      %v4731 = vpop.f32.mrb[0].mxu0
      %v4732 = vpop.f32.mrb[0].mxu0
      %v4733 = vadd.f32 0.0, %v4732
      %v4734 = vpop.f32.mrb[0].mxu0
      %4735 = vmatprep.mubr.bf16.mxu0 0
      %4736 = vmatmul.mubr.bf16.gmra.mrb[0].mxu0 %v4432
      %v4737 = vpop.f32.mrb[0].mxu0
      %v4738 = vadd.f32 0.0, %v4737
      %v4739 = vpop.f32.mrb[0].mxu0
      %v4740 = vpop.f32.mrb[0].mxu0
      %v4741 = vadd.f32 0.0, %v4740
      %v4742 = vpop.f32.mrb[0].mxu0
      %4743 = vmatprep.mubr.bf16.mxu0 0
      %4744 = vmatmul.mubr.bf16.gmra.mrb[0].mxu0 %v4435
      %v4745 = vpop.f32.mrb[0].mxu0
      %v4746 = vadd.f32 0.0, %v4745
      %v4747 = vpop.f32.mrb[0].mxu0
      %v4748 = vpop.f32.mrb[0].mxu0
      %v4749 = vadd.f32 0.0, %v4748
      %v4750 = vpop.f32.mrb[0].mxu0
      %4751 = vmatprep.mubr.bf16.mxu0 0
      %4752 = vmatmul.mubr.bf16.gmra.mrb[0].mxu0 %v4438
      %v4753 = vpop.f32.mrb[0].mxu0
      %v4754 = vadd.f32 0.0, %v4753
      %v4755 = vpop.f32.mrb[0].mxu0
      %v4756 = vpop.f32.mrb[0].mxu0
      %v4757 = vadd.f32 0.0, %v4756
      %v4758 = vpop.f32.mrb[0].mxu0
      %4759 = vmatprep.mubr.bf16.mxu0 0
      %4760 = vmatmul.mubr.bf16.gmra.mrb[0].mxu0 %v4441
      %v4761 = vpop.f32.mrb[0].mxu0
      %v4762 = vadd.f32 0.0, %v4761
      %v4763 = vpop.f32.mrb[0].mxu0
      %v4764 = vpop.f32.mrb[0].mxu0
      %v4765 = vadd.f32 0.0, %v4764
      %v4766 = vpop.f32.mrb[0].mxu0
      %4767 = vmatprep.mubr.bf16.mxu0 0
      %4768 = vmatmul.mubr.bf16.gmra.mrb[0].mxu0 %v4444
      %v4769 = vpop.f32.mrb[0].mxu0
      %v4770 = vadd.f32 0.0, %v4769
      %v4771 = vpop.f32.mrb[0].mxu0
      %v4772 = vpop.f32.mrb[0].mxu0
      %v4773 = vadd.f32 0.0, %v4772
      %v4774 = vpop.f32.mrb[0].mxu0
      %4775 = vmatprep.mubr.bf16.mxu0 0
      %4776 = vmatmul.mubr.bf16.gmra.mrb[0].mxu0 %v4447
      %v4777 = vpop.f32.mrb[0].mxu0
      %v4778 = vadd.f32 0.0, %v4777
      %v4779 = vpop.f32.mrb[0].mxu0
      %v4780 = vpop.f32.mrb[0].mxu0
      %v4781 = vadd.f32 0.0, %v4780
      %v4782 = vpop.f32.mrb[0].mxu0
      %4783 = vmatprep.mubr.bf16.mxu0 0
      %4784 = vmatmul.mubr.bf16.gmra.mrb[0].mxu0 %v4450
      %v4785 = vpop.f32.mrb[0].mxu0
      %v4786 = vadd.f32 0.0, %v4785
      %v4787 = vpop.f32.mrb[0].mxu0
      %v4788 = vpop.f32.mrb[0].mxu0
      %v4789 = vadd.f32 0.0, %v4788
      %v4790 = vpop.f32.mrb[0].mxu0
      %4791 = vmatprep.mubr.bf16.mxu0 0
      %4792 = vmatmul.mubr.bf16.gmra.mrb[0].mxu0 %v4453
      %v4793 = vpop.f32.mrb[0].mxu0
      %v4794 = vadd.f32 0.0, %v4793
      %v4795 = vpop.f32.mrb[0].mxu0
      %v4796 = vpop.f32.mrb[0].mxu0
      %v4797 = vadd.f32 0.0, %v4796
      %v4798 = vpop.f32.mrb[0].mxu0
      %4799 = vmatprep.mubr.bf16.mxu0 0
      %4800 = vmatmul.mubr.bf16.gmra.mrb[0].mxu0 %v4456
      %v4801 = vpop.f32.mrb[0].mxu0
      %v4802 = vadd.f32 0.0, %v4801
      %v4803 = vpop.f32.mrb[0].mxu0
      %v4804 = vpop.f32.mrb[0].mxu0
      %v4805 = vadd.f32 0.0, %v4804
      %v4806 = vpop.f32.mrb[0].mxu0
      %4807 = vmatprep.mubr.bf16.mxu0 0
      %4808 = vmatmul.mubr.bf16.gmra.mrb[0].mxu0 %v4459
      %v4809 = vpop.f32.mrb[0].mxu0
      %v4810 = vadd.f32 0.0, %v4809
      %v4811 = vpop.f32.mrb[0].mxu0
      %v4812 = vpop.f32.mrb[0].mxu0
      %v4813 = vadd.f32 0.0, %v4812
      %v4814 = vpop.f32.mrb[0].mxu0
      %4815 = vmatprep.mubr.bf16.mxu0 0
      %4816 = vmatmul.mubr.bf16.gmra.mrb[0].mxu0 %v4462
      %v4817 = vpop.f32.mrb[0].mxu0
      %v4818 = vadd.f32 0.0, %v4817
      %v4819 = vpop.f32.mrb[0].mxu0
      %v4820 = vpop.f32.mrb[0].mxu0
      %v4821 = vadd.f32 0.0, %v4820
      %v4822 = vpop.f32.mrb[0].mxu0
      %4823 = vmatprep.mubr.bf16.mxu0 0
      %4824 = vmatmul.mubr.bf16.gmra.mrb[0].mxu0 %v4465
      %v4825 = vpop.f32.mrb[0].mxu0
      %v4826 = vadd.f32 0.0, %v4825
      %v4827 = vpop.f32.mrb[0].mxu0
      %v4828 = vpop.f32.mrb[0].mxu0
      %v4829 = vadd.f32 0.0, %v4828
      %v4830 = vpop.f32.mrb[0].mxu0
      %4831 = vmatprep.mubr.bf16.mxu0 0
      %4832 = vmatmul.mubr.bf16.gmra.mrb[0].mxu0 %v4468
      %v4833 = vpop.f32.mrb[0].mxu0
      %v4834 = vadd.f32 0.0, %v4833
      %v4835 = vpop.f32.mrb[0].mxu0
      %v4836 = vpop.f32.mrb[0].mxu0
      %v4837 = vadd.f32 0.0, %v4836
      %v4838 = vpop.f32.mrb[0].mxu0
      %4839 = vmatprep.mubr.bf16.mxu0 0
      %4840 = vmatmul.mubr.bf16.gmra.mrb[0].mxu0 %v4471
      %v4841 = vpop.f32.mrb[0].mxu0
      %v4842 = vadd.f32 0.0, %v4841
      %v4843 = vpop.f32.mrb[0].mxu0
      %v4844 = vpop.f32.mrb[0].mxu0
      %v4845 = vadd.f32 0.0, %v4844
      %v4846 = vpop.f32.mrb[0].mxu0
      %4847 = vmatprep.mubr.bf16.mxu0 0
      %4848 = vmatmul.mubr.bf16.gmra.mrb[0].mxu0 %v4474
      %v4849 = vpop.f32.mrb[0].mxu0
      %v4850 = vadd.f32 0.0, %v4849
      %v4851 = vpop.f32.mrb[0].mxu0
      %v4852 = vpop.f32.mrb[0].mxu0
      %v4853 = vadd.f32 0.0, %v4852
      %v4854 = vpop.f32.mrb[0].mxu0
      %4855 = vmatprep.mubr.bf16.mxu0 0
      %4856 = vmatmul.mubr.bf16.gmra.mrb[0].mxu0 %v4477
      %v4857 = vpop.f32.mrb[0].mxu0
      %v4858 = vadd.f32 0.0, %v4857
      %v4859 = vpop.f32.mrb[0].mxu0
      %v4860 = vpop.f32.mrb[0].mxu0
      %v4861 = vadd.f32 0.0, %v4860
      %v4862 = vpop.f32.mrb[0].mxu0
      %4863 = vmatprep.mubr.bf16.mxu0 0
      %4864 = vmatmul.mubr.bf16.gmra.mrb[0].mxu0 %v4480
      %v4865 = vpop.f32.mrb[0].mxu0
      %v4866 = vadd.f32 0.0, %v4865
      %v4867 = vpop.f32.mrb[0].mxu0
      %v4868 = vpop.f32.mrb[0].mxu0
      %v4869 = vadd.f32 0.0, %v4868
      %v4870 = vpop.f32.mrb[0].mxu0
      %4871 = vmatprep.mubr.bf16.mxu0 0
      %4872 = vmatmul.mubr.bf16.gmra.mrb[0].mxu0 %v4483
      %v4873 = vpop.f32.mrb[0].mxu0
      %v4874 = vadd.f32 0.0, %v4873
      %v4875 = vpop.f32.mrb[0].mxu0
      %v4876 = vpop.f32.mrb[0].mxu0
      %v4877 = vadd.f32 0.0, %v4876
      %v4878 = vpop.f32.mrb[0].mxu0
      %4879 = vmatprep.mubr.bf16.mxu0 0
      %4880 = vmatmul.mubr.bf16.gmra.mrb[0].mxu0 %v4486
      %v4881 = vpop.f32.mrb[0].mxu0
      %v4882 = vadd.f32 0.0, %v4881
      %v4883 = vpop.f32.mrb[0].mxu0
      %v4884 = vpop.f32.mrb[0].mxu0
      %v4885 = vadd.f32 0.0, %v4884
      %v4886 = vpop.f32.mrb[0].mxu0
      %4887 = vmatprep.mubr.bf16.mxu0 0
      %4888 = vmatmul.mubr.bf16.gmra.mrb[0].mxu0 %v4489
      %v4889 = vpop.f32.mrb[0].mxu0
      %v4890 = vadd.f32 0.0, %v4889
      %v4891 = vpop.f32.mrb[0].mxu0
      %v4892 = vpop.f32.mrb[0].mxu0
      %v4893 = vadd.f32 0.0, %v4892
      %v4894 = vpop.f32.mrb[0].mxu0
      %4895 = vmatprep.mubr.bf16.mxu0 0
      %4896 = vmatmul.mubr.bf16.gmra.mrb[0].mxu0 %v4492
      %v4897 = vpop.f32.mrb[0].mxu0
      %v4898 = vadd.f32 0.0, %v4897
      %v4899 = vpop.f32.mrb[0].mxu0
      %v4900 = vpop.f32.mrb[0].mxu0
      %v4901 = vadd.f32 0.0, %v4900
      %v4902 = vpop.f32.mrb[0].mxu0
      %4903 = vmatprep.mubr.bf16.mxu0 0
      %4904 = vmatmul.mubr.bf16.gmra.mrb[0].mxu0 %v4495
      %v4905 = vpop.f32.mrb[0].mxu0
      %v4906 = vadd.f32 0.0, %v4905
      %v4907 = vpop.f32.mrb[0].mxu0
      %v4908 = vpop.f32.mrb[0].mxu0
      %v4909 = vadd.f32 0.0, %v4908
      %v4910 = vpop.f32.mrb[0].mxu0
      %4911 = vmatprep.mubr.bf16.mxu0 0
      %4912 = vmatmul.mubr.bf16.gmra.mrb[0].mxu0 %v4498
      %v4913 = vpop.f32.mrb[0].mxu0
      %v4914 = vadd.f32 0.0, %v4913
      %v4915 = vpop.f32.mrb[0].mxu0
      %v4916 = vpop.f32.mrb[0].mxu0
      %v4917 = vadd.f32 0.0, %v4916
      %v4918 = vpop.f32.mrb[0].mxu0
      %4919 = vmatprep.mubr.bf16.mxu0 0
      %4920 = vmatmul.mubr.bf16.gmra.mrb[0].mxu0 %v4501
      %v4921 = vpop.f32.mrb[0].mxu0
      %v4922 = vadd.f32 0.0, %v4921
      %v4923 = vpop.f32.mrb[0].mxu0
      %v4924 = vpop.f32.mrb[0].mxu0
      %v4925 = vadd.f32 0.0, %v4924
      %v4926 = vpop.f32.mrb[0].mxu0
      %4927 = vmatprep.mubr.bf16.mxu0 0
      %4928 = vmatmul.mubr.bf16.gmra.mrb[0].mxu0 %v4504
      %v4929 = vpop.f32.mrb[0].mxu0
      %v4930 = vadd.f32 0.0, %v4929
      %v4931 = vpop.f32.mrb[0].mxu0
      %v4932 = vpop.f32.mrb[0].mxu0
      %v4933 = vadd.f32 0.0, %v4932
      %v4934 = vpop.f32.mrb[0].mxu0
      %4935 = vmatprep.mubr.bf16.mxu0 0
      %4936 = vmatmul.mubr.bf16.gmra.mrb[0].mxu0 %v4507
      %v4937 = vpop.f32.mrb[0].mxu0
      %v4938 = vadd.f32 0.0, %v4937
      %v4939 = vpop.f32.mrb[0].mxu0
      %v4940 = vpop.f32.mrb[0].mxu0
      %v4941 = vadd.f32 0.0, %v4940
      %v4942 = vpop.f32.mrb[0].mxu0
      %4943 = vmatprep.mubr.bf16.mxu0 0
      %4944 = vmatmul.mubr.bf16.gmra.mrb[0].mxu0 %v4510
      %v4945 = vpop.f32.mrb[0].mxu0
      %v4946 = vadd.f32 0.0, %v4945
      %v4947 = vpop.f32.mrb[0].mxu0
      %v4948 = vpop.f32.mrb[0].mxu0
      %v4949 = vadd.f32 0.0, %v4948
      %v4950 = vpop.f32.mrb[0].mxu0
      %4951 = vmatprep.mubr.bf16.mxu0 0
      %4952 = vmatmul.mubr.bf16.gmra.mrb[0].mxu0 %v4513
      %v4953 = vpop.f32.mrb[0].mxu0
      %v4954 = vadd.f32 0.0, %v4953
      %v4955 = vpop.f32.mrb[0].mxu0
      %v4956 = vpop.f32.mrb[0].mxu0
      %v4957 = vadd.f32 0.0, %v4956
      %v4958 = vpop.f32.mrb[0].mxu0
      %4959 = vmatprep.mubr.bf16.mxu0 0
      %4960 = vmatmul.mubr.bf16.gmra.mrb[0].mxu0 %v4516
      %v4961 = vpop.f32.mrb[0].mxu0
      %v4962 = vadd.f32 0.0, %v4961
      %v4963 = vpop.f32.mrb[0].mxu0
      %v4964 = vpop.f32.mrb[0].mxu0
      %v4965 = vadd.f32 0.0, %v4964
      %v4966 = vpop.f32.mrb[0].mxu0
      %4967 = vmatprep.mubr.bf16.mxu0 0
      %4968 = vmatmul.mubr.bf16.gmra.mrb[0].mxu0 %v4519
      %v4969 = vpop.f32.mrb[0].mxu0
      %v4970 = vadd.f32 0.0, %v4969
      %v4971 = vpop.f32.mrb[0].mxu0
      %v4972 = vpop.f32.mrb[0].mxu0
      %v4973 = vadd.f32 0.0, %v4972
      %v4974 = vpop.f32.mrb[0].mxu0
      %4975 = vmatprep.mubr.bf16.mxu0 0
      %4976 = vmatmul.mubr.bf16.gmra.mrb[0].mxu0 %v4522
      %v4977 = vpop.f32.mrb[0].mxu0
      %v4978 = vadd.f32 0.0, %v4977
      %v4979 = vpop.f32.mrb[0].mxu0
      %v4980 = vpop.f32.mrb[0].mxu0
      %v4981 = vadd.f32 0.0, %v4980
      %v4982 = vpop.f32.mrb[0].mxu0
      %4983 = vmatprep.mubr.bf16.mxu0 0
      %4984 = vmatmul.mubr.bf16.gmra.mrb[0].mxu0 %v4525
      %v4985 = vpop.f32.mrb[0].mxu0
      %v4986 = vadd.f32 0.0, %v4985
      %v4987 = vpop.f32.mrb[0].mxu0
      %v4988 = vpop.f32.mrb[0].mxu0
      %v4989 = vadd.f32 0.0, %v4988
      %v4990 = vpop.f32.mrb[0].mxu0
      %4991 = vmatprep.mubr.bf16.mxu0 0
      %4992 = vmatmul.mubr.bf16.gmra.mrb[0].mxu0 %v4528
      %v4993 = vpop.f32.mrb[0].mxu0
      %v4994 = vadd.f32 0.0, %v4993
      %v4995 = vpop.f32.mrb[0].mxu0
      %v4996 = vpop.f32.mrb[0].mxu0
      %v4997 = vadd.f32 0.0, %v4996
      %v4998 = vpop.f32.mrb[0].mxu0
      %4999 = vmatprep.mubr.bf16.mxu0 0
      %5000 = vmatmul.mubr.bf16.gmra.mrb[0].mxu0 %v4531
      %v5001 = vpop.f32.mrb[0].mxu0
      %v5002 = vadd.f32 0.0, %v5001
      %v5003 = vpop.f32.mrb[0].mxu0
      %v5004 = vpop.f32.mrb[0].mxu0
      %v5005 = vadd.f32 0.0, %v5004
      %v5006 = vpop.f32.mrb[0].mxu0
      %5007 = vmatprep.mubr.bf16.mxu0 0
      %5008 = vmatmul.mubr.bf16.gmra.mrb[0].mxu0 %v4534
      %v5009 = vpop.f32.mrb[0].mxu0
      %v5010 = vadd.f32 0.0, %v5009
      %v5011 = vpop.f32.mrb[0].mxu0
      %v5012 = vpop.f32.mrb[0].mxu0
      %v5013 = vadd.f32 0.0, %v5012
      %v5014 = vpop.f32.mrb[0].mxu0
      %5015 = vmatprep.mubr.bf16.mxu0 0
      %5016 = vmatmul.mubr.bf16.gmra.mrb[0].mxu0 %v4537
      %v5017 = vpop.f32.mrb[0].mxu0
      %v5018 = vadd.f32 0.0, %v5017
      %v5019 = vpop.f32.mrb[0].mxu0
      %v5020 = vpop.f32.mrb[0].mxu0
      %v5021 = vadd.f32 0.0, %v5020
      %v5022 = vpop.f32.mrb[0].mxu0
      %5023 = vmatprep.mubr.bf16.mxu0 0
      %5024 = vmatmul.mubr.bf16.gmra.mrb[0].mxu0 %v4540
      %v5025 = vpop.f32.mrb[0].mxu0
      %v5026 = vadd.f32 0.0, %v5025
      %v5027 = vpop.f32.mrb[0].mxu0
      %v5028 = vpop.f32.mrb[0].mxu0
      %v5029 = vadd.f32 0.0, %v5028
      %v5030 = vpop.f32.mrb[0].mxu0
      %5031 = vmatprep.mubr.bf16.mxu0 0
      %5032 = vmatmul.mubr.bf16.gmra.mrb[0].mxu0 %v4543
      %v5033 = vpop.f32.mrb[0].mxu0
      %v5034 = vadd.f32 0.0, %v5033
      %v5035 = vpop.f32.mrb[0].mxu0
      %v5036 = vpop.f32.mrb[0].mxu0
      %v5037 = vadd.f32 0.0, %v5036
      %v5038 = vpop.f32.mrb[0].mxu0
      %5039 = vmatprep.mubr.bf16.mxu0 0
      %5040 = vmatmul.mubr.bf16.gmra.mrb[0].mxu0 %v4546
      %v5041 = vpop.f32.mrb[0].mxu0
      %v5042 = vadd.f32 0.0, %v5041
      %v5043 = vpop.f32.mrb[0].mxu0
      %v5044 = vpop.f32.mrb[0].mxu0
      %v5045 = vadd.f32 0.0, %v5044
      %v5046 = vpop.f32.mrb[0].mxu0
      %5047 = vmatprep.mubr.bf16.mxu0 0
      %5048 = vmatmul.mubr.bf16.gmra.mrb[0].mxu0 %v4549
      %v5049 = vpop.f32.mrb[0].mxu0
      %v5050 = vadd.f32 0.0, %v5049
      %v5051 = vpop.f32.mrb[0].mxu0
      %v5052 = vpop.f32.mrb[0].mxu0
      %v5053 = vadd.f32 0.0, %v5052
      %v5054 = vpop.f32.mrb[0].mxu0
      %5055 = vmatprep.mubr.bf16.mxu0 0
      %5056 = vmatmul.mubr.bf16.gmra.mrb[0].mxu0 %v4552
      %v5057 = vpop.f32.mrb[0].mxu0
      %v5058 = vadd.f32 0.0, %v5057
      %v5059 = vpop.f32.mrb[0].mxu0
      %v5060 = vpop.f32.mrb[0].mxu0
      %v5061 = vadd.f32 0.0, %v5060
      %v5062 = vpop.f32.mrb[0].mxu0
      %5063 = vmatprep.mubr.bf16.mxu0 0
      %5064 = vmatmul.mubr.bf16.gmra.mrb[0].mxu0 %v4555
      %v5065 = vpop.f32.mrb[0].mxu0
      %v5066 = vadd.f32 0.0, %v5065
      %v5067 = vpop.f32.mrb[0].mxu0
      %v5068 = vpop.f32.mrb[0].mxu0
      %v5069 = vadd.f32 0.0, %v5068
      %v5070 = vpop.f32.mrb[0].mxu0
      %5071 = vmatprep.mubr.bf16.mxu0 0
      %5072 = vmatmul.mubr.bf16.gmra.mrb[0].mxu0 %v4558
      %v5073 = vpop.f32.mrb[0].mxu0
      %v5074 = vadd.f32 0.0, %v5073
      %v5075 = vpop.f32.mrb[0].mxu0
      %v5076 = vpop.f32.mrb[0].mxu0
      %v5077 = vadd.f32 0.0, %v5076
      %v5078 = vpop.f32.mrb[0].mxu0
      %5079 = vmatprep.mubr.bf16.mxu0 0
      %5080 = vmatmul.mubr.bf16.gmra.mrb[0].mxu0 %v4561
      %v5081 = vpop.f32.mrb[0].mxu0
      %v5082 = vadd.f32 0.0, %v5081
      %v5083 = vpop.f32.mrb[0].mxu0
      %v5084 = vpop.f32.mrb[0].mxu0
      %v5085 = vadd.f32 0.0, %v5084
      %v5086 = vpop.f32.mrb[0].mxu0
      %5087 = vmatprep.mubr.bf16.mxu0 0
      %5088 = vmatmul.mubr.bf16.gmra.mrb[0].mxu0 %v4564
      %v5089 = vpop.f32.mrb[0].mxu0
      %v5090 = vadd.f32 0.0, %v5089
      %v5091 = vpop.f32.mrb[0].mxu0
      %v5092 = vpop.f32.mrb[0].mxu0
      %v5093 = vadd.f32 0.0, %v5092
      %v5094 = vpop.f32.mrb[0].mxu0
      %5095 = vmatprep.mubr.bf16.mxu0 0
      %5096 = vmatmul.mubr.bf16.gmra.mrb[0].mxu0 %v4567
      %v5097 = vpop.f32.mrb[0].mxu0
      %v5098 = vadd.f32 0.0, %v5097
      %v5099 = vpop.f32.mrb[0].mxu0
      %v5100 = vpop.f32.mrb[0].mxu0
      %v5101 = vadd.f32 0.0, %v5100
      %v5102 = vpop.f32.mrb[0].mxu0
      %5103 = vmatprep.mubr.bf16.mxu0 0
      %5104 = vmatmul.mubr.bf16.gmra.mrb[0].mxu0 %v4570
      %v5105 = vpop.f32.mrb[0].mxu0
      %v5106 = vadd.f32 0.0, %v5105
      %v5107 = vpop.f32.mrb[0].mxu0
      %v5108 = vpop.f32.mrb[0].mxu0
      %v5109 = vadd.f32 0.0, %v5108
      %v5110 = vpop.f32.mrb[0].mxu0
      %5111 = vmatprep.mubr.bf16.mxu0 0
      %5112 = vmatmul.mubr.bf16.gmra.mrb[0].mxu0 %v4573
      %v5113 = vpop.f32.mrb[0].mxu0
      %v5114 = vadd.f32 0.0, %v5113
      %v5115 = vpop.f32.mrb[0].mxu0
      %v5116 = vpop.f32.mrb[0].mxu0
      %v5117 = vadd.f32 0.0, %v5116
      %v5118 = vpop.f32.mrb[0].mxu0
      %5119 = vmatprep.mubr.bf16.mxu0 0
      %5120 = vmatmul.mubr.bf16.gmra.mrb[0].mxu0 %v4576
      %v5121 = vpop.f32.mrb[0].mxu0
      %v5122 = vadd.f32 0.0, %v5121
      %v5123 = vpop.f32.mrb[0].mxu0
      %v5124 = vpop.f32.mrb[0].mxu0
      %v5125 = vadd.f32 0.0, %v5124
      %v5126 = vpop.f32.mrb[0].mxu0
      %5127 = vmatprep.mubr.bf16.mxu0 0
      %5128 = vmatmul.mubr.bf16.gmra.mrb[0].mxu0 %v4579
      %v5129 = vpop.f32.mrb[0].mxu0
      %v5130 = vadd.f32 0.0, %v5129
      %v5131 = vpop.f32.mrb[0].mxu0
      %v5132 = vpop.f32.mrb[0].mxu0
      %v5133 = vadd.f32 0.0, %v5132
      %v5134 = vpop.f32.mrb[0].mxu0
      %5135 = vmatprep.mubr.bf16.mxu0 0
      %5136 = vmatmul.mubr.bf16.gmra.mrb[0].mxu0 %v4582
      %v5137 = vpop.f32.mrb[0].mxu0
      %v5138 = vadd.f32 0.0, %v5137
      %v5139 = vpop.f32.mrb[0].mxu0
      %v5140 = vpop.f32.mrb[0].mxu0
      %v5141 = vadd.f32 0.0, %v5140
      %v5142 = vpop.f32.mrb[0].mxu0
      %5143 = vmatprep.mubr.bf16.mxu0 0
      %5144 = vmatmul.mubr.bf16.gmra.mrb[0].mxu0 %v4585
      %v5145 = vpop.f32.mrb[0].mxu0
      %v5146 = vadd.f32 0.0, %v5145
      %v5147 = vpop.f32.mrb[0].mxu0
      %v5148 = vpop.f32.mrb[0].mxu0
      %v5149 = vadd.f32 0.0, %v5148
      %v5150 = vpop.f32.mrb[0].mxu0
      %5151 = vmatprep.mubr.bf16.mxu0 0
      %5152 = vmatmul.mubr.bf16.gmra.mrb[0].mxu0 %v4588
      %v5153 = vpop.f32.mrb[0].mxu0
      %v5154 = vadd.f32 0.0, %v5153
      %v5155 = vpop.f32.mrb[0].mxu0
      %v5156 = vpop.f32.mrb[0].mxu0
      %v5157 = vadd.f32 0.0, %v5156
      %v5158 = vpop.f32.mrb[0].mxu0
      %5159 = vmatprep.mubr.bf16.mxu0 0
      %5160 = vmatmul.mubr.bf16.gmra.mrb[0].mxu0 %v4591
      %v5161 = vpop.f32.mrb[0].mxu0
      %v5162 = vadd.f32 0.0, %v5161
      %v5163 = vpop.f32.mrb[0].mxu0
      %v5164 = vpop.f32.mrb[0].mxu0
      %v5165 = vadd.f32 0.0, %v5164
      %v5166 = vpop.f32.mrb[0].mxu0
      %5167 = vmatprep.mubr.bf16.mxu0 0
      %5168 = vmatmul.mubr.bf16.gmra.mrb[0].mxu0 %v4594
      %v5169 = vpop.f32.mrb[0].mxu0
      %v5170 = vadd.f32 0.0, %v5169
      %v5171 = vpop.f32.mrb[0].mxu0
      %v5172 = vpop.f32.mrb[0].mxu0
      %v5173 = vadd.f32 0.0, %v5172
      %v5174 = vpop.f32.mrb[0].mxu0
      %5175 = vdwg.mxu0
      %v5176 = vadd.f32 %v3637, %v4634
      %v5177 = vadd.f32 %v3638, %v4637
      %v5178 = vadd.f32 %v3639, %v4642
      %v5179 = vadd.f32 %v3640, %v4645
      %v5180 = vadd.f32 %v3641, %v4650
      %v5181 = vadd.f32 %v3642, %v4653
      %v5182 = vadd.f32 %v3643, %v4658
      %v5183 = vadd.f32 %v3644, %v4661
      %v5184 = vadd.f32 %v3645, %v4666
      %v5185 = vadd.f32 %v3646, %v4669
      %v5186 = vadd.f32 %v3647, %v4674
      %v5187 = vadd.f32 %v3648, %v4677
      %v5188 = vadd.f32 %v3649, %v4682
      %v5189 = vadd.f32 %v3650, %v4685
      %v5190 = vadd.f32 %v3651, %v4690
      %v5191 = vadd.f32 %v3652, %v4693
      %v5192 = vadd.f32 %v3653, %v4698
      %v5193 = vadd.f32 %v3654, %v4701
      %v5194 = vadd.f32 %v3655, %v4706
      %v5195 = vadd.f32 %v3656, %v4709
      %v5196 = vadd.f32 %v3657, %v4714
      %v5197 = vadd.f32 %v3658, %v4717
      %v5198 = vadd.f32 %v3659, %v4722
      %v5199 = vadd.f32 %v3660, %v4725
      %v5200 = vadd.f32 %v3661, %v4730
      %v5201 = vadd.f32 %v3662, %v4733
      %v5202 = vadd.f32 %v3663, %v4738
      %v5203 = vadd.f32 %v3664, %v4741
      %v5204 = vadd.f32 %v3665, %v4746
      %v5205 = vadd.f32 %v3666, %v4749
      %v5206 = vadd.f32 %v3667, %v4754
      %v5207 = vadd.f32 %v3668, %v4757
      %v5208 = vadd.f32 %v3669, %v4762
      %v5209 = vadd.f32 %v3670, %v4765
      %v5210 = vadd.f32 %v3671, %v4770
      %v5211 = vadd.f32 %v3672, %v4773
      %v5212 = vadd.f32 %v3673, %v4778
      %v5213 = vadd.f32 %v3674, %v4781
      %v5214 = vadd.f32 %v3675, %v4786
      %v5215 = vadd.f32 %v3676, %v4789
      %v5216 = vadd.f32 %v3677, %v4794
      %v5217 = vadd.f32 %v3678, %v4797
      %v5218 = vadd.f32 %v3679, %v4802
      %v5219 = vadd.f32 %v3680, %v4805
      %v5220 = vadd.f32 %v3681, %v4810
      %v5221 = vadd.f32 %v3682, %v4813
      %v5222 = vadd.f32 %v3683, %v4818
      %v5223 = vadd.f32 %v3684, %v4821
      %v5224 = vadd.f32 %v3685, %v4826
      %v5225 = vadd.f32 %v3686, %v4829
      %v5226 = vadd.f32 %v3687, %v4834
      %v5227 = vadd.f32 %v3688, %v4837
      %v5228 = vadd.f32 %v3689, %v4842
      %v5229 = vadd.f32 %v3690, %v4845
      %v5230 = vadd.f32 %v3691, %v4850
      %v5231 = vadd.f32 %v3692, %v4853
      %v5232 = vadd.f32 %v3693, %v4858
      %v5233 = vadd.f32 %v3694, %v4861
      %v5234 = vadd.f32 %v3695, %v4866
      %v5235 = vadd.f32 %v3696, %v4869
      %v5236 = vadd.f32 %v3697, %v4874
      %v5237 = vadd.f32 %v3698, %v4877
      %v5238 = vadd.f32 %v3699, %v4882
      %v5239 = vadd.f32 %v3700, %v4885
      %v5240 = vadd.f32 %v3701, %v4890
      %v5241 = vadd.f32 %v3702, %v4893
      %v5242 = vadd.f32 %v3703, %v4898
      %v5243 = vadd.f32 %v3704, %v4901
      %v5244 = vadd.f32 %v3705, %v4906
      %v5245 = vadd.f32 %v3706, %v4909
      %v5246 = vadd.f32 %v3707, %v4914
      %v5247 = vadd.f32 %v3708, %v4917
      %v5248 = vadd.f32 %v3709, %v4922
      %v5249 = vadd.f32 %v3710, %v4925
      %v5250 = vadd.f32 %v3711, %v4930
      %v5251 = vadd.f32 %v3712, %v4933
      %v5252 = vadd.f32 %v3713, %v4938
      %v5253 = vadd.f32 %v3714, %v4941
      %v5254 = vadd.f32 %v3715, %v4946
      %v5255 = vadd.f32 %v3716, %v4949
      %v5256 = vadd.f32 %v3717, %v4954
      %v5257 = vadd.f32 %v3718, %v4957
      %v5258 = vadd.f32 %v3719, %v4962
      %v5259 = vadd.f32 %v3720, %v4965
      %v5260 = vadd.f32 %v3721, %v4970
      %v5261 = vadd.f32 %v3722, %v4973
      %v5262 = vadd.f32 %v3723, %v4978
      %v5263 = vadd.f32 %v3724, %v4981
      %v5264 = vadd.f32 %v3725, %v4986
      %v5265 = vadd.f32 %v3726, %v4989
      %v5266 = vadd.f32 %v3727, %v4994
      %v5267 = vadd.f32 %v3728, %v4997
      %v5268 = vadd.f32 %v3729, %v5002
      %v5269 = vadd.f32 %v3730, %v5005
      %v5270 = vadd.f32 %v3731, %v5010
      %v5271 = vadd.f32 %v3732, %v5013
      %v5272 = vadd.f32 %v3733, %v5018
      %v5273 = vadd.f32 %v3734, %v5021
      %v5274 = vadd.f32 %v3735, %v5026
      %v5275 = vadd.f32 %v3736, %v5029
      %v5276 = vadd.f32 %v3737, %v5034
      %v5277 = vadd.f32 %v3738, %v5037
      %v5278 = vadd.f32 %v3739, %v5042
      %v5279 = vadd.f32 %v3740, %v5045
      %v5280 = vadd.f32 %v3741, %v5050
      %v5281 = vadd.f32 %v3742, %v5053
      %v5282 = vadd.f32 %v3743, %v5058
      %v5283 = vadd.f32 %v3744, %v5061
      %v5284 = vadd.f32 %v3745, %v5066
      %v5285 = vadd.f32 %v3746, %v5069
      %v5286 = vadd.f32 %v3747, %v5074
      %v5287 = vadd.f32 %v3748, %v5077
      %v5288 = vadd.f32 %v3749, %v5082
      %v5289 = vadd.f32 %v3750, %v5085
      %v5290 = vadd.f32 %v3751, %v5090
      %v5291 = vadd.f32 %v3752, %v5093
      %v5292 = vadd.f32 %v3753, %v5098
      %v5293 = vadd.f32 %v3754, %v5101
      %v5294 = vadd.f32 %v3755, %v5106
      %v5295 = vadd.f32 %v3756, %v5109
      %v5296 = vadd.f32 %v3757, %v5114
      %v5297 = vadd.f32 %v3758, %v5117
      %v5298 = vadd.f32 %v3759, %v5122
      %v5299 = vadd.f32 %v3760, %v5125
      %v5300 = vadd.f32 %v3761, %v5130
      %v5301 = vadd.f32 %v3762, %v5133
      %v5302 = vadd.f32 %v3763, %v5138
      %v5303 = vadd.f32 %v3764, %v5141
      %v5304 = vadd.f32 %v3765, %v5146
      %v5305 = vadd.f32 %v3766, %v5149
      %v5306 = vadd.f32 %v3767, %v5154
      %v5307 = vadd.f32 %v3768, %v5157
      %v5308 = vadd.f32 %v3769, %v5162
      %v5309 = vadd.f32 %v3770, %v5165
      %v5310 = vadd.f32 %v3771, %v5170
      %v5311 = vadd.f32 %v3772, %v5173
      %v5312 = vld [vmem:[%s165 + $0x230] sm:$0x3]
      %s5313 = scalar_lea.vmem %s1, 8
      %v5314 = vld [vmem:[%s5313] sm:$0x3]
      %v5316 = vunpack.c.l.b16 %v5312
      %v5317 = vpack.c.b16 %v5316, %v5316
      %vm5318 = vsmask.f32 6400
      %v5320 = vshrl.u32 %v4186, 16
      %v5322 = vrot.slane %v5320, 1
      %v5323 = vshll.u32 %v4186, 16
      %v5325 = vrot.slane %v5323, 2
      %v5326 = vor.u32 %v5322, %v5325
      %v5328 = vshrl.u32 %v4187, 16
      %v5330 = vrot.slane %v5328, 1
      %v5331 = vshll.u32 %v4187, 16
      %v5333 = vrot.slane %v5331, 2
      %v5334 = vor.u32 %v5330, %v5333
      %v5335 = vsel %vm5318, %v5326, %v5334
      %v5337 = vshrl.u32 %v4188, 16
      %v5339 = vrot.slane %v5337, 1
      %v5340 = vshll.u32 %v4188, 16
      %v5342 = vrot.slane %v5340, 2
      %v5343 = vor.u32 %v5339, %v5342
      %v5344 = vsel %vm5318, %v5334, %v5343
      %v5346 = vshrl.u32 %v4189, 16
      %v5348 = vrot.slane %v5346, 1
      %v5349 = vshll.u32 %v4189, 16
      %v5351 = vrot.slane %v5349, 2
      %v5352 = vor.u32 %v5348, %v5351
      %v5353 = vsel %vm5318, %v5343, %v5352
      %v5355 = vshrl.u32 %v4190, 16
      %v5357 = vrot.slane %v5355, 1
      %v5358 = vshll.u32 %v4190, 16
      %v5360 = vrot.slane %v5358, 2
      %v5361 = vor.u32 %v5357, %v5360
      %v5362 = vsel %vm5318, %v5352, %v5361
      %v5364 = vshrl.u32 %v4191, 16
      %v5366 = vrot.slane %v5364, 1
      %v5367 = vshll.u32 %v4191, 16
      %v5369 = vrot.slane %v5367, 2
      %v5370 = vor.u32 %v5366, %v5369
      %v5371 = vsel %vm5318, %v5361, %v5370
      %v5373 = vshrl.u32 %v4192, 16
      %v5375 = vrot.slane %v5373, 1
      %v5376 = vshll.u32 %v4192, 16
      %v5378 = vrot.slane %v5376, 2
      %v5379 = vor.u32 %v5375, %v5378
      %v5380 = vsel %vm5318, %v5370, %v5379
      %v5382 = vshrl.u32 %v4193, 16
      %v5384 = vrot.slane %v5382, 1
      %v5385 = vshll.u32 %v4193, 16
      %v5387 = vrot.slane %v5385, 2
      %v5388 = vor.u32 %v5384, %v5387
      %v5389 = vsel %vm5318, %v5379, %v5388
      %v5391 = vshrl.u32 %v4194, 16
      %v5393 = vrot.slane %v5391, 1
      %v5394 = vshll.u32 %v4194, 16
      %v5396 = vrot.slane %v5394, 2
      %v5397 = vor.u32 %v5393, %v5396
      %v5398 = vsel %vm5318, %v5388, %v5397
      %v5400 = vshrl.u32 %v4195, 16
      %v5402 = vrot.slane %v5400, 1
      %v5403 = vshll.u32 %v4195, 16
      %v5405 = vrot.slane %v5403, 2
      %v5406 = vor.u32 %v5402, %v5405
      %v5407 = vsel %vm5318, %v5397, %v5406
      %v5409 = vshrl.u32 %v4196, 16
      %v5411 = vrot.slane %v5409, 1
      %v5412 = vshll.u32 %v4196, 16
      %v5414 = vrot.slane %v5412, 2
      %v5415 = vor.u32 %v5411, %v5414
      %v5416 = vsel %vm5318, %v5406, %v5415
      %v5418 = vshrl.u32 %v4197, 16
      %v5420 = vrot.slane %v5418, 1
      %v5421 = vshll.u32 %v4197, 16
      %v5423 = vrot.slane %v5421, 2
      %v5424 = vor.u32 %v5420, %v5423
      %v5425 = vsel %vm5318, %v5415, %v5424
      %v5427 = vshrl.u32 %v4198, 16
      %v5429 = vrot.slane %v5427, 1
      %v5430 = vshll.u32 %v4198, 16
      %v5432 = vrot.slane %v5430, 2
      %v5433 = vor.u32 %v5429, %v5432
      %v5434 = vsel %vm5318, %v5424, %v5433
      %v5436 = vshrl.u32 %v4199, 16
      %v5438 = vrot.slane %v5436, 1
      %v5439 = vshll.u32 %v4199, 16
      %v5441 = vrot.slane %v5439, 2
      %v5442 = vor.u32 %v5438, %v5441
      %v5443 = vsel %vm5318, %v5433, %v5442
      %v5445 = vshrl.u32 %v4200, 16
      %v5447 = vrot.slane %v5445, 1
      %v5448 = vshll.u32 %v4200, 16
      %v5450 = vrot.slane %v5448, 2
      %v5451 = vor.u32 %v5447, %v5450
      %v5452 = vsel %vm5318, %v5442, %v5451
      %v5454 = vshrl.u32 %v4201, 16
      %v5456 = vrot.slane %v5454, 1
      %v5457 = vshll.u32 %v4201, 16
      %v5459 = vrot.slane %v5457, 2
      %v5460 = vor.u32 %v5456, %v5459
      %v5461 = vsel %vm5318, %v5451, %v5460
      %v5463 = vshrl.u32 %v4202, 16
      %v5465 = vrot.slane %v5463, 1
      %v5466 = vshll.u32 %v4202, 16
      %v5468 = vrot.slane %v5466, 2
      %v5469 = vor.u32 %v5465, %v5468
      %v5470 = vsel %vm5318, %v5460, %v5469
      %v5472 = vshrl.u32 %v4203, 16
      %v5474 = vrot.slane %v5472, 1
      %v5475 = vshll.u32 %v4203, 16
      %v5477 = vrot.slane %v5475, 2
      %v5478 = vor.u32 %v5474, %v5477
      %v5479 = vsel %vm5318, %v5469, %v5478
      %v5481 = vshrl.u32 %v4204, 16
      %v5483 = vrot.slane %v5481, 1
      %v5484 = vshll.u32 %v4204, 16
      %v5486 = vrot.slane %v5484, 2
      %v5487 = vor.u32 %v5483, %v5486
      %v5488 = vsel %vm5318, %v5478, %v5487
      %v5490 = vshrl.u32 %v4205, 16
      %v5492 = vrot.slane %v5490, 1
      %v5493 = vshll.u32 %v4205, 16
      %v5495 = vrot.slane %v5493, 2
      %v5496 = vor.u32 %v5492, %v5495
      %v5497 = vsel %vm5318, %v5487, %v5496
      %v5499 = vshrl.u32 %v4206, 16
      %v5501 = vrot.slane %v5499, 1
      %v5502 = vshll.u32 %v4206, 16
      %v5504 = vrot.slane %v5502, 2
      %v5505 = vor.u32 %v5501, %v5504
      %v5506 = vsel %vm5318, %v5496, %v5505
      %v5508 = vshrl.u32 %v4207, 16
      %v5510 = vrot.slane %v5508, 1
      %v5511 = vshll.u32 %v4207, 16
      %v5513 = vrot.slane %v5511, 2
      %v5514 = vor.u32 %v5510, %v5513
      %v5515 = vsel %vm5318, %v5505, %v5514
      %v5517 = vshrl.u32 %v4208, 16
      %v5519 = vrot.slane %v5517, 1
      %v5520 = vshll.u32 %v4208, 16
      %v5522 = vrot.slane %v5520, 2
      %v5523 = vor.u32 %v5519, %v5522
      %v5524 = vsel %vm5318, %v5514, %v5523
      %v5526 = vshrl.u32 %v4209, 16
      %v5528 = vrot.slane %v5526, 1
      %v5529 = vshll.u32 %v4209, 16
      %v5531 = vrot.slane %v5529, 2
      %v5532 = vor.u32 %v5528, %v5531
      %v5533 = vsel %vm5318, %v5523, %v5532
      %v5535 = vshrl.u32 %v4210, 16
      %v5537 = vrot.slane %v5535, 1
      %v5538 = vshll.u32 %v4210, 16
      %v5540 = vrot.slane %v5538, 2
      %v5541 = vor.u32 %v5537, %v5540
      %v5542 = vsel %vm5318, %v5532, %v5541
      %v5544 = vshrl.u32 %v4211, 16
      %v5546 = vrot.slane %v5544, 1
      %v5547 = vshll.u32 %v4211, 16
      %v5549 = vrot.slane %v5547, 2
      %v5550 = vor.u32 %v5546, %v5549
      %v5551 = vsel %vm5318, %v5541, %v5550
      %v5553 = vshrl.u32 %v4212, 16
      %v5555 = vrot.slane %v5553, 1
      %v5556 = vshll.u32 %v4212, 16
      %v5558 = vrot.slane %v5556, 2
      %v5559 = vor.u32 %v5555, %v5558
      %v5560 = vsel %vm5318, %v5550, %v5559
      %v5562 = vshrl.u32 %v4213, 16
      %v5564 = vrot.slane %v5562, 1
      %v5565 = vshll.u32 %v4213, 16
      %v5567 = vrot.slane %v5565, 2
      %v5568 = vor.u32 %v5564, %v5567
      %v5569 = vsel %vm5318, %v5559, %v5568
      %v5571 = vshrl.u32 %v4214, 16
      %v5573 = vrot.slane %v5571, 1
      %v5574 = vshll.u32 %v4214, 16
      %v5576 = vrot.slane %v5574, 2
      %v5577 = vor.u32 %v5573, %v5576
      %v5578 = vsel %vm5318, %v5568, %v5577
      %v5580 = vshrl.u32 %v4215, 16
      %v5582 = vrot.slane %v5580, 1
      %v5583 = vshll.u32 %v4215, 16
      %v5585 = vrot.slane %v5583, 2
      %v5586 = vor.u32 %v5582, %v5585
      %v5587 = vsel %vm5318, %v5577, %v5586
      %v5589 = vshrl.u32 %v4216, 16
      %v5591 = vrot.slane %v5589, 1
      %v5592 = vshll.u32 %v4216, 16
      %v5594 = vrot.slane %v5592, 2
      %v5595 = vor.u32 %v5591, %v5594
      %v5596 = vsel %vm5318, %v5586, %v5595
      %v5598 = vshrl.u32 %v4217, 16
      %v5600 = vrot.slane %v5598, 1
      %v5601 = vshll.u32 %v4217, 16
      %v5603 = vrot.slane %v5601, 2
      %v5604 = vor.u32 %v5600, %v5603
      %v5605 = vsel %vm5318, %v5595, %v5604
      %v5607 = vshrl.u32 %v4218, 16
      %v5609 = vrot.slane %v5607, 1
      %v5610 = vshll.u32 %v4218, 16
      %v5612 = vrot.slane %v5610, 2
      %v5613 = vor.u32 %v5609, %v5612
      %v5614 = vsel %vm5318, %v5604, %v5613
      %v5616 = vshrl.u32 %v4219, 16
      %v5618 = vrot.slane %v5616, 1
      %v5619 = vshll.u32 %v4219, 16
      %v5621 = vrot.slane %v5619, 2
      %v5622 = vor.u32 %v5618, %v5621
      %v5623 = vsel %vm5318, %v5613, %v5622
      %v5625 = vshrl.u32 %v4220, 16
      %v5627 = vrot.slane %v5625, 1
      %v5628 = vshll.u32 %v4220, 16
      %v5630 = vrot.slane %v5628, 2
      %v5631 = vor.u32 %v5627, %v5630
      %v5632 = vsel %vm5318, %v5622, %v5631
      %v5634 = vshrl.u32 %v4221, 16
      %v5636 = vrot.slane %v5634, 1
      %v5637 = vshll.u32 %v4221, 16
      %v5639 = vrot.slane %v5637, 2
      %v5640 = vor.u32 %v5636, %v5639
      %v5641 = vsel %vm5318, %v5631, %v5640
      %v5643 = vshrl.u32 %v4222, 16
      %v5645 = vrot.slane %v5643, 1
      %v5646 = vshll.u32 %v4222, 16
      %v5648 = vrot.slane %v5646, 2
      %v5649 = vor.u32 %v5645, %v5648
      %v5650 = vsel %vm5318, %v5640, %v5649
      %v5652 = vshrl.u32 %v4223, 16
      %v5654 = vrot.slane %v5652, 1
      %v5655 = vshll.u32 %v4223, 16
      %v5657 = vrot.slane %v5655, 2
      %v5658 = vor.u32 %v5654, %v5657
      %v5659 = vsel %vm5318, %v5649, %v5658
      %v5661 = vshrl.u32 %v4224, 16
      %v5663 = vrot.slane %v5661, 1
      %v5664 = vshll.u32 %v4224, 16
      %v5666 = vrot.slane %v5664, 2
      %v5667 = vor.u32 %v5663, %v5666
      %v5668 = vsel %vm5318, %v5658, %v5667
      %v5670 = vshrl.u32 %v4225, 16
      %v5672 = vrot.slane %v5670, 1
      %v5673 = vshll.u32 %v4225, 16
      %v5675 = vrot.slane %v5673, 2
      %v5676 = vor.u32 %v5672, %v5675
      %v5677 = vsel %vm5318, %v5667, %v5676
      %v5679 = vshrl.u32 %v4226, 16
      %v5681 = vrot.slane %v5679, 1
      %v5682 = vshll.u32 %v4226, 16
      %v5684 = vrot.slane %v5682, 2
      %v5685 = vor.u32 %v5681, %v5684
      %v5686 = vsel %vm5318, %v5676, %v5685
      %v5688 = vshrl.u32 %v4227, 16
      %v5690 = vrot.slane %v5688, 1
      %v5691 = vshll.u32 %v4227, 16
      %v5693 = vrot.slane %v5691, 2
      %v5694 = vor.u32 %v5690, %v5693
      %v5695 = vsel %vm5318, %v5685, %v5694
      %v5697 = vshrl.u32 %v4228, 16
      %v5699 = vrot.slane %v5697, 1
      %v5700 = vshll.u32 %v4228, 16
      %v5702 = vrot.slane %v5700, 2
      %v5703 = vor.u32 %v5699, %v5702
      %v5704 = vsel %vm5318, %v5694, %v5703
      %v5706 = vshrl.u32 %v4229, 16
      %v5708 = vrot.slane %v5706, 1
      %v5709 = vshll.u32 %v4229, 16
      %v5711 = vrot.slane %v5709, 2
      %v5712 = vor.u32 %v5708, %v5711
      %v5713 = vsel %vm5318, %v5703, %v5712
      %v5715 = vshrl.u32 %v4230, 16
      %v5717 = vrot.slane %v5715, 1
      %v5718 = vshll.u32 %v4230, 16
      %v5720 = vrot.slane %v5718, 2
      %v5721 = vor.u32 %v5717, %v5720
      %v5722 = vsel %vm5318, %v5712, %v5721
      %v5724 = vshrl.u32 %v4231, 16
      %v5726 = vrot.slane %v5724, 1
      %v5727 = vshll.u32 %v4231, 16
      %v5729 = vrot.slane %v5727, 2
      %v5730 = vor.u32 %v5726, %v5729
      %v5731 = vsel %vm5318, %v5721, %v5730
      %v5733 = vshrl.u32 %v4232, 16
      %v5735 = vrot.slane %v5733, 1
      %v5736 = vshll.u32 %v4232, 16
      %v5738 = vrot.slane %v5736, 2
      %v5739 = vor.u32 %v5735, %v5738
      %v5740 = vsel %vm5318, %v5730, %v5739
      %v5742 = vshrl.u32 %v4233, 16
      %v5744 = vrot.slane %v5742, 1
      %v5745 = vshll.u32 %v4233, 16
      %v5747 = vrot.slane %v5745, 2
      %v5748 = vor.u32 %v5744, %v5747
      %v5749 = vsel %vm5318, %v5739, %v5748
      %v5751 = vshrl.u32 %v4234, 16
      %v5753 = vrot.slane %v5751, 1
      %v5754 = vshll.u32 %v4234, 16
      %v5756 = vrot.slane %v5754, 2
      %v5757 = vor.u32 %v5753, %v5756
      %v5758 = vsel %vm5318, %v5748, %v5757
      %v5760 = vshrl.u32 %v4235, 16
      %v5762 = vrot.slane %v5760, 1
      %v5763 = vshll.u32 %v4235, 16
      %v5765 = vrot.slane %v5763, 2
      %v5766 = vor.u32 %v5762, %v5765
      %v5767 = vsel %vm5318, %v5757, %v5766
      %v5769 = vshrl.u32 %v4236, 16
      %v5771 = vrot.slane %v5769, 1
      %v5772 = vshll.u32 %v4236, 16
      %v5774 = vrot.slane %v5772, 2
      %v5775 = vor.u32 %v5771, %v5774
      %v5776 = vsel %vm5318, %v5766, %v5775
      %v5778 = vshrl.u32 %v4237, 16
      %v5780 = vrot.slane %v5778, 1
      %v5781 = vshll.u32 %v4237, 16
      %v5783 = vrot.slane %v5781, 2
      %v5784 = vor.u32 %v5780, %v5783
      %v5785 = vsel %vm5318, %v5775, %v5784
      %v5787 = vshrl.u32 %v4238, 16
      %v5789 = vrot.slane %v5787, 1
      %v5790 = vshll.u32 %v4238, 16
      %v5792 = vrot.slane %v5790, 2
      %v5793 = vor.u32 %v5789, %v5792
      %v5794 = vsel %vm5318, %v5784, %v5793
      %v5796 = vshrl.u32 %v4239, 16
      %v5798 = vrot.slane %v5796, 1
      %v5799 = vshll.u32 %v4239, 16
      %v5801 = vrot.slane %v5799, 2
      %v5802 = vor.u32 %v5798, %v5801
      %v5803 = vsel %vm5318, %v5793, %v5802
      %v5805 = vshrl.u32 %v4240, 16
      %v5807 = vrot.slane %v5805, 1
      %v5808 = vshll.u32 %v4240, 16
      %v5810 = vrot.slane %v5808, 2
      %v5811 = vor.u32 %v5807, %v5810
      %v5812 = vsel %vm5318, %v5802, %v5811
      %v5814 = vshrl.u32 %v4241, 16
      %v5816 = vrot.slane %v5814, 1
      %v5817 = vshll.u32 %v4241, 16
      %v5819 = vrot.slane %v5817, 2
      %v5820 = vor.u32 %v5816, %v5819
      %v5821 = vsel %vm5318, %v5811, %v5820
      %v5823 = vshrl.u32 %v4242, 16
      %v5825 = vrot.slane %v5823, 1
      %v5826 = vshll.u32 %v4242, 16
      %v5828 = vrot.slane %v5826, 2
      %v5829 = vor.u32 %v5825, %v5828
      %v5830 = vsel %vm5318, %v5820, %v5829
      %v5832 = vshrl.u32 %v4243, 16
      %v5834 = vrot.slane %v5832, 1
      %v5835 = vshll.u32 %v4243, 16
      %v5837 = vrot.slane %v5835, 2
      %v5838 = vor.u32 %v5834, %v5837
      %v5839 = vsel %vm5318, %v5829, %v5838
      %v5841 = vshrl.u32 %v4244, 16
      %v5843 = vrot.slane %v5841, 1
      %v5844 = vshll.u32 %v4244, 16
      %v5846 = vrot.slane %v5844, 2
      %v5847 = vor.u32 %v5843, %v5846
      %v5848 = vsel %vm5318, %v5838, %v5847
      %v5850 = vshrl.u32 %v4245, 16
      %v5852 = vrot.slane %v5850, 1
      %v5853 = vshll.u32 %v4245, 16
      %v5855 = vrot.slane %v5853, 2
      %v5856 = vor.u32 %v5852, %v5855
      %v5857 = vsel %vm5318, %v5847, %v5856
      %v5859 = vshrl.u32 %v4246, 16
      %v5861 = vrot.slane %v5859, 1
      %v5862 = vshll.u32 %v4246, 16
      %v5864 = vrot.slane %v5862, 2
      %v5865 = vor.u32 %v5861, %v5864
      %v5866 = vsel %vm5318, %v5856, %v5865
      %v5868 = vshrl.u32 %v4247, 16
      %v5870 = vrot.slane %v5868, 1
      %v5871 = vshll.u32 %v4247, 16
      %v5873 = vrot.slane %v5871, 2
      %v5874 = vor.u32 %v5870, %v5873
      %v5875 = vsel %vm5318, %v5865, %v5874
      %v5877 = vshrl.u32 %v4248, 16
      %v5879 = vrot.slane %v5877, 1
      %v5880 = vshll.u32 %v4248, 16
      %v5882 = vrot.slane %v5880, 2
      %v5883 = vor.u32 %v5879, %v5882
      %v5884 = vsel %vm5318, %v5874, %v5883
      %v5886 = vshrl.u32 %v4249, 16
      %v5888 = vrot.slane %v5886, 1
      %v5889 = vshll.u32 %v4249, 16
      %v5891 = vrot.slane %v5889, 2
      %v5892 = vor.u32 %v5888, %v5891
      %v5893 = vsel %vm5318, %v5883, %v5892
      %v5895 = vshrl.u32 %v4250, 16
      %v5897 = vrot.slane %v5895, 1
      %v5898 = vshll.u32 %v4250, 16
      %v5900 = vrot.slane %v5898, 2
      %v5901 = vor.u32 %v5897, %v5900
      %v5902 = vsel %vm5318, %v5892, %v5901
      %v5904 = vshrl.u32 %v4251, 16
      %v5906 = vrot.slane %v5904, 1
      %v5907 = vshll.u32 %v4251, 16
      %v5909 = vrot.slane %v5907, 2
      %v5910 = vor.u32 %v5906, %v5909
      %v5911 = vsel %vm5318, %v5901, %v5910
      %v5913 = vshrl.u32 %v4252, 16
      %v5915 = vrot.slane %v5913, 1
      %v5916 = vshll.u32 %v4252, 16
      %v5918 = vrot.slane %v5916, 2
      %v5919 = vor.u32 %v5915, %v5918
      %v5920 = vsel %vm5318, %v5910, %v5919
      %v5922 = vshrl.u32 %v4253, 16
      %v5924 = vrot.slane %v5922, 1
      %v5925 = vshll.u32 %v4253, 16
      %v5927 = vrot.slane %v5925, 2
      %v5928 = vor.u32 %v5924, %v5927
      %v5929 = vsel %vm5318, %v5919, %v5928
      %v5931 = vshrl.u32 %v5317, 16
      %v5933 = vrot.slane %v5931, 1
      %v5934 = vshll.u32 %v5317, 16
      %v5936 = vrot.slane %v5934, 2
      %v5937 = vor.u32 %v5933, %v5936
      %v5938 = vsel %vm5318, %v5928, %v5937
      %v5940 = vsel %vm1204, %v5335, 0
      %v5943 = vsel %vm1204, %v5344, 0
      %v5946 = vsel %vm1204, %v5353, 0
      %v5949 = vsel %vm1204, %v5362, 0
      %v5952 = vsel %vm1204, %v5371, 0
      %v5955 = vsel %vm1204, %v5380, 0
      %v5958 = vsel %vm1204, %v5389, 0
      %v5961 = vsel %vm1204, %v5398, 0
      %v5964 = vsel %vm1204, %v5407, 0
      %v5967 = vsel %vm1204, %v5416, 0
      %v5970 = vsel %vm1204, %v5425, 0
      %v5973 = vsel %vm1204, %v5434, 0
      %v5976 = vsel %vm1204, %v5443, 0
      %v5979 = vsel %vm1204, %v5452, 0
      %v5982 = vsel %vm1204, %v5461, 0
      %v5985 = vsel %vm1204, %v5470, 0
      %v5988 = vsel %vm1204, %v5479, 0
      %v5991 = vsel %vm1204, %v5488, 0
      %v5994 = vsel %vm1204, %v5497, 0
      %v5997 = vsel %vm1204, %v5506, 0
      %v6000 = vsel %vm1204, %v5515, 0
      %v6003 = vsel %vm1204, %v5524, 0
      %v6006 = vsel %vm1204, %v5533, 0
      %v6009 = vsel %vm1204, %v5542, 0
      %v6012 = vsel %vm1204, %v5551, 0
      %v6015 = vsel %vm1204, %v5560, 0
      %v6018 = vsel %vm1204, %v5569, 0
      %v6021 = vsel %vm1204, %v5578, 0
      %v6024 = vsel %vm1204, %v5587, 0
      %v6027 = vsel %vm1204, %v5596, 0
      %v6030 = vsel %vm1204, %v5605, 0
      %v6033 = vsel %vm1204, %v5614, 0
      %v6036 = vsel %vm1204, %v5623, 0
      %v6039 = vsel %vm1204, %v5632, 0
      %v6042 = vsel %vm1204, %v5641, 0
      %v6045 = vsel %vm1204, %v5650, 0
      %v6048 = vsel %vm1204, %v5659, 0
      %v6051 = vsel %vm1204, %v5668, 0
      %v6054 = vsel %vm1204, %v5677, 0
      %v6057 = vsel %vm1204, %v5686, 0
      %v6060 = vsel %vm1204, %v5695, 0
      %v6063 = vsel %vm1204, %v5704, 0
      %v6066 = vsel %vm1204, %v5713, 0
      %v6069 = vsel %vm1204, %v5722, 0
      %v6072 = vsel %vm1204, %v5731, 0
      %v6075 = vsel %vm1204, %v5740, 0
      %v6078 = vsel %vm1204, %v5749, 0
      %v6081 = vsel %vm1204, %v5758, 0
      %v6084 = vsel %vm1204, %v5767, 0
      %v6087 = vsel %vm1204, %v5776, 0
      %v6090 = vsel %vm1204, %v5785, 0
      %v6093 = vsel %vm1204, %v5794, 0
      %v6096 = vsel %vm1204, %v5803, 0
      %v6099 = vsel %vm1204, %v5812, 0
      %v6102 = vsel %vm1204, %v5821, 0
      %v6105 = vsel %vm1204, %v5830, 0
      %v6108 = vsel %vm1204, %v5839, 0
      %v6111 = vsel %vm1204, %v5848, 0
      %v6114 = vsel %vm1204, %v5857, 0
      %v6117 = vsel %vm1204, %v5866, 0
      %v6120 = vsel %vm1204, %v5875, 0
      %v6123 = vsel %vm1204, %v5884, 0
      %v6126 = vsel %vm1204, %v5893, 0
      %v6129 = vsel %vm1204, %v5902, 0
      %v6132 = vsel %vm1204, %v5911, 0
      %v6135 = vsel %vm1204, %v5920, 0
      %v6138 = vsel %vm1204, %v5929, 0
      %v6141 = vsel %vm1204, %v5938, 0
      %v6144 = vand.u32 %v5314, %v1412
      %6146 = vmatprep.subr.bf16.mxu0 0
      %6147 = vmatpush1.bf16.msra.mxu0 %v6144
      %6148 = vmatprep.subr.bf16.mxu0 0
      %6149 = vmatpush1.bf16.msra.mxu0 0
      %6150 = vmatprep.subr.bf16.mxu0 0
      %6151 = vmatpush1.bf16.msra.mxu0 0
      %6152 = vmatprep.subr.bf16.mxu0 0
      %6153 = vmatpush1.bf16.msra.mxu0 0
      %6154 = vmatprep.subr.bf16.mxu0 0
      %6155 = vmatpush1.bf16.msra.mxu0 0
      %6156 = vmatprep.subr.bf16.mxu0 0
      %6157 = vmatpush1.bf16.msra.mxu0 0
      %6158 = vmatprep.subr.bf16.mxu0 0
      %6159 = vmatpush1.bf16.msra.mxu0 0
      %6160 = vmatprep.subr.bf16.mxu0 0
      %6161 = vmatpush1.bf16.msra.mxu0 0
      %6162 = vmatprep.subr.bf16.mxu0 0
      %6163 = vmatpush1.bf16.msra.mxu0 0
      %6164 = vmatprep.subr.bf16.mxu0 0
      %6165 = vmatpush1.bf16.msra.mxu0 0
      %6166 = vmatprep.subr.bf16.mxu0 0
      %6167 = vmatpush1.bf16.msra.mxu0 0
      %6168 = vmatprep.subr.bf16.mxu0 0
      %6169 = vmatpush1.bf16.msra.mxu0 0
      %6170 = vmatprep.subr.bf16.mxu0 0
      %6171 = vmatpush1.bf16.msra.mxu0 0
      %6172 = vmatprep.subr.bf16.mxu0 0
      %6173 = vmatpush1.bf16.msra.mxu0 0
      %6174 = vmatprep.subr.bf16.mxu0 0
      %6175 = vmatpush1.bf16.msra.mxu0 0
      %6176 = vmatprep.subr.bf16.mxu0 0
      %6177 = vmatpush1.bf16.msra.mxu0 0
      %6178 = vmatprep.mubr.bf16.mxu0 0
      %6179 = vmatmul.mubr.bf16.gmra.mrb[0].mxu0 %v5940
      %v6180 = vpop.f32.mrb[0].mxu0
      %v6181 = vadd.f32 0.0, %v6180
      %v6182 = vpop.f32.mrb[0].mxu0
      %v6183 = vpop.f32.mrb[0].mxu0
      %v6184 = vadd.f32 0.0, %v6183
      %v6185 = vpop.f32.mrb[0].mxu0
      %6186 = vmatprep.mubr.bf16.mxu0 0
      %6187 = vmatmul.mubr.bf16.gmra.mrb[0].mxu0 %v5943
      %v6188 = vpop.f32.mrb[0].mxu0
      %v6189 = vadd.f32 0.0, %v6188
      %v6190 = vpop.f32.mrb[0].mxu0
      %v6191 = vpop.f32.mrb[0].mxu0
      %v6192 = vadd.f32 0.0, %v6191
      %v6193 = vpop.f32.mrb[0].mxu0
      %6194 = vmatprep.mubr.bf16.mxu0 0
      %6195 = vmatmul.mubr.bf16.gmra.mrb[0].mxu0 %v5946
      %v6196 = vpop.f32.mrb[0].mxu0
      %v6197 = vadd.f32 0.0, %v6196
      %v6198 = vpop.f32.mrb[0].mxu0
      %v6199 = vpop.f32.mrb[0].mxu0
      %v6200 = vadd.f32 0.0, %v6199
      %v6201 = vpop.f32.mrb[0].mxu0
      %6202 = vmatprep.mubr.bf16.mxu0 0
      %6203 = vmatmul.mubr.bf16.gmra.mrb[0].mxu0 %v5949
      %v6204 = vpop.f32.mrb[0].mxu0
      %v6205 = vadd.f32 0.0, %v6204
      %v6206 = vpop.f32.mrb[0].mxu0
      %v6207 = vpop.f32.mrb[0].mxu0
      %v6208 = vadd.f32 0.0, %v6207
      %v6209 = vpop.f32.mrb[0].mxu0
      %6210 = vmatprep.mubr.bf16.mxu0 0
      %6211 = vmatmul.mubr.bf16.gmra.mrb[0].mxu0 %v5952
      %v6212 = vpop.f32.mrb[0].mxu0
      %v6213 = vadd.f32 0.0, %v6212
      %v6214 = vpop.f32.mrb[0].mxu0
      %v6215 = vpop.f32.mrb[0].mxu0
      %v6216 = vadd.f32 0.0, %v6215
      %v6217 = vpop.f32.mrb[0].mxu0
      %6218 = vmatprep.mubr.bf16.mxu0 0
      %6219 = vmatmul.mubr.bf16.gmra.mrb[0].mxu0 %v5955
      %v6220 = vpop.f32.mrb[0].mxu0
      %v6221 = vadd.f32 0.0, %v6220
      %v6222 = vpop.f32.mrb[0].mxu0
      %v6223 = vpop.f32.mrb[0].mxu0
      %v6224 = vadd.f32 0.0, %v6223
      %v6225 = vpop.f32.mrb[0].mxu0
      %6226 = vmatprep.mubr.bf16.mxu0 0
      %6227 = vmatmul.mubr.bf16.gmra.mrb[0].mxu0 %v5958
      %v6228 = vpop.f32.mrb[0].mxu0
      %v6229 = vadd.f32 0.0, %v6228
      %v6230 = vpop.f32.mrb[0].mxu0
      %v6231 = vpop.f32.mrb[0].mxu0
      %v6232 = vadd.f32 0.0, %v6231
      %v6233 = vpop.f32.mrb[0].mxu0
      %6234 = vmatprep.mubr.bf16.mxu0 0
      %6235 = vmatmul.mubr.bf16.gmra.mrb[0].mxu0 %v5961
      %v6236 = vpop.f32.mrb[0].mxu0
      %v6237 = vadd.f32 0.0, %v6236
      %v6238 = vpop.f32.mrb[0].mxu0
      %v6239 = vpop.f32.mrb[0].mxu0
      %v6240 = vadd.f32 0.0, %v6239
      %v6241 = vpop.f32.mrb[0].mxu0
      %6242 = vmatprep.mubr.bf16.mxu0 0
      %6243 = vmatmul.mubr.bf16.gmra.mrb[0].mxu0 %v5964
      %v6244 = vpop.f32.mrb[0].mxu0
      %v6245 = vadd.f32 0.0, %v6244
      %v6246 = vpop.f32.mrb[0].mxu0
      %v6247 = vpop.f32.mrb[0].mxu0
      %v6248 = vadd.f32 0.0, %v6247
      %v6249 = vpop.f32.mrb[0].mxu0
      %6250 = vmatprep.mubr.bf16.mxu0 0
      %6251 = vmatmul.mubr.bf16.gmra.mrb[0].mxu0 %v5967
      %v6252 = vpop.f32.mrb[0].mxu0
      %v6253 = vadd.f32 0.0, %v6252
      %v6254 = vpop.f32.mrb[0].mxu0
      %v6255 = vpop.f32.mrb[0].mxu0
      %v6256 = vadd.f32 0.0, %v6255
      %v6257 = vpop.f32.mrb[0].mxu0
      %6258 = vmatprep.mubr.bf16.mxu0 0
      %6259 = vmatmul.mubr.bf16.gmra.mrb[0].mxu0 %v5970
      %v6260 = vpop.f32.mrb[0].mxu0
      %v6261 = vadd.f32 0.0, %v6260
      %v6262 = vpop.f32.mrb[0].mxu0
      %v6263 = vpop.f32.mrb[0].mxu0
      %v6264 = vadd.f32 0.0, %v6263
      %v6265 = vpop.f32.mrb[0].mxu0
      %6266 = vmatprep.mubr.bf16.mxu0 0
      %6267 = vmatmul.mubr.bf16.gmra.mrb[0].mxu0 %v5973
      %v6268 = vpop.f32.mrb[0].mxu0
      %v6269 = vadd.f32 0.0, %v6268
      %v6270 = vpop.f32.mrb[0].mxu0
      %v6271 = vpop.f32.mrb[0].mxu0
      %v6272 = vadd.f32 0.0, %v6271
      %v6273 = vpop.f32.mrb[0].mxu0
      %6274 = vmatprep.mubr.bf16.mxu0 0
      %6275 = vmatmul.mubr.bf16.gmra.mrb[0].mxu0 %v5976
      %v6276 = vpop.f32.mrb[0].mxu0
      %v6277 = vadd.f32 0.0, %v6276
      %v6278 = vpop.f32.mrb[0].mxu0
      %v6279 = vpop.f32.mrb[0].mxu0
      %v6280 = vadd.f32 0.0, %v6279
      %v6281 = vpop.f32.mrb[0].mxu0
      %6282 = vmatprep.mubr.bf16.mxu0 0
      %6283 = vmatmul.mubr.bf16.gmra.mrb[0].mxu0 %v5979
      %v6284 = vpop.f32.mrb[0].mxu0
      %v6285 = vadd.f32 0.0, %v6284
      %v6286 = vpop.f32.mrb[0].mxu0
      %v6287 = vpop.f32.mrb[0].mxu0
      %v6288 = vadd.f32 0.0, %v6287
      %v6289 = vpop.f32.mrb[0].mxu0
      %6290 = vmatprep.mubr.bf16.mxu0 0
      %6291 = vmatmul.mubr.bf16.gmra.mrb[0].mxu0 %v5982
      %v6292 = vpop.f32.mrb[0].mxu0
      %v6293 = vadd.f32 0.0, %v6292
      %v6294 = vpop.f32.mrb[0].mxu0
      %v6295 = vpop.f32.mrb[0].mxu0
      %v6296 = vadd.f32 0.0, %v6295
      %v6297 = vpop.f32.mrb[0].mxu0
      %6298 = vmatprep.mubr.bf16.mxu0 0
      %6299 = vmatmul.mubr.bf16.gmra.mrb[0].mxu0 %v5985
      %v6300 = vpop.f32.mrb[0].mxu0
      %v6301 = vadd.f32 0.0, %v6300
      %v6302 = vpop.f32.mrb[0].mxu0
      %v6303 = vpop.f32.mrb[0].mxu0
      %v6304 = vadd.f32 0.0, %v6303
      %v6305 = vpop.f32.mrb[0].mxu0
      %6306 = vmatprep.mubr.bf16.mxu0 0
      %6307 = vmatmul.mubr.bf16.gmra.mrb[0].mxu0 %v5988
      %v6308 = vpop.f32.mrb[0].mxu0
      %v6309 = vadd.f32 0.0, %v6308
      %v6310 = vpop.f32.mrb[0].mxu0
      %v6311 = vpop.f32.mrb[0].mxu0
      %v6312 = vadd.f32 0.0, %v6311
      %v6313 = vpop.f32.mrb[0].mxu0
      %6314 = vmatprep.mubr.bf16.mxu0 0
      %6315 = vmatmul.mubr.bf16.gmra.mrb[0].mxu0 %v5991
      %v6316 = vpop.f32.mrb[0].mxu0
      %v6317 = vadd.f32 0.0, %v6316
      %v6318 = vpop.f32.mrb[0].mxu0
      %v6319 = vpop.f32.mrb[0].mxu0
      %v6320 = vadd.f32 0.0, %v6319
      %v6321 = vpop.f32.mrb[0].mxu0
      %6322 = vmatprep.mubr.bf16.mxu0 0
      %6323 = vmatmul.mubr.bf16.gmra.mrb[0].mxu0 %v5994
      %v6324 = vpop.f32.mrb[0].mxu0
      %v6325 = vadd.f32 0.0, %v6324
      %v6326 = vpop.f32.mrb[0].mxu0
      %v6327 = vpop.f32.mrb[0].mxu0
      %v6328 = vadd.f32 0.0, %v6327
      %v6329 = vpop.f32.mrb[0].mxu0
      %6330 = vmatprep.mubr.bf16.mxu0 0
      %6331 = vmatmul.mubr.bf16.gmra.mrb[0].mxu0 %v5997
      %v6332 = vpop.f32.mrb[0].mxu0
      %v6333 = vadd.f32 0.0, %v6332
      %v6334 = vpop.f32.mrb[0].mxu0
      %v6335 = vpop.f32.mrb[0].mxu0
      %v6336 = vadd.f32 0.0, %v6335
      %v6337 = vpop.f32.mrb[0].mxu0
      %6338 = vmatprep.mubr.bf16.mxu0 0
      %6339 = vmatmul.mubr.bf16.gmra.mrb[0].mxu0 %v6000
      %v6340 = vpop.f32.mrb[0].mxu0
      %v6341 = vadd.f32 0.0, %v6340
      %v6342 = vpop.f32.mrb[0].mxu0
      %v6343 = vpop.f32.mrb[0].mxu0
      %v6344 = vadd.f32 0.0, %v6343
      %v6345 = vpop.f32.mrb[0].mxu0
      %6346 = vmatprep.mubr.bf16.mxu0 0
      %6347 = vmatmul.mubr.bf16.gmra.mrb[0].mxu0 %v6003
      %v6348 = vpop.f32.mrb[0].mxu0
      %v6349 = vadd.f32 0.0, %v6348
      %v6350 = vpop.f32.mrb[0].mxu0
      %v6351 = vpop.f32.mrb[0].mxu0
      %v6352 = vadd.f32 0.0, %v6351
      %v6353 = vpop.f32.mrb[0].mxu0
      %6354 = vmatprep.mubr.bf16.mxu0 0
      %6355 = vmatmul.mubr.bf16.gmra.mrb[0].mxu0 %v6006
      %v6356 = vpop.f32.mrb[0].mxu0
      %v6357 = vadd.f32 0.0, %v6356
      %v6358 = vpop.f32.mrb[0].mxu0
      %v6359 = vpop.f32.mrb[0].mxu0
      %v6360 = vadd.f32 0.0, %v6359
      %v6361 = vpop.f32.mrb[0].mxu0
      %6362 = vmatprep.mubr.bf16.mxu0 0
      %6363 = vmatmul.mubr.bf16.gmra.mrb[0].mxu0 %v6009
      %v6364 = vpop.f32.mrb[0].mxu0
      %v6365 = vadd.f32 0.0, %v6364
      %v6366 = vpop.f32.mrb[0].mxu0
      %v6367 = vpop.f32.mrb[0].mxu0
      %v6368 = vadd.f32 0.0, %v6367
      %v6369 = vpop.f32.mrb[0].mxu0
      %6370 = vmatprep.mubr.bf16.mxu0 0
      %6371 = vmatmul.mubr.bf16.gmra.mrb[0].mxu0 %v6012
      %v6372 = vpop.f32.mrb[0].mxu0
      %v6373 = vadd.f32 0.0, %v6372
      %v6374 = vpop.f32.mrb[0].mxu0
      %v6375 = vpop.f32.mrb[0].mxu0
      %v6376 = vadd.f32 0.0, %v6375
      %v6377 = vpop.f32.mrb[0].mxu0
      %6378 = vmatprep.mubr.bf16.mxu0 0
      %6379 = vmatmul.mubr.bf16.gmra.mrb[0].mxu0 %v6015
      %v6380 = vpop.f32.mrb[0].mxu0
      %v6381 = vadd.f32 0.0, %v6380
      %v6382 = vpop.f32.mrb[0].mxu0
      %v6383 = vpop.f32.mrb[0].mxu0
      %v6384 = vadd.f32 0.0, %v6383
      %v6385 = vpop.f32.mrb[0].mxu0
      %6386 = vmatprep.mubr.bf16.mxu0 0
      %6387 = vmatmul.mubr.bf16.gmra.mrb[0].mxu0 %v6018
      %v6388 = vpop.f32.mrb[0].mxu0
      %v6389 = vadd.f32 0.0, %v6388
      %v6390 = vpop.f32.mrb[0].mxu0
      %v6391 = vpop.f32.mrb[0].mxu0
      %v6392 = vadd.f32 0.0, %v6391
      %v6393 = vpop.f32.mrb[0].mxu0
      %6394 = vmatprep.mubr.bf16.mxu0 0
      %6395 = vmatmul.mubr.bf16.gmra.mrb[0].mxu0 %v6021
      %v6396 = vpop.f32.mrb[0].mxu0
      %v6397 = vadd.f32 0.0, %v6396
      %v6398 = vpop.f32.mrb[0].mxu0
      %v6399 = vpop.f32.mrb[0].mxu0
      %v6400 = vadd.f32 0.0, %v6399
      %v6401 = vpop.f32.mrb[0].mxu0
      %6402 = vmatprep.mubr.bf16.mxu0 0
      %6403 = vmatmul.mubr.bf16.gmra.mrb[0].mxu0 %v6024
      %v6404 = vpop.f32.mrb[0].mxu0
      %v6405 = vadd.f32 0.0, %v6404
      %v6406 = vpop.f32.mrb[0].mxu0
      %v6407 = vpop.f32.mrb[0].mxu0
      %v6408 = vadd.f32 0.0, %v6407
      %v6409 = vpop.f32.mrb[0].mxu0
      %6410 = vmatprep.mubr.bf16.mxu0 0
      %6411 = vmatmul.mubr.bf16.gmra.mrb[0].mxu0 %v6027
      %v6412 = vpop.f32.mrb[0].mxu0
      %v6413 = vadd.f32 0.0, %v6412
      %v6414 = vpop.f32.mrb[0].mxu0
      %v6415 = vpop.f32.mrb[0].mxu0
      %v6416 = vadd.f32 0.0, %v6415
      %v6417 = vpop.f32.mrb[0].mxu0
      %6418 = vmatprep.mubr.bf16.mxu0 0
      %6419 = vmatmul.mubr.bf16.gmra.mrb[0].mxu0 %v6030
      %v6420 = vpop.f32.mrb[0].mxu0
      %v6421 = vadd.f32 0.0, %v6420
      %v6422 = vpop.f32.mrb[0].mxu0
      %v6423 = vpop.f32.mrb[0].mxu0
      %v6424 = vadd.f32 0.0, %v6423
      %v6425 = vpop.f32.mrb[0].mxu0
      %6426 = vmatprep.mubr.bf16.mxu0 0
      %6427 = vmatmul.mubr.bf16.gmra.mrb[0].mxu0 %v6033
      %v6428 = vpop.f32.mrb[0].mxu0
      %v6429 = vadd.f32 0.0, %v6428
      %v6430 = vpop.f32.mrb[0].mxu0
      %v6431 = vpop.f32.mrb[0].mxu0
      %v6432 = vadd.f32 0.0, %v6431
      %v6433 = vpop.f32.mrb[0].mxu0
      %6434 = vmatprep.mubr.bf16.mxu0 0
      %6435 = vmatmul.mubr.bf16.gmra.mrb[0].mxu0 %v6036
      %v6436 = vpop.f32.mrb[0].mxu0
      %v6437 = vadd.f32 0.0, %v6436
      %v6438 = vpop.f32.mrb[0].mxu0
      %v6439 = vpop.f32.mrb[0].mxu0
      %v6440 = vadd.f32 0.0, %v6439
      %v6441 = vpop.f32.mrb[0].mxu0
      %6442 = vmatprep.mubr.bf16.mxu0 0
      %6443 = vmatmul.mubr.bf16.gmra.mrb[0].mxu0 %v6039
      %v6444 = vpop.f32.mrb[0].mxu0
      %v6445 = vadd.f32 0.0, %v6444
      %v6446 = vpop.f32.mrb[0].mxu0
      %v6447 = vpop.f32.mrb[0].mxu0
      %v6448 = vadd.f32 0.0, %v6447
      %v6449 = vpop.f32.mrb[0].mxu0
      %6450 = vmatprep.mubr.bf16.mxu0 0
      %6451 = vmatmul.mubr.bf16.gmra.mrb[0].mxu0 %v6042
      %v6452 = vpop.f32.mrb[0].mxu0
      %v6453 = vadd.f32 0.0, %v6452
      %v6454 = vpop.f32.mrb[0].mxu0
      %v6455 = vpop.f32.mrb[0].mxu0
      %v6456 = vadd.f32 0.0, %v6455
      %v6457 = vpop.f32.mrb[0].mxu0
      %6458 = vmatprep.mubr.bf16.mxu0 0
      %6459 = vmatmul.mubr.bf16.gmra.mrb[0].mxu0 %v6045
      %v6460 = vpop.f32.mrb[0].mxu0
      %v6461 = vadd.f32 0.0, %v6460
      %v6462 = vpop.f32.mrb[0].mxu0
      %v6463 = vpop.f32.mrb[0].mxu0
      %v6464 = vadd.f32 0.0, %v6463
      %v6465 = vpop.f32.mrb[0].mxu0
      %6466 = vmatprep.mubr.bf16.mxu0 0
      %6467 = vmatmul.mubr.bf16.gmra.mrb[0].mxu0 %v6048
      %v6468 = vpop.f32.mrb[0].mxu0
      %v6469 = vadd.f32 0.0, %v6468
      %v6470 = vpop.f32.mrb[0].mxu0
      %v6471 = vpop.f32.mrb[0].mxu0
      %v6472 = vadd.f32 0.0, %v6471
      %v6473 = vpop.f32.mrb[0].mxu0
      %6474 = vmatprep.mubr.bf16.mxu0 0
      %6475 = vmatmul.mubr.bf16.gmra.mrb[0].mxu0 %v6051
      %v6476 = vpop.f32.mrb[0].mxu0
      %v6477 = vadd.f32 0.0, %v6476
      %v6478 = vpop.f32.mrb[0].mxu0
      %v6479 = vpop.f32.mrb[0].mxu0
      %v6480 = vadd.f32 0.0, %v6479
      %v6481 = vpop.f32.mrb[0].mxu0
      %6482 = vmatprep.mubr.bf16.mxu0 0
      %6483 = vmatmul.mubr.bf16.gmra.mrb[0].mxu0 %v6054
      %v6484 = vpop.f32.mrb[0].mxu0
      %v6485 = vadd.f32 0.0, %v6484
      %v6486 = vpop.f32.mrb[0].mxu0
      %v6487 = vpop.f32.mrb[0].mxu0
      %v6488 = vadd.f32 0.0, %v6487
      %v6489 = vpop.f32.mrb[0].mxu0
      %6490 = vmatprep.mubr.bf16.mxu0 0
      %6491 = vmatmul.mubr.bf16.gmra.mrb[0].mxu0 %v6057
      %v6492 = vpop.f32.mrb[0].mxu0
      %v6493 = vadd.f32 0.0, %v6492
      %v6494 = vpop.f32.mrb[0].mxu0
      %v6495 = vpop.f32.mrb[0].mxu0
      %v6496 = vadd.f32 0.0, %v6495
      %v6497 = vpop.f32.mrb[0].mxu0
      %6498 = vmatprep.mubr.bf16.mxu0 0
      %6499 = vmatmul.mubr.bf16.gmra.mrb[0].mxu0 %v6060
      %v6500 = vpop.f32.mrb[0].mxu0
      %v6501 = vadd.f32 0.0, %v6500
      %v6502 = vpop.f32.mrb[0].mxu0
      %v6503 = vpop.f32.mrb[0].mxu0
      %v6504 = vadd.f32 0.0, %v6503
      %v6505 = vpop.f32.mrb[0].mxu0
      %6506 = vmatprep.mubr.bf16.mxu0 0
      %6507 = vmatmul.mubr.bf16.gmra.mrb[0].mxu0 %v6063
      %v6508 = vpop.f32.mrb[0].mxu0
      %v6509 = vadd.f32 0.0, %v6508
      %v6510 = vpop.f32.mrb[0].mxu0
      %v6511 = vpop.f32.mrb[0].mxu0
      %v6512 = vadd.f32 0.0, %v6511
      %v6513 = vpop.f32.mrb[0].mxu0
      %6514 = vmatprep.mubr.bf16.mxu0 0
      %6515 = vmatmul.mubr.bf16.gmra.mrb[0].mxu0 %v6066
      %v6516 = vpop.f32.mrb[0].mxu0
      %v6517 = vadd.f32 0.0, %v6516
      %v6518 = vpop.f32.mrb[0].mxu0
      %v6519 = vpop.f32.mrb[0].mxu0
      %v6520 = vadd.f32 0.0, %v6519
      %v6521 = vpop.f32.mrb[0].mxu0
      %6522 = vmatprep.mubr.bf16.mxu0 0
      %6523 = vmatmul.mubr.bf16.gmra.mrb[0].mxu0 %v6069
      %v6524 = vpop.f32.mrb[0].mxu0
      %v6525 = vadd.f32 0.0, %v6524
      %v6526 = vpop.f32.mrb[0].mxu0
      %v6527 = vpop.f32.mrb[0].mxu0
      %v6528 = vadd.f32 0.0, %v6527
      %v6529 = vpop.f32.mrb[0].mxu0
      %6530 = vmatprep.mubr.bf16.mxu0 0
      %6531 = vmatmul.mubr.bf16.gmra.mrb[0].mxu0 %v6072
      %v6532 = vpop.f32.mrb[0].mxu0
      %v6533 = vadd.f32 0.0, %v6532
      %v6534 = vpop.f32.mrb[0].mxu0
      %v6535 = vpop.f32.mrb[0].mxu0
      %v6536 = vadd.f32 0.0, %v6535
      %v6537 = vpop.f32.mrb[0].mxu0
      %6538 = vmatprep.mubr.bf16.mxu0 0
      %6539 = vmatmul.mubr.bf16.gmra.mrb[0].mxu0 %v6075
      %v6540 = vpop.f32.mrb[0].mxu0
      %v6541 = vadd.f32 0.0, %v6540
      %v6542 = vpop.f32.mrb[0].mxu0
      %v6543 = vpop.f32.mrb[0].mxu0
      %v6544 = vadd.f32 0.0, %v6543
      %v6545 = vpop.f32.mrb[0].mxu0
      %6546 = vmatprep.mubr.bf16.mxu0 0
      %6547 = vmatmul.mubr.bf16.gmra.mrb[0].mxu0 %v6078
      %v6548 = vpop.f32.mrb[0].mxu0
      %v6549 = vadd.f32 0.0, %v6548
      %v6550 = vpop.f32.mrb[0].mxu0
      %v6551 = vpop.f32.mrb[0].mxu0
      %v6552 = vadd.f32 0.0, %v6551
      %v6553 = vpop.f32.mrb[0].mxu0
      %6554 = vmatprep.mubr.bf16.mxu0 0
      %6555 = vmatmul.mubr.bf16.gmra.mrb[0].mxu0 %v6081
      %v6556 = vpop.f32.mrb[0].mxu0
      %v6557 = vadd.f32 0.0, %v6556
      %v6558 = vpop.f32.mrb[0].mxu0
      %v6559 = vpop.f32.mrb[0].mxu0
      %v6560 = vadd.f32 0.0, %v6559
      %v6561 = vpop.f32.mrb[0].mxu0
      %6562 = vmatprep.mubr.bf16.mxu0 0
      %6563 = vmatmul.mubr.bf16.gmra.mrb[0].mxu0 %v6084
      %v6564 = vpop.f32.mrb[0].mxu0
      %v6565 = vadd.f32 0.0, %v6564
      %v6566 = vpop.f32.mrb[0].mxu0
      %v6567 = vpop.f32.mrb[0].mxu0
      %v6568 = vadd.f32 0.0, %v6567
      %v6569 = vpop.f32.mrb[0].mxu0
      %6570 = vmatprep.mubr.bf16.mxu0 0
      %6571 = vmatmul.mubr.bf16.gmra.mrb[0].mxu0 %v6087
      %v6572 = vpop.f32.mrb[0].mxu0
      %v6573 = vadd.f32 0.0, %v6572
      %v6574 = vpop.f32.mrb[0].mxu0
      %v6575 = vpop.f32.mrb[0].mxu0
      %v6576 = vadd.f32 0.0, %v6575
      %v6577 = vpop.f32.mrb[0].mxu0
      %6578 = vmatprep.mubr.bf16.mxu0 0
      %6579 = vmatmul.mubr.bf16.gmra.mrb[0].mxu0 %v6090
      %v6580 = vpop.f32.mrb[0].mxu0
      %v6581 = vadd.f32 0.0, %v6580
      %v6582 = vpop.f32.mrb[0].mxu0
      %v6583 = vpop.f32.mrb[0].mxu0
      %v6584 = vadd.f32 0.0, %v6583
      %v6585 = vpop.f32.mrb[0].mxu0
      %6586 = vmatprep.mubr.bf16.mxu0 0
      %6587 = vmatmul.mubr.bf16.gmra.mrb[0].mxu0 %v6093
      %v6588 = vpop.f32.mrb[0].mxu0
      %v6589 = vadd.f32 0.0, %v6588
      %v6590 = vpop.f32.mrb[0].mxu0
      %v6591 = vpop.f32.mrb[0].mxu0
      %v6592 = vadd.f32 0.0, %v6591
      %v6593 = vpop.f32.mrb[0].mxu0
      %6594 = vmatprep.mubr.bf16.mxu0 0
      %6595 = vmatmul.mubr.bf16.gmra.mrb[0].mxu0 %v6096
      %v6596 = vpop.f32.mrb[0].mxu0
      %v6597 = vadd.f32 0.0, %v6596
      %v6598 = vpop.f32.mrb[0].mxu0
      %v6599 = vpop.f32.mrb[0].mxu0
      %v6600 = vadd.f32 0.0, %v6599
      %v6601 = vpop.f32.mrb[0].mxu0
      %6602 = vmatprep.mubr.bf16.mxu0 0
      %6603 = vmatmul.mubr.bf16.gmra.mrb[0].mxu0 %v6099
      %v6604 = vpop.f32.mrb[0].mxu0
      %v6605 = vadd.f32 0.0, %v6604
      %v6606 = vpop.f32.mrb[0].mxu0
      %v6607 = vpop.f32.mrb[0].mxu0
      %v6608 = vadd.f32 0.0, %v6607
      %v6609 = vpop.f32.mrb[0].mxu0
      %6610 = vmatprep.mubr.bf16.mxu0 0
      %6611 = vmatmul.mubr.bf16.gmra.mrb[0].mxu0 %v6102
      %v6612 = vpop.f32.mrb[0].mxu0
      %v6613 = vadd.f32 0.0, %v6612
      %v6614 = vpop.f32.mrb[0].mxu0
      %v6615 = vpop.f32.mrb[0].mxu0
      %v6616 = vadd.f32 0.0, %v6615
      %v6617 = vpop.f32.mrb[0].mxu0
      %6618 = vmatprep.mubr.bf16.mxu0 0
      %6619 = vmatmul.mubr.bf16.gmra.mrb[0].mxu0 %v6105
      %v6620 = vpop.f32.mrb[0].mxu0
      %v6621 = vadd.f32 0.0, %v6620
      %v6622 = vpop.f32.mrb[0].mxu0
      %v6623 = vpop.f32.mrb[0].mxu0
      %v6624 = vadd.f32 0.0, %v6623
      %v6625 = vpop.f32.mrb[0].mxu0
      %6626 = vmatprep.mubr.bf16.mxu0 0
      %6627 = vmatmul.mubr.bf16.gmra.mrb[0].mxu0 %v6108
      %v6628 = vpop.f32.mrb[0].mxu0
      %v6629 = vadd.f32 0.0, %v6628
      %v6630 = vpop.f32.mrb[0].mxu0
      %v6631 = vpop.f32.mrb[0].mxu0
      %v6632 = vadd.f32 0.0, %v6631
      %v6633 = vpop.f32.mrb[0].mxu0
      %6634 = vmatprep.mubr.bf16.mxu0 0
      %6635 = vmatmul.mubr.bf16.gmra.mrb[0].mxu0 %v6111
      %v6636 = vpop.f32.mrb[0].mxu0
      %v6637 = vadd.f32 0.0, %v6636
      %v6638 = vpop.f32.mrb[0].mxu0
      %v6639 = vpop.f32.mrb[0].mxu0
      %v6640 = vadd.f32 0.0, %v6639
      %v6641 = vpop.f32.mrb[0].mxu0
      %6642 = vmatprep.mubr.bf16.mxu0 0
      %6643 = vmatmul.mubr.bf16.gmra.mrb[0].mxu0 %v6114
      %v6644 = vpop.f32.mrb[0].mxu0
      %v6645 = vadd.f32 0.0, %v6644
      %v6646 = vpop.f32.mrb[0].mxu0
      %v6647 = vpop.f32.mrb[0].mxu0
      %v6648 = vadd.f32 0.0, %v6647
      %v6649 = vpop.f32.mrb[0].mxu0
      %6650 = vmatprep.mubr.bf16.mxu0 0
      %6651 = vmatmul.mubr.bf16.gmra.mrb[0].mxu0 %v6117
      %v6652 = vpop.f32.mrb[0].mxu0
      %v6653 = vadd.f32 0.0, %v6652
      %v6654 = vpop.f32.mrb[0].mxu0
      %v6655 = vpop.f32.mrb[0].mxu0
      %v6656 = vadd.f32 0.0, %v6655
      %v6657 = vpop.f32.mrb[0].mxu0
      %6658 = vmatprep.mubr.bf16.mxu0 0
      %6659 = vmatmul.mubr.bf16.gmra.mrb[0].mxu0 %v6120
      %v6660 = vpop.f32.mrb[0].mxu0
      %v6661 = vadd.f32 0.0, %v6660
      %v6662 = vpop.f32.mrb[0].mxu0
      %v6663 = vpop.f32.mrb[0].mxu0
      %v6664 = vadd.f32 0.0, %v6663
      %v6665 = vpop.f32.mrb[0].mxu0
      %6666 = vmatprep.mubr.bf16.mxu0 0
      %6667 = vmatmul.mubr.bf16.gmra.mrb[0].mxu0 %v6123
      %v6668 = vpop.f32.mrb[0].mxu0
      %v6669 = vadd.f32 0.0, %v6668
      %v6670 = vpop.f32.mrb[0].mxu0
      %v6671 = vpop.f32.mrb[0].mxu0
      %v6672 = vadd.f32 0.0, %v6671
      %v6673 = vpop.f32.mrb[0].mxu0
      %6674 = vmatprep.mubr.bf16.mxu0 0
      %6675 = vmatmul.mubr.bf16.gmra.mrb[0].mxu0 %v6126
      %v6676 = vpop.f32.mrb[0].mxu0
      %v6677 = vadd.f32 0.0, %v6676
      %v6678 = vpop.f32.mrb[0].mxu0
      %v6679 = vpop.f32.mrb[0].mxu0
      %v6680 = vadd.f32 0.0, %v6679
      %v6681 = vpop.f32.mrb[0].mxu0
      %6682 = vmatprep.mubr.bf16.mxu0 0
      %6683 = vmatmul.mubr.bf16.gmra.mrb[0].mxu0 %v6129
      %v6684 = vpop.f32.mrb[0].mxu0
      %v6685 = vadd.f32 0.0, %v6684
      %v6686 = vpop.f32.mrb[0].mxu0
      %v6687 = vpop.f32.mrb[0].mxu0
      %v6688 = vadd.f32 0.0, %v6687
      %v6689 = vpop.f32.mrb[0].mxu0
      %6690 = vmatprep.mubr.bf16.mxu0 0
      %6691 = vmatmul.mubr.bf16.gmra.mrb[0].mxu0 %v6132
      %v6692 = vpop.f32.mrb[0].mxu0
      %v6693 = vadd.f32 0.0, %v6692
      %v6694 = vpop.f32.mrb[0].mxu0
      %v6695 = vpop.f32.mrb[0].mxu0
      %v6696 = vadd.f32 0.0, %v6695
      %v6697 = vpop.f32.mrb[0].mxu0
      %6698 = vmatprep.mubr.bf16.mxu0 0
      %6699 = vmatmul.mubr.bf16.gmra.mrb[0].mxu0 %v6135
      %v6700 = vpop.f32.mrb[0].mxu0
      %v6701 = vadd.f32 0.0, %v6700
      %v6702 = vpop.f32.mrb[0].mxu0
      %v6703 = vpop.f32.mrb[0].mxu0
      %v6704 = vadd.f32 0.0, %v6703
      %v6705 = vpop.f32.mrb[0].mxu0
      %6706 = vmatprep.mubr.bf16.mxu0 0
      %6707 = vmatmul.mubr.bf16.gmra.mrb[0].mxu0 %v6138
      %v6708 = vpop.f32.mrb[0].mxu0
      %v6709 = vadd.f32 0.0, %v6708
      %v6710 = vpop.f32.mrb[0].mxu0
      %v6711 = vpop.f32.mrb[0].mxu0
      %v6712 = vadd.f32 0.0, %v6711
      %v6713 = vpop.f32.mrb[0].mxu0
      %6714 = vmatprep.mubr.bf16.mxu0 0
      %6715 = vmatmul.mubr.bf16.gmra.mrb[0].mxu0 %v6141
      %v6716 = vpop.f32.mrb[0].mxu0
      %v6717 = vadd.f32 0.0, %v6716
      %v6718 = vpop.f32.mrb[0].mxu0
      %v6719 = vpop.f32.mrb[0].mxu0
      %v6720 = vadd.f32 0.0, %v6719
      %v6721 = vpop.f32.mrb[0].mxu0
      %6722 = vdwg.mxu0
      %v6723 = vadd.f32 %v5176, %v6181
      %v6724 = vadd.f32 %v5177, %v6184
      %v6725 = vadd.f32 %v5178, %v6189
      %v6726 = vadd.f32 %v5179, %v6192
      %v6727 = vadd.f32 %v5180, %v6197
      %v6728 = vadd.f32 %v5181, %v6200
      %v6729 = vadd.f32 %v5182, %v6205
      %v6730 = vadd.f32 %v5183, %v6208
      %v6731 = vadd.f32 %v5184, %v6213
      %v6732 = vadd.f32 %v5185, %v6216
      %v6733 = vadd.f32 %v5186, %v6221
      %v6734 = vadd.f32 %v5187, %v6224
      %v6735 = vadd.f32 %v5188, %v6229
      %v6736 = vadd.f32 %v5189, %v6232
      %v6737 = vadd.f32 %v5190, %v6237
      %v6738 = vadd.f32 %v5191, %v6240
      %v6739 = vadd.f32 %v5192, %v6245
      %v6740 = vadd.f32 %v5193, %v6248
      %v6741 = vadd.f32 %v5194, %v6253
      %v6742 = vadd.f32 %v5195, %v6256
      %v6743 = vadd.f32 %v5196, %v6261
      %v6744 = vadd.f32 %v5197, %v6264
      %v6745 = vadd.f32 %v5198, %v6269
      %v6746 = vadd.f32 %v5199, %v6272
      %v6747 = vadd.f32 %v5200, %v6277
      %v6748 = vadd.f32 %v5201, %v6280
      %v6749 = vadd.f32 %v5202, %v6285
      %v6750 = vadd.f32 %v5203, %v6288
      %v6751 = vadd.f32 %v5204, %v6293
      %v6752 = vadd.f32 %v5205, %v6296
      %v6753 = vadd.f32 %v5206, %v6301
      %v6754 = vadd.f32 %v5207, %v6304
      %v6755 = vadd.f32 %v5208, %v6309
      %v6756 = vadd.f32 %v5209, %v6312
      %v6757 = vadd.f32 %v5210, %v6317
      %v6758 = vadd.f32 %v5211, %v6320
      %v6759 = vadd.f32 %v5212, %v6325
      %v6760 = vadd.f32 %v5213, %v6328
      %v6761 = vadd.f32 %v5214, %v6333
      %v6762 = vadd.f32 %v5215, %v6336
      %v6763 = vadd.f32 %v5216, %v6341
      %v6764 = vadd.f32 %v5217, %v6344
      %v6765 = vadd.f32 %v5218, %v6349
      %v6766 = vadd.f32 %v5219, %v6352
      %v6767 = vadd.f32 %v5220, %v6357
      %v6768 = vadd.f32 %v5221, %v6360
      %v6769 = vadd.f32 %v5222, %v6365
      %v6770 = vadd.f32 %v5223, %v6368
      %v6771 = vadd.f32 %v5224, %v6373
      %v6772 = vadd.f32 %v5225, %v6376
      %v6773 = vadd.f32 %v5226, %v6381
      %v6774 = vadd.f32 %v5227, %v6384
      %v6775 = vadd.f32 %v5228, %v6389
      %v6776 = vadd.f32 %v5229, %v6392
      %v6777 = vadd.f32 %v5230, %v6397
      %v6778 = vadd.f32 %v5231, %v6400
      %v6779 = vadd.f32 %v5232, %v6405
      %v6780 = vadd.f32 %v5233, %v6408
      %v6781 = vadd.f32 %v5234, %v6413
      %v6782 = vadd.f32 %v5235, %v6416
      %v6783 = vadd.f32 %v5236, %v6421
      %v6784 = vadd.f32 %v5237, %v6424
      %v6785 = vadd.f32 %v5238, %v6429
      %v6786 = vadd.f32 %v5239, %v6432
      %v6787 = vadd.f32 %v5240, %v6437
      %v6788 = vadd.f32 %v5241, %v6440
      %v6789 = vadd.f32 %v5242, %v6445
      %v6790 = vadd.f32 %v5243, %v6448
      %v6791 = vadd.f32 %v5244, %v6453
      %v6792 = vadd.f32 %v5245, %v6456
      %v6793 = vadd.f32 %v5246, %v6461
      %v6794 = vadd.f32 %v5247, %v6464
      %v6795 = vadd.f32 %v5248, %v6469
      %v6796 = vadd.f32 %v5249, %v6472
      %v6797 = vadd.f32 %v5250, %v6477
      %v6798 = vadd.f32 %v5251, %v6480
      %v6799 = vadd.f32 %v5252, %v6485
      %v6800 = vadd.f32 %v5253, %v6488
      %v6801 = vadd.f32 %v5254, %v6493
      %v6802 = vadd.f32 %v5255, %v6496
      %v6803 = vadd.f32 %v5256, %v6501
      %v6804 = vadd.f32 %v5257, %v6504
      %v6805 = vadd.f32 %v5258, %v6509
      %v6806 = vadd.f32 %v5259, %v6512
      %v6807 = vadd.f32 %v5260, %v6517
      %v6808 = vadd.f32 %v5261, %v6520
      %v6809 = vadd.f32 %v5262, %v6525
      %v6810 = vadd.f32 %v5263, %v6528
      %v6811 = vadd.f32 %v5264, %v6533
      %v6812 = vadd.f32 %v5265, %v6536
      %v6813 = vadd.f32 %v5266, %v6541
      %v6814 = vadd.f32 %v5267, %v6544
      %v6815 = vadd.f32 %v5268, %v6549
      %v6816 = vadd.f32 %v5269, %v6552
      %v6817 = vadd.f32 %v5270, %v6557
      %v6818 = vadd.f32 %v5271, %v6560
      %v6819 = vadd.f32 %v5272, %v6565
      %v6820 = vadd.f32 %v5273, %v6568
      %v6821 = vadd.f32 %v5274, %v6573
      %v6822 = vadd.f32 %v5275, %v6576
      %v6823 = vadd.f32 %v5276, %v6581
      %v6824 = vadd.f32 %v5277, %v6584
      %v6825 = vadd.f32 %v5278, %v6589
      %v6826 = vadd.f32 %v5279, %v6592
      %v6827 = vadd.f32 %v5280, %v6597
      %v6828 = vadd.f32 %v5281, %v6600
      %v6829 = vadd.f32 %v5282, %v6605
      %v6830 = vadd.f32 %v5283, %v6608
      %v6831 = vadd.f32 %v5284, %v6613
      %v6832 = vadd.f32 %v5285, %v6616
      %v6833 = vadd.f32 %v5286, %v6621
      %v6834 = vadd.f32 %v5287, %v6624
      %v6835 = vadd.f32 %v5288, %v6629
      %v6836 = vadd.f32 %v5289, %v6632
      %v6837 = vadd.f32 %v5290, %v6637
      %v6838 = vadd.f32 %v5291, %v6640
      %v6839 = vadd.f32 %v5292, %v6645
      %v6840 = vadd.f32 %v5293, %v6648
      %v6841 = vadd.f32 %v5294, %v6653
      %v6842 = vadd.f32 %v5295, %v6656
      %v6843 = vadd.f32 %v5296, %v6661
      %v6844 = vadd.f32 %v5297, %v6664
      %v6845 = vadd.f32 %v5298, %v6669
      %v6846 = vadd.f32 %v5299, %v6672
      %v6847 = vadd.f32 %v5300, %v6677
      %v6848 = vadd.f32 %v5301, %v6680
      %v6849 = vadd.f32 %v5302, %v6685
      %v6850 = vadd.f32 %v5303, %v6688
      %v6851 = vadd.f32 %v5304, %v6693
      %v6852 = vadd.f32 %v5305, %v6696
      %v6853 = vadd.f32 %v5306, %v6701
      %v6854 = vadd.f32 %v5307, %v6704
      %v6855 = vadd.f32 %v5308, %v6709
      %v6856 = vadd.f32 %v5309, %v6712
      %v6857 = vadd.f32 %v5310, %v6717
      %v6858 = vadd.f32 %v5311, %v6720
      %v6859 = vld [vmem:[%s165 + $0x10] sm:$0xc]
      %s6860 = scalar_lea.vmem %s1, 10
      %v6861 = vld [vmem:[%s6860] sm:$0x3]
      %v6863 = vunpack.c.l.b16 %v6859
      %v6864 = vpack.c.b16 %v4050, %v6863
      %vm6865 = vcmask 1045504
      %v6866 = vrot.slane %v6864, 2
      %v6867 = vrot.slane %v4187, 2
      %v6868 = vsel %vm6865, %v6866, %v6867
      %v6869 = vrot.slane %v4188, 2
      %v6870 = vsel %vm6865, %v6867, %v6869
      %v6871 = vrot.slane %v4189, 2
      %v6872 = vsel %vm6865, %v6869, %v6871
      %v6873 = vrot.slane %v4190, 2
      %v6874 = vsel %vm6865, %v6871, %v6873
      %v6875 = vrot.slane %v4191, 2
      %v6876 = vsel %vm6865, %v6873, %v6875
      %v6877 = vrot.slane %v4192, 2
      %v6878 = vsel %vm6865, %v6875, %v6877
      %v6879 = vrot.slane %v4193, 2
      %v6880 = vsel %vm6865, %v6877, %v6879
      %v6881 = vrot.slane %v4194, 2
      %v6882 = vsel %vm6865, %v6879, %v6881
      %v6883 = vrot.slane %v4195, 2
      %v6884 = vsel %vm6865, %v6881, %v6883
      %v6885 = vrot.slane %v4196, 2
      %v6886 = vsel %vm6865, %v6883, %v6885
      %v6887 = vrot.slane %v4197, 2
      %v6888 = vsel %vm6865, %v6885, %v6887
      %v6889 = vrot.slane %v4198, 2
      %v6890 = vsel %vm6865, %v6887, %v6889
      %v6891 = vrot.slane %v4199, 2
      %v6892 = vsel %vm6865, %v6889, %v6891
      %v6893 = vrot.slane %v4200, 2
      %v6894 = vsel %vm6865, %v6891, %v6893
      %v6895 = vrot.slane %v4201, 2
      %v6896 = vsel %vm6865, %v6893, %v6895
      %v6897 = vrot.slane %v4202, 2
      %v6898 = vsel %vm6865, %v6895, %v6897
      %v6899 = vrot.slane %v4203, 2
      %v6900 = vsel %vm6865, %v6897, %v6899
      %v6901 = vrot.slane %v4204, 2
      %v6902 = vsel %vm6865, %v6899, %v6901
      %v6903 = vrot.slane %v4205, 2
      %v6904 = vsel %vm6865, %v6901, %v6903
      %v6905 = vrot.slane %v4206, 2
      %v6906 = vsel %vm6865, %v6903, %v6905
      %v6907 = vrot.slane %v4207, 2
      %v6908 = vsel %vm6865, %v6905, %v6907
      %v6909 = vrot.slane %v4208, 2
      %v6910 = vsel %vm6865, %v6907, %v6909
      %v6911 = vrot.slane %v4209, 2
      %v6912 = vsel %vm6865, %v6909, %v6911
      %v6913 = vrot.slane %v4210, 2
      %v6914 = vsel %vm6865, %v6911, %v6913
      %v6915 = vrot.slane %v4211, 2
      %v6916 = vsel %vm6865, %v6913, %v6915
      %v6917 = vrot.slane %v4212, 2
      %v6918 = vsel %vm6865, %v6915, %v6917
      %v6919 = vrot.slane %v4213, 2
      %v6920 = vsel %vm6865, %v6917, %v6919
      %v6921 = vrot.slane %v4214, 2
      %v6922 = vsel %vm6865, %v6919, %v6921
      %v6923 = vrot.slane %v4215, 2
      %v6924 = vsel %vm6865, %v6921, %v6923
      %v6925 = vrot.slane %v4216, 2
      %v6926 = vsel %vm6865, %v6923, %v6925
      %v6927 = vrot.slane %v4217, 2
      %v6928 = vsel %vm6865, %v6925, %v6927
      %v6929 = vrot.slane %v4218, 2
      %v6930 = vsel %vm6865, %v6927, %v6929
      %v6931 = vrot.slane %v4219, 2
      %v6932 = vsel %vm6865, %v6929, %v6931
      %v6933 = vrot.slane %v4220, 2
      %v6934 = vsel %vm6865, %v6931, %v6933
      %v6935 = vrot.slane %v4221, 2
      %v6936 = vsel %vm6865, %v6933, %v6935
      %v6937 = vrot.slane %v4222, 2
      %v6938 = vsel %vm6865, %v6935, %v6937
      %v6939 = vrot.slane %v4223, 2
      %v6940 = vsel %vm6865, %v6937, %v6939
      %v6941 = vrot.slane %v4224, 2
      %v6942 = vsel %vm6865, %v6939, %v6941
      %v6943 = vrot.slane %v4225, 2
      %v6944 = vsel %vm6865, %v6941, %v6943
      %v6945 = vrot.slane %v4226, 2
      %v6946 = vsel %vm6865, %v6943, %v6945
      %v6947 = vrot.slane %v4227, 2
      %v6948 = vsel %vm6865, %v6945, %v6947
      %v6949 = vrot.slane %v4228, 2
      %v6950 = vsel %vm6865, %v6947, %v6949
      %v6951 = vrot.slane %v4229, 2
      %v6952 = vsel %vm6865, %v6949, %v6951
      %v6953 = vrot.slane %v4230, 2
      %v6954 = vsel %vm6865, %v6951, %v6953
      %v6955 = vrot.slane %v4231, 2
      %v6956 = vsel %vm6865, %v6953, %v6955
      %v6957 = vrot.slane %v4232, 2
      %v6958 = vsel %vm6865, %v6955, %v6957
      %v6959 = vrot.slane %v4233, 2
      %v6960 = vsel %vm6865, %v6957, %v6959
      %v6961 = vrot.slane %v4234, 2
      %v6962 = vsel %vm6865, %v6959, %v6961
      %v6963 = vrot.slane %v4235, 2
      %v6964 = vsel %vm6865, %v6961, %v6963
      %v6965 = vrot.slane %v4236, 2
      %v6966 = vsel %vm6865, %v6963, %v6965
      %v6967 = vrot.slane %v4237, 2
      %v6968 = vsel %vm6865, %v6965, %v6967
      %v6969 = vrot.slane %v4238, 2
      %v6970 = vsel %vm6865, %v6967, %v6969
      %v6971 = vrot.slane %v4239, 2
      %v6972 = vsel %vm6865, %v6969, %v6971
      %v6973 = vrot.slane %v4240, 2
      %v6974 = vsel %vm6865, %v6971, %v6973
      %v6975 = vrot.slane %v4241, 2
      %v6976 = vsel %vm6865, %v6973, %v6975
      %v6977 = vrot.slane %v4242, 2
      %v6978 = vsel %vm6865, %v6975, %v6977
      %v6979 = vrot.slane %v4243, 2
      %v6980 = vsel %vm6865, %v6977, %v6979
      %v6981 = vrot.slane %v4244, 2
      %v6982 = vsel %vm6865, %v6979, %v6981
      %v6983 = vrot.slane %v4245, 2
      %v6984 = vsel %vm6865, %v6981, %v6983
      %v6985 = vrot.slane %v4246, 2
      %v6986 = vsel %vm6865, %v6983, %v6985
      %v6987 = vrot.slane %v4247, 2
      %v6988 = vsel %vm6865, %v6985, %v6987
      %v6989 = vrot.slane %v4248, 2
      %v6990 = vsel %vm6865, %v6987, %v6989
      %v6991 = vrot.slane %v4249, 2
      %v6992 = vsel %vm6865, %v6989, %v6991
      %v6993 = vrot.slane %v4250, 2
      %v6994 = vsel %vm6865, %v6991, %v6993
      %v6995 = vrot.slane %v4251, 2
      %v6996 = vsel %vm6865, %v6993, %v6995
      %v6997 = vrot.slane %v4252, 2
      %v6998 = vsel %vm6865, %v6995, %v6997
      %v6999 = vrot.slane %v4253, 2
      %v7000 = vsel %vm6865, %v6997, %v6999
      %v7001 = vrot.slane %v5317, 2
      %v7002 = vsel %vm6865, %v6999, %v7001
      %v7004 = vsel %vm1204, %v6868, 0
      %v7007 = vsel %vm1204, %v6870, 0
      %v7010 = vsel %vm1204, %v6872, 0
      %v7013 = vsel %vm1204, %v6874, 0
      %v7016 = vsel %vm1204, %v6876, 0
      %v7019 = vsel %vm1204, %v6878, 0
      %v7022 = vsel %vm1204, %v6880, 0
      %v7025 = vsel %vm1204, %v6882, 0
      %v7028 = vsel %vm1204, %v6884, 0
      %v7031 = vsel %vm1204, %v6886, 0
      %v7034 = vsel %vm1204, %v6888, 0
      %v7037 = vsel %vm1204, %v6890, 0
      %v7040 = vsel %vm1204, %v6892, 0
      %v7043 = vsel %vm1204, %v6894, 0
      %v7046 = vsel %vm1204, %v6896, 0
      %v7049 = vsel %vm1204, %v6898, 0
      %v7052 = vsel %vm1204, %v6900, 0
      %v7055 = vsel %vm1204, %v6902, 0
      %v7058 = vsel %vm1204, %v6904, 0
      %v7061 = vsel %vm1204, %v6906, 0
      %v7064 = vsel %vm1204, %v6908, 0
      %v7067 = vsel %vm1204, %v6910, 0
      %v7070 = vsel %vm1204, %v6912, 0
      %v7073 = vsel %vm1204, %v6914, 0
      %v7076 = vsel %vm1204, %v6916, 0
      %v7079 = vsel %vm1204, %v6918, 0
      %v7082 = vsel %vm1204, %v6920, 0
      %v7085 = vsel %vm1204, %v6922, 0
      %v7088 = vsel %vm1204, %v6924, 0
      %v7091 = vsel %vm1204, %v6926, 0
      %v7094 = vsel %vm1204, %v6928, 0
      %v7097 = vsel %vm1204, %v6930, 0
      %v7100 = vsel %vm1204, %v6932, 0
      %v7103 = vsel %vm1204, %v6934, 0
      %v7106 = vsel %vm1204, %v6936, 0
      %v7109 = vsel %vm1204, %v6938, 0
      %v7112 = vsel %vm1204, %v6940, 0
      %v7115 = vsel %vm1204, %v6942, 0
      %v7118 = vsel %vm1204, %v6944, 0
      %v7121 = vsel %vm1204, %v6946, 0
      %v7124 = vsel %vm1204, %v6948, 0
      %v7127 = vsel %vm1204, %v6950, 0
      %v7130 = vsel %vm1204, %v6952, 0
      %v7133 = vsel %vm1204, %v6954, 0
      %v7136 = vsel %vm1204, %v6956, 0
      %v7139 = vsel %vm1204, %v6958, 0
      %v7142 = vsel %vm1204, %v6960, 0
      %v7145 = vsel %vm1204, %v6962, 0
      %v7148 = vsel %vm1204, %v6964, 0
      %v7151 = vsel %vm1204, %v6966, 0
      %v7154 = vsel %vm1204, %v6968, 0
      %v7157 = vsel %vm1204, %v6970, 0
      %v7160 = vsel %vm1204, %v6972, 0
      %v7163 = vsel %vm1204, %v6974, 0
      %v7166 = vsel %vm1204, %v6976, 0
      %v7169 = vsel %vm1204, %v6978, 0
      %v7172 = vsel %vm1204, %v6980, 0
      %v7175 = vsel %vm1204, %v6982, 0
      %v7178 = vsel %vm1204, %v6984, 0
      %v7181 = vsel %vm1204, %v6986, 0
      %v7184 = vsel %vm1204, %v6988, 0
      %v7187 = vsel %vm1204, %v6990, 0
      %v7190 = vsel %vm1204, %v6992, 0
      %v7193 = vsel %vm1204, %v6994, 0
      %v7196 = vsel %vm1204, %v6996, 0
      %v7199 = vsel %vm1204, %v6998, 0
      %v7202 = vsel %vm1204, %v7000, 0
      %v7205 = vsel %vm1204, %v7002, 0
      %v7208 = vand.u32 %v6861, %v1412
      %7210 = vmatprep.subr.bf16.mxu0 0
      %7211 = vmatpush1.bf16.msra.mxu0 %v7208
      %7212 = vmatprep.subr.bf16.mxu0 0
      %7213 = vmatpush1.bf16.msra.mxu0 0
      %7214 = vmatprep.subr.bf16.mxu0 0
      %7215 = vmatpush1.bf16.msra.mxu0 0
      %7216 = vmatprep.subr.bf16.mxu0 0
      %7217 = vmatpush1.bf16.msra.mxu0 0
      %7218 = vmatprep.subr.bf16.mxu0 0
      %7219 = vmatpush1.bf16.msra.mxu0 0
      %7220 = vmatprep.subr.bf16.mxu0 0
      %7221 = vmatpush1.bf16.msra.mxu0 0
      %7222 = vmatprep.subr.bf16.mxu0 0
      %7223 = vmatpush1.bf16.msra.mxu0 0
      %7224 = vmatprep.subr.bf16.mxu0 0
      %7225 = vmatpush1.bf16.msra.mxu0 0
      %7226 = vmatprep.subr.bf16.mxu0 0
      %7227 = vmatpush1.bf16.msra.mxu0 0
      %7228 = vmatprep.subr.bf16.mxu0 0
      %7229 = vmatpush1.bf16.msra.mxu0 0
      %7230 = vmatprep.subr.bf16.mxu0 0
      %7231 = vmatpush1.bf16.msra.mxu0 0
      %7232 = vmatprep.subr.bf16.mxu0 0
      %7233 = vmatpush1.bf16.msra.mxu0 0
      %7234 = vmatprep.subr.bf16.mxu0 0
      %7235 = vmatpush1.bf16.msra.mxu0 0
      %7236 = vmatprep.subr.bf16.mxu0 0
      %7237 = vmatpush1.bf16.msra.mxu0 0
      %7238 = vmatprep.subr.bf16.mxu0 0
      %7239 = vmatpush1.bf16.msra.mxu0 0
      %7240 = vmatprep.subr.bf16.mxu0 0
      %7241 = vmatpush1.bf16.msra.mxu0 0
      %7242 = vmatprep.mubr.bf16.mxu0 0
      %7243 = vmatmul.mubr.bf16.gmra.mrb[0].mxu0 %v7004
      %v7244 = vpop.f32.mrb[0].mxu0
      %v7245 = vadd.f32 0.0, %v7244
      %v7246 = vpop.f32.mrb[0].mxu0
      %v7247 = vpop.f32.mrb[0].mxu0
      %v7248 = vadd.f32 0.0, %v7247
      %v7249 = vpop.f32.mrb[0].mxu0
      %7250 = vmatprep.mubr.bf16.mxu0 0
      %7251 = vmatmul.mubr.bf16.gmra.mrb[0].mxu0 %v7007
      %v7252 = vpop.f32.mrb[0].mxu0
      %v7253 = vadd.f32 0.0, %v7252
      %v7254 = vpop.f32.mrb[0].mxu0
      %v7255 = vpop.f32.mrb[0].mxu0
      %v7256 = vadd.f32 0.0, %v7255
      %v7257 = vpop.f32.mrb[0].mxu0
      %7258 = vmatprep.mubr.bf16.mxu0 0
      %7259 = vmatmul.mubr.bf16.gmra.mrb[0].mxu0 %v7010
      %v7260 = vpop.f32.mrb[0].mxu0
      %v7261 = vadd.f32 0.0, %v7260
      %v7262 = vpop.f32.mrb[0].mxu0
      %v7263 = vpop.f32.mrb[0].mxu0
      %v7264 = vadd.f32 0.0, %v7263
      %v7265 = vpop.f32.mrb[0].mxu0
      %7266 = vmatprep.mubr.bf16.mxu0 0
      %7267 = vmatmul.mubr.bf16.gmra.mrb[0].mxu0 %v7013
      %v7268 = vpop.f32.mrb[0].mxu0
      %v7269 = vadd.f32 0.0, %v7268
      %v7270 = vpop.f32.mrb[0].mxu0
      %v7271 = vpop.f32.mrb[0].mxu0
      %v7272 = vadd.f32 0.0, %v7271
      %v7273 = vpop.f32.mrb[0].mxu0
      %7274 = vmatprep.mubr.bf16.mxu0 0
      %7275 = vmatmul.mubr.bf16.gmra.mrb[0].mxu0 %v7016
      %v7276 = vpop.f32.mrb[0].mxu0
      %v7277 = vadd.f32 0.0, %v7276
      %v7278 = vpop.f32.mrb[0].mxu0
      %v7279 = vpop.f32.mrb[0].mxu0
      %v7280 = vadd.f32 0.0, %v7279
      %v7281 = vpop.f32.mrb[0].mxu0
      %7282 = vmatprep.mubr.bf16.mxu0 0
      %7283 = vmatmul.mubr.bf16.gmra.mrb[0].mxu0 %v7019
      %v7284 = vpop.f32.mrb[0].mxu0
      %v7285 = vadd.f32 0.0, %v7284
      %v7286 = vpop.f32.mrb[0].mxu0
      %v7287 = vpop.f32.mrb[0].mxu0
      %v7288 = vadd.f32 0.0, %v7287
      %v7289 = vpop.f32.mrb[0].mxu0
      %7290 = vmatprep.mubr.bf16.mxu0 0
      %7291 = vmatmul.mubr.bf16.gmra.mrb[0].mxu0 %v7022
      %v7292 = vpop.f32.mrb[0].mxu0
      %v7293 = vadd.f32 0.0, %v7292
      %v7294 = vpop.f32.mrb[0].mxu0
      %v7295 = vpop.f32.mrb[0].mxu0
      %v7296 = vadd.f32 0.0, %v7295
      %v7297 = vpop.f32.mrb[0].mxu0
      %7298 = vmatprep.mubr.bf16.mxu0 0
      %7299 = vmatmul.mubr.bf16.gmra.mrb[0].mxu0 %v7025
      %v7300 = vpop.f32.mrb[0].mxu0
      %v7301 = vadd.f32 0.0, %v7300
      %v7302 = vpop.f32.mrb[0].mxu0
      %v7303 = vpop.f32.mrb[0].mxu0
      %v7304 = vadd.f32 0.0, %v7303
      %v7305 = vpop.f32.mrb[0].mxu0
      %7306 = vmatprep.mubr.bf16.mxu0 0
      %7307 = vmatmul.mubr.bf16.gmra.mrb[0].mxu0 %v7028
      %v7308 = vpop.f32.mrb[0].mxu0
      %v7309 = vadd.f32 0.0, %v7308
      %v7310 = vpop.f32.mrb[0].mxu0
      %v7311 = vpop.f32.mrb[0].mxu0
      %v7312 = vadd.f32 0.0, %v7311
      %v7313 = vpop.f32.mrb[0].mxu0
      %7314 = vmatprep.mubr.bf16.mxu0 0
      %7315 = vmatmul.mubr.bf16.gmra.mrb[0].mxu0 %v7031
      %v7316 = vpop.f32.mrb[0].mxu0
      %v7317 = vadd.f32 0.0, %v7316
      %v7318 = vpop.f32.mrb[0].mxu0
      %v7319 = vpop.f32.mrb[0].mxu0
      %v7320 = vadd.f32 0.0, %v7319
      %v7321 = vpop.f32.mrb[0].mxu0
      %7322 = vmatprep.mubr.bf16.mxu0 0
      %7323 = vmatmul.mubr.bf16.gmra.mrb[0].mxu0 %v7034
      %v7324 = vpop.f32.mrb[0].mxu0
      %v7325 = vadd.f32 0.0, %v7324
      %v7326 = vpop.f32.mrb[0].mxu0
      %v7327 = vpop.f32.mrb[0].mxu0
      %v7328 = vadd.f32 0.0, %v7327
      %v7329 = vpop.f32.mrb[0].mxu0
      %7330 = vmatprep.mubr.bf16.mxu0 0
      %7331 = vmatmul.mubr.bf16.gmra.mrb[0].mxu0 %v7037
      %v7332 = vpop.f32.mrb[0].mxu0
      %v7333 = vadd.f32 0.0, %v7332
      %v7334 = vpop.f32.mrb[0].mxu0
      %v7335 = vpop.f32.mrb[0].mxu0
      %v7336 = vadd.f32 0.0, %v7335
      %v7337 = vpop.f32.mrb[0].mxu0
      %7338 = vmatprep.mubr.bf16.mxu0 0
      %7339 = vmatmul.mubr.bf16.gmra.mrb[0].mxu0 %v7040
      %v7340 = vpop.f32.mrb[0].mxu0
      %v7341 = vadd.f32 0.0, %v7340
      %v7342 = vpop.f32.mrb[0].mxu0
      %v7343 = vpop.f32.mrb[0].mxu0
      %v7344 = vadd.f32 0.0, %v7343
      %v7345 = vpop.f32.mrb[0].mxu0
      %7346 = vmatprep.mubr.bf16.mxu0 0
      %7347 = vmatmul.mubr.bf16.gmra.mrb[0].mxu0 %v7043
      %v7348 = vpop.f32.mrb[0].mxu0
      %v7349 = vadd.f32 0.0, %v7348
      %v7350 = vpop.f32.mrb[0].mxu0
      %v7351 = vpop.f32.mrb[0].mxu0
      %v7352 = vadd.f32 0.0, %v7351
      %v7353 = vpop.f32.mrb[0].mxu0
      %7354 = vmatprep.mubr.bf16.mxu0 0
      %7355 = vmatmul.mubr.bf16.gmra.mrb[0].mxu0 %v7046
      %v7356 = vpop.f32.mrb[0].mxu0
      %v7357 = vadd.f32 0.0, %v7356
      %v7358 = vpop.f32.mrb[0].mxu0
      %v7359 = vpop.f32.mrb[0].mxu0
      %v7360 = vadd.f32 0.0, %v7359
      %v7361 = vpop.f32.mrb[0].mxu0
      %7362 = vmatprep.mubr.bf16.mxu0 0
      %7363 = vmatmul.mubr.bf16.gmra.mrb[0].mxu0 %v7049
      %v7364 = vpop.f32.mrb[0].mxu0
      %v7365 = vadd.f32 0.0, %v7364
      %v7366 = vpop.f32.mrb[0].mxu0
      %v7367 = vpop.f32.mrb[0].mxu0
      %v7368 = vadd.f32 0.0, %v7367
      %v7369 = vpop.f32.mrb[0].mxu0
      %7370 = vmatprep.mubr.bf16.mxu0 0
      %7371 = vmatmul.mubr.bf16.gmra.mrb[0].mxu0 %v7052
      %v7372 = vpop.f32.mrb[0].mxu0
      %v7373 = vadd.f32 0.0, %v7372
      %v7374 = vpop.f32.mrb[0].mxu0
      %v7375 = vpop.f32.mrb[0].mxu0
      %v7376 = vadd.f32 0.0, %v7375
      %v7377 = vpop.f32.mrb[0].mxu0
      %7378 = vmatprep.mubr.bf16.mxu0 0
      %7379 = vmatmul.mubr.bf16.gmra.mrb[0].mxu0 %v7055
      %v7380 = vpop.f32.mrb[0].mxu0
      %v7381 = vadd.f32 0.0, %v7380
      %v7382 = vpop.f32.mrb[0].mxu0
      %v7383 = vpop.f32.mrb[0].mxu0
      %v7384 = vadd.f32 0.0, %v7383
      %v7385 = vpop.f32.mrb[0].mxu0
      %7386 = vmatprep.mubr.bf16.mxu0 0
      %7387 = vmatmul.mubr.bf16.gmra.mrb[0].mxu0 %v7058
      %v7388 = vpop.f32.mrb[0].mxu0
      %v7389 = vadd.f32 0.0, %v7388
      %v7390 = vpop.f32.mrb[0].mxu0
      %v7391 = vpop.f32.mrb[0].mxu0
      %v7392 = vadd.f32 0.0, %v7391
      %v7393 = vpop.f32.mrb[0].mxu0
      %7394 = vmatprep.mubr.bf16.mxu0 0
      %7395 = vmatmul.mubr.bf16.gmra.mrb[0].mxu0 %v7061
      %v7396 = vpop.f32.mrb[0].mxu0
      %v7397 = vadd.f32 0.0, %v7396
      %v7398 = vpop.f32.mrb[0].mxu0
      %v7399 = vpop.f32.mrb[0].mxu0
      %v7400 = vadd.f32 0.0, %v7399
      %v7401 = vpop.f32.mrb[0].mxu0
      %7402 = vmatprep.mubr.bf16.mxu0 0
      %7403 = vmatmul.mubr.bf16.gmra.mrb[0].mxu0 %v7064
      %v7404 = vpop.f32.mrb[0].mxu0
      %v7405 = vadd.f32 0.0, %v7404
      %v7406 = vpop.f32.mrb[0].mxu0
      %v7407 = vpop.f32.mrb[0].mxu0
      %v7408 = vadd.f32 0.0, %v7407
      %v7409 = vpop.f32.mrb[0].mxu0
      %7410 = vmatprep.mubr.bf16.mxu0 0
      %7411 = vmatmul.mubr.bf16.gmra.mrb[0].mxu0 %v7067
      %v7412 = vpop.f32.mrb[0].mxu0
      %v7413 = vadd.f32 0.0, %v7412
      %v7414 = vpop.f32.mrb[0].mxu0
      %v7415 = vpop.f32.mrb[0].mxu0
      %v7416 = vadd.f32 0.0, %v7415
      %v7417 = vpop.f32.mrb[0].mxu0
      %7418 = vmatprep.mubr.bf16.mxu0 0
      %7419 = vmatmul.mubr.bf16.gmra.mrb[0].mxu0 %v7070
      %v7420 = vpop.f32.mrb[0].mxu0
      %v7421 = vadd.f32 0.0, %v7420
      %v7422 = vpop.f32.mrb[0].mxu0
      %v7423 = vpop.f32.mrb[0].mxu0
      %v7424 = vadd.f32 0.0, %v7423
      %v7425 = vpop.f32.mrb[0].mxu0
      %7426 = vmatprep.mubr.bf16.mxu0 0
      %7427 = vmatmul.mubr.bf16.gmra.mrb[0].mxu0 %v7073
      %v7428 = vpop.f32.mrb[0].mxu0
      %v7429 = vadd.f32 0.0, %v7428
      %v7430 = vpop.f32.mrb[0].mxu0
      %v7431 = vpop.f32.mrb[0].mxu0
      %v7432 = vadd.f32 0.0, %v7431
      %v7433 = vpop.f32.mrb[0].mxu0
      %7434 = vmatprep.mubr.bf16.mxu0 0
      %7435 = vmatmul.mubr.bf16.gmra.mrb[0].mxu0 %v7076
      %v7436 = vpop.f32.mrb[0].mxu0
      %v7437 = vadd.f32 0.0, %v7436
      %v7438 = vpop.f32.mrb[0].mxu0
      %v7439 = vpop.f32.mrb[0].mxu0
      %v7440 = vadd.f32 0.0, %v7439
      %v7441 = vpop.f32.mrb[0].mxu0
      %7442 = vmatprep.mubr.bf16.mxu0 0
      %7443 = vmatmul.mubr.bf16.gmra.mrb[0].mxu0 %v7079
      %v7444 = vpop.f32.mrb[0].mxu0
      %v7445 = vadd.f32 0.0, %v7444
      %v7446 = vpop.f32.mrb[0].mxu0
      %v7447 = vpop.f32.mrb[0].mxu0
      %v7448 = vadd.f32 0.0, %v7447
      %v7449 = vpop.f32.mrb[0].mxu0
      %7450 = vmatprep.mubr.bf16.mxu0 0
      %7451 = vmatmul.mubr.bf16.gmra.mrb[0].mxu0 %v7082
      %v7452 = vpop.f32.mrb[0].mxu0
      %v7453 = vadd.f32 0.0, %v7452
      %v7454 = vpop.f32.mrb[0].mxu0
      %v7455 = vpop.f32.mrb[0].mxu0
      %v7456 = vadd.f32 0.0, %v7455
      %v7457 = vpop.f32.mrb[0].mxu0
      %7458 = vmatprep.mubr.bf16.mxu0 0
      %7459 = vmatmul.mubr.bf16.gmra.mrb[0].mxu0 %v7085
      %v7460 = vpop.f32.mrb[0].mxu0
      %v7461 = vadd.f32 0.0, %v7460
      %v7462 = vpop.f32.mrb[0].mxu0
      %v7463 = vpop.f32.mrb[0].mxu0
      %v7464 = vadd.f32 0.0, %v7463
      %v7465 = vpop.f32.mrb[0].mxu0
      %7466 = vmatprep.mubr.bf16.mxu0 0
      %7467 = vmatmul.mubr.bf16.gmra.mrb[0].mxu0 %v7088
      %v7468 = vpop.f32.mrb[0].mxu0
      %v7469 = vadd.f32 0.0, %v7468
      %v7470 = vpop.f32.mrb[0].mxu0
      %v7471 = vpop.f32.mrb[0].mxu0
      %v7472 = vadd.f32 0.0, %v7471
      %v7473 = vpop.f32.mrb[0].mxu0
      %7474 = vmatprep.mubr.bf16.mxu0 0
      %7475 = vmatmul.mubr.bf16.gmra.mrb[0].mxu0 %v7091
      %v7476 = vpop.f32.mrb[0].mxu0
      %v7477 = vadd.f32 0.0, %v7476
      %v7478 = vpop.f32.mrb[0].mxu0
      %v7479 = vpop.f32.mrb[0].mxu0
      %v7480 = vadd.f32 0.0, %v7479
      %v7481 = vpop.f32.mrb[0].mxu0
      %7482 = vmatprep.mubr.bf16.mxu0 0
      %7483 = vmatmul.mubr.bf16.gmra.mrb[0].mxu0 %v7094
      %v7484 = vpop.f32.mrb[0].mxu0
      %v7485 = vadd.f32 0.0, %v7484
      %v7486 = vpop.f32.mrb[0].mxu0
      %v7487 = vpop.f32.mrb[0].mxu0
      %v7488 = vadd.f32 0.0, %v7487
      %v7489 = vpop.f32.mrb[0].mxu0
      %7490 = vmatprep.mubr.bf16.mxu0 0
      %7491 = vmatmul.mubr.bf16.gmra.mrb[0].mxu0 %v7097
      %v7492 = vpop.f32.mrb[0].mxu0
      %v7493 = vadd.f32 0.0, %v7492
      %v7494 = vpop.f32.mrb[0].mxu0
      %v7495 = vpop.f32.mrb[0].mxu0
      %v7496 = vadd.f32 0.0, %v7495
      %v7497 = vpop.f32.mrb[0].mxu0
      %7498 = vmatprep.mubr.bf16.mxu0 0
      %7499 = vmatmul.mubr.bf16.gmra.mrb[0].mxu0 %v7100
      %v7500 = vpop.f32.mrb[0].mxu0
      %v7501 = vadd.f32 0.0, %v7500
      %v7502 = vpop.f32.mrb[0].mxu0
      %v7503 = vpop.f32.mrb[0].mxu0
      %v7504 = vadd.f32 0.0, %v7503
      %v7505 = vpop.f32.mrb[0].mxu0
      %7506 = vmatprep.mubr.bf16.mxu0 0
      %7507 = vmatmul.mubr.bf16.gmra.mrb[0].mxu0 %v7103
      %v7508 = vpop.f32.mrb[0].mxu0
      %v7509 = vadd.f32 0.0, %v7508
      %v7510 = vpop.f32.mrb[0].mxu0
      %v7511 = vpop.f32.mrb[0].mxu0
      %v7512 = vadd.f32 0.0, %v7511
      %v7513 = vpop.f32.mrb[0].mxu0
      %7514 = vmatprep.mubr.bf16.mxu0 0
      %7515 = vmatmul.mubr.bf16.gmra.mrb[0].mxu0 %v7106
      %v7516 = vpop.f32.mrb[0].mxu0
      %v7517 = vadd.f32 0.0, %v7516
      %v7518 = vpop.f32.mrb[0].mxu0
      %v7519 = vpop.f32.mrb[0].mxu0
      %v7520 = vadd.f32 0.0, %v7519
      %v7521 = vpop.f32.mrb[0].mxu0
      %7522 = vmatprep.mubr.bf16.mxu0 0
      %7523 = vmatmul.mubr.bf16.gmra.mrb[0].mxu0 %v7109
      %v7524 = vpop.f32.mrb[0].mxu0
      %v7525 = vadd.f32 0.0, %v7524
      %v7526 = vpop.f32.mrb[0].mxu0
      %v7527 = vpop.f32.mrb[0].mxu0
      %v7528 = vadd.f32 0.0, %v7527
      %v7529 = vpop.f32.mrb[0].mxu0
      %7530 = vmatprep.mubr.bf16.mxu0 0
      %7531 = vmatmul.mubr.bf16.gmra.mrb[0].mxu0 %v7112
      %v7532 = vpop.f32.mrb[0].mxu0
      %v7533 = vadd.f32 0.0, %v7532
      %v7534 = vpop.f32.mrb[0].mxu0
      %v7535 = vpop.f32.mrb[0].mxu0
      %v7536 = vadd.f32 0.0, %v7535
      %v7537 = vpop.f32.mrb[0].mxu0
      %7538 = vmatprep.mubr.bf16.mxu0 0
      %7539 = vmatmul.mubr.bf16.gmra.mrb[0].mxu0 %v7115
      %v7540 = vpop.f32.mrb[0].mxu0
      %v7541 = vadd.f32 0.0, %v7540
      %v7542 = vpop.f32.mrb[0].mxu0
      %v7543 = vpop.f32.mrb[0].mxu0
      %v7544 = vadd.f32 0.0, %v7543
      %v7545 = vpop.f32.mrb[0].mxu0
      %7546 = vmatprep.mubr.bf16.mxu0 0
      %7547 = vmatmul.mubr.bf16.gmra.mrb[0].mxu0 %v7118
      %v7548 = vpop.f32.mrb[0].mxu0
      %v7549 = vadd.f32 0.0, %v7548
      %v7550 = vpop.f32.mrb[0].mxu0
      %v7551 = vpop.f32.mrb[0].mxu0
      %v7552 = vadd.f32 0.0, %v7551
      %v7553 = vpop.f32.mrb[0].mxu0
      %7554 = vmatprep.mubr.bf16.mxu0 0
      %7555 = vmatmul.mubr.bf16.gmra.mrb[0].mxu0 %v7121
      %v7556 = vpop.f32.mrb[0].mxu0
      %v7557 = vadd.f32 0.0, %v7556
      %v7558 = vpop.f32.mrb[0].mxu0
      %v7559 = vpop.f32.mrb[0].mxu0
      %v7560 = vadd.f32 0.0, %v7559
      %v7561 = vpop.f32.mrb[0].mxu0
      %7562 = vmatprep.mubr.bf16.mxu0 0
      %7563 = vmatmul.mubr.bf16.gmra.mrb[0].mxu0 %v7124
      %v7564 = vpop.f32.mrb[0].mxu0
      %v7565 = vadd.f32 0.0, %v7564
      %v7566 = vpop.f32.mrb[0].mxu0
      %v7567 = vpop.f32.mrb[0].mxu0
      %v7568 = vadd.f32 0.0, %v7567
      %v7569 = vpop.f32.mrb[0].mxu0
      %7570 = vmatprep.mubr.bf16.mxu0 0
      %7571 = vmatmul.mubr.bf16.gmra.mrb[0].mxu0 %v7127
      %v7572 = vpop.f32.mrb[0].mxu0
      %v7573 = vadd.f32 0.0, %v7572
      %v7574 = vpop.f32.mrb[0].mxu0
      %v7575 = vpop.f32.mrb[0].mxu0
      %v7576 = vadd.f32 0.0, %v7575
      %v7577 = vpop.f32.mrb[0].mxu0
      %7578 = vmatprep.mubr.bf16.mxu0 0
      %7579 = vmatmul.mubr.bf16.gmra.mrb[0].mxu0 %v7130
      %v7580 = vpop.f32.mrb[0].mxu0
      %v7581 = vadd.f32 0.0, %v7580
      %v7582 = vpop.f32.mrb[0].mxu0
      %v7583 = vpop.f32.mrb[0].mxu0
      %v7584 = vadd.f32 0.0, %v7583
      %v7585 = vpop.f32.mrb[0].mxu0
      %7586 = vmatprep.mubr.bf16.mxu0 0
      %7587 = vmatmul.mubr.bf16.gmra.mrb[0].mxu0 %v7133
      %v7588 = vpop.f32.mrb[0].mxu0
      %v7589 = vadd.f32 0.0, %v7588
      %v7590 = vpop.f32.mrb[0].mxu0
      %v7591 = vpop.f32.mrb[0].mxu0
      %v7592 = vadd.f32 0.0, %v7591
      %v7593 = vpop.f32.mrb[0].mxu0
      %7594 = vmatprep.mubr.bf16.mxu0 0
      %7595 = vmatmul.mubr.bf16.gmra.mrb[0].mxu0 %v7136
      %v7596 = vpop.f32.mrb[0].mxu0
      %v7597 = vadd.f32 0.0, %v7596
      %v7598 = vpop.f32.mrb[0].mxu0
      %v7599 = vpop.f32.mrb[0].mxu0
      %v7600 = vadd.f32 0.0, %v7599
      %v7601 = vpop.f32.mrb[0].mxu0
      %7602 = vmatprep.mubr.bf16.mxu0 0
      %7603 = vmatmul.mubr.bf16.gmra.mrb[0].mxu0 %v7139
      %v7604 = vpop.f32.mrb[0].mxu0
      %v7605 = vadd.f32 0.0, %v7604
      %v7606 = vpop.f32.mrb[0].mxu0
      %v7607 = vpop.f32.mrb[0].mxu0
      %v7608 = vadd.f32 0.0, %v7607
      %v7609 = vpop.f32.mrb[0].mxu0
      %7610 = vmatprep.mubr.bf16.mxu0 0
      %7611 = vmatmul.mubr.bf16.gmra.mrb[0].mxu0 %v7142
      %v7612 = vpop.f32.mrb[0].mxu0
      %v7613 = vadd.f32 0.0, %v7612
      %v7614 = vpop.f32.mrb[0].mxu0
      %v7615 = vpop.f32.mrb[0].mxu0
      %v7616 = vadd.f32 0.0, %v7615
      %v7617 = vpop.f32.mrb[0].mxu0
      %7618 = vmatprep.mubr.bf16.mxu0 0
      %7619 = vmatmul.mubr.bf16.gmra.mrb[0].mxu0 %v7145
      %v7620 = vpop.f32.mrb[0].mxu0
      %v7621 = vadd.f32 0.0, %v7620
      %v7622 = vpop.f32.mrb[0].mxu0
      %v7623 = vpop.f32.mrb[0].mxu0
      %v7624 = vadd.f32 0.0, %v7623
      %v7625 = vpop.f32.mrb[0].mxu0
      %7626 = vmatprep.mubr.bf16.mxu0 0
      %7627 = vmatmul.mubr.bf16.gmra.mrb[0].mxu0 %v7148
      %v7628 = vpop.f32.mrb[0].mxu0
      %v7629 = vadd.f32 0.0, %v7628
      %v7630 = vpop.f32.mrb[0].mxu0
      %v7631 = vpop.f32.mrb[0].mxu0
      %v7632 = vadd.f32 0.0, %v7631
      %v7633 = vpop.f32.mrb[0].mxu0
      %7634 = vmatprep.mubr.bf16.mxu0 0
      %7635 = vmatmul.mubr.bf16.gmra.mrb[0].mxu0 %v7151
      %v7636 = vpop.f32.mrb[0].mxu0
      %v7637 = vadd.f32 0.0, %v7636
      %v7638 = vpop.f32.mrb[0].mxu0
      %v7639 = vpop.f32.mrb[0].mxu0
      %v7640 = vadd.f32 0.0, %v7639
      %v7641 = vpop.f32.mrb[0].mxu0
      %7642 = vmatprep.mubr.bf16.mxu0 0
      %7643 = vmatmul.mubr.bf16.gmra.mrb[0].mxu0 %v7154
      %v7644 = vpop.f32.mrb[0].mxu0
      %v7645 = vadd.f32 0.0, %v7644
      %v7646 = vpop.f32.mrb[0].mxu0
      %v7647 = vpop.f32.mrb[0].mxu0
      %v7648 = vadd.f32 0.0, %v7647
      %v7649 = vpop.f32.mrb[0].mxu0
      %7650 = vmatprep.mubr.bf16.mxu0 0
      %7651 = vmatmul.mubr.bf16.gmra.mrb[0].mxu0 %v7157
      %v7652 = vpop.f32.mrb[0].mxu0
      %v7653 = vadd.f32 0.0, %v7652
      %v7654 = vpop.f32.mrb[0].mxu0
      %v7655 = vpop.f32.mrb[0].mxu0
      %v7656 = vadd.f32 0.0, %v7655
      %v7657 = vpop.f32.mrb[0].mxu0
      %7658 = vmatprep.mubr.bf16.mxu0 0
      %7659 = vmatmul.mubr.bf16.gmra.mrb[0].mxu0 %v7160
      %v7660 = vpop.f32.mrb[0].mxu0
      %v7661 = vadd.f32 0.0, %v7660
      %v7662 = vpop.f32.mrb[0].mxu0
      %v7663 = vpop.f32.mrb[0].mxu0
      %v7664 = vadd.f32 0.0, %v7663
      %v7665 = vpop.f32.mrb[0].mxu0
      %7666 = vmatprep.mubr.bf16.mxu0 0
      %7667 = vmatmul.mubr.bf16.gmra.mrb[0].mxu0 %v7163
      %v7668 = vpop.f32.mrb[0].mxu0
      %v7669 = vadd.f32 0.0, %v7668
      %v7670 = vpop.f32.mrb[0].mxu0
      %v7671 = vpop.f32.mrb[0].mxu0
      %v7672 = vadd.f32 0.0, %v7671
      %v7673 = vpop.f32.mrb[0].mxu0
      %7674 = vmatprep.mubr.bf16.mxu0 0
      %7675 = vmatmul.mubr.bf16.gmra.mrb[0].mxu0 %v7166
      %v7676 = vpop.f32.mrb[0].mxu0
      %v7677 = vadd.f32 0.0, %v7676
      %v7678 = vpop.f32.mrb[0].mxu0
      %v7679 = vpop.f32.mrb[0].mxu0
      %v7680 = vadd.f32 0.0, %v7679
      %v7681 = vpop.f32.mrb[0].mxu0
      %7682 = vmatprep.mubr.bf16.mxu0 0
      %7683 = vmatmul.mubr.bf16.gmra.mrb[0].mxu0 %v7169
      %v7684 = vpop.f32.mrb[0].mxu0
      %v7685 = vadd.f32 0.0, %v7684
      %v7686 = vpop.f32.mrb[0].mxu0
      %v7687 = vpop.f32.mrb[0].mxu0
      %v7688 = vadd.f32 0.0, %v7687
      %v7689 = vpop.f32.mrb[0].mxu0
      %7690 = vmatprep.mubr.bf16.mxu0 0
      %7691 = vmatmul.mubr.bf16.gmra.mrb[0].mxu0 %v7172
      %v7692 = vpop.f32.mrb[0].mxu0
      %v7693 = vadd.f32 0.0, %v7692
      %v7694 = vpop.f32.mrb[0].mxu0
      %v7695 = vpop.f32.mrb[0].mxu0
      %v7696 = vadd.f32 0.0, %v7695
      %v7697 = vpop.f32.mrb[0].mxu0
      %7698 = vmatprep.mubr.bf16.mxu0 0
      %7699 = vmatmul.mubr.bf16.gmra.mrb[0].mxu0 %v7175
      %v7700 = vpop.f32.mrb[0].mxu0
      %v7701 = vadd.f32 0.0, %v7700
      %v7702 = vpop.f32.mrb[0].mxu0
      %v7703 = vpop.f32.mrb[0].mxu0
      %v7704 = vadd.f32 0.0, %v7703
      %v7705 = vpop.f32.mrb[0].mxu0
      %7706 = vmatprep.mubr.bf16.mxu0 0
      %7707 = vmatmul.mubr.bf16.gmra.mrb[0].mxu0 %v7178
      %v7708 = vpop.f32.mrb[0].mxu0
      %v7709 = vadd.f32 0.0, %v7708
      %v7710 = vpop.f32.mrb[0].mxu0
      %v7711 = vpop.f32.mrb[0].mxu0
      %v7712 = vadd.f32 0.0, %v7711
      %v7713 = vpop.f32.mrb[0].mxu0
      %7714 = vmatprep.mubr.bf16.mxu0 0
      %7715 = vmatmul.mubr.bf16.gmra.mrb[0].mxu0 %v7181
      %v7716 = vpop.f32.mrb[0].mxu0
      %v7717 = vadd.f32 0.0, %v7716
      %v7718 = vpop.f32.mrb[0].mxu0
      %v7719 = vpop.f32.mrb[0].mxu0
      %v7720 = vadd.f32 0.0, %v7719
      %v7721 = vpop.f32.mrb[0].mxu0
      %7722 = vmatprep.mubr.bf16.mxu0 0
      %7723 = vmatmul.mubr.bf16.gmra.mrb[0].mxu0 %v7184
      %v7724 = vpop.f32.mrb[0].mxu0
      %v7725 = vadd.f32 0.0, %v7724
      %v7726 = vpop.f32.mrb[0].mxu0
      %v7727 = vpop.f32.mrb[0].mxu0
      %v7728 = vadd.f32 0.0, %v7727
      %v7729 = vpop.f32.mrb[0].mxu0
      %7730 = vmatprep.mubr.bf16.mxu0 0
      %7731 = vmatmul.mubr.bf16.gmra.mrb[0].mxu0 %v7187
      %v7732 = vpop.f32.mrb[0].mxu0
      %v7733 = vadd.f32 0.0, %v7732
      %v7734 = vpop.f32.mrb[0].mxu0
      %v7735 = vpop.f32.mrb[0].mxu0
      %v7736 = vadd.f32 0.0, %v7735
      %v7737 = vpop.f32.mrb[0].mxu0
      %7738 = vmatprep.mubr.bf16.mxu0 0
      %7739 = vmatmul.mubr.bf16.gmra.mrb[0].mxu0 %v7190
      %v7740 = vpop.f32.mrb[0].mxu0
      %v7741 = vadd.f32 0.0, %v7740
      %v7742 = vpop.f32.mrb[0].mxu0
      %v7743 = vpop.f32.mrb[0].mxu0
      %v7744 = vadd.f32 0.0, %v7743
      %v7745 = vpop.f32.mrb[0].mxu0
      %7746 = vmatprep.mubr.bf16.mxu0 0
      %7747 = vmatmul.mubr.bf16.gmra.mrb[0].mxu0 %v7193
      %v7748 = vpop.f32.mrb[0].mxu0
      %v7749 = vadd.f32 0.0, %v7748
      %v7750 = vpop.f32.mrb[0].mxu0
      %v7751 = vpop.f32.mrb[0].mxu0
      %v7752 = vadd.f32 0.0, %v7751
      %v7753 = vpop.f32.mrb[0].mxu0
      %7754 = vmatprep.mubr.bf16.mxu0 0
      %7755 = vmatmul.mubr.bf16.gmra.mrb[0].mxu0 %v7196
      %v7756 = vpop.f32.mrb[0].mxu0
      %v7757 = vadd.f32 0.0, %v7756
      %v7758 = vpop.f32.mrb[0].mxu0
      %v7759 = vpop.f32.mrb[0].mxu0
      %v7760 = vadd.f32 0.0, %v7759
      %v7761 = vpop.f32.mrb[0].mxu0
      %7762 = vmatprep.mubr.bf16.mxu0 0
      %7763 = vmatmul.mubr.bf16.gmra.mrb[0].mxu0 %v7199
      %v7764 = vpop.f32.mrb[0].mxu0
      %v7765 = vadd.f32 0.0, %v7764
      %v7766 = vpop.f32.mrb[0].mxu0
      %v7767 = vpop.f32.mrb[0].mxu0
      %v7768 = vadd.f32 0.0, %v7767
      %v7769 = vpop.f32.mrb[0].mxu0
      %7770 = vmatprep.mubr.bf16.mxu0 0
      %7771 = vmatmul.mubr.bf16.gmra.mrb[0].mxu0 %v7202
      %v7772 = vpop.f32.mrb[0].mxu0
      %v7773 = vadd.f32 0.0, %v7772
      %v7774 = vpop.f32.mrb[0].mxu0
      %v7775 = vpop.f32.mrb[0].mxu0
      %v7776 = vadd.f32 0.0, %v7775
      %v7777 = vpop.f32.mrb[0].mxu0
      %7778 = vmatprep.mubr.bf16.mxu0 0
      %7779 = vmatmul.mubr.bf16.gmra.mrb[0].mxu0 %v7205
      %v7780 = vpop.f32.mrb[0].mxu0
      %v7781 = vadd.f32 0.0, %v7780
      %v7782 = vpop.f32.mrb[0].mxu0
      %v7783 = vpop.f32.mrb[0].mxu0
      %v7784 = vadd.f32 0.0, %v7783
      %v7785 = vpop.f32.mrb[0].mxu0
      %7786 = vdwg.mxu0
      %v7787 = vadd.f32 %v6723, %v7245
      %v7788 = vadd.f32 %v6724, %v7248
      %v7789 = vadd.f32 %v6725, %v7253
      %v7790 = vadd.f32 %v6726, %v7256
      %v7791 = vadd.f32 %v6727, %v7261
      %v7792 = vadd.f32 %v6728, %v7264
      %v7793 = vadd.f32 %v6729, %v7269
      %v7794 = vadd.f32 %v6730, %v7272
      %v7795 = vadd.f32 %v6731, %v7277
      %v7796 = vadd.f32 %v6732, %v7280
      %v7797 = vadd.f32 %v6733, %v7285
      %v7798 = vadd.f32 %v6734, %v7288
      %v7799 = vadd.f32 %v6735, %v7293
      %v7800 = vadd.f32 %v6736, %v7296
      %v7801 = vadd.f32 %v6737, %v7301
      %v7802 = vadd.f32 %v6738, %v7304
      %v7803 = vadd.f32 %v6739, %v7309
      %v7804 = vadd.f32 %v6740, %v7312
      %v7805 = vadd.f32 %v6741, %v7317
      %v7806 = vadd.f32 %v6742, %v7320
      %v7807 = vadd.f32 %v6743, %v7325
      %v7808 = vadd.f32 %v6744, %v7328
      %v7809 = vadd.f32 %v6745, %v7333
      %v7810 = vadd.f32 %v6746, %v7336
      %v7811 = vadd.f32 %v6747, %v7341
      %v7812 = vadd.f32 %v6748, %v7344
      %v7813 = vadd.f32 %v6749, %v7349
      %v7814 = vadd.f32 %v6750, %v7352
      %v7815 = vadd.f32 %v6751, %v7357
      %v7816 = vadd.f32 %v6752, %v7360
      %v7817 = vadd.f32 %v6753, %v7365
      %v7818 = vadd.f32 %v6754, %v7368
      %v7819 = vadd.f32 %v6755, %v7373
      %v7820 = vadd.f32 %v6756, %v7376
      %v7821 = vadd.f32 %v6757, %v7381
      %v7822 = vadd.f32 %v6758, %v7384
      %v7823 = vadd.f32 %v6759, %v7389
      %v7824 = vadd.f32 %v6760, %v7392
      %v7825 = vadd.f32 %v6761, %v7397
      %v7826 = vadd.f32 %v6762, %v7400
      %v7827 = vadd.f32 %v6763, %v7405
      %v7828 = vadd.f32 %v6764, %v7408
      %v7829 = vadd.f32 %v6765, %v7413
      %v7830 = vadd.f32 %v6766, %v7416
      %v7831 = vadd.f32 %v6767, %v7421
      %v7832 = vadd.f32 %v6768, %v7424
      %v7833 = vadd.f32 %v6769, %v7429
      %v7834 = vadd.f32 %v6770, %v7432
      %v7835 = vadd.f32 %v6771, %v7437
      %v7836 = vadd.f32 %v6772, %v7440
      %v7837 = vadd.f32 %v6773, %v7445
      %v7838 = vadd.f32 %v6774, %v7448
      %v7839 = vadd.f32 %v6775, %v7453
      %v7840 = vadd.f32 %v6776, %v7456
      %v7841 = vadd.f32 %v6777, %v7461
      %v7842 = vadd.f32 %v6778, %v7464
      %v7843 = vadd.f32 %v6779, %v7469
      %v7844 = vadd.f32 %v6780, %v7472
      %v7845 = vadd.f32 %v6781, %v7477
      %v7846 = vadd.f32 %v6782, %v7480
      %v7847 = vadd.f32 %v6783, %v7485
      %v7848 = vadd.f32 %v6784, %v7488
      %v7849 = vadd.f32 %v6785, %v7493
      %v7850 = vadd.f32 %v6786, %v7496
      %v7851 = vadd.f32 %v6787, %v7501
      %v7852 = vadd.f32 %v6788, %v7504
      %v7853 = vadd.f32 %v6789, %v7509
      %v7854 = vadd.f32 %v6790, %v7512
      %v7855 = vadd.f32 %v6791, %v7517
      %v7856 = vadd.f32 %v6792, %v7520
      %v7857 = vadd.f32 %v6793, %v7525
      %v7858 = vadd.f32 %v6794, %v7528
      %v7859 = vadd.f32 %v6795, %v7533
      %v7860 = vadd.f32 %v6796, %v7536
      %v7861 = vadd.f32 %v6797, %v7541
      %v7862 = vadd.f32 %v6798, %v7544
      %v7863 = vadd.f32 %v6799, %v7549
      %v7864 = vadd.f32 %v6800, %v7552
      %v7865 = vadd.f32 %v6801, %v7557
      %v7866 = vadd.f32 %v6802, %v7560
      %v7867 = vadd.f32 %v6803, %v7565
      %v7868 = vadd.f32 %v6804, %v7568
      %v7869 = vadd.f32 %v6805, %v7573
      %v7870 = vadd.f32 %v6806, %v7576
      %v7871 = vadd.f32 %v6807, %v7581
      %v7872 = vadd.f32 %v6808, %v7584
      %v7873 = vadd.f32 %v6809, %v7589
      %v7874 = vadd.f32 %v6810, %v7592
      %v7875 = vadd.f32 %v6811, %v7597
      %v7876 = vadd.f32 %v6812, %v7600
      %v7877 = vadd.f32 %v6813, %v7605
      %v7878 = vadd.f32 %v6814, %v7608
      %v7879 = vadd.f32 %v6815, %v7613
      %v7880 = vadd.f32 %v6816, %v7616
      %v7881 = vadd.f32 %v6817, %v7621
      %v7882 = vadd.f32 %v6818, %v7624
      %v7883 = vadd.f32 %v6819, %v7629
      %v7884 = vadd.f32 %v6820, %v7632
      %v7885 = vadd.f32 %v6821, %v7637
      %v7886 = vadd.f32 %v6822, %v7640
      %v7887 = vadd.f32 %v6823, %v7645
      %v7888 = vadd.f32 %v6824, %v7648
      %v7889 = vadd.f32 %v6825, %v7653
      %v7890 = vadd.f32 %v6826, %v7656
      %v7891 = vadd.f32 %v6827, %v7661
      %v7892 = vadd.f32 %v6828, %v7664
      %v7893 = vadd.f32 %v6829, %v7669
      %v7894 = vadd.f32 %v6830, %v7672
      %v7895 = vadd.f32 %v6831, %v7677
      %v7896 = vadd.f32 %v6832, %v7680
      %v7897 = vadd.f32 %v6833, %v7685
      %v7898 = vadd.f32 %v6834, %v7688
      %v7899 = vadd.f32 %v6835, %v7693
      %v7900 = vadd.f32 %v6836, %v7696
      %v7901 = vadd.f32 %v6837, %v7701
      %v7902 = vadd.f32 %v6838, %v7704
      %v7903 = vadd.f32 %v6839, %v7709
      %v7904 = vadd.f32 %v6840, %v7712
      %v7905 = vadd.f32 %v6841, %v7717
      %v7906 = vadd.f32 %v6842, %v7720
      %v7907 = vadd.f32 %v6843, %v7725
      %v7908 = vadd.f32 %v6844, %v7728
      %v7909 = vadd.f32 %v6845, %v7733
      %v7910 = vadd.f32 %v6846, %v7736
      %v7911 = vadd.f32 %v6847, %v7741
      %v7912 = vadd.f32 %v6848, %v7744
      %v7913 = vadd.f32 %v6849, %v7749
      %v7914 = vadd.f32 %v6850, %v7752
      %v7915 = vadd.f32 %v6851, %v7757
      %v7916 = vadd.f32 %v6852, %v7760
      %v7917 = vadd.f32 %v6853, %v7765
      %v7918 = vadd.f32 %v6854, %v7768
      %v7919 = vadd.f32 %v6855, %v7773
      %v7920 = vadd.f32 %v6856, %v7776
      %v7921 = vadd.f32 %v6857, %v7781
      %v7922 = vadd.f32 %v6858, %v7784
      %v7923 = vld [vmem:[%s165 + $0x20] sm:$0xc]
      %v7924 = vld [vmem:[%s165 + $0x24] sm:$0xf]
      %v7925 = vld [vmem:[%s165 + $0x28] sm:$0xf]
      %v7926 = vld [vmem:[%s165 + $0x2c] sm:$0xf]
      %v7927 = vld [vmem:[%s165 + $0x30] sm:$0xf]
      %v7928 = vld [vmem:[%s165 + $0x34] sm:$0xf]
      %v7929 = vld [vmem:[%s165 + $0x38] sm:$0xf]
      %v7930 = vld [vmem:[%s165 + $0x3c] sm:$0xf]
      %v7931 = vld [vmem:[%s165 + $0x40] sm:$0xf]
      %v7932 = vld [vmem:[%s165 + $0x44] sm:$0xf]
      %v7933 = vld [vmem:[%s165 + $0x48] sm:$0xf]
      %v7934 = vld [vmem:[%s165 + $0x4c] sm:$0xf]
      %v7935 = vld [vmem:[%s165 + $0x50] sm:$0xf]
      %v7936 = vld [vmem:[%s165 + $0x54] sm:$0xf]
      %v7937 = vld [vmem:[%s165 + $0x58] sm:$0xf]
      %v7938 = vld [vmem:[%s165 + $0x5c] sm:$0xf]
      %v7939 = vld [vmem:[%s165 + $0x60] sm:$0xf]
      %v7940 = vld [vmem:[%s165 + $0x64] sm:$0xf]
      %v7941 = vld [vmem:[%s165 + $0x68] sm:$0xf]
      %v7942 = vld [vmem:[%s165 + $0x6c] sm:$0xf]
      %v7943 = vld [vmem:[%s165 + $0x70] sm:$0xf]
      %v7944 = vld [vmem:[%s165 + $0x74] sm:$0xf]
      %v7945 = vld [vmem:[%s165 + $0x78] sm:$0xf]
      %v7946 = vld [vmem:[%s165 + $0x7c] sm:$0xf]
      %v7947 = vld [vmem:[%s165 + $0x80] sm:$0xf]
      %v7948 = vld [vmem:[%s165 + $0x84] sm:$0xf]
      %v7949 = vld [vmem:[%s165 + $0x88] sm:$0xf]
      %v7950 = vld [vmem:[%s165 + $0x8c] sm:$0xf]
      %v7951 = vld [vmem:[%s165 + $0x90] sm:$0xf]
      %v7952 = vld [vmem:[%s165 + $0x94] sm:$0xf]
      %v7953 = vld [vmem:[%s165 + $0x98] sm:$0xf]
      %v7954 = vld [vmem:[%s165 + $0x9c] sm:$0xf]
      %v7955 = vld [vmem:[%s165 + $0xa0] sm:$0xf]
      %v7956 = vld [vmem:[%s165 + $0xa4] sm:$0xf]
      %v7957 = vld [vmem:[%s165 + $0xa8] sm:$0xf]
      %v7958 = vld [vmem:[%s165 + $0xac] sm:$0xf]
      %v7959 = vld [vmem:[%s165 + $0xb0] sm:$0xf]
      %v7960 = vld [vmem:[%s165 + $0xb4] sm:$0xf]
      %v7961 = vld [vmem:[%s165 + $0xb8] sm:$0xf]
      %v7962 = vld [vmem:[%s165 + $0xbc] sm:$0xf]
      %v7963 = vld [vmem:[%s165 + $0xc0] sm:$0xf]
      %v7964 = vld [vmem:[%s165 + $0xc4] sm:$0xf]
      %v7965 = vld [vmem:[%s165 + $0xc8] sm:$0xf]
      %v7966 = vld [vmem:[%s165 + $0xcc] sm:$0xf]
      %v7967 = vld [vmem:[%s165 + $0xd0] sm:$0xf]
      %v7968 = vld [vmem:[%s165 + $0xd4] sm:$0xf]
      %v7969 = vld [vmem:[%s165 + $0xd8] sm:$0xf]
      %v7970 = vld [vmem:[%s165 + $0xdc] sm:$0xf]
      %v7971 = vld [vmem:[%s165 + $0xe0] sm:$0xf]
      %v7972 = vld [vmem:[%s165 + $0xe4] sm:$0xf]
      %v7973 = vld [vmem:[%s165 + $0xe8] sm:$0xf]
      %v7974 = vld [vmem:[%s165 + $0xec] sm:$0xf]
      %v7975 = vld [vmem:[%s165 + $0xf0] sm:$0xf]
      %v7976 = vld [vmem:[%s165 + $0xf4] sm:$0xf]
      %v7977 = vld [vmem:[%s165 + $0xf8] sm:$0xf]
      %v7978 = vld [vmem:[%s165 + $0xfc] sm:$0xf]
      %v7979 = vld [vmem:[%s165 + $0x100] sm:$0xf]
      %v7980 = vld [vmem:[%s165 + $0x104] sm:$0xf]
      %v7981 = vld [vmem:[%s165 + $0x108] sm:$0xf]
      %v7982 = vld [vmem:[%s165 + $0x10c] sm:$0xf]
      %v7983 = vld [vmem:[%s165 + $0x110] sm:$0xf]
      %v7984 = vld [vmem:[%s165 + $0x114] sm:$0xf]
      %v7985 = vld [vmem:[%s165 + $0x118] sm:$0xf]
      %v7986 = vld [vmem:[%s165 + $0x11c] sm:$0xf]
      %v7987 = vld [vmem:[%s165 + $0x120] sm:$0xf]
      %v7988 = vld [vmem:[%s165 + $0x124] sm:$0xf]
      %v7989 = vld [vmem:[%s165 + $0x128] sm:$0xf]
      %v7990 = vld [vmem:[%s165 + $0x12c] sm:$0xf]
      %v7991 = vld [vmem:[%s165 + $0x130] sm:$0xf]
      %v7992 = vld [vmem:[%s165 + $0x134] sm:$0xf]
      %v7993 = vld [vmem:[%s165 + $0x138] sm:$0xf]
      %v7994 = vld [vmem:[%s165 + $0x13c] sm:$0xf]
      %v7995 = vld [vmem:[%s165 + $0x140] sm:$0xf]
      %v7996 = vld [vmem:[%s165 + $0x144] sm:$0xf]
      %v7997 = vld [vmem:[%s165 + $0x148] sm:$0xf]
      %v7998 = vld [vmem:[%s165 + $0x14c] sm:$0xf]
      %v7999 = vld [vmem:[%s165 + $0x150] sm:$0xf]
      %v8000 = vld [vmem:[%s165 + $0x154] sm:$0xf]
      %v8001 = vld [vmem:[%s165 + $0x158] sm:$0xf]
      %v8002 = vld [vmem:[%s165 + $0x15c] sm:$0xf]
      %v8003 = vld [vmem:[%s165 + $0x160] sm:$0xf]
      %v8004 = vld [vmem:[%s165 + $0x164] sm:$0xf]
      %v8005 = vld [vmem:[%s165 + $0x168] sm:$0xf]
      %v8006 = vld [vmem:[%s165 + $0x16c] sm:$0xf]
      %v8007 = vld [vmem:[%s165 + $0x170] sm:$0xf]
      %v8008 = vld [vmem:[%s165 + $0x174] sm:$0xf]
      %v8009 = vld [vmem:[%s165 + $0x178] sm:$0xf]
      %v8010 = vld [vmem:[%s165 + $0x17c] sm:$0xf]
      %v8011 = vld [vmem:[%s165 + $0x180] sm:$0xf]
      %v8012 = vld [vmem:[%s165 + $0x184] sm:$0xf]
      %v8013 = vld [vmem:[%s165 + $0x188] sm:$0xf]
      %v8014 = vld [vmem:[%s165 + $0x18c] sm:$0xf]
      %v8015 = vld [vmem:[%s165 + $0x190] sm:$0xf]
      %v8016 = vld [vmem:[%s165 + $0x194] sm:$0xf]
      %v8017 = vld [vmem:[%s165 + $0x198] sm:$0xf]
      %v8018 = vld [vmem:[%s165 + $0x19c] sm:$0xf]
      %v8019 = vld [vmem:[%s165 + $0x1a0] sm:$0xf]
      %v8020 = vld [vmem:[%s165 + $0x1a4] sm:$0xf]
      %v8021 = vld [vmem:[%s165 + $0x1a8] sm:$0xf]
      %v8022 = vld [vmem:[%s165 + $0x1ac] sm:$0xf]
      %v8023 = vld [vmem:[%s165 + $0x1b0] sm:$0xf]
      %v8024 = vld [vmem:[%s165 + $0x1b4] sm:$0xf]
      %v8025 = vld [vmem:[%s165 + $0x1b8] sm:$0xf]
      %v8026 = vld [vmem:[%s165 + $0x1bc] sm:$0xf]
      %v8027 = vld [vmem:[%s165 + $0x1c0] sm:$0xf]
      %v8028 = vld [vmem:[%s165 + $0x1c4] sm:$0xf]
      %v8029 = vld [vmem:[%s165 + $0x1c8] sm:$0xf]
      %v8030 = vld [vmem:[%s165 + $0x1cc] sm:$0xf]
      %v8031 = vld [vmem:[%s165 + $0x1d0] sm:$0xf]
      %v8032 = vld [vmem:[%s165 + $0x1d4] sm:$0xf]
      %v8033 = vld [vmem:[%s165 + $0x1d8] sm:$0xf]
      %v8034 = vld [vmem:[%s165 + $0x1dc] sm:$0xf]
      %v8035 = vld [vmem:[%s165 + $0x1e0] sm:$0xf]
      %v8036 = vld [vmem:[%s165 + $0x1e4] sm:$0xf]
      %v8037 = vld [vmem:[%s165 + $0x1e8] sm:$0xf]
      %v8038 = vld [vmem:[%s165 + $0x1ec] sm:$0xf]
      %v8039 = vld [vmem:[%s165 + $0x1f0] sm:$0xf]
      %v8040 = vld [vmem:[%s165 + $0x1f4] sm:$0xf]
      %v8041 = vld [vmem:[%s165 + $0x1f8] sm:$0xf]
      %v8042 = vld [vmem:[%s165 + $0x1fc] sm:$0xf]
      %v8043 = vld [vmem:[%s165 + $0x200] sm:$0xf]
      %v8044 = vld [vmem:[%s165 + $0x204] sm:$0xf]
      %v8045 = vld [vmem:[%s165 + $0x208] sm:$0xf]
      %v8046 = vld [vmem:[%s165 + $0x20c] sm:$0xf]
      %v8047 = vld [vmem:[%s165 + $0x210] sm:$0xf]
      %v8048 = vld [vmem:[%s165 + $0x214] sm:$0xf]
      %v8049 = vld [vmem:[%s165 + $0x218] sm:$0xf]
      %v8050 = vld [vmem:[%s165 + $0x21c] sm:$0xf]
      %v8051 = vld [vmem:[%s165 + $0x220] sm:$0xf]
      %v8052 = vld [vmem:[%s165 + $0x224] sm:$0xf]
      %v8053 = vld [vmem:[%s165 + $0x228] sm:$0xf]
      %v8054 = vld [vmem:[%s165 + $0x22c] sm:$0xf]
      %v8055 = vld [vmem:[%s165 + $0x230] sm:$0xf]
      %v8056 = vld [vmem:[%s165 + $0x234] sm:$0xf]
      %v8057 = vld [vmem:[%s165 + $0x238] sm:$0xf]
      %v8058 = vld [vmem:[%s165 + $0x23c] sm:$0xf]
      %v8059 = vld [vmem:[%s165 + $0x240] sm:$0x3]
      %s8060 = scalar_lea.vmem %s1, 12
      %v8061 = vld [vmem:[%s8060] sm:$0x3]
      %v8199 = vunpack.c.l.b16 %v7923
      %v8200 = vunpack.c.l.b16 %v7924
      %v8201 = vunpack.c.l.b16 %v7925
      %v8202 = vunpack.c.l.b16 %v7926
      %v8203 = vunpack.c.l.b16 %v7927
      %v8204 = vunpack.c.l.b16 %v7928
      %v8205 = vunpack.c.l.b16 %v7929
      %v8206 = vunpack.c.l.b16 %v7930
      %v8207 = vunpack.c.l.b16 %v7931
      %v8208 = vunpack.c.l.b16 %v7932
      %v8209 = vunpack.c.l.b16 %v7933
      %v8210 = vunpack.c.l.b16 %v7934
      %v8211 = vunpack.c.l.b16 %v7935
      %v8212 = vunpack.c.l.b16 %v7936
      %v8213 = vunpack.c.l.b16 %v7937
      %v8214 = vunpack.c.l.b16 %v7938
      %v8215 = vunpack.c.l.b16 %v7939
      %v8216 = vunpack.c.l.b16 %v7940
      %v8217 = vunpack.c.l.b16 %v7941
      %v8218 = vunpack.c.l.b16 %v7942
      %v8219 = vunpack.c.l.b16 %v7943
      %v8220 = vunpack.c.l.b16 %v7944
      %v8221 = vunpack.c.l.b16 %v7945
      %v8222 = vunpack.c.l.b16 %v7946
      %v8223 = vunpack.c.l.b16 %v7947
      %v8224 = vunpack.c.l.b16 %v7948
      %v8225 = vunpack.c.l.b16 %v7949
      %v8226 = vunpack.c.l.b16 %v7950
      %v8227 = vunpack.c.l.b16 %v7951
      %v8228 = vunpack.c.l.b16 %v7952
      %v8229 = vunpack.c.l.b16 %v7953
      %v8230 = vunpack.c.l.b16 %v7954
      %v8231 = vunpack.c.l.b16 %v7955
      %v8232 = vunpack.c.l.b16 %v7956
      %v8233 = vunpack.c.l.b16 %v7957
      %v8234 = vunpack.c.l.b16 %v7958
      %v8235 = vunpack.c.l.b16 %v7959
      %v8236 = vunpack.c.l.b16 %v7960
      %v8237 = vunpack.c.l.b16 %v7961
      %v8238 = vunpack.c.l.b16 %v7962
      %v8239 = vunpack.c.l.b16 %v7963
      %v8240 = vunpack.c.l.b16 %v7964
      %v8241 = vunpack.c.l.b16 %v7965
      %v8242 = vunpack.c.l.b16 %v7966
      %v8243 = vunpack.c.l.b16 %v7967
      %v8244 = vunpack.c.l.b16 %v7968
      %v8245 = vunpack.c.l.b16 %v7969
      %v8246 = vunpack.c.l.b16 %v7970
      %v8247 = vunpack.c.l.b16 %v7971
      %v8248 = vunpack.c.l.b16 %v7972
      %v8249 = vunpack.c.l.b16 %v7973
      %v8250 = vunpack.c.l.b16 %v7974
      %v8251 = vunpack.c.l.b16 %v7975
      %v8252 = vunpack.c.l.b16 %v7976
      %v8253 = vunpack.c.l.b16 %v7977
      %v8254 = vunpack.c.l.b16 %v7978
      %v8255 = vunpack.c.l.b16 %v7979
      %v8256 = vunpack.c.l.b16 %v7980
      %v8257 = vunpack.c.l.b16 %v7981
      %v8258 = vunpack.c.l.b16 %v7982
      %v8259 = vunpack.c.l.b16 %v7983
      %v8260 = vunpack.c.l.b16 %v7984
      %v8261 = vunpack.c.l.b16 %v7985
      %v8262 = vunpack.c.l.b16 %v7986
      %v8263 = vunpack.c.l.b16 %v7987
      %v8264 = vunpack.c.l.b16 %v7988
      %v8265 = vunpack.c.l.b16 %v7989
      %v8266 = vunpack.c.l.b16 %v7990
      %v8267 = vunpack.c.l.b16 %v7991
      %v8268 = vunpack.c.l.b16 %v7992
      %v8269 = vunpack.c.l.b16 %v7993
      %v8270 = vunpack.c.l.b16 %v7994
      %v8271 = vunpack.c.l.b16 %v7995
      %v8272 = vunpack.c.l.b16 %v7996
      %v8273 = vunpack.c.l.b16 %v7997
      %v8274 = vunpack.c.l.b16 %v7998
      %v8275 = vunpack.c.l.b16 %v7999
      %v8276 = vunpack.c.l.b16 %v8000
      %v8277 = vunpack.c.l.b16 %v8001
      %v8278 = vunpack.c.l.b16 %v8002
      %v8279 = vunpack.c.l.b16 %v8003
      %v8280 = vunpack.c.l.b16 %v8004
      %v8281 = vunpack.c.l.b16 %v8005
      %v8282 = vunpack.c.l.b16 %v8006
      %v8283 = vunpack.c.l.b16 %v8007
      %v8284 = vunpack.c.l.b16 %v8008
      %v8285 = vunpack.c.l.b16 %v8009
      %v8286 = vunpack.c.l.b16 %v8010
      %v8287 = vunpack.c.l.b16 %v8011
      %v8288 = vunpack.c.l.b16 %v8012
      %v8289 = vunpack.c.l.b16 %v8013
      %v8290 = vunpack.c.l.b16 %v8014
      %v8291 = vunpack.c.l.b16 %v8015
      %v8292 = vunpack.c.l.b16 %v8016
      %v8293 = vunpack.c.l.b16 %v8017
      %v8294 = vunpack.c.l.b16 %v8018
      %v8295 = vunpack.c.l.b16 %v8019
      %v8296 = vunpack.c.l.b16 %v8020
      %v8297 = vunpack.c.l.b16 %v8021
      %v8298 = vunpack.c.l.b16 %v8022
      %v8299 = vunpack.c.l.b16 %v8023
      %v8300 = vunpack.c.l.b16 %v8024
      %v8301 = vunpack.c.l.b16 %v8025
      %v8302 = vunpack.c.l.b16 %v8026
      %v8303 = vunpack.c.l.b16 %v8027
      %v8304 = vunpack.c.l.b16 %v8028
      %v8305 = vunpack.c.l.b16 %v8029
      %v8306 = vunpack.c.l.b16 %v8030
      %v8307 = vunpack.c.l.b16 %v8031
      %v8308 = vunpack.c.l.b16 %v8032
      %v8309 = vunpack.c.l.b16 %v8033
      %v8310 = vunpack.c.l.b16 %v8034
      %v8311 = vunpack.c.l.b16 %v8035
      %v8312 = vunpack.c.l.b16 %v8036
      %v8313 = vunpack.c.l.b16 %v8037
      %v8314 = vunpack.c.l.b16 %v8038
      %v8315 = vunpack.c.l.b16 %v8039
      %v8316 = vunpack.c.l.b16 %v8040
      %v8317 = vunpack.c.l.b16 %v8041
      %v8318 = vunpack.c.l.b16 %v8042
      %v8319 = vunpack.c.l.b16 %v8043
      %v8320 = vunpack.c.l.b16 %v8044
      %v8321 = vunpack.c.l.b16 %v8045
      %v8322 = vunpack.c.l.b16 %v8046
      %v8323 = vunpack.c.l.b16 %v8047
      %v8324 = vunpack.c.l.b16 %v8048
      %v8325 = vunpack.c.l.b16 %v8049
      %v8326 = vunpack.c.l.b16 %v8050
      %v8327 = vunpack.c.l.b16 %v8051
      %v8328 = vunpack.c.l.b16 %v8052
      %v8329 = vunpack.c.l.b16 %v8053
      %v8330 = vunpack.c.l.b16 %v8054
      %v8331 = vunpack.c.l.b16 %v8055
      %v8332 = vunpack.c.l.b16 %v8056
      %v8333 = vunpack.c.l.b16 %v8057
      %v8334 = vunpack.c.l.b16 %v8058
      %v8335 = vunpack.c.l.b16 %v8059
      %v8336 = vpack.c.b16 %v8200, %v8199
      %v8337 = vpack.c.b16 %v8202, %v8201
      %v8338 = vpack.c.b16 %v8204, %v8203
      %v8339 = vpack.c.b16 %v8206, %v8205
      %v8340 = vpack.c.b16 %v8208, %v8207
      %v8341 = vpack.c.b16 %v8210, %v8209
      %v8342 = vpack.c.b16 %v8212, %v8211
      %v8343 = vpack.c.b16 %v8214, %v8213
      %v8344 = vpack.c.b16 %v8216, %v8215
      %v8345 = vpack.c.b16 %v8218, %v8217
      %v8346 = vpack.c.b16 %v8220, %v8219
      %v8347 = vpack.c.b16 %v8222, %v8221
      %v8348 = vpack.c.b16 %v8224, %v8223
      %v8349 = vpack.c.b16 %v8226, %v8225
      %v8350 = vpack.c.b16 %v8228, %v8227
      %v8351 = vpack.c.b16 %v8230, %v8229
      %v8352 = vpack.c.b16 %v8232, %v8231
      %v8353 = vpack.c.b16 %v8234, %v8233
      %v8354 = vpack.c.b16 %v8236, %v8235
      %v8355 = vpack.c.b16 %v8238, %v8237
      %v8356 = vpack.c.b16 %v8240, %v8239
      %v8357 = vpack.c.b16 %v8242, %v8241
      %v8358 = vpack.c.b16 %v8244, %v8243
      %v8359 = vpack.c.b16 %v8246, %v8245
      %v8360 = vpack.c.b16 %v8248, %v8247
      %v8361 = vpack.c.b16 %v8250, %v8249
      %v8362 = vpack.c.b16 %v8252, %v8251
      %v8363 = vpack.c.b16 %v8254, %v8253
      %v8364 = vpack.c.b16 %v8256, %v8255
      %v8365 = vpack.c.b16 %v8258, %v8257
      %v8366 = vpack.c.b16 %v8260, %v8259
      %v8367 = vpack.c.b16 %v8262, %v8261
      %v8368 = vpack.c.b16 %v8264, %v8263
      %v8369 = vpack.c.b16 %v8266, %v8265
      %v8370 = vpack.c.b16 %v8268, %v8267
      %v8371 = vpack.c.b16 %v8270, %v8269
      %v8372 = vpack.c.b16 %v8272, %v8271
      %v8373 = vpack.c.b16 %v8274, %v8273
      %v8374 = vpack.c.b16 %v8276, %v8275
      %v8375 = vpack.c.b16 %v8278, %v8277
      %v8376 = vpack.c.b16 %v8280, %v8279
      %v8377 = vpack.c.b16 %v8282, %v8281
      %v8378 = vpack.c.b16 %v8284, %v8283
      %v8379 = vpack.c.b16 %v8286, %v8285
      %v8380 = vpack.c.b16 %v8288, %v8287
      %v8381 = vpack.c.b16 %v8290, %v8289
      %v8382 = vpack.c.b16 %v8292, %v8291
      %v8383 = vpack.c.b16 %v8294, %v8293
      %v8384 = vpack.c.b16 %v8296, %v8295
      %v8385 = vpack.c.b16 %v8298, %v8297
      %v8386 = vpack.c.b16 %v8300, %v8299
      %v8387 = vpack.c.b16 %v8302, %v8301
      %v8388 = vpack.c.b16 %v8304, %v8303
      %v8389 = vpack.c.b16 %v8306, %v8305
      %v8390 = vpack.c.b16 %v8308, %v8307
      %v8391 = vpack.c.b16 %v8310, %v8309
      %v8392 = vpack.c.b16 %v8312, %v8311
      %v8393 = vpack.c.b16 %v8314, %v8313
      %v8394 = vpack.c.b16 %v8316, %v8315
      %v8395 = vpack.c.b16 %v8318, %v8317
      %v8396 = vpack.c.b16 %v8320, %v8319
      %v8397 = vpack.c.b16 %v8322, %v8321
      %v8398 = vpack.c.b16 %v8324, %v8323
      %v8399 = vpack.c.b16 %v8326, %v8325
      %v8400 = vpack.c.b16 %v8328, %v8327
      %v8401 = vpack.c.b16 %v8330, %v8329
      %v8402 = vpack.c.b16 %v8332, %v8331
      %v8403 = vpack.c.b16 %v8334, %v8333
      %v8404 = vpack.c.b16 %v8335, %v8335
      %v8405 = vrot.slane %v8336, 2
      %v8406 = vrot.slane %v8337, 2
      %v8407 = vsel %vm6865, %v8405, %v8406
      %v8408 = vrot.slane %v8338, 2
      %v8409 = vsel %vm6865, %v8406, %v8408
      %v8410 = vrot.slane %v8339, 2
      %v8411 = vsel %vm6865, %v8408, %v8410
      %v8412 = vrot.slane %v8340, 2
      %v8413 = vsel %vm6865, %v8410, %v8412
      %v8414 = vrot.slane %v8341, 2
      %v8415 = vsel %vm6865, %v8412, %v8414
      %v8416 = vrot.slane %v8342, 2
      %v8417 = vsel %vm6865, %v8414, %v8416
      %v8418 = vrot.slane %v8343, 2
      %v8419 = vsel %vm6865, %v8416, %v8418
      %v8420 = vrot.slane %v8344, 2
      %v8421 = vsel %vm6865, %v8418, %v8420
      %v8422 = vrot.slane %v8345, 2
      %v8423 = vsel %vm6865, %v8420, %v8422
      %v8424 = vrot.slane %v8346, 2
      %v8425 = vsel %vm6865, %v8422, %v8424
      %v8426 = vrot.slane %v8347, 2
      %v8427 = vsel %vm6865, %v8424, %v8426
      %v8428 = vrot.slane %v8348, 2
      %v8429 = vsel %vm6865, %v8426, %v8428
      %v8430 = vrot.slane %v8349, 2
      %v8431 = vsel %vm6865, %v8428, %v8430
      %v8432 = vrot.slane %v8350, 2
      %v8433 = vsel %vm6865, %v8430, %v8432
      %v8434 = vrot.slane %v8351, 2
      %v8435 = vsel %vm6865, %v8432, %v8434
      %v8436 = vrot.slane %v8352, 2
      %v8437 = vsel %vm6865, %v8434, %v8436
      %v8438 = vrot.slane %v8353, 2
      %v8439 = vsel %vm6865, %v8436, %v8438
      %v8440 = vrot.slane %v8354, 2
      %v8441 = vsel %vm6865, %v8438, %v8440
      %v8442 = vrot.slane %v8355, 2
      %v8443 = vsel %vm6865, %v8440, %v8442
      %v8444 = vrot.slane %v8356, 2
      %v8445 = vsel %vm6865, %v8442, %v8444
      %v8446 = vrot.slane %v8357, 2
      %v8447 = vsel %vm6865, %v8444, %v8446
      %v8448 = vrot.slane %v8358, 2
      %v8449 = vsel %vm6865, %v8446, %v8448
      %v8450 = vrot.slane %v8359, 2
      %v8451 = vsel %vm6865, %v8448, %v8450
      %v8452 = vrot.slane %v8360, 2
      %v8453 = vsel %vm6865, %v8450, %v8452
      %v8454 = vrot.slane %v8361, 2
      %v8455 = vsel %vm6865, %v8452, %v8454
      %v8456 = vrot.slane %v8362, 2
      %v8457 = vsel %vm6865, %v8454, %v8456
      %v8458 = vrot.slane %v8363, 2
      %v8459 = vsel %vm6865, %v8456, %v8458
      %v8460 = vrot.slane %v8364, 2
      %v8461 = vsel %vm6865, %v8458, %v8460
      %v8462 = vrot.slane %v8365, 2
      %v8463 = vsel %vm6865, %v8460, %v8462
      %v8464 = vrot.slane %v8366, 2
      %v8465 = vsel %vm6865, %v8462, %v8464
      %v8466 = vrot.slane %v8367, 2
      %v8467 = vsel %vm6865, %v8464, %v8466
      %v8468 = vrot.slane %v8368, 2
      %v8469 = vsel %vm6865, %v8466, %v8468
      %v8470 = vrot.slane %v8369, 2
      %v8471 = vsel %vm6865, %v8468, %v8470
      %v8472 = vrot.slane %v8370, 2
      %v8473 = vsel %vm6865, %v8470, %v8472
      %v8474 = vrot.slane %v8371, 2
      %v8475 = vsel %vm6865, %v8472, %v8474
      %v8476 = vrot.slane %v8372, 2
      %v8477 = vsel %vm6865, %v8474, %v8476
      %v8478 = vrot.slane %v8373, 2
      %v8479 = vsel %vm6865, %v8476, %v8478
      %v8480 = vrot.slane %v8374, 2
      %v8481 = vsel %vm6865, %v8478, %v8480
      %v8482 = vrot.slane %v8375, 2
      %v8483 = vsel %vm6865, %v8480, %v8482
      %v8484 = vrot.slane %v8376, 2
      %v8485 = vsel %vm6865, %v8482, %v8484
      %v8486 = vrot.slane %v8377, 2
      %v8487 = vsel %vm6865, %v8484, %v8486
      %v8488 = vrot.slane %v8378, 2
      %v8489 = vsel %vm6865, %v8486, %v8488
      %v8490 = vrot.slane %v8379, 2
      %v8491 = vsel %vm6865, %v8488, %v8490
      %v8492 = vrot.slane %v8380, 2
      %v8493 = vsel %vm6865, %v8490, %v8492
      %v8494 = vrot.slane %v8381, 2
      %v8495 = vsel %vm6865, %v8492, %v8494
      %v8496 = vrot.slane %v8382, 2
      %v8497 = vsel %vm6865, %v8494, %v8496
      %v8498 = vrot.slane %v8383, 2
      %v8499 = vsel %vm6865, %v8496, %v8498
      %v8500 = vrot.slane %v8384, 2
      %v8501 = vsel %vm6865, %v8498, %v8500
      %v8502 = vrot.slane %v8385, 2
      %v8503 = vsel %vm6865, %v8500, %v8502
      %v8504 = vrot.slane %v8386, 2
      %v8505 = vsel %vm6865, %v8502, %v8504
      %v8506 = vrot.slane %v8387, 2
      %v8507 = vsel %vm6865, %v8504, %v8506
      %v8508 = vrot.slane %v8388, 2
      %v8509 = vsel %vm6865, %v8506, %v8508
      %v8510 = vrot.slane %v8389, 2
      %v8511 = vsel %vm6865, %v8508, %v8510
      %v8512 = vrot.slane %v8390, 2
      %v8513 = vsel %vm6865, %v8510, %v8512
      %v8514 = vrot.slane %v8391, 2
      %v8515 = vsel %vm6865, %v8512, %v8514
      %v8516 = vrot.slane %v8392, 2
      %v8517 = vsel %vm6865, %v8514, %v8516
      %v8518 = vrot.slane %v8393, 2
      %v8519 = vsel %vm6865, %v8516, %v8518
      %v8520 = vrot.slane %v8394, 2
      %v8521 = vsel %vm6865, %v8518, %v8520
      %v8522 = vrot.slane %v8395, 2
      %v8523 = vsel %vm6865, %v8520, %v8522
      %v8524 = vrot.slane %v8396, 2
      %v8525 = vsel %vm6865, %v8522, %v8524
      %v8526 = vrot.slane %v8397, 2
      %v8527 = vsel %vm6865, %v8524, %v8526
      %v8528 = vrot.slane %v8398, 2
      %v8529 = vsel %vm6865, %v8526, %v8528
      %v8530 = vrot.slane %v8399, 2
      %v8531 = vsel %vm6865, %v8528, %v8530
      %v8532 = vrot.slane %v8400, 2
      %v8533 = vsel %vm6865, %v8530, %v8532
      %v8534 = vrot.slane %v8401, 2
      %v8535 = vsel %vm6865, %v8532, %v8534
      %v8536 = vrot.slane %v8402, 2
      %v8537 = vsel %vm6865, %v8534, %v8536
      %v8538 = vrot.slane %v8403, 2
      %v8539 = vsel %vm6865, %v8536, %v8538
      %v8540 = vrot.slane %v8404, 2
      %v8541 = vsel %vm6865, %v8538, %v8540
      %v8543 = vsel %vm1204, %v8407, 0
      %v8546 = vsel %vm1204, %v8409, 0
      %v8549 = vsel %vm1204, %v8411, 0
      %v8552 = vsel %vm1204, %v8413, 0
      %v8555 = vsel %vm1204, %v8415, 0
      %v8558 = vsel %vm1204, %v8417, 0
      %v8561 = vsel %vm1204, %v8419, 0
      %v8564 = vsel %vm1204, %v8421, 0
      %v8567 = vsel %vm1204, %v8423, 0
      %v8570 = vsel %vm1204, %v8425, 0
      %v8573 = vsel %vm1204, %v8427, 0
      %v8576 = vsel %vm1204, %v8429, 0
      %v8579 = vsel %vm1204, %v8431, 0
      %v8582 = vsel %vm1204, %v8433, 0
      %v8585 = vsel %vm1204, %v8435, 0
      %v8588 = vsel %vm1204, %v8437, 0
      %v8591 = vsel %vm1204, %v8439, 0
      %v8594 = vsel %vm1204, %v8441, 0
      %v8597 = vsel %vm1204, %v8443, 0
      %v8600 = vsel %vm1204, %v8445, 0
      %v8603 = vsel %vm1204, %v8447, 0
      %v8606 = vsel %vm1204, %v8449, 0
      %v8609 = vsel %vm1204, %v8451, 0
      %v8612 = vsel %vm1204, %v8453, 0
      %v8615 = vsel %vm1204, %v8455, 0
      %v8618 = vsel %vm1204, %v8457, 0
      %v8621 = vsel %vm1204, %v8459, 0
      %v8624 = vsel %vm1204, %v8461, 0
      %v8627 = vsel %vm1204, %v8463, 0
      %v8630 = vsel %vm1204, %v8465, 0
      %v8633 = vsel %vm1204, %v8467, 0
      %v8636 = vsel %vm1204, %v8469, 0
      %v8639 = vsel %vm1204, %v8471, 0
      %v8642 = vsel %vm1204, %v8473, 0
      %v8645 = vsel %vm1204, %v8475, 0
      %v8648 = vsel %vm1204, %v8477, 0
      %v8651 = vsel %vm1204, %v8479, 0
      %v8654 = vsel %vm1204, %v8481, 0
      %v8657 = vsel %vm1204, %v8483, 0
      %v8660 = vsel %vm1204, %v8485, 0
      %v8663 = vsel %vm1204, %v8487, 0
      %v8666 = vsel %vm1204, %v8489, 0
      %v8669 = vsel %vm1204, %v8491, 0
      %v8672 = vsel %vm1204, %v8493, 0
      %v8675 = vsel %vm1204, %v8495, 0
      %v8678 = vsel %vm1204, %v8497, 0
      %v8681 = vsel %vm1204, %v8499, 0
      %v8684 = vsel %vm1204, %v8501, 0
      %v8687 = vsel %vm1204, %v8503, 0
      %v8690 = vsel %vm1204, %v8505, 0
      %v8693 = vsel %vm1204, %v8507, 0
      %v8696 = vsel %vm1204, %v8509, 0
      %v8699 = vsel %vm1204, %v8511, 0
      %v8702 = vsel %vm1204, %v8513, 0
      %v8705 = vsel %vm1204, %v8515, 0
      %v8708 = vsel %vm1204, %v8517, 0
      %v8711 = vsel %vm1204, %v8519, 0
      %v8714 = vsel %vm1204, %v8521, 0
      %v8717 = vsel %vm1204, %v8523, 0
      %v8720 = vsel %vm1204, %v8525, 0
      %v8723 = vsel %vm1204, %v8527, 0
      %v8726 = vsel %vm1204, %v8529, 0
      %v8729 = vsel %vm1204, %v8531, 0
      %v8732 = vsel %vm1204, %v8533, 0
      %v8735 = vsel %vm1204, %v8535, 0
      %v8738 = vsel %vm1204, %v8537, 0
      %v8741 = vsel %vm1204, %v8539, 0
      %v8744 = vsel %vm1204, %v8541, 0
      %v8747 = vand.u32 %v8061, %v1412
      %8749 = vmatprep.subr.bf16.mxu0 0
      %8750 = vmatpush1.bf16.msra.mxu0 %v8747
      %8751 = vmatprep.subr.bf16.mxu0 0
      %8752 = vmatpush1.bf16.msra.mxu0 0
      %8753 = vmatprep.subr.bf16.mxu0 0
      %8754 = vmatpush1.bf16.msra.mxu0 0
      %8755 = vmatprep.subr.bf16.mxu0 0
      %8756 = vmatpush1.bf16.msra.mxu0 0
      %8757 = vmatprep.subr.bf16.mxu0 0
      %8758 = vmatpush1.bf16.msra.mxu0 0
      %8759 = vmatprep.subr.bf16.mxu0 0
      %8760 = vmatpush1.bf16.msra.mxu0 0
      %8761 = vmatprep.subr.bf16.mxu0 0
      %8762 = vmatpush1.bf16.msra.mxu0 0
      %8763 = vmatprep.subr.bf16.mxu0 0
      %8764 = vmatpush1.bf16.msra.mxu0 0
      %8765 = vmatprep.subr.bf16.mxu0 0
      %8766 = vmatpush1.bf16.msra.mxu0 0
      %8767 = vmatprep.subr.bf16.mxu0 0
      %8768 = vmatpush1.bf16.msra.mxu0 0
      %8769 = vmatprep.subr.bf16.mxu0 0
      %8770 = vmatpush1.bf16.msra.mxu0 0
      %8771 = vmatprep.subr.bf16.mxu0 0
      %8772 = vmatpush1.bf16.msra.mxu0 0
      %8773 = vmatprep.subr.bf16.mxu0 0
      %8774 = vmatpush1.bf16.msra.mxu0 0
      %8775 = vmatprep.subr.bf16.mxu0 0
      %8776 = vmatpush1.bf16.msra.mxu0 0
      %8777 = vmatprep.subr.bf16.mxu0 0
      %8778 = vmatpush1.bf16.msra.mxu0 0
      %8779 = vmatprep.subr.bf16.mxu0 0
      %8780 = vmatpush1.bf16.msra.mxu0 0
      %8781 = vmatprep.mubr.bf16.mxu0 0
      %8782 = vmatmul.mubr.bf16.gmra.mrb[0].mxu0 %v8543
      %v8783 = vpop.f32.mrb[0].mxu0
      %v8784 = vadd.f32 0.0, %v8783
      %v8785 = vpop.f32.mrb[0].mxu0
      %v8786 = vpop.f32.mrb[0].mxu0
      %v8787 = vadd.f32 0.0, %v8786
      %v8788 = vpop.f32.mrb[0].mxu0
      %8789 = vmatprep.mubr.bf16.mxu0 0
      %8790 = vmatmul.mubr.bf16.gmra.mrb[0].mxu0 %v8546
      %v8791 = vpop.f32.mrb[0].mxu0
      %v8792 = vadd.f32 0.0, %v8791
      %v8793 = vpop.f32.mrb[0].mxu0
      %v8794 = vpop.f32.mrb[0].mxu0
      %v8795 = vadd.f32 0.0, %v8794
      %v8796 = vpop.f32.mrb[0].mxu0
      %8797 = vmatprep.mubr.bf16.mxu0 0
      %8798 = vmatmul.mubr.bf16.gmra.mrb[0].mxu0 %v8549
      %v8799 = vpop.f32.mrb[0].mxu0
      %v8800 = vadd.f32 0.0, %v8799
      %v8801 = vpop.f32.mrb[0].mxu0
      %v8802 = vpop.f32.mrb[0].mxu0
      %v8803 = vadd.f32 0.0, %v8802
      %v8804 = vpop.f32.mrb[0].mxu0
      %8805 = vmatprep.mubr.bf16.mxu0 0
      %8806 = vmatmul.mubr.bf16.gmra.mrb[0].mxu0 %v8552
      %v8807 = vpop.f32.mrb[0].mxu0
      %v8808 = vadd.f32 0.0, %v8807
      %v8809 = vpop.f32.mrb[0].mxu0
      %v8810 = vpop.f32.mrb[0].mxu0
      %v8811 = vadd.f32 0.0, %v8810
      %v8812 = vpop.f32.mrb[0].mxu0
      %8813 = vmatprep.mubr.bf16.mxu0 0
      %8814 = vmatmul.mubr.bf16.gmra.mrb[0].mxu0 %v8555
      %v8815 = vpop.f32.mrb[0].mxu0
      %v8816 = vadd.f32 0.0, %v8815
      %v8817 = vpop.f32.mrb[0].mxu0
      %v8818 = vpop.f32.mrb[0].mxu0
      %v8819 = vadd.f32 0.0, %v8818
      %v8820 = vpop.f32.mrb[0].mxu0
      %8821 = vmatprep.mubr.bf16.mxu0 0
      %8822 = vmatmul.mubr.bf16.gmra.mrb[0].mxu0 %v8558
      %v8823 = vpop.f32.mrb[0].mxu0
      %v8824 = vadd.f32 0.0, %v8823
      %v8825 = vpop.f32.mrb[0].mxu0
      %v8826 = vpop.f32.mrb[0].mxu0
      %v8827 = vadd.f32 0.0, %v8826
      %v8828 = vpop.f32.mrb[0].mxu0
      %8829 = vmatprep.mubr.bf16.mxu0 0
      %8830 = vmatmul.mubr.bf16.gmra.mrb[0].mxu0 %v8561
      %v8831 = vpop.f32.mrb[0].mxu0
      %v8832 = vadd.f32 0.0, %v8831
      %v8833 = vpop.f32.mrb[0].mxu0
      %v8834 = vpop.f32.mrb[0].mxu0
      %v8835 = vadd.f32 0.0, %v8834
      %v8836 = vpop.f32.mrb[0].mxu0
      %8837 = vmatprep.mubr.bf16.mxu0 0
      %8838 = vmatmul.mubr.bf16.gmra.mrb[0].mxu0 %v8564
      %v8839 = vpop.f32.mrb[0].mxu0
      %v8840 = vadd.f32 0.0, %v8839
      %v8841 = vpop.f32.mrb[0].mxu0
      %v8842 = vpop.f32.mrb[0].mxu0
      %v8843 = vadd.f32 0.0, %v8842
      %v8844 = vpop.f32.mrb[0].mxu0
      %8845 = vmatprep.mubr.bf16.mxu0 0
      %8846 = vmatmul.mubr.bf16.gmra.mrb[0].mxu0 %v8567
      %v8847 = vpop.f32.mrb[0].mxu0
      %v8848 = vadd.f32 0.0, %v8847
      %v8849 = vpop.f32.mrb[0].mxu0
      %v8850 = vpop.f32.mrb[0].mxu0
      %v8851 = vadd.f32 0.0, %v8850
      %v8852 = vpop.f32.mrb[0].mxu0
      %8853 = vmatprep.mubr.bf16.mxu0 0
      %8854 = vmatmul.mubr.bf16.gmra.mrb[0].mxu0 %v8570
      %v8855 = vpop.f32.mrb[0].mxu0
      %v8856 = vadd.f32 0.0, %v8855
      %v8857 = vpop.f32.mrb[0].mxu0
      %v8858 = vpop.f32.mrb[0].mxu0
      %v8859 = vadd.f32 0.0, %v8858
      %v8860 = vpop.f32.mrb[0].mxu0
      %8861 = vmatprep.mubr.bf16.mxu0 0
      %8862 = vmatmul.mubr.bf16.gmra.mrb[0].mxu0 %v8573
      %v8863 = vpop.f32.mrb[0].mxu0
      %v8864 = vadd.f32 0.0, %v8863
      %v8865 = vpop.f32.mrb[0].mxu0
      %v8866 = vpop.f32.mrb[0].mxu0
      %v8867 = vadd.f32 0.0, %v8866
      %v8868 = vpop.f32.mrb[0].mxu0
      %8869 = vmatprep.mubr.bf16.mxu0 0
      %8870 = vmatmul.mubr.bf16.gmra.mrb[0].mxu0 %v8576
      %v8871 = vpop.f32.mrb[0].mxu0
      %v8872 = vadd.f32 0.0, %v8871
      %v8873 = vpop.f32.mrb[0].mxu0
      %v8874 = vpop.f32.mrb[0].mxu0
      %v8875 = vadd.f32 0.0, %v8874
      %v8876 = vpop.f32.mrb[0].mxu0
      %8877 = vmatprep.mubr.bf16.mxu0 0
      %8878 = vmatmul.mubr.bf16.gmra.mrb[0].mxu0 %v8579
      %v8879 = vpop.f32.mrb[0].mxu0
      %v8880 = vadd.f32 0.0, %v8879
      %v8881 = vpop.f32.mrb[0].mxu0
      %v8882 = vpop.f32.mrb[0].mxu0
      %v8883 = vadd.f32 0.0, %v8882
      %v8884 = vpop.f32.mrb[0].mxu0
      %8885 = vmatprep.mubr.bf16.mxu0 0
      %8886 = vmatmul.mubr.bf16.gmra.mrb[0].mxu0 %v8582
      %v8887 = vpop.f32.mrb[0].mxu0
      %v8888 = vadd.f32 0.0, %v8887
      %v8889 = vpop.f32.mrb[0].mxu0
      %v8890 = vpop.f32.mrb[0].mxu0
      %v8891 = vadd.f32 0.0, %v8890
      %v8892 = vpop.f32.mrb[0].mxu0
      %8893 = vmatprep.mubr.bf16.mxu0 0
      %8894 = vmatmul.mubr.bf16.gmra.mrb[0].mxu0 %v8585
      %v8895 = vpop.f32.mrb[0].mxu0
      %v8896 = vadd.f32 0.0, %v8895
      %v8897 = vpop.f32.mrb[0].mxu0
      %v8898 = vpop.f32.mrb[0].mxu0
      %v8899 = vadd.f32 0.0, %v8898
      %v8900 = vpop.f32.mrb[0].mxu0
      %8901 = vmatprep.mubr.bf16.mxu0 0
      %8902 = vmatmul.mubr.bf16.gmra.mrb[0].mxu0 %v8588
      %v8903 = vpop.f32.mrb[0].mxu0
      %v8904 = vadd.f32 0.0, %v8903
      %v8905 = vpop.f32.mrb[0].mxu0
      %v8906 = vpop.f32.mrb[0].mxu0
      %v8907 = vadd.f32 0.0, %v8906
      %v8908 = vpop.f32.mrb[0].mxu0
      %8909 = vmatprep.mubr.bf16.mxu0 0
      %8910 = vmatmul.mubr.bf16.gmra.mrb[0].mxu0 %v8591
      %v8911 = vpop.f32.mrb[0].mxu0
      %v8912 = vadd.f32 0.0, %v8911
      %v8913 = vpop.f32.mrb[0].mxu0
      %v8914 = vpop.f32.mrb[0].mxu0
      %v8915 = vadd.f32 0.0, %v8914
      %v8916 = vpop.f32.mrb[0].mxu0
      %8917 = vmatprep.mubr.bf16.mxu0 0
      %8918 = vmatmul.mubr.bf16.gmra.mrb[0].mxu0 %v8594
      %v8919 = vpop.f32.mrb[0].mxu0
      %v8920 = vadd.f32 0.0, %v8919
      %v8921 = vpop.f32.mrb[0].mxu0
      %v8922 = vpop.f32.mrb[0].mxu0
      %v8923 = vadd.f32 0.0, %v8922
      %v8924 = vpop.f32.mrb[0].mxu0
      %8925 = vmatprep.mubr.bf16.mxu0 0
      %8926 = vmatmul.mubr.bf16.gmra.mrb[0].mxu0 %v8597
      %v8927 = vpop.f32.mrb[0].mxu0
      %v8928 = vadd.f32 0.0, %v8927
      %v8929 = vpop.f32.mrb[0].mxu0
      %v8930 = vpop.f32.mrb[0].mxu0
      %v8931 = vadd.f32 0.0, %v8930
      %v8932 = vpop.f32.mrb[0].mxu0
      %8933 = vmatprep.mubr.bf16.mxu0 0
      %8934 = vmatmul.mubr.bf16.gmra.mrb[0].mxu0 %v8600
      %v8935 = vpop.f32.mrb[0].mxu0
      %v8936 = vadd.f32 0.0, %v8935
      %v8937 = vpop.f32.mrb[0].mxu0
      %v8938 = vpop.f32.mrb[0].mxu0
      %v8939 = vadd.f32 0.0, %v8938
      %v8940 = vpop.f32.mrb[0].mxu0
      %8941 = vmatprep.mubr.bf16.mxu0 0
      %8942 = vmatmul.mubr.bf16.gmra.mrb[0].mxu0 %v8603
      %v8943 = vpop.f32.mrb[0].mxu0
      %v8944 = vadd.f32 0.0, %v8943
      %v8945 = vpop.f32.mrb[0].mxu0
      %v8946 = vpop.f32.mrb[0].mxu0
      %v8947 = vadd.f32 0.0, %v8946
      %v8948 = vpop.f32.mrb[0].mxu0
      %8949 = vmatprep.mubr.bf16.mxu0 0
      %8950 = vmatmul.mubr.bf16.gmra.mrb[0].mxu0 %v8606
      %v8951 = vpop.f32.mrb[0].mxu0
      %v8952 = vadd.f32 0.0, %v8951
      %v8953 = vpop.f32.mrb[0].mxu0
      %v8954 = vpop.f32.mrb[0].mxu0
      %v8955 = vadd.f32 0.0, %v8954
      %v8956 = vpop.f32.mrb[0].mxu0
      %8957 = vmatprep.mubr.bf16.mxu0 0
      %8958 = vmatmul.mubr.bf16.gmra.mrb[0].mxu0 %v8609
      %v8959 = vpop.f32.mrb[0].mxu0
      %v8960 = vadd.f32 0.0, %v8959
      %v8961 = vpop.f32.mrb[0].mxu0
      %v8962 = vpop.f32.mrb[0].mxu0
      %v8963 = vadd.f32 0.0, %v8962
      %v8964 = vpop.f32.mrb[0].mxu0
      %8965 = vmatprep.mubr.bf16.mxu0 0
      %8966 = vmatmul.mubr.bf16.gmra.mrb[0].mxu0 %v8612
      %v8967 = vpop.f32.mrb[0].mxu0
      %v8968 = vadd.f32 0.0, %v8967
      %v8969 = vpop.f32.mrb[0].mxu0
      %v8970 = vpop.f32.mrb[0].mxu0
      %v8971 = vadd.f32 0.0, %v8970
      %v8972 = vpop.f32.mrb[0].mxu0
      %8973 = vmatprep.mubr.bf16.mxu0 0
      %8974 = vmatmul.mubr.bf16.gmra.mrb[0].mxu0 %v8615
      %v8975 = vpop.f32.mrb[0].mxu0
      %v8976 = vadd.f32 0.0, %v8975
      %v8977 = vpop.f32.mrb[0].mxu0
      %v8978 = vpop.f32.mrb[0].mxu0
      %v8979 = vadd.f32 0.0, %v8978
      %v8980 = vpop.f32.mrb[0].mxu0
      %8981 = vmatprep.mubr.bf16.mxu0 0
      %8982 = vmatmul.mubr.bf16.gmra.mrb[0].mxu0 %v8618
      %v8983 = vpop.f32.mrb[0].mxu0
      %v8984 = vadd.f32 0.0, %v8983
      %v8985 = vpop.f32.mrb[0].mxu0
      %v8986 = vpop.f32.mrb[0].mxu0
      %v8987 = vadd.f32 0.0, %v8986
      %v8988 = vpop.f32.mrb[0].mxu0
      %8989 = vmatprep.mubr.bf16.mxu0 0
      %8990 = vmatmul.mubr.bf16.gmra.mrb[0].mxu0 %v8621
      %v8991 = vpop.f32.mrb[0].mxu0
      %v8992 = vadd.f32 0.0, %v8991
      %v8993 = vpop.f32.mrb[0].mxu0
      %v8994 = vpop.f32.mrb[0].mxu0
      %v8995 = vadd.f32 0.0, %v8994
      %v8996 = vpop.f32.mrb[0].mxu0
      %8997 = vmatprep.mubr.bf16.mxu0 0
      %8998 = vmatmul.mubr.bf16.gmra.mrb[0].mxu0 %v8624
      %v8999 = vpop.f32.mrb[0].mxu0
      %v9000 = vadd.f32 0.0, %v8999
      %v9001 = vpop.f32.mrb[0].mxu0
      %v9002 = vpop.f32.mrb[0].mxu0
      %v9003 = vadd.f32 0.0, %v9002
      %v9004 = vpop.f32.mrb[0].mxu0
      %9005 = vmatprep.mubr.bf16.mxu0 0
      %9006 = vmatmul.mubr.bf16.gmra.mrb[0].mxu0 %v8627
      %v9007 = vpop.f32.mrb[0].mxu0
      %v9008 = vadd.f32 0.0, %v9007
      %v9009 = vpop.f32.mrb[0].mxu0
      %v9010 = vpop.f32.mrb[0].mxu0
      %v9011 = vadd.f32 0.0, %v9010
      %v9012 = vpop.f32.mrb[0].mxu0
      %9013 = vmatprep.mubr.bf16.mxu0 0
      %9014 = vmatmul.mubr.bf16.gmra.mrb[0].mxu0 %v8630
      %v9015 = vpop.f32.mrb[0].mxu0
      %v9016 = vadd.f32 0.0, %v9015
      %v9017 = vpop.f32.mrb[0].mxu0
      %v9018 = vpop.f32.mrb[0].mxu0
      %v9019 = vadd.f32 0.0, %v9018
      %v9020 = vpop.f32.mrb[0].mxu0
      %9021 = vmatprep.mubr.bf16.mxu0 0
      %9022 = vmatmul.mubr.bf16.gmra.mrb[0].mxu0 %v8633
      %v9023 = vpop.f32.mrb[0].mxu0
      %v9024 = vadd.f32 0.0, %v9023
      %v9025 = vpop.f32.mrb[0].mxu0
      %v9026 = vpop.f32.mrb[0].mxu0
      %v9027 = vadd.f32 0.0, %v9026
      %v9028 = vpop.f32.mrb[0].mxu0
      %9029 = vmatprep.mubr.bf16.mxu0 0
      %9030 = vmatmul.mubr.bf16.gmra.mrb[0].mxu0 %v8636
      %v9031 = vpop.f32.mrb[0].mxu0
      %v9032 = vadd.f32 0.0, %v9031
      %v9033 = vpop.f32.mrb[0].mxu0
      %v9034 = vpop.f32.mrb[0].mxu0
      %v9035 = vadd.f32 0.0, %v9034
      %v9036 = vpop.f32.mrb[0].mxu0
      %9037 = vmatprep.mubr.bf16.mxu0 0
      %9038 = vmatmul.mubr.bf16.gmra.mrb[0].mxu0 %v8639
      %v9039 = vpop.f32.mrb[0].mxu0
      %v9040 = vadd.f32 0.0, %v9039
      %v9041 = vpop.f32.mrb[0].mxu0
      %v9042 = vpop.f32.mrb[0].mxu0
      %v9043 = vadd.f32 0.0, %v9042
      %v9044 = vpop.f32.mrb[0].mxu0
      %9045 = vmatprep.mubr.bf16.mxu0 0
      %9046 = vmatmul.mubr.bf16.gmra.mrb[0].mxu0 %v8642
      %v9047 = vpop.f32.mrb[0].mxu0
      %v9048 = vadd.f32 0.0, %v9047
      %v9049 = vpop.f32.mrb[0].mxu0
      %v9050 = vpop.f32.mrb[0].mxu0
      %v9051 = vadd.f32 0.0, %v9050
      %v9052 = vpop.f32.mrb[0].mxu0
      %9053 = vmatprep.mubr.bf16.mxu0 0
      %9054 = vmatmul.mubr.bf16.gmra.mrb[0].mxu0 %v8645
      %v9055 = vpop.f32.mrb[0].mxu0
      %v9056 = vadd.f32 0.0, %v9055
      %v9057 = vpop.f32.mrb[0].mxu0
      %v9058 = vpop.f32.mrb[0].mxu0
      %v9059 = vadd.f32 0.0, %v9058
      %v9060 = vpop.f32.mrb[0].mxu0
      %9061 = vmatprep.mubr.bf16.mxu0 0
      %9062 = vmatmul.mubr.bf16.gmra.mrb[0].mxu0 %v8648
      %v9063 = vpop.f32.mrb[0].mxu0
      %v9064 = vadd.f32 0.0, %v9063
      %v9065 = vpop.f32.mrb[0].mxu0
      %v9066 = vpop.f32.mrb[0].mxu0
      %v9067 = vadd.f32 0.0, %v9066
      %v9068 = vpop.f32.mrb[0].mxu0
      %9069 = vmatprep.mubr.bf16.mxu0 0
      %9070 = vmatmul.mubr.bf16.gmra.mrb[0].mxu0 %v8651
      %v9071 = vpop.f32.mrb[0].mxu0
      %v9072 = vadd.f32 0.0, %v9071
      %v9073 = vpop.f32.mrb[0].mxu0
      %v9074 = vpop.f32.mrb[0].mxu0
      %v9075 = vadd.f32 0.0, %v9074
      %v9076 = vpop.f32.mrb[0].mxu0
      %9077 = vmatprep.mubr.bf16.mxu0 0
      %9078 = vmatmul.mubr.bf16.gmra.mrb[0].mxu0 %v8654
      %v9079 = vpop.f32.mrb[0].mxu0
      %v9080 = vadd.f32 0.0, %v9079
      %v9081 = vpop.f32.mrb[0].mxu0
      %v9082 = vpop.f32.mrb[0].mxu0
      %v9083 = vadd.f32 0.0, %v9082
      %v9084 = vpop.f32.mrb[0].mxu0
      %9085 = vmatprep.mubr.bf16.mxu0 0
      %9086 = vmatmul.mubr.bf16.gmra.mrb[0].mxu0 %v8657
      %v9087 = vpop.f32.mrb[0].mxu0
      %v9088 = vadd.f32 0.0, %v9087
      %v9089 = vpop.f32.mrb[0].mxu0
      %v9090 = vpop.f32.mrb[0].mxu0
      %v9091 = vadd.f32 0.0, %v9090
      %v9092 = vpop.f32.mrb[0].mxu0
      %9093 = vmatprep.mubr.bf16.mxu0 0
      %9094 = vmatmul.mubr.bf16.gmra.mrb[0].mxu0 %v8660
      %v9095 = vpop.f32.mrb[0].mxu0
      %v9096 = vadd.f32 0.0, %v9095
      %v9097 = vpop.f32.mrb[0].mxu0
      %v9098 = vpop.f32.mrb[0].mxu0
      %v9099 = vadd.f32 0.0, %v9098
      %v9100 = vpop.f32.mrb[0].mxu0
      %9101 = vmatprep.mubr.bf16.mxu0 0
      %9102 = vmatmul.mubr.bf16.gmra.mrb[0].mxu0 %v8663
      %v9103 = vpop.f32.mrb[0].mxu0
      %v9104 = vadd.f32 0.0, %v9103
      %v9105 = vpop.f32.mrb[0].mxu0
      %v9106 = vpop.f32.mrb[0].mxu0
      %v9107 = vadd.f32 0.0, %v9106
      %v9108 = vpop.f32.mrb[0].mxu0
      %9109 = vmatprep.mubr.bf16.mxu0 0
      %9110 = vmatmul.mubr.bf16.gmra.mrb[0].mxu0 %v8666
      %v9111 = vpop.f32.mrb[0].mxu0
      %v9112 = vadd.f32 0.0, %v9111
      %v9113 = vpop.f32.mrb[0].mxu0
      %v9114 = vpop.f32.mrb[0].mxu0
      %v9115 = vadd.f32 0.0, %v9114
      %v9116 = vpop.f32.mrb[0].mxu0
      %9117 = vmatprep.mubr.bf16.mxu0 0
      %9118 = vmatmul.mubr.bf16.gmra.mrb[0].mxu0 %v8669
      %v9119 = vpop.f32.mrb[0].mxu0
      %v9120 = vadd.f32 0.0, %v9119
      %v9121 = vpop.f32.mrb[0].mxu0
      %v9122 = vpop.f32.mrb[0].mxu0
      %v9123 = vadd.f32 0.0, %v9122
      %v9124 = vpop.f32.mrb[0].mxu0
      %9125 = vmatprep.mubr.bf16.mxu0 0
      %9126 = vmatmul.mubr.bf16.gmra.mrb[0].mxu0 %v8672
      %v9127 = vpop.f32.mrb[0].mxu0
      %v9128 = vadd.f32 0.0, %v9127
      %v9129 = vpop.f32.mrb[0].mxu0
      %v9130 = vpop.f32.mrb[0].mxu0
      %v9131 = vadd.f32 0.0, %v9130
      %v9132 = vpop.f32.mrb[0].mxu0
      %9133 = vmatprep.mubr.bf16.mxu0 0
      %9134 = vmatmul.mubr.bf16.gmra.mrb[0].mxu0 %v8675
      %v9135 = vpop.f32.mrb[0].mxu0
      %v9136 = vadd.f32 0.0, %v9135
      %v9137 = vpop.f32.mrb[0].mxu0
      %v9138 = vpop.f32.mrb[0].mxu0
      %v9139 = vadd.f32 0.0, %v9138
      %v9140 = vpop.f32.mrb[0].mxu0
      %9141 = vmatprep.mubr.bf16.mxu0 0
      %9142 = vmatmul.mubr.bf16.gmra.mrb[0].mxu0 %v8678
      %v9143 = vpop.f32.mrb[0].mxu0
      %v9144 = vadd.f32 0.0, %v9143
      %v9145 = vpop.f32.mrb[0].mxu0
      %v9146 = vpop.f32.mrb[0].mxu0
      %v9147 = vadd.f32 0.0, %v9146
      %v9148 = vpop.f32.mrb[0].mxu0
      %9149 = vmatprep.mubr.bf16.mxu0 0
      %9150 = vmatmul.mubr.bf16.gmra.mrb[0].mxu0 %v8681
      %v9151 = vpop.f32.mrb[0].mxu0
      %v9152 = vadd.f32 0.0, %v9151
      %v9153 = vpop.f32.mrb[0].mxu0
      %v9154 = vpop.f32.mrb[0].mxu0
      %v9155 = vadd.f32 0.0, %v9154
      %v9156 = vpop.f32.mrb[0].mxu0
      %9157 = vmatprep.mubr.bf16.mxu0 0
      %9158 = vmatmul.mubr.bf16.gmra.mrb[0].mxu0 %v8684
      %v9159 = vpop.f32.mrb[0].mxu0
      %v9160 = vadd.f32 0.0, %v9159
      %v9161 = vpop.f32.mrb[0].mxu0
      %v9162 = vpop.f32.mrb[0].mxu0
      %v9163 = vadd.f32 0.0, %v9162
      %v9164 = vpop.f32.mrb[0].mxu0
      %9165 = vmatprep.mubr.bf16.mxu0 0
      %9166 = vmatmul.mubr.bf16.gmra.mrb[0].mxu0 %v8687
      %v9167 = vpop.f32.mrb[0].mxu0
      %v9168 = vadd.f32 0.0, %v9167
      %v9169 = vpop.f32.mrb[0].mxu0
      %v9170 = vpop.f32.mrb[0].mxu0
      %v9171 = vadd.f32 0.0, %v9170
      %v9172 = vpop.f32.mrb[0].mxu0
      %9173 = vmatprep.mubr.bf16.mxu0 0
      %9174 = vmatmul.mubr.bf16.gmra.mrb[0].mxu0 %v8690
      %v9175 = vpop.f32.mrb[0].mxu0
      %v9176 = vadd.f32 0.0, %v9175
      %v9177 = vpop.f32.mrb[0].mxu0
      %v9178 = vpop.f32.mrb[0].mxu0
      %v9179 = vadd.f32 0.0, %v9178
      %v9180 = vpop.f32.mrb[0].mxu0
      %9181 = vmatprep.mubr.bf16.mxu0 0
      %9182 = vmatmul.mubr.bf16.gmra.mrb[0].mxu0 %v8693
      %v9183 = vpop.f32.mrb[0].mxu0
      %v9184 = vadd.f32 0.0, %v9183
      %v9185 = vpop.f32.mrb[0].mxu0
      %v9186 = vpop.f32.mrb[0].mxu0
      %v9187 = vadd.f32 0.0, %v9186
      %v9188 = vpop.f32.mrb[0].mxu0
      %9189 = vmatprep.mubr.bf16.mxu0 0
      %9190 = vmatmul.mubr.bf16.gmra.mrb[0].mxu0 %v8696
      %v9191 = vpop.f32.mrb[0].mxu0
      %v9192 = vadd.f32 0.0, %v9191
      %v9193 = vpop.f32.mrb[0].mxu0
      %v9194 = vpop.f32.mrb[0].mxu0
      %v9195 = vadd.f32 0.0, %v9194
      %v9196 = vpop.f32.mrb[0].mxu0
      %9197 = vmatprep.mubr.bf16.mxu0 0
      %9198 = vmatmul.mubr.bf16.gmra.mrb[0].mxu0 %v8699
      %v9199 = vpop.f32.mrb[0].mxu0
      %v9200 = vadd.f32 0.0, %v9199
      %v9201 = vpop.f32.mrb[0].mxu0
      %v9202 = vpop.f32.mrb[0].mxu0
      %v9203 = vadd.f32 0.0, %v9202
      %v9204 = vpop.f32.mrb[0].mxu0
      %9205 = vmatprep.mubr.bf16.mxu0 0
      %9206 = vmatmul.mubr.bf16.gmra.mrb[0].mxu0 %v8702
      %v9207 = vpop.f32.mrb[0].mxu0
      %v9208 = vadd.f32 0.0, %v9207
      %v9209 = vpop.f32.mrb[0].mxu0
      %v9210 = vpop.f32.mrb[0].mxu0
      %v9211 = vadd.f32 0.0, %v9210
      %v9212 = vpop.f32.mrb[0].mxu0
      %9213 = vmatprep.mubr.bf16.mxu0 0
      %9214 = vmatmul.mubr.bf16.gmra.mrb[0].mxu0 %v8705
      %v9215 = vpop.f32.mrb[0].mxu0
      %v9216 = vadd.f32 0.0, %v9215
      %v9217 = vpop.f32.mrb[0].mxu0
      %v9218 = vpop.f32.mrb[0].mxu0
      %v9219 = vadd.f32 0.0, %v9218
      %v9220 = vpop.f32.mrb[0].mxu0
      %9221 = vmatprep.mubr.bf16.mxu0 0
      %9222 = vmatmul.mubr.bf16.gmra.mrb[0].mxu0 %v8708
      %v9223 = vpop.f32.mrb[0].mxu0
      %v9224 = vadd.f32 0.0, %v9223
      %v9225 = vpop.f32.mrb[0].mxu0
      %v9226 = vpop.f32.mrb[0].mxu0
      %v9227 = vadd.f32 0.0, %v9226
      %v9228 = vpop.f32.mrb[0].mxu0
      %9229 = vmatprep.mubr.bf16.mxu0 0
      %9230 = vmatmul.mubr.bf16.gmra.mrb[0].mxu0 %v8711
      %v9231 = vpop.f32.mrb[0].mxu0
      %v9232 = vadd.f32 0.0, %v9231
      %v9233 = vpop.f32.mrb[0].mxu0
      %v9234 = vpop.f32.mrb[0].mxu0
      %v9235 = vadd.f32 0.0, %v9234
      %v9236 = vpop.f32.mrb[0].mxu0
      %9237 = vmatprep.mubr.bf16.mxu0 0
      %9238 = vmatmul.mubr.bf16.gmra.mrb[0].mxu0 %v8714
      %v9239 = vpop.f32.mrb[0].mxu0
      %v9240 = vadd.f32 0.0, %v9239
      %v9241 = vpop.f32.mrb[0].mxu0
      %v9242 = vpop.f32.mrb[0].mxu0
      %v9243 = vadd.f32 0.0, %v9242
      %v9244 = vpop.f32.mrb[0].mxu0
      %9245 = vmatprep.mubr.bf16.mxu0 0
      %9246 = vmatmul.mubr.bf16.gmra.mrb[0].mxu0 %v8717
      %v9247 = vpop.f32.mrb[0].mxu0
      %v9248 = vadd.f32 0.0, %v9247
      %v9249 = vpop.f32.mrb[0].mxu0
      %v9250 = vpop.f32.mrb[0].mxu0
      %v9251 = vadd.f32 0.0, %v9250
      %v9252 = vpop.f32.mrb[0].mxu0
      %9253 = vmatprep.mubr.bf16.mxu0 0
      %9254 = vmatmul.mubr.bf16.gmra.mrb[0].mxu0 %v8720
      %v9255 = vpop.f32.mrb[0].mxu0
      %v9256 = vadd.f32 0.0, %v9255
      %v9257 = vpop.f32.mrb[0].mxu0
      %v9258 = vpop.f32.mrb[0].mxu0
      %v9259 = vadd.f32 0.0, %v9258
      %v9260 = vpop.f32.mrb[0].mxu0
      %9261 = vmatprep.mubr.bf16.mxu0 0
      %9262 = vmatmul.mubr.bf16.gmra.mrb[0].mxu0 %v8723
      %v9263 = vpop.f32.mrb[0].mxu0
      %v9264 = vadd.f32 0.0, %v9263
      %v9265 = vpop.f32.mrb[0].mxu0
      %v9266 = vpop.f32.mrb[0].mxu0
      %v9267 = vadd.f32 0.0, %v9266
      %v9268 = vpop.f32.mrb[0].mxu0
      %9269 = vmatprep.mubr.bf16.mxu0 0
      %9270 = vmatmul.mubr.bf16.gmra.mrb[0].mxu0 %v8726
      %v9271 = vpop.f32.mrb[0].mxu0
      %v9272 = vadd.f32 0.0, %v9271
      %v9273 = vpop.f32.mrb[0].mxu0
      %v9274 = vpop.f32.mrb[0].mxu0
      %v9275 = vadd.f32 0.0, %v9274
      %v9276 = vpop.f32.mrb[0].mxu0
      %9277 = vmatprep.mubr.bf16.mxu0 0
      %9278 = vmatmul.mubr.bf16.gmra.mrb[0].mxu0 %v8729
      %v9279 = vpop.f32.mrb[0].mxu0
      %v9280 = vadd.f32 0.0, %v9279
      %v9281 = vpop.f32.mrb[0].mxu0
      %v9282 = vpop.f32.mrb[0].mxu0
      %v9283 = vadd.f32 0.0, %v9282
      %v9284 = vpop.f32.mrb[0].mxu0
      %9285 = vmatprep.mubr.bf16.mxu0 0
      %9286 = vmatmul.mubr.bf16.gmra.mrb[0].mxu0 %v8732
      %v9287 = vpop.f32.mrb[0].mxu0
      %v9288 = vadd.f32 0.0, %v9287
      %v9289 = vpop.f32.mrb[0].mxu0
      %v9290 = vpop.f32.mrb[0].mxu0
      %v9291 = vadd.f32 0.0, %v9290
      %v9292 = vpop.f32.mrb[0].mxu0
      %9293 = vmatprep.mubr.bf16.mxu0 0
      %9294 = vmatmul.mubr.bf16.gmra.mrb[0].mxu0 %v8735
      %v9295 = vpop.f32.mrb[0].mxu0
      %v9296 = vadd.f32 0.0, %v9295
      %v9297 = vpop.f32.mrb[0].mxu0
      %v9298 = vpop.f32.mrb[0].mxu0
      %v9299 = vadd.f32 0.0, %v9298
      %v9300 = vpop.f32.mrb[0].mxu0
      %9301 = vmatprep.mubr.bf16.mxu0 0
      %9302 = vmatmul.mubr.bf16.gmra.mrb[0].mxu0 %v8738
      %v9303 = vpop.f32.mrb[0].mxu0
      %v9304 = vadd.f32 0.0, %v9303
      %v9305 = vpop.f32.mrb[0].mxu0
      %v9306 = vpop.f32.mrb[0].mxu0
      %v9307 = vadd.f32 0.0, %v9306
      %v9308 = vpop.f32.mrb[0].mxu0
      %9309 = vmatprep.mubr.bf16.mxu0 0
      %9310 = vmatmul.mubr.bf16.gmra.mrb[0].mxu0 %v8741
      %v9311 = vpop.f32.mrb[0].mxu0
      %v9312 = vadd.f32 0.0, %v9311
      %v9313 = vpop.f32.mrb[0].mxu0
      %v9314 = vpop.f32.mrb[0].mxu0
      %v9315 = vadd.f32 0.0, %v9314
      %v9316 = vpop.f32.mrb[0].mxu0
      %9317 = vmatprep.mubr.bf16.mxu0 0
      %9318 = vmatmul.mubr.bf16.gmra.mrb[0].mxu0 %v8744
      %v9319 = vpop.f32.mrb[0].mxu0
      %v9320 = vadd.f32 0.0, %v9319
      %v9321 = vpop.f32.mrb[0].mxu0
      %v9322 = vpop.f32.mrb[0].mxu0
      %v9323 = vadd.f32 0.0, %v9322
      %v9324 = vpop.f32.mrb[0].mxu0
      %9325 = vdwg.mxu0
      %v9326 = vadd.f32 %v7787, %v8784
      %v9327 = vadd.f32 %v7788, %v8787
      %v9328 = vadd.f32 %v7789, %v8792
      %v9329 = vadd.f32 %v7790, %v8795
      %v9330 = vadd.f32 %v7791, %v8800
      %v9331 = vadd.f32 %v7792, %v8803
      %v9332 = vadd.f32 %v7793, %v8808
      %v9333 = vadd.f32 %v7794, %v8811
      %v9334 = vadd.f32 %v7795, %v8816
      %v9335 = vadd.f32 %v7796, %v8819
      %v9336 = vadd.f32 %v7797, %v8824
      %v9337 = vadd.f32 %v7798, %v8827
      %v9338 = vadd.f32 %v7799, %v8832
      %v9339 = vadd.f32 %v7800, %v8835
      %v9340 = vadd.f32 %v7801, %v8840
      %v9341 = vadd.f32 %v7802, %v8843
      %v9342 = vadd.f32 %v7803, %v8848
      %v9343 = vadd.f32 %v7804, %v8851
      %v9344 = vadd.f32 %v7805, %v8856
      %v9345 = vadd.f32 %v7806, %v8859
      %v9346 = vadd.f32 %v7807, %v8864
      %v9347 = vadd.f32 %v7808, %v8867
      %v9348 = vadd.f32 %v7809, %v8872
      %v9349 = vadd.f32 %v7810, %v8875
      %v9350 = vadd.f32 %v7811, %v8880
      %v9351 = vadd.f32 %v7812, %v8883
      %v9352 = vadd.f32 %v7813, %v8888
      %v9353 = vadd.f32 %v7814, %v8891
      %v9354 = vadd.f32 %v7815, %v8896
      %v9355 = vadd.f32 %v7816, %v8899
      %v9356 = vadd.f32 %v7817, %v8904
      %v9357 = vadd.f32 %v7818, %v8907
      %v9358 = vadd.f32 %v7819, %v8912
      %v9359 = vadd.f32 %v7820, %v8915
      %v9360 = vadd.f32 %v7821, %v8920
      %v9361 = vadd.f32 %v7822, %v8923
      %v9362 = vadd.f32 %v7823, %v8928
      %v9363 = vadd.f32 %v7824, %v8931
      %v9364 = vadd.f32 %v7825, %v8936
      %v9365 = vadd.f32 %v7826, %v8939
      %v9366 = vadd.f32 %v7827, %v8944
      %v9367 = vadd.f32 %v7828, %v8947
      %v9368 = vadd.f32 %v7829, %v8952
      %v9369 = vadd.f32 %v7830, %v8955
      %v9370 = vadd.f32 %v7831, %v8960
      %v9371 = vadd.f32 %v7832, %v8963
      %v9372 = vadd.f32 %v7833, %v8968
      %v9373 = vadd.f32 %v7834, %v8971
      %v9374 = vadd.f32 %v7835, %v8976
      %v9375 = vadd.f32 %v7836, %v8979
      %v9376 = vadd.f32 %v7837, %v8984
      %v9377 = vadd.f32 %v7838, %v8987
      %v9378 = vadd.f32 %v7839, %v8992
      %v9379 = vadd.f32 %v7840, %v8995
      %v9380 = vadd.f32 %v7841, %v9000
      %v9381 = vadd.f32 %v7842, %v9003
      %v9382 = vadd.f32 %v7843, %v9008
      %v9383 = vadd.f32 %v7844, %v9011
      %v9384 = vadd.f32 %v7845, %v9016
      %v9385 = vadd.f32 %v7846, %v9019
      %v9386 = vadd.f32 %v7847, %v9024
      %v9387 = vadd.f32 %v7848, %v9027
      %v9388 = vadd.f32 %v7849, %v9032
      %v9389 = vadd.f32 %v7850, %v9035
      %v9390 = vadd.f32 %v7851, %v9040
      %v9391 = vadd.f32 %v7852, %v9043
      %v9392 = vadd.f32 %v7853, %v9048
      %v9393 = vadd.f32 %v7854, %v9051
      %v9394 = vadd.f32 %v7855, %v9056
      %v9395 = vadd.f32 %v7856, %v9059
      %v9396 = vadd.f32 %v7857, %v9064
      %v9397 = vadd.f32 %v7858, %v9067
      %v9398 = vadd.f32 %v7859, %v9072
      %v9399 = vadd.f32 %v7860, %v9075
      %v9400 = vadd.f32 %v7861, %v9080
      %v9401 = vadd.f32 %v7862, %v9083
      %v9402 = vadd.f32 %v7863, %v9088
      %v9403 = vadd.f32 %v7864, %v9091
      %v9404 = vadd.f32 %v7865, %v9096
      %v9405 = vadd.f32 %v7866, %v9099
      %v9406 = vadd.f32 %v7867, %v9104
      %v9407 = vadd.f32 %v7868, %v9107
      %v9408 = vadd.f32 %v7869, %v9112
      %v9409 = vadd.f32 %v7870, %v9115
      %v9410 = vadd.f32 %v7871, %v9120
      %v9411 = vadd.f32 %v7872, %v9123
      %v9412 = vadd.f32 %v7873, %v9128
      %v9413 = vadd.f32 %v7874, %v9131
      %v9414 = vadd.f32 %v7875, %v9136
      %v9415 = vadd.f32 %v7876, %v9139
      %v9416 = vadd.f32 %v7877, %v9144
      %v9417 = vadd.f32 %v7878, %v9147
      %v9418 = vadd.f32 %v7879, %v9152
      %v9419 = vadd.f32 %v7880, %v9155
      %v9420 = vadd.f32 %v7881, %v9160
      %v9421 = vadd.f32 %v7882, %v9163
      %v9422 = vadd.f32 %v7883, %v9168
      %v9423 = vadd.f32 %v7884, %v9171
      %v9424 = vadd.f32 %v7885, %v9176
      %v9425 = vadd.f32 %v7886, %v9179
      %v9426 = vadd.f32 %v7887, %v9184
      %v9427 = vadd.f32 %v7888, %v9187
      %v9428 = vadd.f32 %v7889, %v9192
      %v9429 = vadd.f32 %v7890, %v9195
      %v9430 = vadd.f32 %v7891, %v9200
      %v9431 = vadd.f32 %v7892, %v9203
      %v9432 = vadd.f32 %v7893, %v9208
      %v9433 = vadd.f32 %v7894, %v9211
      %v9434 = vadd.f32 %v7895, %v9216
      %v9435 = vadd.f32 %v7896, %v9219
      %v9436 = vadd.f32 %v7897, %v9224
      %v9437 = vadd.f32 %v7898, %v9227
      %v9438 = vadd.f32 %v7899, %v9232
      %v9439 = vadd.f32 %v7900, %v9235
      %v9440 = vadd.f32 %v7901, %v9240
      %v9441 = vadd.f32 %v7902, %v9243
      %v9442 = vadd.f32 %v7903, %v9248
      %v9443 = vadd.f32 %v7904, %v9251
      %v9444 = vadd.f32 %v7905, %v9256
      %v9445 = vadd.f32 %v7906, %v9259
      %v9446 = vadd.f32 %v7907, %v9264
      %v9447 = vadd.f32 %v7908, %v9267
      %v9448 = vadd.f32 %v7909, %v9272
      %v9449 = vadd.f32 %v7910, %v9275
      %v9450 = vadd.f32 %v7911, %v9280
      %v9451 = vadd.f32 %v7912, %v9283
      %v9452 = vadd.f32 %v7913, %v9288
      %v9453 = vadd.f32 %v7914, %v9291
      %v9454 = vadd.f32 %v7915, %v9296
      %v9455 = vadd.f32 %v7916, %v9299
      %v9456 = vadd.f32 %v7917, %v9304
      %v9457 = vadd.f32 %v7918, %v9307
      %v9458 = vadd.f32 %v7919, %v9312
      %v9459 = vadd.f32 %v7920, %v9315
      %v9460 = vadd.f32 %v7921, %v9320
      %v9461 = vadd.f32 %v7922, %v9323
      %v9462 = vld [vmem:[%s165 + $0x240] sm:$0x7]
      %s9463 = scalar_lea.vmem %s1, 14
      %v9464 = vld [vmem:[%s9463] sm:$0x3]
      %v9466 = vunpack.c.l.b16 %v9462
      %v9467 = vpack.c.b16 %v9466, %v9466
      %vm9468 = vsmask.f32 5376
      %v9470 = vshrl.u32 %v8336, 16
      %v9472 = vrot.slane %v9470, 2
      %v9473 = vshll.u32 %v8336, 16
      %v9475 = vrot.slane %v9473, 3
      %v9476 = vor.u32 %v9472, %v9475
      %v9478 = vshrl.u32 %v8337, 16
      %v9480 = vrot.slane %v9478, 2
      %v9481 = vshll.u32 %v8337, 16
      %v9483 = vrot.slane %v9481, 3
      %v9484 = vor.u32 %v9480, %v9483
      %v9485 = vsel %vm9468, %v9476, %v9484
      %v9487 = vshrl.u32 %v8338, 16
      %v9489 = vrot.slane %v9487, 2
      %v9490 = vshll.u32 %v8338, 16
      %v9492 = vrot.slane %v9490, 3
      %v9493 = vor.u32 %v9489, %v9492
      %v9494 = vsel %vm9468, %v9484, %v9493
      %v9496 = vshrl.u32 %v8339, 16
      %v9498 = vrot.slane %v9496, 2
      %v9499 = vshll.u32 %v8339, 16
      %v9501 = vrot.slane %v9499, 3
      %v9502 = vor.u32 %v9498, %v9501
      %v9503 = vsel %vm9468, %v9493, %v9502
      %v9505 = vshrl.u32 %v8340, 16
      %v9507 = vrot.slane %v9505, 2
      %v9508 = vshll.u32 %v8340, 16
      %v9510 = vrot.slane %v9508, 3
      %v9511 = vor.u32 %v9507, %v9510
      %v9512 = vsel %vm9468, %v9502, %v9511
      %v9514 = vshrl.u32 %v8341, 16
      %v9516 = vrot.slane %v9514, 2
      %v9517 = vshll.u32 %v8341, 16
      %v9519 = vrot.slane %v9517, 3
      %v9520 = vor.u32 %v9516, %v9519
      %v9521 = vsel %vm9468, %v9511, %v9520
      %v9523 = vshrl.u32 %v8342, 16
      %v9525 = vrot.slane %v9523, 2
      %v9526 = vshll.u32 %v8342, 16
      %v9528 = vrot.slane %v9526, 3
      %v9529 = vor.u32 %v9525, %v9528
      %v9530 = vsel %vm9468, %v9520, %v9529
      %v9532 = vshrl.u32 %v8343, 16
      %v9534 = vrot.slane %v9532, 2
      %v9535 = vshll.u32 %v8343, 16
      %v9537 = vrot.slane %v9535, 3
      %v9538 = vor.u32 %v9534, %v9537
      %v9539 = vsel %vm9468, %v9529, %v9538
      %v9541 = vshrl.u32 %v8344, 16
      %v9543 = vrot.slane %v9541, 2
      %v9544 = vshll.u32 %v8344, 16
      %v9546 = vrot.slane %v9544, 3
      %v9547 = vor.u32 %v9543, %v9546
      %v9548 = vsel %vm9468, %v9538, %v9547
      %v9550 = vshrl.u32 %v8345, 16
      %v9552 = vrot.slane %v9550, 2
      %v9553 = vshll.u32 %v8345, 16
      %v9555 = vrot.slane %v9553, 3
      %v9556 = vor.u32 %v9552, %v9555
      %v9557 = vsel %vm9468, %v9547, %v9556
      %v9559 = vshrl.u32 %v8346, 16
      %v9561 = vrot.slane %v9559, 2
      %v9562 = vshll.u32 %v8346, 16
      %v9564 = vrot.slane %v9562, 3
      %v9565 = vor.u32 %v9561, %v9564
      %v9566 = vsel %vm9468, %v9556, %v9565
      %v9568 = vshrl.u32 %v8347, 16
      %v9570 = vrot.slane %v9568, 2
      %v9571 = vshll.u32 %v8347, 16
      %v9573 = vrot.slane %v9571, 3
      %v9574 = vor.u32 %v9570, %v9573
      %v9575 = vsel %vm9468, %v9565, %v9574
      %v9577 = vshrl.u32 %v8348, 16
      %v9579 = vrot.slane %v9577, 2
      %v9580 = vshll.u32 %v8348, 16
      %v9582 = vrot.slane %v9580, 3
      %v9583 = vor.u32 %v9579, %v9582
      %v9584 = vsel %vm9468, %v9574, %v9583
      %v9586 = vshrl.u32 %v8349, 16
      %v9588 = vrot.slane %v9586, 2
      %v9589 = vshll.u32 %v8349, 16
      %v9591 = vrot.slane %v9589, 3
      %v9592 = vor.u32 %v9588, %v9591
      %v9593 = vsel %vm9468, %v9583, %v9592
      %v9595 = vshrl.u32 %v8350, 16
      %v9597 = vrot.slane %v9595, 2
      %v9598 = vshll.u32 %v8350, 16
      %v9600 = vrot.slane %v9598, 3
      %v9601 = vor.u32 %v9597, %v9600
      %v9602 = vsel %vm9468, %v9592, %v9601
      %v9604 = vshrl.u32 %v8351, 16
      %v9606 = vrot.slane %v9604, 2
      %v9607 = vshll.u32 %v8351, 16
      %v9609 = vrot.slane %v9607, 3
      %v9610 = vor.u32 %v9606, %v9609
      %v9611 = vsel %vm9468, %v9601, %v9610
      %v9613 = vshrl.u32 %v8352, 16
      %v9615 = vrot.slane %v9613, 2
      %v9616 = vshll.u32 %v8352, 16
      %v9618 = vrot.slane %v9616, 3
      %v9619 = vor.u32 %v9615, %v9618
      %v9620 = vsel %vm9468, %v9610, %v9619
      %v9622 = vshrl.u32 %v8353, 16
      %v9624 = vrot.slane %v9622, 2
      %v9625 = vshll.u32 %v8353, 16
      %v9627 = vrot.slane %v9625, 3
      %v9628 = vor.u32 %v9624, %v9627
      %v9629 = vsel %vm9468, %v9619, %v9628
      %v9631 = vshrl.u32 %v8354, 16
      %v9633 = vrot.slane %v9631, 2
      %v9634 = vshll.u32 %v8354, 16
      %v9636 = vrot.slane %v9634, 3
      %v9637 = vor.u32 %v9633, %v9636
      %v9638 = vsel %vm9468, %v9628, %v9637
      %v9640 = vshrl.u32 %v8355, 16
      %v9642 = vrot.slane %v9640, 2
      %v9643 = vshll.u32 %v8355, 16
      %v9645 = vrot.slane %v9643, 3
      %v9646 = vor.u32 %v9642, %v9645
      %v9647 = vsel %vm9468, %v9637, %v9646
      %v9649 = vshrl.u32 %v8356, 16
      %v9651 = vrot.slane %v9649, 2
      %v9652 = vshll.u32 %v8356, 16
      %v9654 = vrot.slane %v9652, 3
      %v9655 = vor.u32 %v9651, %v9654
      %v9656 = vsel %vm9468, %v9646, %v9655
      %v9658 = vshrl.u32 %v8357, 16
      %v9660 = vrot.slane %v9658, 2
      %v9661 = vshll.u32 %v8357, 16
      %v9663 = vrot.slane %v9661, 3
      %v9664 = vor.u32 %v9660, %v9663
      %v9665 = vsel %vm9468, %v9655, %v9664
      %v9667 = vshrl.u32 %v8358, 16
      %v9669 = vrot.slane %v9667, 2
      %v9670 = vshll.u32 %v8358, 16
      %v9672 = vrot.slane %v9670, 3
      %v9673 = vor.u32 %v9669, %v9672
      %v9674 = vsel %vm9468, %v9664, %v9673
      %v9676 = vshrl.u32 %v8359, 16
      %v9678 = vrot.slane %v9676, 2
      %v9679 = vshll.u32 %v8359, 16
      %v9681 = vrot.slane %v9679, 3
      %v9682 = vor.u32 %v9678, %v9681
      %v9683 = vsel %vm9468, %v9673, %v9682
      %v9685 = vshrl.u32 %v8360, 16
      %v9687 = vrot.slane %v9685, 2
      %v9688 = vshll.u32 %v8360, 16
      %v9690 = vrot.slane %v9688, 3
      %v9691 = vor.u32 %v9687, %v9690
      %v9692 = vsel %vm9468, %v9682, %v9691
      %v9694 = vshrl.u32 %v8361, 16
      %v9696 = vrot.slane %v9694, 2
      %v9697 = vshll.u32 %v8361, 16
      %v9699 = vrot.slane %v9697, 3
      %v9700 = vor.u32 %v9696, %v9699
      %v9701 = vsel %vm9468, %v9691, %v9700
      %v9703 = vshrl.u32 %v8362, 16
      %v9705 = vrot.slane %v9703, 2
      %v9706 = vshll.u32 %v8362, 16
      %v9708 = vrot.slane %v9706, 3
      %v9709 = vor.u32 %v9705, %v9708
      %v9710 = vsel %vm9468, %v9700, %v9709
      %v9712 = vshrl.u32 %v8363, 16
      %v9714 = vrot.slane %v9712, 2
      %v9715 = vshll.u32 %v8363, 16
      %v9717 = vrot.slane %v9715, 3
      %v9718 = vor.u32 %v9714, %v9717
      %v9719 = vsel %vm9468, %v9709, %v9718
      %v9721 = vshrl.u32 %v8364, 16
      %v9723 = vrot.slane %v9721, 2
      %v9724 = vshll.u32 %v8364, 16
      %v9726 = vrot.slane %v9724, 3
      %v9727 = vor.u32 %v9723, %v9726
      %v9728 = vsel %vm9468, %v9718, %v9727
      %v9730 = vshrl.u32 %v8365, 16
      %v9732 = vrot.slane %v9730, 2
      %v9733 = vshll.u32 %v8365, 16
      %v9735 = vrot.slane %v9733, 3
      %v9736 = vor.u32 %v9732, %v9735
      %v9737 = vsel %vm9468, %v9727, %v9736
      %v9739 = vshrl.u32 %v8366, 16
      %v9741 = vrot.slane %v9739, 2
      %v9742 = vshll.u32 %v8366, 16
      %v9744 = vrot.slane %v9742, 3
      %v9745 = vor.u32 %v9741, %v9744
      %v9746 = vsel %vm9468, %v9736, %v9745
      %v9748 = vshrl.u32 %v8367, 16
      %v9750 = vrot.slane %v9748, 2
      %v9751 = vshll.u32 %v8367, 16
      %v9753 = vrot.slane %v9751, 3
      %v9754 = vor.u32 %v9750, %v9753
      %v9755 = vsel %vm9468, %v9745, %v9754
      %v9757 = vshrl.u32 %v8368, 16
      %v9759 = vrot.slane %v9757, 2
      %v9760 = vshll.u32 %v8368, 16
      %v9762 = vrot.slane %v9760, 3
      %v9763 = vor.u32 %v9759, %v9762
      %v9764 = vsel %vm9468, %v9754, %v9763
      %v9766 = vshrl.u32 %v8369, 16
      %v9768 = vrot.slane %v9766, 2
      %v9769 = vshll.u32 %v8369, 16
      %v9771 = vrot.slane %v9769, 3
      %v9772 = vor.u32 %v9768, %v9771
      %v9773 = vsel %vm9468, %v9763, %v9772
      %v9775 = vshrl.u32 %v8370, 16
      %v9777 = vrot.slane %v9775, 2
      %v9778 = vshll.u32 %v8370, 16
      %v9780 = vrot.slane %v9778, 3
      %v9781 = vor.u32 %v9777, %v9780
      %v9782 = vsel %vm9468, %v9772, %v9781
      %v9784 = vshrl.u32 %v8371, 16
      %v9786 = vrot.slane %v9784, 2
      %v9787 = vshll.u32 %v8371, 16
      %v9789 = vrot.slane %v9787, 3
      %v9790 = vor.u32 %v9786, %v9789
      %v9791 = vsel %vm9468, %v9781, %v9790
      %v9793 = vshrl.u32 %v8372, 16
      %v9795 = vrot.slane %v9793, 2
      %v9796 = vshll.u32 %v8372, 16
      %v9798 = vrot.slane %v9796, 3
      %v9799 = vor.u32 %v9795, %v9798
      %v9800 = vsel %vm9468, %v9790, %v9799
      %v9802 = vshrl.u32 %v8373, 16
      %v9804 = vrot.slane %v9802, 2
      %v9805 = vshll.u32 %v8373, 16
      %v9807 = vrot.slane %v9805, 3
      %v9808 = vor.u32 %v9804, %v9807
      %v9809 = vsel %vm9468, %v9799, %v9808
      %v9811 = vshrl.u32 %v8374, 16
      %v9813 = vrot.slane %v9811, 2
      %v9814 = vshll.u32 %v8374, 16
      %v9816 = vrot.slane %v9814, 3
      %v9817 = vor.u32 %v9813, %v9816
      %v9818 = vsel %vm9468, %v9808, %v9817
      %v9820 = vshrl.u32 %v8375, 16
      %v9822 = vrot.slane %v9820, 2
      %v9823 = vshll.u32 %v8375, 16
      %v9825 = vrot.slane %v9823, 3
      %v9826 = vor.u32 %v9822, %v9825
      %v9827 = vsel %vm9468, %v9817, %v9826
      %v9829 = vshrl.u32 %v8376, 16
      %v9831 = vrot.slane %v9829, 2
      %v9832 = vshll.u32 %v8376, 16
      %v9834 = vrot.slane %v9832, 3
      %v9835 = vor.u32 %v9831, %v9834
      %v9836 = vsel %vm9468, %v9826, %v9835
      %v9838 = vshrl.u32 %v8377, 16
      %v9840 = vrot.slane %v9838, 2
      %v9841 = vshll.u32 %v8377, 16
      %v9843 = vrot.slane %v9841, 3
      %v9844 = vor.u32 %v9840, %v9843
      %v9845 = vsel %vm9468, %v9835, %v9844
      %v9847 = vshrl.u32 %v8378, 16
      %v9849 = vrot.slane %v9847, 2
      %v9850 = vshll.u32 %v8378, 16
      %v9852 = vrot.slane %v9850, 3
      %v9853 = vor.u32 %v9849, %v9852
      %v9854 = vsel %vm9468, %v9844, %v9853
      %v9856 = vshrl.u32 %v8379, 16
      %v9858 = vrot.slane %v9856, 2
      %v9859 = vshll.u32 %v8379, 16
      %v9861 = vrot.slane %v9859, 3
      %v9862 = vor.u32 %v9858, %v9861
      %v9863 = vsel %vm9468, %v9853, %v9862
      %v9865 = vshrl.u32 %v8380, 16
      %v9867 = vrot.slane %v9865, 2
      %v9868 = vshll.u32 %v8380, 16
      %v9870 = vrot.slane %v9868, 3
      %v9871 = vor.u32 %v9867, %v9870
      %v9872 = vsel %vm9468, %v9862, %v9871
      %v9874 = vshrl.u32 %v8381, 16
      %v9876 = vrot.slane %v9874, 2
      %v9877 = vshll.u32 %v8381, 16
      %v9879 = vrot.slane %v9877, 3
      %v9880 = vor.u32 %v9876, %v9879
      %v9881 = vsel %vm9468, %v9871, %v9880
      %v9883 = vshrl.u32 %v8382, 16
      %v9885 = vrot.slane %v9883, 2
      %v9886 = vshll.u32 %v8382, 16
      %v9888 = vrot.slane %v9886, 3
      %v9889 = vor.u32 %v9885, %v9888
      %v9890 = vsel %vm9468, %v9880, %v9889
      %v9892 = vshrl.u32 %v8383, 16
      %v9894 = vrot.slane %v9892, 2
      %v9895 = vshll.u32 %v8383, 16
      %v9897 = vrot.slane %v9895, 3
      %v9898 = vor.u32 %v9894, %v9897
      %v9899 = vsel %vm9468, %v9889, %v9898
      %v9901 = vshrl.u32 %v8384, 16
      %v9903 = vrot.slane %v9901, 2
      %v9904 = vshll.u32 %v8384, 16
      %v9906 = vrot.slane %v9904, 3
      %v9907 = vor.u32 %v9903, %v9906
      %v9908 = vsel %vm9468, %v9898, %v9907
      %v9910 = vshrl.u32 %v8385, 16
      %v9912 = vrot.slane %v9910, 2
      %v9913 = vshll.u32 %v8385, 16
      %v9915 = vrot.slane %v9913, 3
      %v9916 = vor.u32 %v9912, %v9915
      %v9917 = vsel %vm9468, %v9907, %v9916
      %v9919 = vshrl.u32 %v8386, 16
      %v9921 = vrot.slane %v9919, 2
      %v9922 = vshll.u32 %v8386, 16
      %v9924 = vrot.slane %v9922, 3
      %v9925 = vor.u32 %v9921, %v9924
      %v9926 = vsel %vm9468, %v9916, %v9925
      %v9928 = vshrl.u32 %v8387, 16
      %v9930 = vrot.slane %v9928, 2
      %v9931 = vshll.u32 %v8387, 16
      %v9933 = vrot.slane %v9931, 3
      %v9934 = vor.u32 %v9930, %v9933
      %v9935 = vsel %vm9468, %v9925, %v9934
      %v9937 = vshrl.u32 %v8388, 16
      %v9939 = vrot.slane %v9937, 2
      %v9940 = vshll.u32 %v8388, 16
      %v9942 = vrot.slane %v9940, 3
      %v9943 = vor.u32 %v9939, %v9942
      %v9944 = vsel %vm9468, %v9934, %v9943
      %v9946 = vshrl.u32 %v8389, 16
      %v9948 = vrot.slane %v9946, 2
      %v9949 = vshll.u32 %v8389, 16
      %v9951 = vrot.slane %v9949, 3
      %v9952 = vor.u32 %v9948, %v9951
      %v9953 = vsel %vm9468, %v9943, %v9952
      %v9955 = vshrl.u32 %v8390, 16
      %v9957 = vrot.slane %v9955, 2
      %v9958 = vshll.u32 %v8390, 16
      %v9960 = vrot.slane %v9958, 3
      %v9961 = vor.u32 %v9957, %v9960
      %v9962 = vsel %vm9468, %v9952, %v9961
      %v9964 = vshrl.u32 %v8391, 16
      %v9966 = vrot.slane %v9964, 2
      %v9967 = vshll.u32 %v8391, 16
      %v9969 = vrot.slane %v9967, 3
      %v9970 = vor.u32 %v9966, %v9969
      %v9971 = vsel %vm9468, %v9961, %v9970
      %v9973 = vshrl.u32 %v8392, 16
      %v9975 = vrot.slane %v9973, 2
      %v9976 = vshll.u32 %v8392, 16
      %v9978 = vrot.slane %v9976, 3
      %v9979 = vor.u32 %v9975, %v9978
      %v9980 = vsel %vm9468, %v9970, %v9979
      %v9982 = vshrl.u32 %v8393, 16
      %v9984 = vrot.slane %v9982, 2
      %v9985 = vshll.u32 %v8393, 16
      %v9987 = vrot.slane %v9985, 3
      %v9988 = vor.u32 %v9984, %v9987
      %v9989 = vsel %vm9468, %v9979, %v9988
      %v9991 = vshrl.u32 %v8394, 16
      %v9993 = vrot.slane %v9991, 2
      %v9994 = vshll.u32 %v8394, 16
      %v9996 = vrot.slane %v9994, 3
      %v9997 = vor.u32 %v9993, %v9996
      %v9998 = vsel %vm9468, %v9988, %v9997
      %v10000 = vshrl.u32 %v8395, 16
      %v10002 = vrot.slane %v10000, 2
      %v10003 = vshll.u32 %v8395, 16
      %v10005 = vrot.slane %v10003, 3
      %v10006 = vor.u32 %v10002, %v10005
      %v10007 = vsel %vm9468, %v9997, %v10006
      %v10009 = vshrl.u32 %v8396, 16
      %v10011 = vrot.slane %v10009, 2
      %v10012 = vshll.u32 %v8396, 16
      %v10014 = vrot.slane %v10012, 3
      %v10015 = vor.u32 %v10011, %v10014
      %v10016 = vsel %vm9468, %v10006, %v10015
      %v10018 = vshrl.u32 %v8397, 16
      %v10020 = vrot.slane %v10018, 2
      %v10021 = vshll.u32 %v8397, 16
      %v10023 = vrot.slane %v10021, 3
      %v10024 = vor.u32 %v10020, %v10023
      %v10025 = vsel %vm9468, %v10015, %v10024
      %v10027 = vshrl.u32 %v8398, 16
      %v10029 = vrot.slane %v10027, 2
      %v10030 = vshll.u32 %v8398, 16
      %v10032 = vrot.slane %v10030, 3
      %v10033 = vor.u32 %v10029, %v10032
      %v10034 = vsel %vm9468, %v10024, %v10033
      %v10036 = vshrl.u32 %v8399, 16
      %v10038 = vrot.slane %v10036, 2
      %v10039 = vshll.u32 %v8399, 16
      %v10041 = vrot.slane %v10039, 3
      %v10042 = vor.u32 %v10038, %v10041
      %v10043 = vsel %vm9468, %v10033, %v10042
      %v10045 = vshrl.u32 %v8400, 16
      %v10047 = vrot.slane %v10045, 2
      %v10048 = vshll.u32 %v8400, 16
      %v10050 = vrot.slane %v10048, 3
      %v10051 = vor.u32 %v10047, %v10050
      %v10052 = vsel %vm9468, %v10042, %v10051
      %v10054 = vshrl.u32 %v8401, 16
      %v10056 = vrot.slane %v10054, 2
      %v10057 = vshll.u32 %v8401, 16
      %v10059 = vrot.slane %v10057, 3
      %v10060 = vor.u32 %v10056, %v10059
      %v10061 = vsel %vm9468, %v10051, %v10060
      %v10063 = vshrl.u32 %v8402, 16
      %v10065 = vrot.slane %v10063, 2
      %v10066 = vshll.u32 %v8402, 16
      %v10068 = vrot.slane %v10066, 3
      %v10069 = vor.u32 %v10065, %v10068
      %v10070 = vsel %vm9468, %v10060, %v10069
      %v10072 = vshrl.u32 %v8403, 16
      %v10074 = vrot.slane %v10072, 2
      %v10075 = vshll.u32 %v8403, 16
      %v10077 = vrot.slane %v10075, 3
      %v10078 = vor.u32 %v10074, %v10077
      %v10079 = vsel %vm9468, %v10069, %v10078
      %v10081 = vshrl.u32 %v9467, 16
      %v10083 = vrot.slane %v10081, 2
      %v10084 = vshll.u32 %v9467, 16
      %v10086 = vrot.slane %v10084, 3
      %v10087 = vor.u32 %v10083, %v10086
      %v10088 = vsel %vm9468, %v10078, %v10087
      %v10090 = vsel %vm1204, %v9485, 0
      %v10093 = vsel %vm1204, %v9494, 0
      %v10096 = vsel %vm1204, %v9503, 0
      %v10099 = vsel %vm1204, %v9512, 0
      %v10102 = vsel %vm1204, %v9521, 0
      %v10105 = vsel %vm1204, %v9530, 0
      %v10108 = vsel %vm1204, %v9539, 0
      %v10111 = vsel %vm1204, %v9548, 0
      %v10114 = vsel %vm1204, %v9557, 0
      %v10117 = vsel %vm1204, %v9566, 0
      %v10120 = vsel %vm1204, %v9575, 0
      %v10123 = vsel %vm1204, %v9584, 0
      %v10126 = vsel %vm1204, %v9593, 0
      %v10129 = vsel %vm1204, %v9602, 0
      %v10132 = vsel %vm1204, %v9611, 0
      %v10135 = vsel %vm1204, %v9620, 0
      %v10138 = vsel %vm1204, %v9629, 0
      %v10141 = vsel %vm1204, %v9638, 0
      %v10144 = vsel %vm1204, %v9647, 0
      %v10147 = vsel %vm1204, %v9656, 0
      %v10150 = vsel %vm1204, %v9665, 0
      %v10153 = vsel %vm1204, %v9674, 0
      %v10156 = vsel %vm1204, %v9683, 0
      %v10159 = vsel %vm1204, %v9692, 0
      %v10162 = vsel %vm1204, %v9701, 0
      %v10165 = vsel %vm1204, %v9710, 0
      %v10168 = vsel %vm1204, %v9719, 0
      %v10171 = vsel %vm1204, %v9728, 0
      %v10174 = vsel %vm1204, %v9737, 0
      %v10177 = vsel %vm1204, %v9746, 0
      %v10180 = vsel %vm1204, %v9755, 0
      %v10183 = vsel %vm1204, %v9764, 0
      %v10186 = vsel %vm1204, %v9773, 0
      %v10189 = vsel %vm1204, %v9782, 0
      %v10192 = vsel %vm1204, %v9791, 0
      %v10195 = vsel %vm1204, %v9800, 0
      %v10198 = vsel %vm1204, %v9809, 0
      %v10201 = vsel %vm1204, %v9818, 0
      %v10204 = vsel %vm1204, %v9827, 0
      %v10207 = vsel %vm1204, %v9836, 0
      %v10210 = vsel %vm1204, %v9845, 0
      %v10213 = vsel %vm1204, %v9854, 0
      %v10216 = vsel %vm1204, %v9863, 0
      %v10219 = vsel %vm1204, %v9872, 0
      %v10222 = vsel %vm1204, %v9881, 0
      %v10225 = vsel %vm1204, %v9890, 0
      %v10228 = vsel %vm1204, %v9899, 0
      %v10231 = vsel %vm1204, %v9908, 0
      %v10234 = vsel %vm1204, %v9917, 0
      %v10237 = vsel %vm1204, %v9926, 0
      %v10240 = vsel %vm1204, %v9935, 0
      %v10243 = vsel %vm1204, %v9944, 0
      %v10246 = vsel %vm1204, %v9953, 0
      %v10249 = vsel %vm1204, %v9962, 0
      %v10252 = vsel %vm1204, %v9971, 0
      %v10255 = vsel %vm1204, %v9980, 0
      %v10258 = vsel %vm1204, %v9989, 0
      %v10261 = vsel %vm1204, %v9998, 0
      %v10264 = vsel %vm1204, %v10007, 0
      %v10267 = vsel %vm1204, %v10016, 0
      %v10270 = vsel %vm1204, %v10025, 0
      %v10273 = vsel %vm1204, %v10034, 0
      %v10276 = vsel %vm1204, %v10043, 0
      %v10279 = vsel %vm1204, %v10052, 0
      %v10282 = vsel %vm1204, %v10061, 0
      %v10285 = vsel %vm1204, %v10070, 0
      %v10288 = vsel %vm1204, %v10079, 0
      %v10291 = vsel %vm1204, %v10088, 0
      %v10294 = vand.u32 %v9464, %v1412
      %10296 = vmatprep.subr.bf16.mxu0 0
      %10297 = vmatpush1.bf16.msra.mxu0 %v10294
      %10298 = vmatprep.subr.bf16.mxu0 0
      %10299 = vmatpush1.bf16.msra.mxu0 0
      %10300 = vmatprep.subr.bf16.mxu0 0
      %10301 = vmatpush1.bf16.msra.mxu0 0
      %10302 = vmatprep.subr.bf16.mxu0 0
      %10303 = vmatpush1.bf16.msra.mxu0 0
      %10304 = vmatprep.subr.bf16.mxu0 0
      %10305 = vmatpush1.bf16.msra.mxu0 0
      %10306 = vmatprep.subr.bf16.mxu0 0
      %10307 = vmatpush1.bf16.msra.mxu0 0
      %10308 = vmatprep.subr.bf16.mxu0 0
      %10309 = vmatpush1.bf16.msra.mxu0 0
      %10310 = vmatprep.subr.bf16.mxu0 0
      %10311 = vmatpush1.bf16.msra.mxu0 0
      %10312 = vmatprep.subr.bf16.mxu0 0
      %10313 = vmatpush1.bf16.msra.mxu0 0
      %10314 = vmatprep.subr.bf16.mxu0 0
      %10315 = vmatpush1.bf16.msra.mxu0 0
      %10316 = vmatprep.subr.bf16.mxu0 0
      %10317 = vmatpush1.bf16.msra.mxu0 0
      %10318 = vmatprep.subr.bf16.mxu0 0
      %10319 = vmatpush1.bf16.msra.mxu0 0
      %10320 = vmatprep.subr.bf16.mxu0 0
      %10321 = vmatpush1.bf16.msra.mxu0 0
      %10322 = vmatprep.subr.bf16.mxu0 0
      %10323 = vmatpush1.bf16.msra.mxu0 0
      %10324 = vmatprep.subr.bf16.mxu0 0
      %10325 = vmatpush1.bf16.msra.mxu0 0
      %10326 = vmatprep.subr.bf16.mxu0 0
      %10327 = vmatpush1.bf16.msra.mxu0 0
      %10328 = vmatprep.mubr.bf16.mxu0 0
      %10329 = vmatmul.mubr.bf16.gmra.mrb[0].mxu0 %v10090
      %v10330 = vpop.f32.mrb[0].mxu0
      %v10331 = vadd.f32 0.0, %v10330
      %v10332 = vpop.f32.mrb[0].mxu0
      %v10333 = vpop.f32.mrb[0].mxu0
      %v10334 = vadd.f32 0.0, %v10333
      %v10335 = vpop.f32.mrb[0].mxu0
      %10336 = vmatprep.mubr.bf16.mxu0 0
      %10337 = vmatmul.mubr.bf16.gmra.mrb[0].mxu0 %v10093
      %v10338 = vpop.f32.mrb[0].mxu0
      %v10339 = vadd.f32 0.0, %v10338
      %v10340 = vpop.f32.mrb[0].mxu0
      %v10341 = vpop.f32.mrb[0].mxu0
      %v10342 = vadd.f32 0.0, %v10341
      %v10343 = vpop.f32.mrb[0].mxu0
      %10344 = vmatprep.mubr.bf16.mxu0 0
      %10345 = vmatmul.mubr.bf16.gmra.mrb[0].mxu0 %v10096
      %v10346 = vpop.f32.mrb[0].mxu0
      %v10347 = vadd.f32 0.0, %v10346
      %v10348 = vpop.f32.mrb[0].mxu0
      %v10349 = vpop.f32.mrb[0].mxu0
      %v10350 = vadd.f32 0.0, %v10349
      %v10351 = vpop.f32.mrb[0].mxu0
      %10352 = vmatprep.mubr.bf16.mxu0 0
      %10353 = vmatmul.mubr.bf16.gmra.mrb[0].mxu0 %v10099
      %v10354 = vpop.f32.mrb[0].mxu0
      %v10355 = vadd.f32 0.0, %v10354
      %v10356 = vpop.f32.mrb[0].mxu0
      %v10357 = vpop.f32.mrb[0].mxu0
      %v10358 = vadd.f32 0.0, %v10357
      %v10359 = vpop.f32.mrb[0].mxu0
      %10360 = vmatprep.mubr.bf16.mxu0 0
      %10361 = vmatmul.mubr.bf16.gmra.mrb[0].mxu0 %v10102
      %v10362 = vpop.f32.mrb[0].mxu0
      %v10363 = vadd.f32 0.0, %v10362
      %v10364 = vpop.f32.mrb[0].mxu0
      %v10365 = vpop.f32.mrb[0].mxu0
      %v10366 = vadd.f32 0.0, %v10365
      %v10367 = vpop.f32.mrb[0].mxu0
      %10368 = vmatprep.mubr.bf16.mxu0 0
      %10369 = vmatmul.mubr.bf16.gmra.mrb[0].mxu0 %v10105
      %v10370 = vpop.f32.mrb[0].mxu0
      %v10371 = vadd.f32 0.0, %v10370
      %v10372 = vpop.f32.mrb[0].mxu0
      %v10373 = vpop.f32.mrb[0].mxu0
      %v10374 = vadd.f32 0.0, %v10373
      %v10375 = vpop.f32.mrb[0].mxu0
      %10376 = vmatprep.mubr.bf16.mxu0 0
      %10377 = vmatmul.mubr.bf16.gmra.mrb[0].mxu0 %v10108
      %v10378 = vpop.f32.mrb[0].mxu0
      %v10379 = vadd.f32 0.0, %v10378
      %v10380 = vpop.f32.mrb[0].mxu0
      %v10381 = vpop.f32.mrb[0].mxu0
      %v10382 = vadd.f32 0.0, %v10381
      %v10383 = vpop.f32.mrb[0].mxu0
      %10384 = vmatprep.mubr.bf16.mxu0 0
      %10385 = vmatmul.mubr.bf16.gmra.mrb[0].mxu0 %v10111
      %v10386 = vpop.f32.mrb[0].mxu0
      %v10387 = vadd.f32 0.0, %v10386
      %v10388 = vpop.f32.mrb[0].mxu0
      %v10389 = vpop.f32.mrb[0].mxu0
      %v10390 = vadd.f32 0.0, %v10389
      %v10391 = vpop.f32.mrb[0].mxu0
      %10392 = vmatprep.mubr.bf16.mxu0 0
      %10393 = vmatmul.mubr.bf16.gmra.mrb[0].mxu0 %v10114
      %v10394 = vpop.f32.mrb[0].mxu0
      %v10395 = vadd.f32 0.0, %v10394
      %v10396 = vpop.f32.mrb[0].mxu0
      %v10397 = vpop.f32.mrb[0].mxu0
      %v10398 = vadd.f32 0.0, %v10397
      %v10399 = vpop.f32.mrb[0].mxu0
      %10400 = vmatprep.mubr.bf16.mxu0 0
      %10401 = vmatmul.mubr.bf16.gmra.mrb[0].mxu0 %v10117
      %v10402 = vpop.f32.mrb[0].mxu0
      %v10403 = vadd.f32 0.0, %v10402
      %v10404 = vpop.f32.mrb[0].mxu0
      %v10405 = vpop.f32.mrb[0].mxu0
      %v10406 = vadd.f32 0.0, %v10405
      %v10407 = vpop.f32.mrb[0].mxu0
      %10408 = vmatprep.mubr.bf16.mxu0 0
      %10409 = vmatmul.mubr.bf16.gmra.mrb[0].mxu0 %v10120
      %v10410 = vpop.f32.mrb[0].mxu0
      %v10411 = vadd.f32 0.0, %v10410
      %v10412 = vpop.f32.mrb[0].mxu0
      %v10413 = vpop.f32.mrb[0].mxu0
      %v10414 = vadd.f32 0.0, %v10413
      %v10415 = vpop.f32.mrb[0].mxu0
      %10416 = vmatprep.mubr.bf16.mxu0 0
      %10417 = vmatmul.mubr.bf16.gmra.mrb[0].mxu0 %v10123
      %v10418 = vpop.f32.mrb[0].mxu0
      %v10419 = vadd.f32 0.0, %v10418
      %v10420 = vpop.f32.mrb[0].mxu0
      %v10421 = vpop.f32.mrb[0].mxu0
      %v10422 = vadd.f32 0.0, %v10421
      %v10423 = vpop.f32.mrb[0].mxu0
      %10424 = vmatprep.mubr.bf16.mxu0 0
      %10425 = vmatmul.mubr.bf16.gmra.mrb[0].mxu0 %v10126
      %v10426 = vpop.f32.mrb[0].mxu0
      %v10427 = vadd.f32 0.0, %v10426
      %v10428 = vpop.f32.mrb[0].mxu0
      %v10429 = vpop.f32.mrb[0].mxu0
      %v10430 = vadd.f32 0.0, %v10429
      %v10431 = vpop.f32.mrb[0].mxu0
      %10432 = vmatprep.mubr.bf16.mxu0 0
      %10433 = vmatmul.mubr.bf16.gmra.mrb[0].mxu0 %v10129
      %v10434 = vpop.f32.mrb[0].mxu0
      %v10435 = vadd.f32 0.0, %v10434
      %v10436 = vpop.f32.mrb[0].mxu0
      %v10437 = vpop.f32.mrb[0].mxu0
      %v10438 = vadd.f32 0.0, %v10437
      %v10439 = vpop.f32.mrb[0].mxu0
      %10440 = vmatprep.mubr.bf16.mxu0 0
      %10441 = vmatmul.mubr.bf16.gmra.mrb[0].mxu0 %v10132
      %v10442 = vpop.f32.mrb[0].mxu0
      %v10443 = vadd.f32 0.0, %v10442
      %v10444 = vpop.f32.mrb[0].mxu0
      %v10445 = vpop.f32.mrb[0].mxu0
      %v10446 = vadd.f32 0.0, %v10445
      %v10447 = vpop.f32.mrb[0].mxu0
      %10448 = vmatprep.mubr.bf16.mxu0 0
      %10449 = vmatmul.mubr.bf16.gmra.mrb[0].mxu0 %v10135
      %v10450 = vpop.f32.mrb[0].mxu0
      %v10451 = vadd.f32 0.0, %v10450
      %v10452 = vpop.f32.mrb[0].mxu0
      %v10453 = vpop.f32.mrb[0].mxu0
      %v10454 = vadd.f32 0.0, %v10453
      %v10455 = vpop.f32.mrb[0].mxu0
      %10456 = vmatprep.mubr.bf16.mxu0 0
      %10457 = vmatmul.mubr.bf16.gmra.mrb[0].mxu0 %v10138
      %v10458 = vpop.f32.mrb[0].mxu0
      %v10459 = vadd.f32 0.0, %v10458
      %v10460 = vpop.f32.mrb[0].mxu0
      %v10461 = vpop.f32.mrb[0].mxu0
      %v10462 = vadd.f32 0.0, %v10461
      %v10463 = vpop.f32.mrb[0].mxu0
      %10464 = vmatprep.mubr.bf16.mxu0 0
      %10465 = vmatmul.mubr.bf16.gmra.mrb[0].mxu0 %v10141
      %v10466 = vpop.f32.mrb[0].mxu0
      %v10467 = vadd.f32 0.0, %v10466
      %v10468 = vpop.f32.mrb[0].mxu0
      %v10469 = vpop.f32.mrb[0].mxu0
      %v10470 = vadd.f32 0.0, %v10469
      %v10471 = vpop.f32.mrb[0].mxu0
      %10472 = vmatprep.mubr.bf16.mxu0 0
      %10473 = vmatmul.mubr.bf16.gmra.mrb[0].mxu0 %v10144
      %v10474 = vpop.f32.mrb[0].mxu0
      %v10475 = vadd.f32 0.0, %v10474
      %v10476 = vpop.f32.mrb[0].mxu0
      %v10477 = vpop.f32.mrb[0].mxu0
      %v10478 = vadd.f32 0.0, %v10477
      %v10479 = vpop.f32.mrb[0].mxu0
      %10480 = vmatprep.mubr.bf16.mxu0 0
      %10481 = vmatmul.mubr.bf16.gmra.mrb[0].mxu0 %v10147
      %v10482 = vpop.f32.mrb[0].mxu0
      %v10483 = vadd.f32 0.0, %v10482
      %v10484 = vpop.f32.mrb[0].mxu0
      %v10485 = vpop.f32.mrb[0].mxu0
      %v10486 = vadd.f32 0.0, %v10485
      %v10487 = vpop.f32.mrb[0].mxu0
      %10488 = vmatprep.mubr.bf16.mxu0 0
      %10489 = vmatmul.mubr.bf16.gmra.mrb[0].mxu0 %v10150
      %v10490 = vpop.f32.mrb[0].mxu0
      %v10491 = vadd.f32 0.0, %v10490
      %v10492 = vpop.f32.mrb[0].mxu0
      %v10493 = vpop.f32.mrb[0].mxu0
      %v10494 = vadd.f32 0.0, %v10493
      %v10495 = vpop.f32.mrb[0].mxu0
      %10496 = vmatprep.mubr.bf16.mxu0 0
      %10497 = vmatmul.mubr.bf16.gmra.mrb[0].mxu0 %v10153
      %v10498 = vpop.f32.mrb[0].mxu0
      %v10499 = vadd.f32 0.0, %v10498
      %v10500 = vpop.f32.mrb[0].mxu0
      %v10501 = vpop.f32.mrb[0].mxu0
      %v10502 = vadd.f32 0.0, %v10501
      %v10503 = vpop.f32.mrb[0].mxu0
      %10504 = vmatprep.mubr.bf16.mxu0 0
      %10505 = vmatmul.mubr.bf16.gmra.mrb[0].mxu0 %v10156
      %v10506 = vpop.f32.mrb[0].mxu0
      %v10507 = vadd.f32 0.0, %v10506
      %v10508 = vpop.f32.mrb[0].mxu0
      %v10509 = vpop.f32.mrb[0].mxu0
      %v10510 = vadd.f32 0.0, %v10509
      %v10511 = vpop.f32.mrb[0].mxu0
      %10512 = vmatprep.mubr.bf16.mxu0 0
      %10513 = vmatmul.mubr.bf16.gmra.mrb[0].mxu0 %v10159
      %v10514 = vpop.f32.mrb[0].mxu0
      %v10515 = vadd.f32 0.0, %v10514
      %v10516 = vpop.f32.mrb[0].mxu0
      %v10517 = vpop.f32.mrb[0].mxu0
      %v10518 = vadd.f32 0.0, %v10517
      %v10519 = vpop.f32.mrb[0].mxu0
      %10520 = vmatprep.mubr.bf16.mxu0 0
      %10521 = vmatmul.mubr.bf16.gmra.mrb[0].mxu0 %v10162
      %v10522 = vpop.f32.mrb[0].mxu0
      %v10523 = vadd.f32 0.0, %v10522
      %v10524 = vpop.f32.mrb[0].mxu0
      %v10525 = vpop.f32.mrb[0].mxu0
      %v10526 = vadd.f32 0.0, %v10525
      %v10527 = vpop.f32.mrb[0].mxu0
      %10528 = vmatprep.mubr.bf16.mxu0 0
      %10529 = vmatmul.mubr.bf16.gmra.mrb[0].mxu0 %v10165
      %v10530 = vpop.f32.mrb[0].mxu0
      %v10531 = vadd.f32 0.0, %v10530
      %v10532 = vpop.f32.mrb[0].mxu0
      %v10533 = vpop.f32.mrb[0].mxu0
      %v10534 = vadd.f32 0.0, %v10533
      %v10535 = vpop.f32.mrb[0].mxu0
      %10536 = vmatprep.mubr.bf16.mxu0 0
      %10537 = vmatmul.mubr.bf16.gmra.mrb[0].mxu0 %v10168
      %v10538 = vpop.f32.mrb[0].mxu0
      %v10539 = vadd.f32 0.0, %v10538
      %v10540 = vpop.f32.mrb[0].mxu0
      %v10541 = vpop.f32.mrb[0].mxu0
      %v10542 = vadd.f32 0.0, %v10541
      %v10543 = vpop.f32.mrb[0].mxu0
      %10544 = vmatprep.mubr.bf16.mxu0 0
      %10545 = vmatmul.mubr.bf16.gmra.mrb[0].mxu0 %v10171
      %v10546 = vpop.f32.mrb[0].mxu0
      %v10547 = vadd.f32 0.0, %v10546
      %v10548 = vpop.f32.mrb[0].mxu0
      %v10549 = vpop.f32.mrb[0].mxu0
      %v10550 = vadd.f32 0.0, %v10549
      %v10551 = vpop.f32.mrb[0].mxu0
      %10552 = vmatprep.mubr.bf16.mxu0 0
      %10553 = vmatmul.mubr.bf16.gmra.mrb[0].mxu0 %v10174
      %v10554 = vpop.f32.mrb[0].mxu0
      %v10555 = vadd.f32 0.0, %v10554
      %v10556 = vpop.f32.mrb[0].mxu0
      %v10557 = vpop.f32.mrb[0].mxu0
      %v10558 = vadd.f32 0.0, %v10557
      %v10559 = vpop.f32.mrb[0].mxu0
      %10560 = vmatprep.mubr.bf16.mxu0 0
      %10561 = vmatmul.mubr.bf16.gmra.mrb[0].mxu0 %v10177
      %v10562 = vpop.f32.mrb[0].mxu0
      %v10563 = vadd.f32 0.0, %v10562
      %v10564 = vpop.f32.mrb[0].mxu0
      %v10565 = vpop.f32.mrb[0].mxu0
      %v10566 = vadd.f32 0.0, %v10565
      %v10567 = vpop.f32.mrb[0].mxu0
      %10568 = vmatprep.mubr.bf16.mxu0 0
      %10569 = vmatmul.mubr.bf16.gmra.mrb[0].mxu0 %v10180
      %v10570 = vpop.f32.mrb[0].mxu0
      %v10571 = vadd.f32 0.0, %v10570
      %v10572 = vpop.f32.mrb[0].mxu0
      %v10573 = vpop.f32.mrb[0].mxu0
      %v10574 = vadd.f32 0.0, %v10573
      %v10575 = vpop.f32.mrb[0].mxu0
      %10576 = vmatprep.mubr.bf16.mxu0 0
      %10577 = vmatmul.mubr.bf16.gmra.mrb[0].mxu0 %v10183
      %v10578 = vpop.f32.mrb[0].mxu0
      %v10579 = vadd.f32 0.0, %v10578
      %v10580 = vpop.f32.mrb[0].mxu0
      %v10581 = vpop.f32.mrb[0].mxu0
      %v10582 = vadd.f32 0.0, %v10581
      %v10583 = vpop.f32.mrb[0].mxu0
      %10584 = vmatprep.mubr.bf16.mxu0 0
      %10585 = vmatmul.mubr.bf16.gmra.mrb[0].mxu0 %v10186
      %v10586 = vpop.f32.mrb[0].mxu0
      %v10587 = vadd.f32 0.0, %v10586
      %v10588 = vpop.f32.mrb[0].mxu0
      %v10589 = vpop.f32.mrb[0].mxu0
      %v10590 = vadd.f32 0.0, %v10589
      %v10591 = vpop.f32.mrb[0].mxu0
      %10592 = vmatprep.mubr.bf16.mxu0 0
      %10593 = vmatmul.mubr.bf16.gmra.mrb[0].mxu0 %v10189
      %v10594 = vpop.f32.mrb[0].mxu0
      %v10595 = vadd.f32 0.0, %v10594
      %v10596 = vpop.f32.mrb[0].mxu0
      %v10597 = vpop.f32.mrb[0].mxu0
      %v10598 = vadd.f32 0.0, %v10597
      %v10599 = vpop.f32.mrb[0].mxu0
      %10600 = vmatprep.mubr.bf16.mxu0 0
      %10601 = vmatmul.mubr.bf16.gmra.mrb[0].mxu0 %v10192
      %v10602 = vpop.f32.mrb[0].mxu0
      %v10603 = vadd.f32 0.0, %v10602
      %v10604 = vpop.f32.mrb[0].mxu0
      %v10605 = vpop.f32.mrb[0].mxu0
      %v10606 = vadd.f32 0.0, %v10605
      %v10607 = vpop.f32.mrb[0].mxu0
      %10608 = vmatprep.mubr.bf16.mxu0 0
      %10609 = vmatmul.mubr.bf16.gmra.mrb[0].mxu0 %v10195
      %v10610 = vpop.f32.mrb[0].mxu0
      %v10611 = vadd.f32 0.0, %v10610
      %v10612 = vpop.f32.mrb[0].mxu0
      %v10613 = vpop.f32.mrb[0].mxu0
      %v10614 = vadd.f32 0.0, %v10613
      %v10615 = vpop.f32.mrb[0].mxu0
      %10616 = vmatprep.mubr.bf16.mxu0 0
      %10617 = vmatmul.mubr.bf16.gmra.mrb[0].mxu0 %v10198
      %v10618 = vpop.f32.mrb[0].mxu0
      %v10619 = vadd.f32 0.0, %v10618
      %v10620 = vpop.f32.mrb[0].mxu0
      %v10621 = vpop.f32.mrb[0].mxu0
      %v10622 = vadd.f32 0.0, %v10621
      %v10623 = vpop.f32.mrb[0].mxu0
      %10624 = vmatprep.mubr.bf16.mxu0 0
      %10625 = vmatmul.mubr.bf16.gmra.mrb[0].mxu0 %v10201
      %v10626 = vpop.f32.mrb[0].mxu0
      %v10627 = vadd.f32 0.0, %v10626
      %v10628 = vpop.f32.mrb[0].mxu0
      %v10629 = vpop.f32.mrb[0].mxu0
      %v10630 = vadd.f32 0.0, %v10629
      %v10631 = vpop.f32.mrb[0].mxu0
      %10632 = vmatprep.mubr.bf16.mxu0 0
      %10633 = vmatmul.mubr.bf16.gmra.mrb[0].mxu0 %v10204
      %v10634 = vpop.f32.mrb[0].mxu0
      %v10635 = vadd.f32 0.0, %v10634
      %v10636 = vpop.f32.mrb[0].mxu0
      %v10637 = vpop.f32.mrb[0].mxu0
      %v10638 = vadd.f32 0.0, %v10637
      %v10639 = vpop.f32.mrb[0].mxu0
      %10640 = vmatprep.mubr.bf16.mxu0 0
      %10641 = vmatmul.mubr.bf16.gmra.mrb[0].mxu0 %v10207
      %v10642 = vpop.f32.mrb[0].mxu0
      %v10643 = vadd.f32 0.0, %v10642
      %v10644 = vpop.f32.mrb[0].mxu0
      %v10645 = vpop.f32.mrb[0].mxu0
      %v10646 = vadd.f32 0.0, %v10645
      %v10647 = vpop.f32.mrb[0].mxu0
      %10648 = vmatprep.mubr.bf16.mxu0 0
      %10649 = vmatmul.mubr.bf16.gmra.mrb[0].mxu0 %v10210
      %v10650 = vpop.f32.mrb[0].mxu0
      %v10651 = vadd.f32 0.0, %v10650
      %v10652 = vpop.f32.mrb[0].mxu0
      %v10653 = vpop.f32.mrb[0].mxu0
      %v10654 = vadd.f32 0.0, %v10653
      %v10655 = vpop.f32.mrb[0].mxu0
      %10656 = vmatprep.mubr.bf16.mxu0 0
      %10657 = vmatmul.mubr.bf16.gmra.mrb[0].mxu0 %v10213
      %v10658 = vpop.f32.mrb[0].mxu0
      %v10659 = vadd.f32 0.0, %v10658
      %v10660 = vpop.f32.mrb[0].mxu0
      %v10661 = vpop.f32.mrb[0].mxu0
      %v10662 = vadd.f32 0.0, %v10661
      %v10663 = vpop.f32.mrb[0].mxu0
      %10664 = vmatprep.mubr.bf16.mxu0 0
      %10665 = vmatmul.mubr.bf16.gmra.mrb[0].mxu0 %v10216
      %v10666 = vpop.f32.mrb[0].mxu0
      %v10667 = vadd.f32 0.0, %v10666
      %v10668 = vpop.f32.mrb[0].mxu0
      %v10669 = vpop.f32.mrb[0].mxu0
      %v10670 = vadd.f32 0.0, %v10669
      %v10671 = vpop.f32.mrb[0].mxu0
      %10672 = vmatprep.mubr.bf16.mxu0 0
      %10673 = vmatmul.mubr.bf16.gmra.mrb[0].mxu0 %v10219
      %v10674 = vpop.f32.mrb[0].mxu0
      %v10675 = vadd.f32 0.0, %v10674
      %v10676 = vpop.f32.mrb[0].mxu0
      %v10677 = vpop.f32.mrb[0].mxu0
      %v10678 = vadd.f32 0.0, %v10677
      %v10679 = vpop.f32.mrb[0].mxu0
      %10680 = vmatprep.mubr.bf16.mxu0 0
      %10681 = vmatmul.mubr.bf16.gmra.mrb[0].mxu0 %v10222
      %v10682 = vpop.f32.mrb[0].mxu0
      %v10683 = vadd.f32 0.0, %v10682
      %v10684 = vpop.f32.mrb[0].mxu0
      %v10685 = vpop.f32.mrb[0].mxu0
      %v10686 = vadd.f32 0.0, %v10685
      %v10687 = vpop.f32.mrb[0].mxu0
      %10688 = vmatprep.mubr.bf16.mxu0 0
      %10689 = vmatmul.mubr.bf16.gmra.mrb[0].mxu0 %v10225
      %v10690 = vpop.f32.mrb[0].mxu0
      %v10691 = vadd.f32 0.0, %v10690
      %v10692 = vpop.f32.mrb[0].mxu0
      %v10693 = vpop.f32.mrb[0].mxu0
      %v10694 = vadd.f32 0.0, %v10693
      %v10695 = vpop.f32.mrb[0].mxu0
      %10696 = vmatprep.mubr.bf16.mxu0 0
      %10697 = vmatmul.mubr.bf16.gmra.mrb[0].mxu0 %v10228
      %v10698 = vpop.f32.mrb[0].mxu0
      %v10699 = vadd.f32 0.0, %v10698
      %v10700 = vpop.f32.mrb[0].mxu0
      %v10701 = vpop.f32.mrb[0].mxu0
      %v10702 = vadd.f32 0.0, %v10701
      %v10703 = vpop.f32.mrb[0].mxu0
      %10704 = vmatprep.mubr.bf16.mxu0 0
      %10705 = vmatmul.mubr.bf16.gmra.mrb[0].mxu0 %v10231
      %v10706 = vpop.f32.mrb[0].mxu0
      %v10707 = vadd.f32 0.0, %v10706
      %v10708 = vpop.f32.mrb[0].mxu0
      %v10709 = vpop.f32.mrb[0].mxu0
      %v10710 = vadd.f32 0.0, %v10709
      %v10711 = vpop.f32.mrb[0].mxu0
      %10712 = vmatprep.mubr.bf16.mxu0 0
      %10713 = vmatmul.mubr.bf16.gmra.mrb[0].mxu0 %v10234
      %v10714 = vpop.f32.mrb[0].mxu0
      %v10715 = vadd.f32 0.0, %v10714
      %v10716 = vpop.f32.mrb[0].mxu0
      %v10717 = vpop.f32.mrb[0].mxu0
      %v10718 = vadd.f32 0.0, %v10717
      %v10719 = vpop.f32.mrb[0].mxu0
      %10720 = vmatprep.mubr.bf16.mxu0 0
      %10721 = vmatmul.mubr.bf16.gmra.mrb[0].mxu0 %v10237
      %v10722 = vpop.f32.mrb[0].mxu0
      %v10723 = vadd.f32 0.0, %v10722
      %v10724 = vpop.f32.mrb[0].mxu0
      %v10725 = vpop.f32.mrb[0].mxu0
      %v10726 = vadd.f32 0.0, %v10725
      %v10727 = vpop.f32.mrb[0].mxu0
      %10728 = vmatprep.mubr.bf16.mxu0 0
      %10729 = vmatmul.mubr.bf16.gmra.mrb[0].mxu0 %v10240
      %v10730 = vpop.f32.mrb[0].mxu0
      %v10731 = vadd.f32 0.0, %v10730
      %v10732 = vpop.f32.mrb[0].mxu0
      %v10733 = vpop.f32.mrb[0].mxu0
      %v10734 = vadd.f32 0.0, %v10733
      %v10735 = vpop.f32.mrb[0].mxu0
      %10736 = vmatprep.mubr.bf16.mxu0 0
      %10737 = vmatmul.mubr.bf16.gmra.mrb[0].mxu0 %v10243
      %v10738 = vpop.f32.mrb[0].mxu0
      %v10739 = vadd.f32 0.0, %v10738
      %v10740 = vpop.f32.mrb[0].mxu0
      %v10741 = vpop.f32.mrb[0].mxu0
      %v10742 = vadd.f32 0.0, %v10741
      %v10743 = vpop.f32.mrb[0].mxu0
      %10744 = vmatprep.mubr.bf16.mxu0 0
      %10745 = vmatmul.mubr.bf16.gmra.mrb[0].mxu0 %v10246
      %v10746 = vpop.f32.mrb[0].mxu0
      %v10747 = vadd.f32 0.0, %v10746
      %v10748 = vpop.f32.mrb[0].mxu0
      %v10749 = vpop.f32.mrb[0].mxu0
      %v10750 = vadd.f32 0.0, %v10749
      %v10751 = vpop.f32.mrb[0].mxu0
      %10752 = vmatprep.mubr.bf16.mxu0 0
      %10753 = vmatmul.mubr.bf16.gmra.mrb[0].mxu0 %v10249
      %v10754 = vpop.f32.mrb[0].mxu0
      %v10755 = vadd.f32 0.0, %v10754
      %v10756 = vpop.f32.mrb[0].mxu0
      %v10757 = vpop.f32.mrb[0].mxu0
      %v10758 = vadd.f32 0.0, %v10757
      %v10759 = vpop.f32.mrb[0].mxu0
      %10760 = vmatprep.mubr.bf16.mxu0 0
      %10761 = vmatmul.mubr.bf16.gmra.mrb[0].mxu0 %v10252
      %v10762 = vpop.f32.mrb[0].mxu0
      %v10763 = vadd.f32 0.0, %v10762
      %v10764 = vpop.f32.mrb[0].mxu0
      %v10765 = vpop.f32.mrb[0].mxu0
      %v10766 = vadd.f32 0.0, %v10765
      %v10767 = vpop.f32.mrb[0].mxu0
      %10768 = vmatprep.mubr.bf16.mxu0 0
      %10769 = vmatmul.mubr.bf16.gmra.mrb[0].mxu0 %v10255
      %v10770 = vpop.f32.mrb[0].mxu0
      %v10771 = vadd.f32 0.0, %v10770
      %v10772 = vpop.f32.mrb[0].mxu0
      %v10773 = vpop.f32.mrb[0].mxu0
      %v10774 = vadd.f32 0.0, %v10773
      %v10775 = vpop.f32.mrb[0].mxu0
      %10776 = vmatprep.mubr.bf16.mxu0 0
      %10777 = vmatmul.mubr.bf16.gmra.mrb[0].mxu0 %v10258
      %v10778 = vpop.f32.mrb[0].mxu0
      %v10779 = vadd.f32 0.0, %v10778
      %v10780 = vpop.f32.mrb[0].mxu0
      %v10781 = vpop.f32.mrb[0].mxu0
      %v10782 = vadd.f32 0.0, %v10781
      %v10783 = vpop.f32.mrb[0].mxu0
      %10784 = vmatprep.mubr.bf16.mxu0 0
      %10785 = vmatmul.mubr.bf16.gmra.mrb[0].mxu0 %v10261
      %v10786 = vpop.f32.mrb[0].mxu0
      %v10787 = vadd.f32 0.0, %v10786
      %v10788 = vpop.f32.mrb[0].mxu0
      %v10789 = vpop.f32.mrb[0].mxu0
      %v10790 = vadd.f32 0.0, %v10789
      %v10791 = vpop.f32.mrb[0].mxu0
      %10792 = vmatprep.mubr.bf16.mxu0 0
      %10793 = vmatmul.mubr.bf16.gmra.mrb[0].mxu0 %v10264
      %v10794 = vpop.f32.mrb[0].mxu0
      %v10795 = vadd.f32 0.0, %v10794
      %v10796 = vpop.f32.mrb[0].mxu0
      %v10797 = vpop.f32.mrb[0].mxu0
      %v10798 = vadd.f32 0.0, %v10797
      %v10799 = vpop.f32.mrb[0].mxu0
      %10800 = vmatprep.mubr.bf16.mxu0 0
      %10801 = vmatmul.mubr.bf16.gmra.mrb[0].mxu0 %v10267
      %v10802 = vpop.f32.mrb[0].mxu0
      %v10803 = vadd.f32 0.0, %v10802
      %v10804 = vpop.f32.mrb[0].mxu0
      %v10805 = vpop.f32.mrb[0].mxu0
      %v10806 = vadd.f32 0.0, %v10805
      %v10807 = vpop.f32.mrb[0].mxu0
      %10808 = vmatprep.mubr.bf16.mxu0 0
      %10809 = vmatmul.mubr.bf16.gmra.mrb[0].mxu0 %v10270
      %v10810 = vpop.f32.mrb[0].mxu0
      %v10811 = vadd.f32 0.0, %v10810
      %v10812 = vpop.f32.mrb[0].mxu0
      %v10813 = vpop.f32.mrb[0].mxu0
      %v10814 = vadd.f32 0.0, %v10813
      %v10815 = vpop.f32.mrb[0].mxu0
      %10816 = vmatprep.mubr.bf16.mxu0 0
      %10817 = vmatmul.mubr.bf16.gmra.mrb[0].mxu0 %v10273
      %v10818 = vpop.f32.mrb[0].mxu0
      %v10819 = vadd.f32 0.0, %v10818
      %v10820 = vpop.f32.mrb[0].mxu0
      %v10821 = vpop.f32.mrb[0].mxu0
      %v10822 = vadd.f32 0.0, %v10821
      %v10823 = vpop.f32.mrb[0].mxu0
      %10824 = vmatprep.mubr.bf16.mxu0 0
      %10825 = vmatmul.mubr.bf16.gmra.mrb[0].mxu0 %v10276
      %v10826 = vpop.f32.mrb[0].mxu0
      %v10827 = vadd.f32 0.0, %v10826
      %v10828 = vpop.f32.mrb[0].mxu0
      %v10829 = vpop.f32.mrb[0].mxu0
      %v10830 = vadd.f32 0.0, %v10829
      %v10831 = vpop.f32.mrb[0].mxu0
      %10832 = vmatprep.mubr.bf16.mxu0 0
      %10833 = vmatmul.mubr.bf16.gmra.mrb[0].mxu0 %v10279
      %v10834 = vpop.f32.mrb[0].mxu0
      %v10835 = vadd.f32 0.0, %v10834
      %v10836 = vpop.f32.mrb[0].mxu0
      %v10837 = vpop.f32.mrb[0].mxu0
      %v10838 = vadd.f32 0.0, %v10837
      %v10839 = vpop.f32.mrb[0].mxu0
      %10840 = vmatprep.mubr.bf16.mxu0 0
      %10841 = vmatmul.mubr.bf16.gmra.mrb[0].mxu0 %v10282
      %v10842 = vpop.f32.mrb[0].mxu0
      %v10843 = vadd.f32 0.0, %v10842
      %v10844 = vpop.f32.mrb[0].mxu0
      %v10845 = vpop.f32.mrb[0].mxu0
      %v10846 = vadd.f32 0.0, %v10845
      %v10847 = vpop.f32.mrb[0].mxu0
      %10848 = vmatprep.mubr.bf16.mxu0 0
      %10849 = vmatmul.mubr.bf16.gmra.mrb[0].mxu0 %v10285
      %v10850 = vpop.f32.mrb[0].mxu0
      %v10851 = vadd.f32 0.0, %v10850
      %v10852 = vpop.f32.mrb[0].mxu0
      %v10853 = vpop.f32.mrb[0].mxu0
      %v10854 = vadd.f32 0.0, %v10853
      %v10855 = vpop.f32.mrb[0].mxu0
      %10856 = vmatprep.mubr.bf16.mxu0 0
      %10857 = vmatmul.mubr.bf16.gmra.mrb[0].mxu0 %v10288
      %v10858 = vpop.f32.mrb[0].mxu0
      %v10859 = vadd.f32 0.0, %v10858
      %v10860 = vpop.f32.mrb[0].mxu0
      %v10861 = vpop.f32.mrb[0].mxu0
      %v10862 = vadd.f32 0.0, %v10861
      %v10863 = vpop.f32.mrb[0].mxu0
      %10864 = vmatprep.mubr.bf16.mxu0 0
      %10865 = vmatmul.mubr.bf16.gmra.mrb[0].mxu0 %v10291
      %v10866 = vpop.f32.mrb[0].mxu0
      %v10867 = vadd.f32 0.0, %v10866
      %v10868 = vpop.f32.mrb[0].mxu0
      %v10869 = vpop.f32.mrb[0].mxu0
      %v10870 = vadd.f32 0.0, %v10869
      %v10871 = vpop.f32.mrb[0].mxu0
      %10872 = vdwg.mxu0
      %v10873 = vadd.f32 %v9326, %v10331
      %v10874 = vadd.f32 %v9327, %v10334
      %v10875 = vadd.f32 %v9328, %v10339
      %v10876 = vadd.f32 %v9329, %v10342
      %v10877 = vadd.f32 %v9330, %v10347
      %v10878 = vadd.f32 %v9331, %v10350
      %v10879 = vadd.f32 %v9332, %v10355
      %v10880 = vadd.f32 %v9333, %v10358
      %v10881 = vadd.f32 %v9334, %v10363
      %v10882 = vadd.f32 %v9335, %v10366
      %v10883 = vadd.f32 %v9336, %v10371
      %v10884 = vadd.f32 %v9337, %v10374
      %v10885 = vadd.f32 %v9338, %v10379
      %v10886 = vadd.f32 %v9339, %v10382
      %v10887 = vadd.f32 %v9340, %v10387
      %v10888 = vadd.f32 %v9341, %v10390
      %v10889 = vadd.f32 %v9342, %v10395
      %v10890 = vadd.f32 %v9343, %v10398
      %v10891 = vadd.f32 %v9344, %v10403
      %v10892 = vadd.f32 %v9345, %v10406
      %v10893 = vadd.f32 %v9346, %v10411
      %v10894 = vadd.f32 %v9347, %v10414
      %v10895 = vadd.f32 %v9348, %v10419
      %v10896 = vadd.f32 %v9349, %v10422
      %v10897 = vadd.f32 %v9350, %v10427
      %v10898 = vadd.f32 %v9351, %v10430
      %v10899 = vadd.f32 %v9352, %v10435
      %v10900 = vadd.f32 %v9353, %v10438
      %v10901 = vadd.f32 %v9354, %v10443
      %v10902 = vadd.f32 %v9355, %v10446
      %v10903 = vadd.f32 %v9356, %v10451
      %v10904 = vadd.f32 %v9357, %v10454
      %v10905 = vadd.f32 %v9358, %v10459
      %v10906 = vadd.f32 %v9359, %v10462
      %v10907 = vadd.f32 %v9360, %v10467
      %v10908 = vadd.f32 %v9361, %v10470
      %v10909 = vadd.f32 %v9362, %v10475
      %v10910 = vadd.f32 %v9363, %v10478
      %v10911 = vadd.f32 %v9364, %v10483
      %v10912 = vadd.f32 %v9365, %v10486
      %v10913 = vadd.f32 %v9366, %v10491
      %v10914 = vadd.f32 %v9367, %v10494
      %v10915 = vadd.f32 %v9368, %v10499
      %v10916 = vadd.f32 %v9369, %v10502
      %v10917 = vadd.f32 %v9370, %v10507
      %v10918 = vadd.f32 %v9371, %v10510
      %v10919 = vadd.f32 %v9372, %v10515
      %v10920 = vadd.f32 %v9373, %v10518
      %v10921 = vadd.f32 %v9374, %v10523
      %v10922 = vadd.f32 %v9375, %v10526
      %v10923 = vadd.f32 %v9376, %v10531
      %v10924 = vadd.f32 %v9377, %v10534
      %v10925 = vadd.f32 %v9378, %v10539
      %v10926 = vadd.f32 %v9379, %v10542
      %v10927 = vadd.f32 %v9380, %v10547
      %v10928 = vadd.f32 %v9381, %v10550
      %v10929 = vadd.f32 %v9382, %v10555
      %v10930 = vadd.f32 %v9383, %v10558
      %v10931 = vadd.f32 %v9384, %v10563
      %v10932 = vadd.f32 %v9385, %v10566
      %v10933 = vadd.f32 %v9386, %v10571
      %v10934 = vadd.f32 %v9387, %v10574
      %v10935 = vadd.f32 %v9388, %v10579
      %v10936 = vadd.f32 %v9389, %v10582
      %v10937 = vadd.f32 %v9390, %v10587
      %v10938 = vadd.f32 %v9391, %v10590
      %v10939 = vadd.f32 %v9392, %v10595
      %v10940 = vadd.f32 %v9393, %v10598
      %v10941 = vadd.f32 %v9394, %v10603
      %v10942 = vadd.f32 %v9395, %v10606
      %v10943 = vadd.f32 %v9396, %v10611
      %v10944 = vadd.f32 %v9397, %v10614
      %v10945 = vadd.f32 %v9398, %v10619
      %v10946 = vadd.f32 %v9399, %v10622
      %v10947 = vadd.f32 %v9400, %v10627
      %v10948 = vadd.f32 %v9401, %v10630
      %v10949 = vadd.f32 %v9402, %v10635
      %v10950 = vadd.f32 %v9403, %v10638
      %v10951 = vadd.f32 %v9404, %v10643
      %v10952 = vadd.f32 %v9405, %v10646
      %v10953 = vadd.f32 %v9406, %v10651
      %v10954 = vadd.f32 %v9407, %v10654
      %v10955 = vadd.f32 %v9408, %v10659
      %v10956 = vadd.f32 %v9409, %v10662
      %v10957 = vadd.f32 %v9410, %v10667
      %v10958 = vadd.f32 %v9411, %v10670
      %v10959 = vadd.f32 %v9412, %v10675
      %v10960 = vadd.f32 %v9413, %v10678
      %v10961 = vadd.f32 %v9414, %v10683
      %v10962 = vadd.f32 %v9415, %v10686
      %v10963 = vadd.f32 %v9416, %v10691
      %v10964 = vadd.f32 %v9417, %v10694
      %v10965 = vadd.f32 %v9418, %v10699
      %v10966 = vadd.f32 %v9419, %v10702
      %v10967 = vadd.f32 %v9420, %v10707
      %v10968 = vadd.f32 %v9421, %v10710
      %v10969 = vadd.f32 %v9422, %v10715
      %v10970 = vadd.f32 %v9423, %v10718
      %v10971 = vadd.f32 %v9424, %v10723
      %v10972 = vadd.f32 %v9425, %v10726
      %v10973 = vadd.f32 %v9426, %v10731
      %v10974 = vadd.f32 %v9427, %v10734
      %v10975 = vadd.f32 %v9428, %v10739
      %v10976 = vadd.f32 %v9429, %v10742
      %v10977 = vadd.f32 %v9430, %v10747
      %v10978 = vadd.f32 %v9431, %v10750
      %v10979 = vadd.f32 %v9432, %v10755
      %v10980 = vadd.f32 %v9433, %v10758
      %v10981 = vadd.f32 %v9434, %v10763
      %v10982 = vadd.f32 %v9435, %v10766
      %v10983 = vadd.f32 %v9436, %v10771
      %v10984 = vadd.f32 %v9437, %v10774
      %v10985 = vadd.f32 %v9438, %v10779
      %v10986 = vadd.f32 %v9439, %v10782
      %v10987 = vadd.f32 %v9440, %v10787
      %v10988 = vadd.f32 %v9441, %v10790
      %v10989 = vadd.f32 %v9442, %v10795
      %v10990 = vadd.f32 %v9443, %v10798
      %v10991 = vadd.f32 %v9444, %v10803
      %v10992 = vadd.f32 %v9445, %v10806
      %v10993 = vadd.f32 %v9446, %v10811
      %v10994 = vadd.f32 %v9447, %v10814
      %v10995 = vadd.f32 %v9448, %v10819
      %v10996 = vadd.f32 %v9449, %v10822
      %v10997 = vadd.f32 %v9450, %v10827
      %v10998 = vadd.f32 %v9451, %v10830
      %v10999 = vadd.f32 %v9452, %v10835
      %v11000 = vadd.f32 %v9453, %v10838
      %v11001 = vadd.f32 %v9454, %v10843
      %v11002 = vadd.f32 %v9455, %v10846
      %v11003 = vadd.f32 %v9456, %v10851
      %v11004 = vadd.f32 %v9457, %v10854
      %v11005 = vadd.f32 %v9458, %v10859
      %v11006 = vadd.f32 %v9459, %v10862
      %v11007 = vadd.f32 %v9460, %v10867
      %v11008 = vadd.f32 %v9461, %v10870
      %v11009 = vld [vmem:[%s165 + $0x20] sm:$0x8]
      %s11010 = scalar_lea.vmem %s1, 16
      %v11011 = vld [vmem:[%s11010] sm:$0x3]
      %v11013 = vunpack.c.l.b16 %v11009
      %v11014 = vpack.c.b16 %v8200, %v11013
      %vm11015 = vcmask 1044480
      %v11016 = vrot.slane %v11014, 3
      %v11017 = vrot.slane %v8337, 3
      %v11018 = vsel %vm11015, %v11016, %v11017
      %v11019 = vrot.slane %v8338, 3
      %v11020 = vsel %vm11015, %v11017, %v11019
      %v11021 = vrot.slane %v8339, 3
      %v11022 = vsel %vm11015, %v11019, %v11021
      %v11023 = vrot.slane %v8340, 3
      %v11024 = vsel %vm11015, %v11021, %v11023
      %v11025 = vrot.slane %v8341, 3
      %v11026 = vsel %vm11015, %v11023, %v11025
      %v11027 = vrot.slane %v8342, 3
      %v11028 = vsel %vm11015, %v11025, %v11027
      %v11029 = vrot.slane %v8343, 3
      %v11030 = vsel %vm11015, %v11027, %v11029
      %v11031 = vrot.slane %v8344, 3
      %v11032 = vsel %vm11015, %v11029, %v11031
      %v11033 = vrot.slane %v8345, 3
      %v11034 = vsel %vm11015, %v11031, %v11033
      %v11035 = vrot.slane %v8346, 3
      %v11036 = vsel %vm11015, %v11033, %v11035
      %v11037 = vrot.slane %v8347, 3
      %v11038 = vsel %vm11015, %v11035, %v11037
      %v11039 = vrot.slane %v8348, 3
      %v11040 = vsel %vm11015, %v11037, %v11039
      %v11041 = vrot.slane %v8349, 3
      %v11042 = vsel %vm11015, %v11039, %v11041
      %v11043 = vrot.slane %v8350, 3
      %v11044 = vsel %vm11015, %v11041, %v11043
      %v11045 = vrot.slane %v8351, 3
      %v11046 = vsel %vm11015, %v11043, %v11045
      %v11047 = vrot.slane %v8352, 3
      %v11048 = vsel %vm11015, %v11045, %v11047
      %v11049 = vrot.slane %v8353, 3
      %v11050 = vsel %vm11015, %v11047, %v11049
      %v11051 = vrot.slane %v8354, 3
      %v11052 = vsel %vm11015, %v11049, %v11051
      %v11053 = vrot.slane %v8355, 3
      %v11054 = vsel %vm11015, %v11051, %v11053
      %v11055 = vrot.slane %v8356, 3
      %v11056 = vsel %vm11015, %v11053, %v11055
      %v11057 = vrot.slane %v8357, 3
      %v11058 = vsel %vm11015, %v11055, %v11057
      %v11059 = vrot.slane %v8358, 3
      %v11060 = vsel %vm11015, %v11057, %v11059
      %v11061 = vrot.slane %v8359, 3
      %v11062 = vsel %vm11015, %v11059, %v11061
      %v11063 = vrot.slane %v8360, 3
      %v11064 = vsel %vm11015, %v11061, %v11063
      %v11065 = vrot.slane %v8361, 3
      %v11066 = vsel %vm11015, %v11063, %v11065
      %v11067 = vrot.slane %v8362, 3
      %v11068 = vsel %vm11015, %v11065, %v11067
      %v11069 = vrot.slane %v8363, 3
      %v11070 = vsel %vm11015, %v11067, %v11069
      %v11071 = vrot.slane %v8364, 3
      %v11072 = vsel %vm11015, %v11069, %v11071
      %v11073 = vrot.slane %v8365, 3
      %v11074 = vsel %vm11015, %v11071, %v11073
      %v11075 = vrot.slane %v8366, 3
      %v11076 = vsel %vm11015, %v11073, %v11075
      %v11077 = vrot.slane %v8367, 3
      %v11078 = vsel %vm11015, %v11075, %v11077
      %v11079 = vrot.slane %v8368, 3
      %v11080 = vsel %vm11015, %v11077, %v11079
      %v11081 = vrot.slane %v8369, 3
      %v11082 = vsel %vm11015, %v11079, %v11081
      %v11083 = vrot.slane %v8370, 3
      %v11084 = vsel %vm11015, %v11081, %v11083
      %v11085 = vrot.slane %v8371, 3
      %v11086 = vsel %vm11015, %v11083, %v11085
      %v11087 = vrot.slane %v8372, 3
      %v11088 = vsel %vm11015, %v11085, %v11087
      %v11089 = vrot.slane %v8373, 3
      %v11090 = vsel %vm11015, %v11087, %v11089
      %v11091 = vrot.slane %v8374, 3
      %v11092 = vsel %vm11015, %v11089, %v11091
      %v11093 = vrot.slane %v8375, 3
      %v11094 = vsel %vm11015, %v11091, %v11093
      %v11095 = vrot.slane %v8376, 3
      %v11096 = vsel %vm11015, %v11093, %v11095
      %v11097 = vrot.slane %v8377, 3
      %v11098 = vsel %vm11015, %v11095, %v11097
      %v11099 = vrot.slane %v8378, 3
      %v11100 = vsel %vm11015, %v11097, %v11099
      %v11101 = vrot.slane %v8379, 3
      %v11102 = vsel %vm11015, %v11099, %v11101
      %v11103 = vrot.slane %v8380, 3
      %v11104 = vsel %vm11015, %v11101, %v11103
      %v11105 = vrot.slane %v8381, 3
      %v11106 = vsel %vm11015, %v11103, %v11105
      %v11107 = vrot.slane %v8382, 3
      %v11108 = vsel %vm11015, %v11105, %v11107
      %v11109 = vrot.slane %v8383, 3
      %v11110 = vsel %vm11015, %v11107, %v11109
      %v11111 = vrot.slane %v8384, 3
      %v11112 = vsel %vm11015, %v11109, %v11111
      %v11113 = vrot.slane %v8385, 3
      %v11114 = vsel %vm11015, %v11111, %v11113
      %v11115 = vrot.slane %v8386, 3
      %v11116 = vsel %vm11015, %v11113, %v11115
      %v11117 = vrot.slane %v8387, 3
      %v11118 = vsel %vm11015, %v11115, %v11117
      %v11119 = vrot.slane %v8388, 3
      %v11120 = vsel %vm11015, %v11117, %v11119
      %v11121 = vrot.slane %v8389, 3
      %v11122 = vsel %vm11015, %v11119, %v11121
      %v11123 = vrot.slane %v8390, 3
      %v11124 = vsel %vm11015, %v11121, %v11123
      %v11125 = vrot.slane %v8391, 3
      %v11126 = vsel %vm11015, %v11123, %v11125
      %v11127 = vrot.slane %v8392, 3
      %v11128 = vsel %vm11015, %v11125, %v11127
      %v11129 = vrot.slane %v8393, 3
      %v11130 = vsel %vm11015, %v11127, %v11129
      %v11131 = vrot.slane %v8394, 3
      %v11132 = vsel %vm11015, %v11129, %v11131
      %v11133 = vrot.slane %v8395, 3
      %v11134 = vsel %vm11015, %v11131, %v11133
      %v11135 = vrot.slane %v8396, 3
      %v11136 = vsel %vm11015, %v11133, %v11135
      %v11137 = vrot.slane %v8397, 3
      %v11138 = vsel %vm11015, %v11135, %v11137
      %v11139 = vrot.slane %v8398, 3
      %v11140 = vsel %vm11015, %v11137, %v11139
      %v11141 = vrot.slane %v8399, 3
      %v11142 = vsel %vm11015, %v11139, %v11141
      %v11143 = vrot.slane %v8400, 3
      %v11144 = vsel %vm11015, %v11141, %v11143
      %v11145 = vrot.slane %v8401, 3
      %v11146 = vsel %vm11015, %v11143, %v11145
      %v11147 = vrot.slane %v8402, 3
      %v11148 = vsel %vm11015, %v11145, %v11147
      %v11149 = vrot.slane %v8403, 3
      %v11150 = vsel %vm11015, %v11147, %v11149
      %v11151 = vrot.slane %v9467, 3
      %v11152 = vsel %vm11015, %v11149, %v11151
      %v11154 = vsel %vm1204, %v11018, 0
      %v11157 = vsel %vm1204, %v11020, 0
      %v11160 = vsel %vm1204, %v11022, 0
      %v11163 = vsel %vm1204, %v11024, 0
      %v11166 = vsel %vm1204, %v11026, 0
      %v11169 = vsel %vm1204, %v11028, 0
      %v11172 = vsel %vm1204, %v11030, 0
      %v11175 = vsel %vm1204, %v11032, 0
      %v11178 = vsel %vm1204, %v11034, 0
      %v11181 = vsel %vm1204, %v11036, 0
      %v11184 = vsel %vm1204, %v11038, 0
      %v11187 = vsel %vm1204, %v11040, 0
      %v11190 = vsel %vm1204, %v11042, 0
      %v11193 = vsel %vm1204, %v11044, 0
      %v11196 = vsel %vm1204, %v11046, 0
      %v11199 = vsel %vm1204, %v11048, 0
      %v11202 = vsel %vm1204, %v11050, 0
      %v11205 = vsel %vm1204, %v11052, 0
      %v11208 = vsel %vm1204, %v11054, 0
      %v11211 = vsel %vm1204, %v11056, 0
      %v11214 = vsel %vm1204, %v11058, 0
      %v11217 = vsel %vm1204, %v11060, 0
      %v11220 = vsel %vm1204, %v11062, 0
      %v11223 = vsel %vm1204, %v11064, 0
      %v11226 = vsel %vm1204, %v11066, 0
      %v11229 = vsel %vm1204, %v11068, 0
      %v11232 = vsel %vm1204, %v11070, 0
      %v11235 = vsel %vm1204, %v11072, 0
      %v11238 = vsel %vm1204, %v11074, 0
      %v11241 = vsel %vm1204, %v11076, 0
      %v11244 = vsel %vm1204, %v11078, 0
      %v11247 = vsel %vm1204, %v11080, 0
      %v11250 = vsel %vm1204, %v11082, 0
      %v11253 = vsel %vm1204, %v11084, 0
      %v11256 = vsel %vm1204, %v11086, 0
      %v11259 = vsel %vm1204, %v11088, 0
      %v11262 = vsel %vm1204, %v11090, 0
      %v11265 = vsel %vm1204, %v11092, 0
      %v11268 = vsel %vm1204, %v11094, 0
      %v11271 = vsel %vm1204, %v11096, 0
      %v11274 = vsel %vm1204, %v11098, 0
      %v11277 = vsel %vm1204, %v11100, 0
      %v11280 = vsel %vm1204, %v11102, 0
      %v11283 = vsel %vm1204, %v11104, 0
      %v11286 = vsel %vm1204, %v11106, 0
      %v11289 = vsel %vm1204, %v11108, 0
      %v11292 = vsel %vm1204, %v11110, 0
      %v11295 = vsel %vm1204, %v11112, 0
      %v11298 = vsel %vm1204, %v11114, 0
      %v11301 = vsel %vm1204, %v11116, 0
      %v11304 = vsel %vm1204, %v11118, 0
      %v11307 = vsel %vm1204, %v11120, 0
      %v11310 = vsel %vm1204, %v11122, 0
      %v11313 = vsel %vm1204, %v11124, 0
      %v11316 = vsel %vm1204, %v11126, 0
      %v11319 = vsel %vm1204, %v11128, 0
      %v11322 = vsel %vm1204, %v11130, 0
      %v11325 = vsel %vm1204, %v11132, 0
      %v11328 = vsel %vm1204, %v11134, 0
      %v11331 = vsel %vm1204, %v11136, 0
      %v11334 = vsel %vm1204, %v11138, 0
      %v11337 = vsel %vm1204, %v11140, 0
      %v11340 = vsel %vm1204, %v11142, 0
      %v11343 = vsel %vm1204, %v11144, 0
      %v11346 = vsel %vm1204, %v11146, 0
      %v11349 = vsel %vm1204, %v11148, 0
      %v11352 = vsel %vm1204, %v11150, 0
      %v11355 = vsel %vm1204, %v11152, 0
      %v11358 = vand.u32 %v11011, %v1412
      %11360 = vmatprep.subr.bf16.mxu0 0
      %11361 = vmatpush1.bf16.msra.mxu0 %v11358
      %11362 = vmatprep.subr.bf16.mxu0 0
      %11363 = vmatpush1.bf16.msra.mxu0 0
      %11364 = vmatprep.subr.bf16.mxu0 0
      %11365 = vmatpush1.bf16.msra.mxu0 0
      %11366 = vmatprep.subr.bf16.mxu0 0
      %11367 = vmatpush1.bf16.msra.mxu0 0
      %11368 = vmatprep.subr.bf16.mxu0 0
      %11369 = vmatpush1.bf16.msra.mxu0 0
      %11370 = vmatprep.subr.bf16.mxu0 0
      %11371 = vmatpush1.bf16.msra.mxu0 0
      %11372 = vmatprep.subr.bf16.mxu0 0
      %11373 = vmatpush1.bf16.msra.mxu0 0
      %11374 = vmatprep.subr.bf16.mxu0 0
      %11375 = vmatpush1.bf16.msra.mxu0 0
      %11376 = vmatprep.subr.bf16.mxu0 0
      %11377 = vmatpush1.bf16.msra.mxu0 0
      %11378 = vmatprep.subr.bf16.mxu0 0
      %11379 = vmatpush1.bf16.msra.mxu0 0
      %11380 = vmatprep.subr.bf16.mxu0 0
      %11381 = vmatpush1.bf16.msra.mxu0 0
      %11382 = vmatprep.subr.bf16.mxu0 0
      %11383 = vmatpush1.bf16.msra.mxu0 0
      %11384 = vmatprep.subr.bf16.mxu0 0
      %11385 = vmatpush1.bf16.msra.mxu0 0
      %11386 = vmatprep.subr.bf16.mxu0 0
      %11387 = vmatpush1.bf16.msra.mxu0 0
      %11388 = vmatprep.subr.bf16.mxu0 0
      %11389 = vmatpush1.bf16.msra.mxu0 0
      %11390 = vmatprep.subr.bf16.mxu0 0
      %11391 = vmatpush1.bf16.msra.mxu0 0
      %11392 = vmatprep.mubr.bf16.mxu0 0
      %11393 = vmatmul.mubr.bf16.gmra.mrb[0].mxu0 %v11154
      %v11394 = vpop.f32.mrb[0].mxu0
      %v11395 = vadd.f32 0.0, %v11394
      %v11396 = vpop.f32.mrb[0].mxu0
      %v11397 = vpop.f32.mrb[0].mxu0
      %v11398 = vadd.f32 0.0, %v11397
      %v11399 = vpop.f32.mrb[0].mxu0
      %11400 = vmatprep.mubr.bf16.mxu0 0
      %11401 = vmatmul.mubr.bf16.gmra.mrb[0].mxu0 %v11157
      %v11402 = vpop.f32.mrb[0].mxu0
      %v11403 = vadd.f32 0.0, %v11402
      %v11404 = vpop.f32.mrb[0].mxu0
      %v11405 = vpop.f32.mrb[0].mxu0
      %v11406 = vadd.f32 0.0, %v11405
      %v11407 = vpop.f32.mrb[0].mxu0
      %11408 = vmatprep.mubr.bf16.mxu0 0
      %11409 = vmatmul.mubr.bf16.gmra.mrb[0].mxu0 %v11160
      %v11410 = vpop.f32.mrb[0].mxu0
      %v11411 = vadd.f32 0.0, %v11410
      %v11412 = vpop.f32.mrb[0].mxu0
      %v11413 = vpop.f32.mrb[0].mxu0
      %v11414 = vadd.f32 0.0, %v11413
      %v11415 = vpop.f32.mrb[0].mxu0
      %11416 = vmatprep.mubr.bf16.mxu0 0
      %11417 = vmatmul.mubr.bf16.gmra.mrb[0].mxu0 %v11163
      %v11418 = vpop.f32.mrb[0].mxu0
      %v11419 = vadd.f32 0.0, %v11418
      %v11420 = vpop.f32.mrb[0].mxu0
      %v11421 = vpop.f32.mrb[0].mxu0
      %v11422 = vadd.f32 0.0, %v11421
      %v11423 = vpop.f32.mrb[0].mxu0
      %11424 = vmatprep.mubr.bf16.mxu0 0
      %11425 = vmatmul.mubr.bf16.gmra.mrb[0].mxu0 %v11166
      %v11426 = vpop.f32.mrb[0].mxu0
      %v11427 = vadd.f32 0.0, %v11426
      %v11428 = vpop.f32.mrb[0].mxu0
      %v11429 = vpop.f32.mrb[0].mxu0
      %v11430 = vadd.f32 0.0, %v11429
      %v11431 = vpop.f32.mrb[0].mxu0
      %11432 = vmatprep.mubr.bf16.mxu0 0
      %11433 = vmatmul.mubr.bf16.gmra.mrb[0].mxu0 %v11169
      %v11434 = vpop.f32.mrb[0].mxu0
      %v11435 = vadd.f32 0.0, %v11434
      %v11436 = vpop.f32.mrb[0].mxu0
      %v11437 = vpop.f32.mrb[0].mxu0
      %v11438 = vadd.f32 0.0, %v11437
      %v11439 = vpop.f32.mrb[0].mxu0
      %11440 = vmatprep.mubr.bf16.mxu0 0
      %11441 = vmatmul.mubr.bf16.gmra.mrb[0].mxu0 %v11172
      %v11442 = vpop.f32.mrb[0].mxu0
      %v11443 = vadd.f32 0.0, %v11442
      %v11444 = vpop.f32.mrb[0].mxu0
      %v11445 = vpop.f32.mrb[0].mxu0
      %v11446 = vadd.f32 0.0, %v11445
      %v11447 = vpop.f32.mrb[0].mxu0
      %11448 = vmatprep.mubr.bf16.mxu0 0
      %11449 = vmatmul.mubr.bf16.gmra.mrb[0].mxu0 %v11175
      %v11450 = vpop.f32.mrb[0].mxu0
      %v11451 = vadd.f32 0.0, %v11450
      %v11452 = vpop.f32.mrb[0].mxu0
      %v11453 = vpop.f32.mrb[0].mxu0
      %v11454 = vadd.f32 0.0, %v11453
      %v11455 = vpop.f32.mrb[0].mxu0
      %11456 = vmatprep.mubr.bf16.mxu0 0
      %11457 = vmatmul.mubr.bf16.gmra.mrb[0].mxu0 %v11178
      %v11458 = vpop.f32.mrb[0].mxu0
      %v11459 = vadd.f32 0.0, %v11458
      %v11460 = vpop.f32.mrb[0].mxu0
      %v11461 = vpop.f32.mrb[0].mxu0
      %v11462 = vadd.f32 0.0, %v11461
      %v11463 = vpop.f32.mrb[0].mxu0
      %11464 = vmatprep.mubr.bf16.mxu0 0
      %11465 = vmatmul.mubr.bf16.gmra.mrb[0].mxu0 %v11181
      %v11466 = vpop.f32.mrb[0].mxu0
      %v11467 = vadd.f32 0.0, %v11466
      %v11468 = vpop.f32.mrb[0].mxu0
      %v11469 = vpop.f32.mrb[0].mxu0
      %v11470 = vadd.f32 0.0, %v11469
      %v11471 = vpop.f32.mrb[0].mxu0
      %11472 = vmatprep.mubr.bf16.mxu0 0
      %11473 = vmatmul.mubr.bf16.gmra.mrb[0].mxu0 %v11184
      %v11474 = vpop.f32.mrb[0].mxu0
      %v11475 = vadd.f32 0.0, %v11474
      %v11476 = vpop.f32.mrb[0].mxu0
      %v11477 = vpop.f32.mrb[0].mxu0
      %v11478 = vadd.f32 0.0, %v11477
      %v11479 = vpop.f32.mrb[0].mxu0
      %11480 = vmatprep.mubr.bf16.mxu0 0
      %11481 = vmatmul.mubr.bf16.gmra.mrb[0].mxu0 %v11187
      %v11482 = vpop.f32.mrb[0].mxu0
      %v11483 = vadd.f32 0.0, %v11482
      %v11484 = vpop.f32.mrb[0].mxu0
      %v11485 = vpop.f32.mrb[0].mxu0
      %v11486 = vadd.f32 0.0, %v11485
      %v11487 = vpop.f32.mrb[0].mxu0
      %11488 = vmatprep.mubr.bf16.mxu0 0
      %11489 = vmatmul.mubr.bf16.gmra.mrb[0].mxu0 %v11190
      %v11490 = vpop.f32.mrb[0].mxu0
      %v11491 = vadd.f32 0.0, %v11490
      %v11492 = vpop.f32.mrb[0].mxu0
      %v11493 = vpop.f32.mrb[0].mxu0
      %v11494 = vadd.f32 0.0, %v11493
      %v11495 = vpop.f32.mrb[0].mxu0
      %11496 = vmatprep.mubr.bf16.mxu0 0
      %11497 = vmatmul.mubr.bf16.gmra.mrb[0].mxu0 %v11193
      %v11498 = vpop.f32.mrb[0].mxu0
      %v11499 = vadd.f32 0.0, %v11498
      %v11500 = vpop.f32.mrb[0].mxu0
      %v11501 = vpop.f32.mrb[0].mxu0
      %v11502 = vadd.f32 0.0, %v11501
      %v11503 = vpop.f32.mrb[0].mxu0
      %11504 = vmatprep.mubr.bf16.mxu0 0
      %11505 = vmatmul.mubr.bf16.gmra.mrb[0].mxu0 %v11196
      %v11506 = vpop.f32.mrb[0].mxu0
      %v11507 = vadd.f32 0.0, %v11506
      %v11508 = vpop.f32.mrb[0].mxu0
      %v11509 = vpop.f32.mrb[0].mxu0
      %v11510 = vadd.f32 0.0, %v11509
      %v11511 = vpop.f32.mrb[0].mxu0
      %11512 = vmatprep.mubr.bf16.mxu0 0
      %11513 = vmatmul.mubr.bf16.gmra.mrb[0].mxu0 %v11199
      %v11514 = vpop.f32.mrb[0].mxu0
      %v11515 = vadd.f32 0.0, %v11514
      %v11516 = vpop.f32.mrb[0].mxu0
      %v11517 = vpop.f32.mrb[0].mxu0
      %v11518 = vadd.f32 0.0, %v11517
      %v11519 = vpop.f32.mrb[0].mxu0
      %11520 = vmatprep.mubr.bf16.mxu0 0
      %11521 = vmatmul.mubr.bf16.gmra.mrb[0].mxu0 %v11202
      %v11522 = vpop.f32.mrb[0].mxu0
      %v11523 = vadd.f32 0.0, %v11522
      %v11524 = vpop.f32.mrb[0].mxu0
      %v11525 = vpop.f32.mrb[0].mxu0
      %v11526 = vadd.f32 0.0, %v11525
      %v11527 = vpop.f32.mrb[0].mxu0
      %11528 = vmatprep.mubr.bf16.mxu0 0
      %11529 = vmatmul.mubr.bf16.gmra.mrb[0].mxu0 %v11205
      %v11530 = vpop.f32.mrb[0].mxu0
      %v11531 = vadd.f32 0.0, %v11530
      %v11532 = vpop.f32.mrb[0].mxu0
      %v11533 = vpop.f32.mrb[0].mxu0
      %v11534 = vadd.f32 0.0, %v11533
      %v11535 = vpop.f32.mrb[0].mxu0
      %11536 = vmatprep.mubr.bf16.mxu0 0
      %11537 = vmatmul.mubr.bf16.gmra.mrb[0].mxu0 %v11208
      %v11538 = vpop.f32.mrb[0].mxu0
      %v11539 = vadd.f32 0.0, %v11538
      %v11540 = vpop.f32.mrb[0].mxu0
      %v11541 = vpop.f32.mrb[0].mxu0
      %v11542 = vadd.f32 0.0, %v11541
      %v11543 = vpop.f32.mrb[0].mxu0
      %11544 = vmatprep.mubr.bf16.mxu0 0
      %11545 = vmatmul.mubr.bf16.gmra.mrb[0].mxu0 %v11211
      %v11546 = vpop.f32.mrb[0].mxu0
      %v11547 = vadd.f32 0.0, %v11546
      %v11548 = vpop.f32.mrb[0].mxu0
      %v11549 = vpop.f32.mrb[0].mxu0
      %v11550 = vadd.f32 0.0, %v11549
      %v11551 = vpop.f32.mrb[0].mxu0
      %11552 = vmatprep.mubr.bf16.mxu0 0
      %11553 = vmatmul.mubr.bf16.gmra.mrb[0].mxu0 %v11214
      %v11554 = vpop.f32.mrb[0].mxu0
      %v11555 = vadd.f32 0.0, %v11554
      %v11556 = vpop.f32.mrb[0].mxu0
      %v11557 = vpop.f32.mrb[0].mxu0
      %v11558 = vadd.f32 0.0, %v11557
      %v11559 = vpop.f32.mrb[0].mxu0
      %11560 = vmatprep.mubr.bf16.mxu0 0
      %11561 = vmatmul.mubr.bf16.gmra.mrb[0].mxu0 %v11217
      %v11562 = vpop.f32.mrb[0].mxu0
      %v11563 = vadd.f32 0.0, %v11562
      %v11564 = vpop.f32.mrb[0].mxu0
      %v11565 = vpop.f32.mrb[0].mxu0
      %v11566 = vadd.f32 0.0, %v11565
      %v11567 = vpop.f32.mrb[0].mxu0
      %11568 = vmatprep.mubr.bf16.mxu0 0
      %11569 = vmatmul.mubr.bf16.gmra.mrb[0].mxu0 %v11220
      %v11570 = vpop.f32.mrb[0].mxu0
      %v11571 = vadd.f32 0.0, %v11570
      %v11572 = vpop.f32.mrb[0].mxu0
      %v11573 = vpop.f32.mrb[0].mxu0
      %v11574 = vadd.f32 0.0, %v11573
      %v11575 = vpop.f32.mrb[0].mxu0
      %11576 = vmatprep.mubr.bf16.mxu0 0
      %11577 = vmatmul.mubr.bf16.gmra.mrb[0].mxu0 %v11223
      %v11578 = vpop.f32.mrb[0].mxu0
      %v11579 = vadd.f32 0.0, %v11578
      %v11580 = vpop.f32.mrb[0].mxu0
      %v11581 = vpop.f32.mrb[0].mxu0
      %v11582 = vadd.f32 0.0, %v11581
      %v11583 = vpop.f32.mrb[0].mxu0
      %11584 = vmatprep.mubr.bf16.mxu0 0
      %11585 = vmatmul.mubr.bf16.gmra.mrb[0].mxu0 %v11226
      %v11586 = vpop.f32.mrb[0].mxu0
      %v11587 = vadd.f32 0.0, %v11586
      %v11588 = vpop.f32.mrb[0].mxu0
      %v11589 = vpop.f32.mrb[0].mxu0
      %v11590 = vadd.f32 0.0, %v11589
      %v11591 = vpop.f32.mrb[0].mxu0
      %11592 = vmatprep.mubr.bf16.mxu0 0
      %11593 = vmatmul.mubr.bf16.gmra.mrb[0].mxu0 %v11229
      %v11594 = vpop.f32.mrb[0].mxu0
      %v11595 = vadd.f32 0.0, %v11594
      %v11596 = vpop.f32.mrb[0].mxu0
      %v11597 = vpop.f32.mrb[0].mxu0
      %v11598 = vadd.f32 0.0, %v11597
      %v11599 = vpop.f32.mrb[0].mxu0
      %11600 = vmatprep.mubr.bf16.mxu0 0
      %11601 = vmatmul.mubr.bf16.gmra.mrb[0].mxu0 %v11232
      %v11602 = vpop.f32.mrb[0].mxu0
      %v11603 = vadd.f32 0.0, %v11602
      %v11604 = vpop.f32.mrb[0].mxu0
      %v11605 = vpop.f32.mrb[0].mxu0
      %v11606 = vadd.f32 0.0, %v11605
      %v11607 = vpop.f32.mrb[0].mxu0
      %11608 = vmatprep.mubr.bf16.mxu0 0
      %11609 = vmatmul.mubr.bf16.gmra.mrb[0].mxu0 %v11235
      %v11610 = vpop.f32.mrb[0].mxu0
      %v11611 = vadd.f32 0.0, %v11610
      %v11612 = vpop.f32.mrb[0].mxu0
      %v11613 = vpop.f32.mrb[0].mxu0
      %v11614 = vadd.f32 0.0, %v11613
      %v11615 = vpop.f32.mrb[0].mxu0
      %11616 = vmatprep.mubr.bf16.mxu0 0
      %11617 = vmatmul.mubr.bf16.gmra.mrb[0].mxu0 %v11238
      %v11618 = vpop.f32.mrb[0].mxu0
      %v11619 = vadd.f32 0.0, %v11618
      %v11620 = vpop.f32.mrb[0].mxu0
      %v11621 = vpop.f32.mrb[0].mxu0
      %v11622 = vadd.f32 0.0, %v11621
      %v11623 = vpop.f32.mrb[0].mxu0
      %11624 = vmatprep.mubr.bf16.mxu0 0
      %11625 = vmatmul.mubr.bf16.gmra.mrb[0].mxu0 %v11241
      %v11626 = vpop.f32.mrb[0].mxu0
      %v11627 = vadd.f32 0.0, %v11626
      %v11628 = vpop.f32.mrb[0].mxu0
      %v11629 = vpop.f32.mrb[0].mxu0
      %v11630 = vadd.f32 0.0, %v11629
      %v11631 = vpop.f32.mrb[0].mxu0
      %11632 = vmatprep.mubr.bf16.mxu0 0
      %11633 = vmatmul.mubr.bf16.gmra.mrb[0].mxu0 %v11244
      %v11634 = vpop.f32.mrb[0].mxu0
      %v11635 = vadd.f32 0.0, %v11634
      %v11636 = vpop.f32.mrb[0].mxu0
      %v11637 = vpop.f32.mrb[0].mxu0
      %v11638 = vadd.f32 0.0, %v11637
      %v11639 = vpop.f32.mrb[0].mxu0
      %11640 = vmatprep.mubr.bf16.mxu0 0
      %11641 = vmatmul.mubr.bf16.gmra.mrb[0].mxu0 %v11247
      %v11642 = vpop.f32.mrb[0].mxu0
      %v11643 = vadd.f32 0.0, %v11642
      %v11644 = vpop.f32.mrb[0].mxu0
      %v11645 = vpop.f32.mrb[0].mxu0
      %v11646 = vadd.f32 0.0, %v11645
      %v11647 = vpop.f32.mrb[0].mxu0
      %11648 = vmatprep.mubr.bf16.mxu0 0
      %11649 = vmatmul.mubr.bf16.gmra.mrb[0].mxu0 %v11250
      %v11650 = vpop.f32.mrb[0].mxu0
      %v11651 = vadd.f32 0.0, %v11650
      %v11652 = vpop.f32.mrb[0].mxu0
      %v11653 = vpop.f32.mrb[0].mxu0
      %v11654 = vadd.f32 0.0, %v11653
      %v11655 = vpop.f32.mrb[0].mxu0
      %11656 = vmatprep.mubr.bf16.mxu0 0
      %11657 = vmatmul.mubr.bf16.gmra.mrb[0].mxu0 %v11253
      %v11658 = vpop.f32.mrb[0].mxu0
      %v11659 = vadd.f32 0.0, %v11658
      %v11660 = vpop.f32.mrb[0].mxu0
      %v11661 = vpop.f32.mrb[0].mxu0
      %v11662 = vadd.f32 0.0, %v11661
      %v11663 = vpop.f32.mrb[0].mxu0
      %11664 = vmatprep.mubr.bf16.mxu0 0
      %11665 = vmatmul.mubr.bf16.gmra.mrb[0].mxu0 %v11256
      %v11666 = vpop.f32.mrb[0].mxu0
      %v11667 = vadd.f32 0.0, %v11666
      %v11668 = vpop.f32.mrb[0].mxu0
      %v11669 = vpop.f32.mrb[0].mxu0
      %v11670 = vadd.f32 0.0, %v11669
      %v11671 = vpop.f32.mrb[0].mxu0
      %11672 = vmatprep.mubr.bf16.mxu0 0
      %11673 = vmatmul.mubr.bf16.gmra.mrb[0].mxu0 %v11259
      %v11674 = vpop.f32.mrb[0].mxu0
      %v11675 = vadd.f32 0.0, %v11674
      %v11676 = vpop.f32.mrb[0].mxu0
      %v11677 = vpop.f32.mrb[0].mxu0
      %v11678 = vadd.f32 0.0, %v11677
      %v11679 = vpop.f32.mrb[0].mxu0
      %11680 = vmatprep.mubr.bf16.mxu0 0
      %11681 = vmatmul.mubr.bf16.gmra.mrb[0].mxu0 %v11262
      %v11682 = vpop.f32.mrb[0].mxu0
      %v11683 = vadd.f32 0.0, %v11682
      %v11684 = vpop.f32.mrb[0].mxu0
      %v11685 = vpop.f32.mrb[0].mxu0
      %v11686 = vadd.f32 0.0, %v11685
      %v11687 = vpop.f32.mrb[0].mxu0
      %11688 = vmatprep.mubr.bf16.mxu0 0
      %11689 = vmatmul.mubr.bf16.gmra.mrb[0].mxu0 %v11265
      %v11690 = vpop.f32.mrb[0].mxu0
      %v11691 = vadd.f32 0.0, %v11690
      %v11692 = vpop.f32.mrb[0].mxu0
      %v11693 = vpop.f32.mrb[0].mxu0
      %v11694 = vadd.f32 0.0, %v11693
      %v11695 = vpop.f32.mrb[0].mxu0
      %11696 = vmatprep.mubr.bf16.mxu0 0
      %11697 = vmatmul.mubr.bf16.gmra.mrb[0].mxu0 %v11268
      %v11698 = vpop.f32.mrb[0].mxu0
      %v11699 = vadd.f32 0.0, %v11698
      %v11700 = vpop.f32.mrb[0].mxu0
      %v11701 = vpop.f32.mrb[0].mxu0
      %v11702 = vadd.f32 0.0, %v11701
      %v11703 = vpop.f32.mrb[0].mxu0
      %11704 = vmatprep.mubr.bf16.mxu0 0
      %11705 = vmatmul.mubr.bf16.gmra.mrb[0].mxu0 %v11271
      %v11706 = vpop.f32.mrb[0].mxu0
      %v11707 = vadd.f32 0.0, %v11706
      %v11708 = vpop.f32.mrb[0].mxu0
      %v11709 = vpop.f32.mrb[0].mxu0
      %v11710 = vadd.f32 0.0, %v11709
      %v11711 = vpop.f32.mrb[0].mxu0
      %11712 = vmatprep.mubr.bf16.mxu0 0
      %11713 = vmatmul.mubr.bf16.gmra.mrb[0].mxu0 %v11274
      %v11714 = vpop.f32.mrb[0].mxu0
      %v11715 = vadd.f32 0.0, %v11714
      %v11716 = vpop.f32.mrb[0].mxu0
      %v11717 = vpop.f32.mrb[0].mxu0
      %v11718 = vadd.f32 0.0, %v11717
      %v11719 = vpop.f32.mrb[0].mxu0
      %11720 = vmatprep.mubr.bf16.mxu0 0
      %11721 = vmatmul.mubr.bf16.gmra.mrb[0].mxu0 %v11277
      %v11722 = vpop.f32.mrb[0].mxu0
      %v11723 = vadd.f32 0.0, %v11722
      %v11724 = vpop.f32.mrb[0].mxu0
      %v11725 = vpop.f32.mrb[0].mxu0
      %v11726 = vadd.f32 0.0, %v11725
      %v11727 = vpop.f32.mrb[0].mxu0
      %11728 = vmatprep.mubr.bf16.mxu0 0
      %11729 = vmatmul.mubr.bf16.gmra.mrb[0].mxu0 %v11280
      %v11730 = vpop.f32.mrb[0].mxu0
      %v11731 = vadd.f32 0.0, %v11730
      %v11732 = vpop.f32.mrb[0].mxu0
      %v11733 = vpop.f32.mrb[0].mxu0
      %v11734 = vadd.f32 0.0, %v11733
      %v11735 = vpop.f32.mrb[0].mxu0
      %11736 = vmatprep.mubr.bf16.mxu0 0
      %11737 = vmatmul.mubr.bf16.gmra.mrb[0].mxu0 %v11283
      %v11738 = vpop.f32.mrb[0].mxu0
      %v11739 = vadd.f32 0.0, %v11738
      %v11740 = vpop.f32.mrb[0].mxu0
      %v11741 = vpop.f32.mrb[0].mxu0
      %v11742 = vadd.f32 0.0, %v11741
      %v11743 = vpop.f32.mrb[0].mxu0
      %11744 = vmatprep.mubr.bf16.mxu0 0
      %11745 = vmatmul.mubr.bf16.gmra.mrb[0].mxu0 %v11286
      %v11746 = vpop.f32.mrb[0].mxu0
      %v11747 = vadd.f32 0.0, %v11746
      %v11748 = vpop.f32.mrb[0].mxu0
      %v11749 = vpop.f32.mrb[0].mxu0
      %v11750 = vadd.f32 0.0, %v11749
      %v11751 = vpop.f32.mrb[0].mxu0
      %11752 = vmatprep.mubr.bf16.mxu0 0
      %11753 = vmatmul.mubr.bf16.gmra.mrb[0].mxu0 %v11289
      %v11754 = vpop.f32.mrb[0].mxu0
      %v11755 = vadd.f32 0.0, %v11754
      %v11756 = vpop.f32.mrb[0].mxu0
      %v11757 = vpop.f32.mrb[0].mxu0
      %v11758 = vadd.f32 0.0, %v11757
      %v11759 = vpop.f32.mrb[0].mxu0
      %11760 = vmatprep.mubr.bf16.mxu0 0
      %11761 = vmatmul.mubr.bf16.gmra.mrb[0].mxu0 %v11292
      %v11762 = vpop.f32.mrb[0].mxu0
      %v11763 = vadd.f32 0.0, %v11762
      %v11764 = vpop.f32.mrb[0].mxu0
      %v11765 = vpop.f32.mrb[0].mxu0
      %v11766 = vadd.f32 0.0, %v11765
      %v11767 = vpop.f32.mrb[0].mxu0
      %11768 = vmatprep.mubr.bf16.mxu0 0
      %11769 = vmatmul.mubr.bf16.gmra.mrb[0].mxu0 %v11295
      %v11770 = vpop.f32.mrb[0].mxu0
      %v11771 = vadd.f32 0.0, %v11770
      %v11772 = vpop.f32.mrb[0].mxu0
      %v11773 = vpop.f32.mrb[0].mxu0
      %v11774 = vadd.f32 0.0, %v11773
      %v11775 = vpop.f32.mrb[0].mxu0
      %11776 = vmatprep.mubr.bf16.mxu0 0
      %11777 = vmatmul.mubr.bf16.gmra.mrb[0].mxu0 %v11298
      %v11778 = vpop.f32.mrb[0].mxu0
      %v11779 = vadd.f32 0.0, %v11778
      %v11780 = vpop.f32.mrb[0].mxu0
      %v11781 = vpop.f32.mrb[0].mxu0
      %v11782 = vadd.f32 0.0, %v11781
      %v11783 = vpop.f32.mrb[0].mxu0
      %11784 = vmatprep.mubr.bf16.mxu0 0
      %11785 = vmatmul.mubr.bf16.gmra.mrb[0].mxu0 %v11301
      %v11786 = vpop.f32.mrb[0].mxu0
      %v11787 = vadd.f32 0.0, %v11786
      %v11788 = vpop.f32.mrb[0].mxu0
      %v11789 = vpop.f32.mrb[0].mxu0
      %v11790 = vadd.f32 0.0, %v11789
      %v11791 = vpop.f32.mrb[0].mxu0
      %11792 = vmatprep.mubr.bf16.mxu0 0
      %11793 = vmatmul.mubr.bf16.gmra.mrb[0].mxu0 %v11304
      %v11794 = vpop.f32.mrb[0].mxu0
      %v11795 = vadd.f32 0.0, %v11794
      %v11796 = vpop.f32.mrb[0].mxu0
      %v11797 = vpop.f32.mrb[0].mxu0
      %v11798 = vadd.f32 0.0, %v11797
      %v11799 = vpop.f32.mrb[0].mxu0
      %11800 = vmatprep.mubr.bf16.mxu0 0
      %11801 = vmatmul.mubr.bf16.gmra.mrb[0].mxu0 %v11307
      %v11802 = vpop.f32.mrb[0].mxu0
      %v11803 = vadd.f32 0.0, %v11802
      %v11804 = vpop.f32.mrb[0].mxu0
      %v11805 = vpop.f32.mrb[0].mxu0
      %v11806 = vadd.f32 0.0, %v11805
      %v11807 = vpop.f32.mrb[0].mxu0
      %11808 = vmatprep.mubr.bf16.mxu0 0
      %11809 = vmatmul.mubr.bf16.gmra.mrb[0].mxu0 %v11310
      %v11810 = vpop.f32.mrb[0].mxu0
      %v11811 = vadd.f32 0.0, %v11810
      %v11812 = vpop.f32.mrb[0].mxu0
      %v11813 = vpop.f32.mrb[0].mxu0
      %v11814 = vadd.f32 0.0, %v11813
      %v11815 = vpop.f32.mrb[0].mxu0
      %11816 = vmatprep.mubr.bf16.mxu0 0
      %11817 = vmatmul.mubr.bf16.gmra.mrb[0].mxu0 %v11313
      %v11818 = vpop.f32.mrb[0].mxu0
      %v11819 = vadd.f32 0.0, %v11818
      %v11820 = vpop.f32.mrb[0].mxu0
      %v11821 = vpop.f32.mrb[0].mxu0
      %v11822 = vadd.f32 0.0, %v11821
      %v11823 = vpop.f32.mrb[0].mxu0
      %11824 = vmatprep.mubr.bf16.mxu0 0
      %11825 = vmatmul.mubr.bf16.gmra.mrb[0].mxu0 %v11316
      %v11826 = vpop.f32.mrb[0].mxu0
      %v11827 = vadd.f32 0.0, %v11826
      %v11828 = vpop.f32.mrb[0].mxu0
      %v11829 = vpop.f32.mrb[0].mxu0
      %v11830 = vadd.f32 0.0, %v11829
      %v11831 = vpop.f32.mrb[0].mxu0
      %11832 = vmatprep.mubr.bf16.mxu0 0
      %11833 = vmatmul.mubr.bf16.gmra.mrb[0].mxu0 %v11319
      %v11834 = vpop.f32.mrb[0].mxu0
      %v11835 = vadd.f32 0.0, %v11834
      %v11836 = vpop.f32.mrb[0].mxu0
      %v11837 = vpop.f32.mrb[0].mxu0
      %v11838 = vadd.f32 0.0, %v11837
      %v11839 = vpop.f32.mrb[0].mxu0
      %11840 = vmatprep.mubr.bf16.mxu0 0
      %11841 = vmatmul.mubr.bf16.gmra.mrb[0].mxu0 %v11322
      %v11842 = vpop.f32.mrb[0].mxu0
      %v11843 = vadd.f32 0.0, %v11842
      %v11844 = vpop.f32.mrb[0].mxu0
      %v11845 = vpop.f32.mrb[0].mxu0
      %v11846 = vadd.f32 0.0, %v11845
      %v11847 = vpop.f32.mrb[0].mxu0
      %11848 = vmatprep.mubr.bf16.mxu0 0
      %11849 = vmatmul.mubr.bf16.gmra.mrb[0].mxu0 %v11325
      %v11850 = vpop.f32.mrb[0].mxu0
      %v11851 = vadd.f32 0.0, %v11850
      %v11852 = vpop.f32.mrb[0].mxu0
      %v11853 = vpop.f32.mrb[0].mxu0
      %v11854 = vadd.f32 0.0, %v11853
      %v11855 = vpop.f32.mrb[0].mxu0
      %11856 = vmatprep.mubr.bf16.mxu0 0
      %11857 = vmatmul.mubr.bf16.gmra.mrb[0].mxu0 %v11328
      %v11858 = vpop.f32.mrb[0].mxu0
      %v11859 = vadd.f32 0.0, %v11858
      %v11860 = vpop.f32.mrb[0].mxu0
      %v11861 = vpop.f32.mrb[0].mxu0
      %v11862 = vadd.f32 0.0, %v11861
      %v11863 = vpop.f32.mrb[0].mxu0
      %11864 = vmatprep.mubr.bf16.mxu0 0
      %11865 = vmatmul.mubr.bf16.gmra.mrb[0].mxu0 %v11331
      %v11866 = vpop.f32.mrb[0].mxu0
      %v11867 = vadd.f32 0.0, %v11866
      %v11868 = vpop.f32.mrb[0].mxu0
      %v11869 = vpop.f32.mrb[0].mxu0
      %v11870 = vadd.f32 0.0, %v11869
      %v11871 = vpop.f32.mrb[0].mxu0
      %11872 = vmatprep.mubr.bf16.mxu0 0
      %11873 = vmatmul.mubr.bf16.gmra.mrb[0].mxu0 %v11334
      %v11874 = vpop.f32.mrb[0].mxu0
      %v11875 = vadd.f32 0.0, %v11874
      %v11876 = vpop.f32.mrb[0].mxu0
      %v11877 = vpop.f32.mrb[0].mxu0
      %v11878 = vadd.f32 0.0, %v11877
      %v11879 = vpop.f32.mrb[0].mxu0
      %11880 = vmatprep.mubr.bf16.mxu0 0
      %11881 = vmatmul.mubr.bf16.gmra.mrb[0].mxu0 %v11337
      %v11882 = vpop.f32.mrb[0].mxu0
      %v11883 = vadd.f32 0.0, %v11882
      %v11884 = vpop.f32.mrb[0].mxu0
      %v11885 = vpop.f32.mrb[0].mxu0
      %v11886 = vadd.f32 0.0, %v11885
      %v11887 = vpop.f32.mrb[0].mxu0
      %11888 = vmatprep.mubr.bf16.mxu0 0
      %11889 = vmatmul.mubr.bf16.gmra.mrb[0].mxu0 %v11340
      %v11890 = vpop.f32.mrb[0].mxu0
      %v11891 = vadd.f32 0.0, %v11890
      %v11892 = vpop.f32.mrb[0].mxu0
      %v11893 = vpop.f32.mrb[0].mxu0
      %v11894 = vadd.f32 0.0, %v11893
      %v11895 = vpop.f32.mrb[0].mxu0
      %11896 = vmatprep.mubr.bf16.mxu0 0
      %11897 = vmatmul.mubr.bf16.gmra.mrb[0].mxu0 %v11343
      %v11898 = vpop.f32.mrb[0].mxu0
      %v11899 = vadd.f32 0.0, %v11898
      %v11900 = vpop.f32.mrb[0].mxu0
      %v11901 = vpop.f32.mrb[0].mxu0
      %v11902 = vadd.f32 0.0, %v11901
      %v11903 = vpop.f32.mrb[0].mxu0
      %11904 = vmatprep.mubr.bf16.mxu0 0
      %11905 = vmatmul.mubr.bf16.gmra.mrb[0].mxu0 %v11346
      %v11906 = vpop.f32.mrb[0].mxu0
      %v11907 = vadd.f32 0.0, %v11906
      %v11908 = vpop.f32.mrb[0].mxu0
      %v11909 = vpop.f32.mrb[0].mxu0
      %v11910 = vadd.f32 0.0, %v11909
      %v11911 = vpop.f32.mrb[0].mxu0
      %11912 = vmatprep.mubr.bf16.mxu0 0
      %11913 = vmatmul.mubr.bf16.gmra.mrb[0].mxu0 %v11349
      %v11914 = vpop.f32.mrb[0].mxu0
      %v11915 = vadd.f32 0.0, %v11914
      %v11916 = vpop.f32.mrb[0].mxu0
      %v11917 = vpop.f32.mrb[0].mxu0
      %v11918 = vadd.f32 0.0, %v11917
      %v11919 = vpop.f32.mrb[0].mxu0
      %11920 = vmatprep.mubr.bf16.mxu0 0
      %11921 = vmatmul.mubr.bf16.gmra.mrb[0].mxu0 %v11352
      %v11922 = vpop.f32.mrb[0].mxu0
      %v11923 = vadd.f32 0.0, %v11922
      %v11924 = vpop.f32.mrb[0].mxu0
      %v11925 = vpop.f32.mrb[0].mxu0
      %v11926 = vadd.f32 0.0, %v11925
      %v11927 = vpop.f32.mrb[0].mxu0
      %11928 = vmatprep.mubr.bf16.mxu0 0
      %11929 = vmatmul.mubr.bf16.gmra.mrb[0].mxu0 %v11355
      %v11930 = vpop.f32.mrb[0].mxu0
      %v11931 = vadd.f32 0.0, %v11930
      %v11932 = vpop.f32.mrb[0].mxu0
      %v11933 = vpop.f32.mrb[0].mxu0
      %v11934 = vadd.f32 0.0, %v11933
      %v11935 = vpop.f32.mrb[0].mxu0
      %11936 = vdwg.mxu0
      %v11937 = vadd.f32 %v10873, %v11395
      %v11938 = vadd.f32 %v10874, %v11398
      %v11939 = vadd.f32 %v10875, %v11403
      %v11940 = vadd.f32 %v10876, %v11406
      %v11941 = vadd.f32 %v10877, %v11411
      %v11942 = vadd.f32 %v10878, %v11414
      %v11943 = vadd.f32 %v10879, %v11419
      %v11944 = vadd.f32 %v10880, %v11422
      %v11945 = vadd.f32 %v10881, %v11427
      %v11946 = vadd.f32 %v10882, %v11430
      %v11947 = vadd.f32 %v10883, %v11435
      %v11948 = vadd.f32 %v10884, %v11438
      %v11949 = vadd.f32 %v10885, %v11443
      %v11950 = vadd.f32 %v10886, %v11446
      %v11951 = vadd.f32 %v10887, %v11451
      %v11952 = vadd.f32 %v10888, %v11454
      %v11953 = vadd.f32 %v10889, %v11459
      %v11954 = vadd.f32 %v10890, %v11462
      %v11955 = vadd.f32 %v10891, %v11467
      %v11956 = vadd.f32 %v10892, %v11470
      %v11957 = vadd.f32 %v10893, %v11475
      %v11958 = vadd.f32 %v10894, %v11478
      %v11959 = vadd.f32 %v10895, %v11483
      %v11960 = vadd.f32 %v10896, %v11486
      %v11961 = vadd.f32 %v10897, %v11491
      %v11962 = vadd.f32 %v10898, %v11494
      %v11963 = vadd.f32 %v10899, %v11499
      %v11964 = vadd.f32 %v10900, %v11502
      %v11965 = vadd.f32 %v10901, %v11507
      %v11966 = vadd.f32 %v10902, %v11510
      %v11967 = vadd.f32 %v10903, %v11515
      %v11968 = vadd.f32 %v10904, %v11518
      %v11969 = vadd.f32 %v10905, %v11523
      %v11970 = vadd.f32 %v10906, %v11526
      %v11971 = vadd.f32 %v10907, %v11531
      %v11972 = vadd.f32 %v10908, %v11534
      %v11973 = vadd.f32 %v10909, %v11539
      %v11974 = vadd.f32 %v10910, %v11542
      %v11975 = vadd.f32 %v10911, %v11547
      %v11976 = vadd.f32 %v10912, %v11550
      %v11977 = vadd.f32 %v10913, %v11555
      %v11978 = vadd.f32 %v10914, %v11558
      %v11979 = vadd.f32 %v10915, %v11563
      %v11980 = vadd.f32 %v10916, %v11566
      %v11981 = vadd.f32 %v10917, %v11571
      %v11982 = vadd.f32 %v10918, %v11574
      %v11983 = vadd.f32 %v10919, %v11579
      %v11984 = vadd.f32 %v10920, %v11582
      %v11985 = vadd.f32 %v10921, %v11587
      %v11986 = vadd.f32 %v10922, %v11590
      %v11987 = vadd.f32 %v10923, %v11595
      %v11988 = vadd.f32 %v10924, %v11598
      %v11989 = vadd.f32 %v10925, %v11603
      %v11990 = vadd.f32 %v10926, %v11606
      %v11991 = vadd.f32 %v10927, %v11611
      %v11992 = vadd.f32 %v10928, %v11614
      %v11993 = vadd.f32 %v10929, %v11619
      %v11994 = vadd.f32 %v10930, %v11622
      %v11995 = vadd.f32 %v10931, %v11627
      %v11996 = vadd.f32 %v10932, %v11630
      %v11997 = vadd.f32 %v10933, %v11635
      %v11998 = vadd.f32 %v10934, %v11638
      %v11999 = vadd.f32 %v10935, %v11643
      %v12000 = vadd.f32 %v10936, %v11646
      %v12001 = vadd.f32 %v10937, %v11651
      %v12002 = vadd.f32 %v10938, %v11654
      %v12003 = vadd.f32 %v10939, %v11659
      %v12004 = vadd.f32 %v10940, %v11662
      %v12005 = vadd.f32 %v10941, %v11667
      %v12006 = vadd.f32 %v10942, %v11670
      %v12007 = vadd.f32 %v10943, %v11675
      %v12008 = vadd.f32 %v10944, %v11678
      %v12009 = vadd.f32 %v10945, %v11683
      %v12010 = vadd.f32 %v10946, %v11686
      %v12011 = vadd.f32 %v10947, %v11691
      %v12012 = vadd.f32 %v10948, %v11694
      %v12013 = vadd.f32 %v10949, %v11699
      %v12014 = vadd.f32 %v10950, %v11702
      %v12015 = vadd.f32 %v10951, %v11707
      %v12016 = vadd.f32 %v10952, %v11710
      %v12017 = vadd.f32 %v10953, %v11715
      %v12018 = vadd.f32 %v10954, %v11718
      %v12019 = vadd.f32 %v10955, %v11723
      %v12020 = vadd.f32 %v10956, %v11726
      %v12021 = vadd.f32 %v10957, %v11731
      %v12022 = vadd.f32 %v10958, %v11734
      %v12023 = vadd.f32 %v10959, %v11739
      %v12024 = vadd.f32 %v10960, %v11742
      %v12025 = vadd.f32 %v10961, %v11747
      %v12026 = vadd.f32 %v10962, %v11750
      %v12027 = vadd.f32 %v10963, %v11755
      %v12028 = vadd.f32 %v10964, %v11758
      %v12029 = vadd.f32 %v10965, %v11763
      %v12030 = vadd.f32 %v10966, %v11766
      %v12031 = vadd.f32 %v10967, %v11771
      %v12032 = vadd.f32 %v10968, %v11774
      %v12033 = vadd.f32 %v10969, %v11779
      %v12034 = vadd.f32 %v10970, %v11782
      %v12035 = vadd.f32 %v10971, %v11787
      %v12036 = vadd.f32 %v10972, %v11790
      %v12037 = vadd.f32 %v10973, %v11795
      %v12038 = vadd.f32 %v10974, %v11798
      %v12039 = vadd.f32 %v10975, %v11803
      %v12040 = vadd.f32 %v10976, %v11806
      %v12041 = vadd.f32 %v10977, %v11811
      %v12042 = vadd.f32 %v10978, %v11814
      %v12043 = vadd.f32 %v10979, %v11819
      %v12044 = vadd.f32 %v10980, %v11822
      %v12045 = vadd.f32 %v10981, %v11827
      %v12046 = vadd.f32 %v10982, %v11830
      %v12047 = vadd.f32 %v10983, %v11835
      %v12048 = vadd.f32 %v10984, %v11838
      %v12049 = vadd.f32 %v10985, %v11843
      %v12050 = vadd.f32 %v10986, %v11846
      %v12051 = vadd.f32 %v10987, %v11851
      %v12052 = vadd.f32 %v10988, %v11854
      %v12053 = vadd.f32 %v10989, %v11859
      %v12054 = vadd.f32 %v10990, %v11862
      %v12055 = vadd.f32 %v10991, %v11867
      %v12056 = vadd.f32 %v10992, %v11870
      %v12057 = vadd.f32 %v10993, %v11875
      %v12058 = vadd.f32 %v10994, %v11878
      %v12059 = vadd.f32 %v10995, %v11883
      %v12060 = vadd.f32 %v10996, %v11886
      %v12061 = vadd.f32 %v10997, %v11891
      %v12062 = vadd.f32 %v10998, %v11894
      %v12063 = vadd.f32 %v10999, %v11899
      %v12064 = vadd.f32 %v11000, %v11902
      %v12065 = vadd.f32 %v11001, %v11907
      %v12066 = vadd.f32 %v11002, %v11910
      %v12067 = vadd.f32 %v11003, %v11915
      %v12068 = vadd.f32 %v11004, %v11918
      %v12069 = vadd.f32 %v11005, %v11923
      %v12070 = vadd.f32 %v11006, %v11926
      %v12071 = vadd.f32 %v11007, %v11931
      %v12072 = vadd.f32 %v11008, %v11934
      %v12073 = vld [vmem:[%s2] sm:$0x1]
      %v12075 = vlaneseq
      %v12076 = vshrl.u32 %v12075, 7
      %v12077 = vsub.s32 0, %v12076
      %v12078 = vrot.slane %v12073, %v12077
      %v12080 = vadd.f32 %v11937, %v12078
      %v12081 = vadd.f32 %v11938, %v12078
      %v12082 = vadd.f32 %v11939, %v12078
      %v12083 = vadd.f32 %v11940, %v12078
      %v12084 = vadd.f32 %v11941, %v12078
      %v12085 = vadd.f32 %v11942, %v12078
      %v12086 = vadd.f32 %v11943, %v12078
      %v12087 = vadd.f32 %v11944, %v12078
      %v12088 = vadd.f32 %v11945, %v12078
      %v12089 = vadd.f32 %v11946, %v12078
      %v12090 = vadd.f32 %v11947, %v12078
      %v12091 = vadd.f32 %v11948, %v12078
      %v12092 = vadd.f32 %v11949, %v12078
      %v12093 = vadd.f32 %v11950, %v12078
      %v12094 = vadd.f32 %v11951, %v12078
      %v12095 = vadd.f32 %v11952, %v12078
      %v12096 = vadd.f32 %v11953, %v12078
      %v12097 = vadd.f32 %v11954, %v12078
      %v12098 = vadd.f32 %v11955, %v12078
      %v12099 = vadd.f32 %v11956, %v12078
      %v12100 = vadd.f32 %v11957, %v12078
      %v12101 = vadd.f32 %v11958, %v12078
      %v12102 = vadd.f32 %v11959, %v12078
      %v12103 = vadd.f32 %v11960, %v12078
      %v12104 = vadd.f32 %v11961, %v12078
      %v12105 = vadd.f32 %v11962, %v12078
      %v12106 = vadd.f32 %v11963, %v12078
      %v12107 = vadd.f32 %v11964, %v12078
      %v12108 = vadd.f32 %v11965, %v12078
      %v12109 = vadd.f32 %v11966, %v12078
      %v12110 = vadd.f32 %v11967, %v12078
      %v12111 = vadd.f32 %v11968, %v12078
      %v12112 = vadd.f32 %v11969, %v12078
      %v12113 = vadd.f32 %v11970, %v12078
      %v12114 = vadd.f32 %v11971, %v12078
      %v12115 = vadd.f32 %v11972, %v12078
      %v12116 = vadd.f32 %v11973, %v12078
      %v12117 = vadd.f32 %v11974, %v12078
      %v12118 = vadd.f32 %v11975, %v12078
      %v12119 = vadd.f32 %v11976, %v12078
      %v12120 = vadd.f32 %v11977, %v12078
      %v12121 = vadd.f32 %v11978, %v12078
      %v12122 = vadd.f32 %v11979, %v12078
      %v12123 = vadd.f32 %v11980, %v12078
      %v12124 = vadd.f32 %v11981, %v12078
      %v12125 = vadd.f32 %v11982, %v12078
      %v12126 = vadd.f32 %v11983, %v12078
      %v12127 = vadd.f32 %v11984, %v12078
      %v12128 = vadd.f32 %v11985, %v12078
      %v12129 = vadd.f32 %v11986, %v12078
      %v12130 = vadd.f32 %v11987, %v12078
      %v12131 = vadd.f32 %v11988, %v12078
      %v12132 = vadd.f32 %v11989, %v12078
      %v12133 = vadd.f32 %v11990, %v12078
      %v12134 = vadd.f32 %v11991, %v12078
      %v12135 = vadd.f32 %v11992, %v12078
      %v12136 = vadd.f32 %v11993, %v12078
      %v12137 = vadd.f32 %v11994, %v12078
      %v12138 = vadd.f32 %v11995, %v12078
      %v12139 = vadd.f32 %v11996, %v12078
      %v12140 = vadd.f32 %v11997, %v12078
      %v12141 = vadd.f32 %v11998, %v12078
      %v12142 = vadd.f32 %v11999, %v12078
      %v12143 = vadd.f32 %v12000, %v12078
      %v12144 = vadd.f32 %v12001, %v12078
      %v12145 = vadd.f32 %v12002, %v12078
      %v12146 = vadd.f32 %v12003, %v12078
      %v12147 = vadd.f32 %v12004, %v12078
      %v12148 = vadd.f32 %v12005, %v12078
      %v12149 = vadd.f32 %v12006, %v12078
      %v12150 = vadd.f32 %v12007, %v12078
      %v12151 = vadd.f32 %v12008, %v12078
      %v12152 = vadd.f32 %v12009, %v12078
      %v12153 = vadd.f32 %v12010, %v12078
      %v12154 = vadd.f32 %v12011, %v12078
      %v12155 = vadd.f32 %v12012, %v12078
      %v12156 = vadd.f32 %v12013, %v12078
      %v12157 = vadd.f32 %v12014, %v12078
      %v12158 = vadd.f32 %v12015, %v12078
      %v12159 = vadd.f32 %v12016, %v12078
      %v12160 = vadd.f32 %v12017, %v12078
      %v12161 = vadd.f32 %v12018, %v12078
      %v12162 = vadd.f32 %v12019, %v12078
      %v12163 = vadd.f32 %v12020, %v12078
      %v12164 = vadd.f32 %v12021, %v12078
      %v12165 = vadd.f32 %v12022, %v12078
      %v12166 = vadd.f32 %v12023, %v12078
      %v12167 = vadd.f32 %v12024, %v12078
      %v12168 = vadd.f32 %v12025, %v12078
      %v12169 = vadd.f32 %v12026, %v12078
      %v12170 = vadd.f32 %v12027, %v12078
      %v12171 = vadd.f32 %v12028, %v12078
      %v12172 = vadd.f32 %v12029, %v12078
      %v12173 = vadd.f32 %v12030, %v12078
      %v12174 = vadd.f32 %v12031, %v12078
      %v12175 = vadd.f32 %v12032, %v12078
      %v12176 = vadd.f32 %v12033, %v12078
      %v12177 = vadd.f32 %v12034, %v12078
      %v12178 = vadd.f32 %v12035, %v12078
      %v12179 = vadd.f32 %v12036, %v12078
      %v12180 = vadd.f32 %v12037, %v12078
      %v12181 = vadd.f32 %v12038, %v12078
      %v12182 = vadd.f32 %v12039, %v12078
      %v12183 = vadd.f32 %v12040, %v12078
      %v12184 = vadd.f32 %v12041, %v12078
      %v12185 = vadd.f32 %v12042, %v12078
      %v12186 = vadd.f32 %v12043, %v12078
      %v12187 = vadd.f32 %v12044, %v12078
      %v12188 = vadd.f32 %v12045, %v12078
      %v12189 = vadd.f32 %v12046, %v12078
      %v12190 = vadd.f32 %v12047, %v12078
      %v12191 = vadd.f32 %v12048, %v12078
      %v12192 = vadd.f32 %v12049, %v12078
      %v12193 = vadd.f32 %v12050, %v12078
      %v12194 = vadd.f32 %v12051, %v12078
      %v12195 = vadd.f32 %v12052, %v12078
      %v12196 = vadd.f32 %v12053, %v12078
      %v12197 = vadd.f32 %v12054, %v12078
      %v12198 = vadd.f32 %v12055, %v12078
      %v12199 = vadd.f32 %v12056, %v12078
      %v12200 = vadd.f32 %v12057, %v12078
      %v12201 = vadd.f32 %v12058, %v12078
      %v12202 = vadd.f32 %v12059, %v12078
      %v12203 = vadd.f32 %v12060, %v12078
      %v12204 = vadd.f32 %v12061, %v12078
      %v12205 = vadd.f32 %v12062, %v12078
      %v12206 = vadd.f32 %v12063, %v12078
      %v12207 = vadd.f32 %v12064, %v12078
      %v12208 = vadd.f32 %v12065, %v12078
      %v12209 = vadd.f32 %v12066, %v12078
      %v12210 = vadd.f32 %v12067, %v12078
      %v12211 = vadd.f32 %v12068, %v12078
      %v12212 = vadd.f32 %v12069, %v12078
      %v12213 = vadd.f32 %v12070, %v12078
      %v12214 = vadd.f32 %v12071, %v12078
      %v12215 = vadd.f32 %v12072, %v12078
      %v12216 = vmax.f32 %v12080, 0.0
      %v12217 = vmax.f32 %v12081, 0.0
      %v12218 = vmax.f32 %v12082, 0.0
      %v12219 = vmax.f32 %v12083, 0.0
      %v12220 = vmax.f32 %v12084, 0.0
      %v12221 = vmax.f32 %v12085, 0.0
      %v12222 = vmax.f32 %v12086, 0.0
      %v12223 = vmax.f32 %v12087, 0.0
      %v12224 = vmax.f32 %v12088, 0.0
      %v12225 = vmax.f32 %v12089, 0.0
      %v12226 = vmax.f32 %v12090, 0.0
      %v12227 = vmax.f32 %v12091, 0.0
      %v12228 = vmax.f32 %v12092, 0.0
      %v12229 = vmax.f32 %v12093, 0.0
      %v12230 = vmax.f32 %v12094, 0.0
      %v12231 = vmax.f32 %v12095, 0.0
      %v12232 = vmax.f32 %v12096, 0.0
      %v12233 = vmax.f32 %v12097, 0.0
      %v12234 = vmax.f32 %v12098, 0.0
      %v12235 = vmax.f32 %v12099, 0.0
      %v12236 = vmax.f32 %v12100, 0.0
      %v12237 = vmax.f32 %v12101, 0.0
      %v12238 = vmax.f32 %v12102, 0.0
      %v12239 = vmax.f32 %v12103, 0.0
      %v12240 = vmax.f32 %v12104, 0.0
      %v12241 = vmax.f32 %v12105, 0.0
      %v12242 = vmax.f32 %v12106, 0.0
      %v12243 = vmax.f32 %v12107, 0.0
      %v12244 = vmax.f32 %v12108, 0.0
      %v12245 = vmax.f32 %v12109, 0.0
      %v12246 = vmax.f32 %v12110, 0.0
      %v12247 = vmax.f32 %v12111, 0.0
      %v12248 = vmax.f32 %v12112, 0.0
      %v12249 = vmax.f32 %v12113, 0.0
      %v12250 = vmax.f32 %v12114, 0.0
      %v12251 = vmax.f32 %v12115, 0.0
      %v12252 = vmax.f32 %v12116, 0.0
      %v12253 = vmax.f32 %v12117, 0.0
      %v12254 = vmax.f32 %v12118, 0.0
      %v12255 = vmax.f32 %v12119, 0.0
      %v12256 = vmax.f32 %v12120, 0.0
      %v12257 = vmax.f32 %v12121, 0.0
      %v12258 = vmax.f32 %v12122, 0.0
      %v12259 = vmax.f32 %v12123, 0.0
      %v12260 = vmax.f32 %v12124, 0.0
      %v12261 = vmax.f32 %v12125, 0.0
      %v12262 = vmax.f32 %v12126, 0.0
      %v12263 = vmax.f32 %v12127, 0.0
      %v12264 = vmax.f32 %v12128, 0.0
      %v12265 = vmax.f32 %v12129, 0.0
      %v12266 = vmax.f32 %v12130, 0.0
      %v12267 = vmax.f32 %v12131, 0.0
      %v12268 = vmax.f32 %v12132, 0.0
      %v12269 = vmax.f32 %v12133, 0.0
      %v12270 = vmax.f32 %v12134, 0.0
      %v12271 = vmax.f32 %v12135, 0.0
      %v12272 = vmax.f32 %v12136, 0.0
      %v12273 = vmax.f32 %v12137, 0.0
      %v12274 = vmax.f32 %v12138, 0.0
      %v12275 = vmax.f32 %v12139, 0.0
      %v12276 = vmax.f32 %v12140, 0.0
      %v12277 = vmax.f32 %v12141, 0.0
      %v12278 = vmax.f32 %v12142, 0.0
      %v12279 = vmax.f32 %v12143, 0.0
      %v12280 = vmax.f32 %v12144, 0.0
      %v12281 = vmax.f32 %v12145, 0.0
      %v12282 = vmax.f32 %v12146, 0.0
      %v12283 = vmax.f32 %v12147, 0.0
      %v12284 = vmax.f32 %v12148, 0.0
      %v12285 = vmax.f32 %v12149, 0.0
      %v12286 = vmax.f32 %v12150, 0.0
      %v12287 = vmax.f32 %v12151, 0.0
      %v12288 = vmax.f32 %v12152, 0.0
      %v12289 = vmax.f32 %v12153, 0.0
      %v12290 = vmax.f32 %v12154, 0.0
      %v12291 = vmax.f32 %v12155, 0.0
      %v12292 = vmax.f32 %v12156, 0.0
      %v12293 = vmax.f32 %v12157, 0.0
      %v12294 = vmax.f32 %v12158, 0.0
      %v12295 = vmax.f32 %v12159, 0.0
      %v12296 = vmax.f32 %v12160, 0.0
      %v12297 = vmax.f32 %v12161, 0.0
      %v12298 = vmax.f32 %v12162, 0.0
      %v12299 = vmax.f32 %v12163, 0.0
      %v12300 = vmax.f32 %v12164, 0.0
      %v12301 = vmax.f32 %v12165, 0.0
      %v12302 = vmax.f32 %v12166, 0.0
      %v12303 = vmax.f32 %v12167, 0.0
      %v12304 = vmax.f32 %v12168, 0.0
      %v12305 = vmax.f32 %v12169, 0.0
      %v12306 = vmax.f32 %v12170, 0.0
      %v12307 = vmax.f32 %v12171, 0.0
      %v12308 = vmax.f32 %v12172, 0.0
      %v12309 = vmax.f32 %v12173, 0.0
      %v12310 = vmax.f32 %v12174, 0.0
      %v12311 = vmax.f32 %v12175, 0.0
      %v12312 = vmax.f32 %v12176, 0.0
      %v12313 = vmax.f32 %v12177, 0.0
      %v12314 = vmax.f32 %v12178, 0.0
      %v12315 = vmax.f32 %v12179, 0.0
      %v12316 = vmax.f32 %v12180, 0.0
      %v12317 = vmax.f32 %v12181, 0.0
      %v12318 = vmax.f32 %v12182, 0.0
      %v12319 = vmax.f32 %v12183, 0.0
      %v12320 = vmax.f32 %v12184, 0.0
      %v12321 = vmax.f32 %v12185, 0.0
      %v12322 = vmax.f32 %v12186, 0.0
      %v12323 = vmax.f32 %v12187, 0.0
      %v12324 = vmax.f32 %v12188, 0.0
      %v12325 = vmax.f32 %v12189, 0.0
      %v12326 = vmax.f32 %v12190, 0.0
      %v12327 = vmax.f32 %v12191, 0.0
      %v12328 = vmax.f32 %v12192, 0.0
      %v12329 = vmax.f32 %v12193, 0.0
      %v12330 = vmax.f32 %v12194, 0.0
      %v12331 = vmax.f32 %v12195, 0.0
      %v12332 = vmax.f32 %v12196, 0.0
      %v12333 = vmax.f32 %v12197, 0.0
      %v12334 = vmax.f32 %v12198, 0.0
      %v12335 = vmax.f32 %v12199, 0.0
      %v12336 = vmax.f32 %v12200, 0.0
      %v12337 = vmax.f32 %v12201, 0.0
      %v12338 = vmax.f32 %v12202, 0.0
      %v12339 = vmax.f32 %v12203, 0.0
      %v12340 = vmax.f32 %v12204, 0.0
      %v12341 = vmax.f32 %v12205, 0.0
      %v12342 = vmax.f32 %v12206, 0.0
      %v12343 = vmax.f32 %v12207, 0.0
      %v12344 = vmax.f32 %v12208, 0.0
      %v12345 = vmax.f32 %v12209, 0.0
      %v12346 = vmax.f32 %v12210, 0.0
      %v12347 = vmax.f32 %v12211, 0.0
      %v12348 = vmax.f32 %v12212, 0.0
      %v12349 = vmax.f32 %v12213, 0.0
      %v12350 = vmax.f32 %v12214, 0.0
      %v12351 = vmax.f32 %v12215, 0.0
      %v12352 = vpack.c.bf16 %v12217, %v12216
      %v12353 = vpack.c.bf16 %v12219, %v12218
      %v12354 = vpack.c.bf16 %v12221, %v12220
      %v12355 = vpack.c.bf16 %v12223, %v12222
      %v12356 = vpack.c.bf16 %v12225, %v12224
      %v12357 = vpack.c.bf16 %v12227, %v12226
      %v12358 = vpack.c.bf16 %v12229, %v12228
      %v12359 = vpack.c.bf16 %v12231, %v12230
      %v12360 = vpack.c.bf16 %v12233, %v12232
      %v12361 = vpack.c.bf16 %v12235, %v12234
      %v12362 = vpack.c.bf16 %v12237, %v12236
      %v12363 = vpack.c.bf16 %v12239, %v12238
      %v12364 = vpack.c.bf16 %v12241, %v12240
      %v12365 = vpack.c.bf16 %v12243, %v12242
      %v12366 = vpack.c.bf16 %v12245, %v12244
      %v12367 = vpack.c.bf16 %v12247, %v12246
      %v12368 = vpack.c.bf16 %v12249, %v12248
      %v12369 = vpack.c.bf16 %v12251, %v12250
      %v12370 = vpack.c.bf16 %v12253, %v12252
      %v12371 = vpack.c.bf16 %v12255, %v12254
      %v12372 = vpack.c.bf16 %v12257, %v12256
      %v12373 = vpack.c.bf16 %v12259, %v12258
      %v12374 = vpack.c.bf16 %v12261, %v12260
      %v12375 = vpack.c.bf16 %v12263, %v12262
      %v12376 = vpack.c.bf16 %v12265, %v12264
      %v12377 = vpack.c.bf16 %v12267, %v12266
      %v12378 = vpack.c.bf16 %v12269, %v12268
      %v12379 = vpack.c.bf16 %v12271, %v12270
      %v12380 = vpack.c.bf16 %v12273, %v12272
      %v12381 = vpack.c.bf16 %v12275, %v12274
      %v12382 = vpack.c.bf16 %v12277, %v12276
      %v12383 = vpack.c.bf16 %v12279, %v12278
      %v12384 = vpack.c.bf16 %v12281, %v12280
      %v12385 = vpack.c.bf16 %v12283, %v12282
      %v12386 = vpack.c.bf16 %v12285, %v12284
      %v12387 = vpack.c.bf16 %v12287, %v12286
      %v12388 = vpack.c.bf16 %v12289, %v12288
      %v12389 = vpack.c.bf16 %v12291, %v12290
      %v12390 = vpack.c.bf16 %v12293, %v12292
      %v12391 = vpack.c.bf16 %v12295, %v12294
      %v12392 = vpack.c.bf16 %v12297, %v12296
      %v12393 = vpack.c.bf16 %v12299, %v12298
      %v12394 = vpack.c.bf16 %v12301, %v12300
      %v12395 = vpack.c.bf16 %v12303, %v12302
      %v12396 = vpack.c.bf16 %v12305, %v12304
      %v12397 = vpack.c.bf16 %v12307, %v12306
      %v12398 = vpack.c.bf16 %v12309, %v12308
      %v12399 = vpack.c.bf16 %v12311, %v12310
      %v12400 = vpack.c.bf16 %v12313, %v12312
      %v12401 = vpack.c.bf16 %v12315, %v12314
      %v12402 = vpack.c.bf16 %v12317, %v12316
      %v12403 = vpack.c.bf16 %v12319, %v12318
      %v12404 = vpack.c.bf16 %v12321, %v12320
      %v12405 = vpack.c.bf16 %v12323, %v12322
      %v12406 = vpack.c.bf16 %v12325, %v12324
      %v12407 = vpack.c.bf16 %v12327, %v12326
      %v12408 = vpack.c.bf16 %v12329, %v12328
      %v12409 = vpack.c.bf16 %v12331, %v12330
      %v12410 = vpack.c.bf16 %v12333, %v12332
      %v12411 = vpack.c.bf16 %v12335, %v12334
      %v12412 = vpack.c.bf16 %v12337, %v12336
      %v12413 = vpack.c.bf16 %v12339, %v12338
      %v12414 = vpack.c.bf16 %v12341, %v12340
      %v12415 = vpack.c.bf16 %v12343, %v12342
      %v12416 = vpack.c.bf16 %v12345, %v12344
      %v12417 = vpack.c.bf16 %v12347, %v12346
      %v12418 = vpack.c.bf16 %v12349, %v12348
      %v12419 = vpack.c.bf16 %v12351, %v12350
      %v12488 = vunpack.c.l.b16 %v12352
      %v12489 = vunpack.c.h.b16 %v12352
      %v12490 = vunpack.c.l.b16 %v12353
      %v12491 = vunpack.c.h.b16 %v12353
      %v12492 = vunpack.c.l.b16 %v12354
      %v12493 = vunpack.c.h.b16 %v12354
      %v12494 = vunpack.c.l.b16 %v12355
      %v12495 = vunpack.c.h.b16 %v12355
      %v12496 = vunpack.c.l.b16 %v12356
      %v12497 = vunpack.c.h.b16 %v12356
      %v12498 = vunpack.c.l.b16 %v12357
      %v12499 = vunpack.c.h.b16 %v12357
      %v12500 = vunpack.c.l.b16 %v12358
      %v12501 = vunpack.c.h.b16 %v12358
      %v12502 = vunpack.c.l.b16 %v12359
      %v12503 = vunpack.c.h.b16 %v12359
      %v12504 = vunpack.c.l.b16 %v12360
      %v12505 = vunpack.c.h.b16 %v12360
      %v12506 = vunpack.c.l.b16 %v12361
      %v12507 = vunpack.c.h.b16 %v12361
      %v12508 = vunpack.c.l.b16 %v12362
      %v12509 = vunpack.c.h.b16 %v12362
      %v12510 = vunpack.c.l.b16 %v12363
      %v12511 = vunpack.c.h.b16 %v12363
      %v12512 = vunpack.c.l.b16 %v12364
      %v12513 = vunpack.c.h.b16 %v12364
      %v12514 = vunpack.c.l.b16 %v12365
      %v12515 = vunpack.c.h.b16 %v12365
      %v12516 = vunpack.c.l.b16 %v12366
      %v12517 = vunpack.c.h.b16 %v12366
      %v12518 = vunpack.c.l.b16 %v12367
      %v12519 = vunpack.c.h.b16 %v12367
      %v12520 = vunpack.c.l.b16 %v12368
      %v12521 = vunpack.c.h.b16 %v12368
      %v12522 = vunpack.c.l.b16 %v12369
      %v12523 = vunpack.c.h.b16 %v12369
      %v12524 = vunpack.c.l.b16 %v12370
      %v12525 = vunpack.c.h.b16 %v12370
      %v12526 = vunpack.c.l.b16 %v12371
      %v12527 = vunpack.c.h.b16 %v12371
      %v12528 = vunpack.c.l.b16 %v12372
      %v12529 = vunpack.c.h.b16 %v12372
      %v12530 = vunpack.c.l.b16 %v12373
      %v12531 = vunpack.c.h.b16 %v12373
      %v12532 = vunpack.c.l.b16 %v12374
      %v12533 = vunpack.c.h.b16 %v12374
      %v12534 = vunpack.c.l.b16 %v12375
      %v12535 = vunpack.c.h.b16 %v12375
      %v12536 = vunpack.c.l.b16 %v12376
      %v12537 = vunpack.c.h.b16 %v12376
      %v12538 = vunpack.c.l.b16 %v12377
      %v12539 = vunpack.c.h.b16 %v12377
      %v12540 = vunpack.c.l.b16 %v12378
      %v12541 = vunpack.c.h.b16 %v12378
      %v12542 = vunpack.c.l.b16 %v12379
      %v12543 = vunpack.c.h.b16 %v12379
      %v12544 = vunpack.c.l.b16 %v12380
      %v12545 = vunpack.c.h.b16 %v12380
      %v12546 = vunpack.c.l.b16 %v12381
      %v12547 = vunpack.c.h.b16 %v12381
      %v12548 = vunpack.c.l.b16 %v12382
      %v12549 = vunpack.c.h.b16 %v12382
      %v12550 = vunpack.c.l.b16 %v12383
      %v12551 = vunpack.c.h.b16 %v12383
      %v12552 = vunpack.c.l.b16 %v12384
      %v12553 = vunpack.c.h.b16 %v12384
      %v12554 = vunpack.c.l.b16 %v12385
      %v12555 = vunpack.c.h.b16 %v12385
      %v12556 = vunpack.c.l.b16 %v12386
      %v12557 = vunpack.c.h.b16 %v12386
      %v12558 = vunpack.c.l.b16 %v12387
      %v12559 = vunpack.c.h.b16 %v12387
      %v12560 = vunpack.c.l.b16 %v12388
      %v12561 = vunpack.c.h.b16 %v12388
      %v12562 = vunpack.c.l.b16 %v12389
      %v12563 = vunpack.c.h.b16 %v12389
      %v12564 = vunpack.c.l.b16 %v12390
      %v12565 = vunpack.c.h.b16 %v12390
      %v12566 = vunpack.c.l.b16 %v12391
      %v12567 = vunpack.c.h.b16 %v12391
      %v12568 = vunpack.c.l.b16 %v12392
      %v12569 = vunpack.c.h.b16 %v12392
      %v12570 = vunpack.c.l.b16 %v12393
      %v12571 = vunpack.c.h.b16 %v12393
      %v12572 = vunpack.c.l.b16 %v12394
      %v12573 = vunpack.c.h.b16 %v12394
      %v12574 = vunpack.c.l.b16 %v12395
      %v12575 = vunpack.c.h.b16 %v12395
      %v12576 = vunpack.c.l.b16 %v12396
      %v12577 = vunpack.c.h.b16 %v12396
      %v12578 = vunpack.c.l.b16 %v12397
      %v12579 = vunpack.c.h.b16 %v12397
      %v12580 = vunpack.c.l.b16 %v12398
      %v12581 = vunpack.c.h.b16 %v12398
      %v12582 = vunpack.c.l.b16 %v12399
      %v12583 = vunpack.c.h.b16 %v12399
      %v12584 = vunpack.c.l.b16 %v12400
      %v12585 = vunpack.c.h.b16 %v12400
      %v12586 = vunpack.c.l.b16 %v12401
      %v12587 = vunpack.c.h.b16 %v12401
      %v12588 = vunpack.c.l.b16 %v12402
      %v12589 = vunpack.c.h.b16 %v12402
      %v12590 = vunpack.c.l.b16 %v12403
      %v12591 = vunpack.c.h.b16 %v12403
      %v12592 = vunpack.c.l.b16 %v12404
      %v12593 = vunpack.c.h.b16 %v12404
      %v12594 = vunpack.c.l.b16 %v12405
      %v12595 = vunpack.c.h.b16 %v12405
      %v12596 = vunpack.c.l.b16 %v12406
      %v12597 = vunpack.c.h.b16 %v12406
      %v12598 = vunpack.c.l.b16 %v12407
      %v12599 = vunpack.c.h.b16 %v12407
      %v12600 = vunpack.c.l.b16 %v12408
      %v12601 = vunpack.c.h.b16 %v12408
      %v12602 = vunpack.c.l.b16 %v12409
      %v12603 = vunpack.c.h.b16 %v12409
      %v12604 = vunpack.c.l.b16 %v12410
      %v12605 = vunpack.c.h.b16 %v12410
      %v12606 = vunpack.c.l.b16 %v12411
      %v12607 = vunpack.c.h.b16 %v12411
      %v12608 = vunpack.c.l.b16 %v12412
      %v12609 = vunpack.c.h.b16 %v12412
      %v12610 = vunpack.c.l.b16 %v12413
      %v12611 = vunpack.c.h.b16 %v12413
      %v12612 = vunpack.c.l.b16 %v12414
      %v12613 = vunpack.c.h.b16 %v12414
      %v12614 = vunpack.c.l.b16 %v12415
      %v12615 = vunpack.c.h.b16 %v12415
      %v12616 = vunpack.c.l.b16 %v12416
      %v12617 = vunpack.c.h.b16 %v12416
      %v12618 = vunpack.c.l.b16 %v12417
      %v12619 = vunpack.c.h.b16 %v12417
      %v12620 = vunpack.c.l.b16 %v12418
      %v12621 = vunpack.c.h.b16 %v12418
      %v12622 = vunpack.c.l.b16 %v12419
      %v12623 = vunpack.c.h.b16 %v12419
      %v12624 = vpack.c.b16 %v12488, %v12488
      %v12625 = vpack.c.b16 %v12489, %v12489
      %v12626 = vpack.c.b16 %v12490, %v12490
      %v12627 = vpack.c.b16 %v12491, %v12491
      %v12628 = vpack.c.b16 %v12492, %v12492
      %v12629 = vpack.c.b16 %v12493, %v12493
      %v12630 = vpack.c.b16 %v12494, %v12494
      %v12631 = vpack.c.b16 %v12495, %v12495
      %v12632 = vpack.c.b16 %v12496, %v12496
      %v12633 = vpack.c.b16 %v12497, %v12497
      %v12634 = vpack.c.b16 %v12498, %v12498
      %v12635 = vpack.c.b16 %v12499, %v12499
      %v12636 = vpack.c.b16 %v12500, %v12500
      %v12637 = vpack.c.b16 %v12501, %v12501
      %v12638 = vpack.c.b16 %v12502, %v12502
      %v12639 = vpack.c.b16 %v12503, %v12503
      %v12640 = vpack.c.b16 %v12504, %v12504
      %v12641 = vpack.c.b16 %v12505, %v12505
      %v12642 = vpack.c.b16 %v12506, %v12506
      %v12643 = vpack.c.b16 %v12507, %v12507
      %v12644 = vpack.c.b16 %v12508, %v12508
      %v12645 = vpack.c.b16 %v12509, %v12509
      %v12646 = vpack.c.b16 %v12510, %v12510
      %v12647 = vpack.c.b16 %v12511, %v12511
      %v12648 = vpack.c.b16 %v12512, %v12512
      %v12649 = vpack.c.b16 %v12513, %v12513
      %v12650 = vpack.c.b16 %v12514, %v12514
      %v12651 = vpack.c.b16 %v12515, %v12515
      %v12652 = vpack.c.b16 %v12516, %v12516
      %v12653 = vpack.c.b16 %v12517, %v12517
      %v12654 = vpack.c.b16 %v12518, %v12518
      %v12655 = vpack.c.b16 %v12519, %v12519
      %v12656 = vpack.c.b16 %v12520, %v12520
      %v12657 = vpack.c.b16 %v12521, %v12521
      %v12658 = vpack.c.b16 %v12522, %v12522
      %v12659 = vpack.c.b16 %v12523, %v12523
      %v12660 = vpack.c.b16 %v12524, %v12524
      %v12661 = vpack.c.b16 %v12525, %v12525
      %v12662 = vpack.c.b16 %v12526, %v12526
      %v12663 = vpack.c.b16 %v12527, %v12527
      %v12664 = vpack.c.b16 %v12528, %v12528
      %v12665 = vpack.c.b16 %v12529, %v12529
      %v12666 = vpack.c.b16 %v12530, %v12530
      %v12667 = vpack.c.b16 %v12531, %v12531
      %v12668 = vpack.c.b16 %v12532, %v12532
      %v12669 = vpack.c.b16 %v12533, %v12533
      %v12670 = vpack.c.b16 %v12534, %v12534
      %v12671 = vpack.c.b16 %v12535, %v12535
      %v12672 = vpack.c.b16 %v12536, %v12536
      %v12673 = vpack.c.b16 %v12537, %v12537
      %v12674 = vpack.c.b16 %v12538, %v12538
      %v12675 = vpack.c.b16 %v12539, %v12539
      %v12676 = vpack.c.b16 %v12540, %v12540
      %v12677 = vpack.c.b16 %v12541, %v12541
      %v12678 = vpack.c.b16 %v12542, %v12542
      %v12679 = vpack.c.b16 %v12543, %v12543
      %v12680 = vpack.c.b16 %v12544, %v12544
      %v12681 = vpack.c.b16 %v12545, %v12545
      %v12682 = vpack.c.b16 %v12546, %v12546
      %v12683 = vpack.c.b16 %v12547, %v12547
      %v12684 = vpack.c.b16 %v12548, %v12548
      %v12685 = vpack.c.b16 %v12549, %v12549
      %v12686 = vpack.c.b16 %v12550, %v12550
      %v12687 = vpack.c.b16 %v12551, %v12551
      %v12688 = vpack.c.b16 %v12552, %v12552
      %v12689 = vpack.c.b16 %v12553, %v12553
      %v12690 = vpack.c.b16 %v12554, %v12554
      %v12691 = vpack.c.b16 %v12555, %v12555
      %v12692 = vpack.c.b16 %v12556, %v12556
      %v12693 = vpack.c.b16 %v12557, %v12557
      %v12694 = vpack.c.b16 %v12558, %v12558
      %v12695 = vpack.c.b16 %v12559, %v12559
      %v12696 = vpack.c.b16 %v12560, %v12560
      %v12697 = vpack.c.b16 %v12561, %v12561
      %v12698 = vpack.c.b16 %v12562, %v12562
      %v12699 = vpack.c.b16 %v12563, %v12563
      %v12700 = vpack.c.b16 %v12564, %v12564
      %v12701 = vpack.c.b16 %v12565, %v12565
      %v12702 = vpack.c.b16 %v12566, %v12566
      %v12703 = vpack.c.b16 %v12567, %v12567
      %v12704 = vpack.c.b16 %v12568, %v12568
      %v12705 = vpack.c.b16 %v12569, %v12569
      %v12706 = vpack.c.b16 %v12570, %v12570
      %v12707 = vpack.c.b16 %v12571, %v12571
      %v12708 = vpack.c.b16 %v12572, %v12572
      %v12709 = vpack.c.b16 %v12573, %v12573
      %v12710 = vpack.c.b16 %v12574, %v12574
      %v12711 = vpack.c.b16 %v12575, %v12575
      %v12712 = vpack.c.b16 %v12576, %v12576
      %v12713 = vpack.c.b16 %v12577, %v12577
      %v12714 = vpack.c.b16 %v12578, %v12578
      %v12715 = vpack.c.b16 %v12579, %v12579
      %v12716 = vpack.c.b16 %v12580, %v12580
      %v12717 = vpack.c.b16 %v12581, %v12581
      %v12718 = vpack.c.b16 %v12582, %v12582
      %v12719 = vpack.c.b16 %v12583, %v12583
      %v12720 = vpack.c.b16 %v12584, %v12584
      %v12721 = vpack.c.b16 %v12585, %v12585
      %v12722 = vpack.c.b16 %v12586, %v12586
      %v12723 = vpack.c.b16 %v12587, %v12587
      %v12724 = vpack.c.b16 %v12588, %v12588
      %v12725 = vpack.c.b16 %v12589, %v12589
      %v12726 = vpack.c.b16 %v12590, %v12590
      %v12727 = vpack.c.b16 %v12591, %v12591
      %v12728 = vpack.c.b16 %v12592, %v12592
      %v12729 = vpack.c.b16 %v12593, %v12593
      %v12730 = vpack.c.b16 %v12594, %v12594
      %v12731 = vpack.c.b16 %v12595, %v12595
      %v12732 = vpack.c.b16 %v12596, %v12596
      %v12733 = vpack.c.b16 %v12597, %v12597
      %v12734 = vpack.c.b16 %v12598, %v12598
      %v12735 = vpack.c.b16 %v12599, %v12599
      %v12736 = vpack.c.b16 %v12600, %v12600
      %v12737 = vpack.c.b16 %v12601, %v12601
      %v12738 = vpack.c.b16 %v12602, %v12602
      %v12739 = vpack.c.b16 %v12603, %v12603
      %v12740 = vpack.c.b16 %v12604, %v12604
      %v12741 = vpack.c.b16 %v12605, %v12605
      %v12742 = vpack.c.b16 %v12606, %v12606
      %v12743 = vpack.c.b16 %v12607, %v12607
      %v12744 = vpack.c.b16 %v12608, %v12608
      %v12745 = vpack.c.b16 %v12609, %v12609
      %v12746 = vpack.c.b16 %v12610, %v12610
      %v12747 = vpack.c.b16 %v12611, %v12611
      %v12748 = vpack.c.b16 %v12612, %v12612
      %v12749 = vpack.c.b16 %v12613, %v12613
      %v12750 = vpack.c.b16 %v12614, %v12614
      %v12751 = vpack.c.b16 %v12615, %v12615
      %v12752 = vpack.c.b16 %v12616, %v12616
      %v12753 = vpack.c.b16 %v12617, %v12617
      %v12754 = vpack.c.b16 %v12618, %v12618
      %v12755 = vpack.c.b16 %v12619, %v12619
      %v12756 = vpack.c.b16 %v12620, %v12620
      %v12757 = vpack.c.b16 %v12621, %v12621
      %v12758 = vpack.c.b16 %v12622, %v12622
      %v12759 = vpack.c.b16 %v12623, %v12623
      %vm12896 = vcmask 519168
      %12897 = vst.msk [vmem:[%s170] sm:$0xf] %vm12896, %v12624
      %12898 = vst.msk [vmem:[%s170 + $0x4] sm:$0xf] %vm12896, %v12625
      %12899 = vst.msk [vmem:[%s170 + $0x8] sm:$0xf] %vm12896, %v12626
      %12900 = vst.msk [vmem:[%s170 + $0xc] sm:$0xf] %vm12896, %v12627
      %12901 = vst.msk [vmem:[%s170 + $0x10] sm:$0xf] %vm12896, %v12628
      %12902 = vst.msk [vmem:[%s170 + $0x14] sm:$0xf] %vm12896, %v12629
      %12903 = vst.msk [vmem:[%s170 + $0x18] sm:$0xf] %vm12896, %v12630
      %12904 = vst.msk [vmem:[%s170 + $0x1c] sm:$0xf] %vm12896, %v12631
      %12905 = vst.msk [vmem:[%s170 + $0x20] sm:$0xf] %vm12896, %v12632
      %12906 = vst.msk [vmem:[%s170 + $0x24] sm:$0xf] %vm12896, %v12633
      %12907 = vst.msk [vmem:[%s170 + $0x28] sm:$0xf] %vm12896, %v12634
      %12908 = vst.msk [vmem:[%s170 + $0x2c] sm:$0xf] %vm12896, %v12635
      %12909 = vst.msk [vmem:[%s170 + $0x30] sm:$0xf] %vm12896, %v12636
      %12910 = vst.msk [vmem:[%s170 + $0x34] sm:$0xf] %vm12896, %v12637
      %12911 = vst.msk [vmem:[%s170 + $0x38] sm:$0xf] %vm12896, %v12638
      %12912 = vst.msk [vmem:[%s170 + $0x3c] sm:$0xf] %vm12896, %v12639
      %12913 = vst.msk [vmem:[%s170 + $0x40] sm:$0xf] %vm12896, %v12640
      %12914 = vst.msk [vmem:[%s170 + $0x44] sm:$0xf] %vm12896, %v12641
      %12915 = vst.msk [vmem:[%s170 + $0x48] sm:$0xf] %vm12896, %v12642
      %12916 = vst.msk [vmem:[%s170 + $0x4c] sm:$0xf] %vm12896, %v12643
      %12917 = vst.msk [vmem:[%s170 + $0x50] sm:$0xf] %vm12896, %v12644
      %12918 = vst.msk [vmem:[%s170 + $0x54] sm:$0xf] %vm12896, %v12645
      %12919 = vst.msk [vmem:[%s170 + $0x58] sm:$0xf] %vm12896, %v12646
      %12920 = vst.msk [vmem:[%s170 + $0x5c] sm:$0xf] %vm12896, %v12647
      %12921 = vst.msk [vmem:[%s170 + $0x60] sm:$0xf] %vm12896, %v12648
      %12922 = vst.msk [vmem:[%s170 + $0x64] sm:$0xf] %vm12896, %v12649
      %12923 = vst.msk [vmem:[%s170 + $0x68] sm:$0xf] %vm12896, %v12650
      %12924 = vst.msk [vmem:[%s170 + $0x6c] sm:$0xf] %vm12896, %v12651
      %12925 = vst.msk [vmem:[%s170 + $0x70] sm:$0xf] %vm12896, %v12652
      %12926 = vst.msk [vmem:[%s170 + $0x74] sm:$0xf] %vm12896, %v12653
      %12927 = vst.msk [vmem:[%s170 + $0x78] sm:$0xf] %vm12896, %v12654
      %12928 = vst.msk [vmem:[%s170 + $0x7c] sm:$0xf] %vm12896, %v12655
      %12929 = vst.msk [vmem:[%s170 + $0x80] sm:$0xf] %vm12896, %v12656
      %12930 = vst.msk [vmem:[%s170 + $0x84] sm:$0xf] %vm12896, %v12657
      %12931 = vst.msk [vmem:[%s170 + $0x88] sm:$0xf] %vm12896, %v12658
      %12932 = vst.msk [vmem:[%s170 + $0x8c] sm:$0xf] %vm12896, %v12659
      %12933 = vst.msk [vmem:[%s170 + $0x90] sm:$0xf] %vm12896, %v12660
      %12934 = vst.msk [vmem:[%s170 + $0x94] sm:$0xf] %vm12896, %v12661
      %12935 = vst.msk [vmem:[%s170 + $0x98] sm:$0xf] %vm12896, %v12662
      %12936 = vst.msk [vmem:[%s170 + $0x9c] sm:$0xf] %vm12896, %v12663
      %12937 = vst.msk [vmem:[%s170 + $0xa0] sm:$0xf] %vm12896, %v12664
      %12938 = vst.msk [vmem:[%s170 + $0xa4] sm:$0xf] %vm12896, %v12665
      %12939 = vst.msk [vmem:[%s170 + $0xa8] sm:$0xf] %vm12896, %v12666
      %12940 = vst.msk [vmem:[%s170 + $0xac] sm:$0xf] %vm12896, %v12667
      %12941 = vst.msk [vmem:[%s170 + $0xb0] sm:$0xf] %vm12896, %v12668
      %12942 = vst.msk [vmem:[%s170 + $0xb4] sm:$0xf] %vm12896, %v12669
      %12943 = vst.msk [vmem:[%s170 + $0xb8] sm:$0xf] %vm12896, %v12670
      %12944 = vst.msk [vmem:[%s170 + $0xbc] sm:$0xf] %vm12896, %v12671
      %12945 = vst.msk [vmem:[%s170 + $0xc0] sm:$0xf] %vm12896, %v12672
      %12946 = vst.msk [vmem:[%s170 + $0xc4] sm:$0xf] %vm12896, %v12673
      %12947 = vst.msk [vmem:[%s170 + $0xc8] sm:$0xf] %vm12896, %v12674
      %12948 = vst.msk [vmem:[%s170 + $0xcc] sm:$0xf] %vm12896, %v12675
      %12949 = vst.msk [vmem:[%s170 + $0xd0] sm:$0xf] %vm12896, %v12676
      %12950 = vst.msk [vmem:[%s170 + $0xd4] sm:$0xf] %vm12896, %v12677
      %12951 = vst.msk [vmem:[%s170 + $0xd8] sm:$0xf] %vm12896, %v12678
      %12952 = vst.msk [vmem:[%s170 + $0xdc] sm:$0xf] %vm12896, %v12679
      %12953 = vst.msk [vmem:[%s170 + $0xe0] sm:$0xf] %vm12896, %v12680
      %12954 = vst.msk [vmem:[%s170 + $0xe4] sm:$0xf] %vm12896, %v12681
      %12955 = vst.msk [vmem:[%s170 + $0xe8] sm:$0xf] %vm12896, %v12682
      %12956 = vst.msk [vmem:[%s170 + $0xec] sm:$0xf] %vm12896, %v12683
      %12957 = vst.msk [vmem:[%s170 + $0xf0] sm:$0xf] %vm12896, %v12684
      %12958 = vst.msk [vmem:[%s170 + $0xf4] sm:$0xf] %vm12896, %v12685
      %12959 = vst.msk [vmem:[%s170 + $0xf8] sm:$0xf] %vm12896, %v12686
      %12960 = vst.msk [vmem:[%s170 + $0xfc] sm:$0xf] %vm12896, %v12687
      %12961 = vst.msk [vmem:[%s170 + $0x100] sm:$0xf] %vm12896, %v12688
      %12962 = vst.msk [vmem:[%s170 + $0x104] sm:$0xf] %vm12896, %v12689
      %12963 = vst.msk [vmem:[%s170 + $0x108] sm:$0xf] %vm12896, %v12690
      %12964 = vst.msk [vmem:[%s170 + $0x10c] sm:$0xf] %vm12896, %v12691
      %12965 = vst.msk [vmem:[%s170 + $0x110] sm:$0xf] %vm12896, %v12692
      %12966 = vst.msk [vmem:[%s170 + $0x114] sm:$0xf] %vm12896, %v12693
      %12967 = vst.msk [vmem:[%s170 + $0x118] sm:$0xf] %vm12896, %v12694
      %12968 = vst.msk [vmem:[%s170 + $0x11c] sm:$0xf] %vm12896, %v12695
      %12969 = vst.msk [vmem:[%s170 + $0x120] sm:$0xf] %vm12896, %v12696
      %12970 = vst.msk [vmem:[%s170 + $0x124] sm:$0xf] %vm12896, %v12697
      %12971 = vst.msk [vmem:[%s170 + $0x128] sm:$0xf] %vm12896, %v12698
      %12972 = vst.msk [vmem:[%s170 + $0x12c] sm:$0xf] %vm12896, %v12699
      %12973 = vst.msk [vmem:[%s170 + $0x130] sm:$0xf] %vm12896, %v12700
      %12974 = vst.msk [vmem:[%s170 + $0x134] sm:$0xf] %vm12896, %v12701
      %12975 = vst.msk [vmem:[%s170 + $0x138] sm:$0xf] %vm12896, %v12702
      %12976 = vst.msk [vmem:[%s170 + $0x13c] sm:$0xf] %vm12896, %v12703
      %12977 = vst.msk [vmem:[%s170 + $0x140] sm:$0xf] %vm12896, %v12704
      %12978 = vst.msk [vmem:[%s170 + $0x144] sm:$0xf] %vm12896, %v12705
      %12979 = vst.msk [vmem:[%s170 + $0x148] sm:$0xf] %vm12896, %v12706
      %12980 = vst.msk [vmem:[%s170 + $0x14c] sm:$0xf] %vm12896, %v12707
      %12981 = vst.msk [vmem:[%s170 + $0x150] sm:$0xf] %vm12896, %v12708
      %12982 = vst.msk [vmem:[%s170 + $0x154] sm:$0xf] %vm12896, %v12709
      %12983 = vst.msk [vmem:[%s170 + $0x158] sm:$0xf] %vm12896, %v12710
      %12984 = vst.msk [vmem:[%s170 + $0x15c] sm:$0xf] %vm12896, %v12711
      %12985 = vst.msk [vmem:[%s170 + $0x160] sm:$0xf] %vm12896, %v12712
      %12986 = vst.msk [vmem:[%s170 + $0x164] sm:$0xf] %vm12896, %v12713
      %12987 = vst.msk [vmem:[%s170 + $0x168] sm:$0xf] %vm12896, %v12714
      %12988 = vst.msk [vmem:[%s170 + $0x16c] sm:$0xf] %vm12896, %v12715
      %12989 = vst.msk [vmem:[%s170 + $0x170] sm:$0xf] %vm12896, %v12716
      %12990 = vst.msk [vmem:[%s170 + $0x174] sm:$0xf] %vm12896, %v12717
      %12991 = vst.msk [vmem:[%s170 + $0x178] sm:$0xf] %vm12896, %v12718
      %12992 = vst.msk [vmem:[%s170 + $0x17c] sm:$0xf] %vm12896, %v12719
      %12993 = vst.msk [vmem:[%s170 + $0x180] sm:$0xf] %vm12896, %v12720
      %12994 = vst.msk [vmem:[%s170 + $0x184] sm:$0xf] %vm12896, %v12721
      %12995 = vst.msk [vmem:[%s170 + $0x188] sm:$0xf] %vm12896, %v12722
      %12996 = vst.msk [vmem:[%s170 + $0x18c] sm:$0xf] %vm12896, %v12723
      %12997 = vst.msk [vmem:[%s170 + $0x190] sm:$0xf] %vm12896, %v12724
      %12998 = vst.msk [vmem:[%s170 + $0x194] sm:$0xf] %vm12896, %v12725
      %12999 = vst.msk [vmem:[%s170 + $0x198] sm:$0xf] %vm12896, %v12726
      %13000 = vst.msk [vmem:[%s170 + $0x19c] sm:$0xf] %vm12896, %v12727
      %13001 = vst.msk [vmem:[%s170 + $0x1a0] sm:$0xf] %vm12896, %v12728
      %13002 = vst.msk [vmem:[%s170 + $0x1a4] sm:$0xf] %vm12896, %v12729
      %13003 = vst.msk [vmem:[%s170 + $0x1a8] sm:$0xf] %vm12896, %v12730
      %13004 = vst.msk [vmem:[%s170 + $0x1ac] sm:$0xf] %vm12896, %v12731
      %13005 = vst.msk [vmem:[%s170 + $0x1b0] sm:$0xf] %vm12896, %v12732
      %13006 = vst.msk [vmem:[%s170 + $0x1b4] sm:$0xf] %vm12896, %v12733
      %13007 = vst.msk [vmem:[%s170 + $0x1b8] sm:$0xf] %vm12896, %v12734
      %13008 = vst.msk [vmem:[%s170 + $0x1bc] sm:$0xf] %vm12896, %v12735
      %13009 = vst.msk [vmem:[%s170 + $0x1c0] sm:$0xf] %vm12896, %v12736
      %13010 = vst.msk [vmem:[%s170 + $0x1c4] sm:$0xf] %vm12896, %v12737
      %13011 = vst.msk [vmem:[%s170 + $0x1c8] sm:$0xf] %vm12896, %v12738
      %13012 = vst.msk [vmem:[%s170 + $0x1cc] sm:$0xf] %vm12896, %v12739
      %13013 = vst.msk [vmem:[%s170 + $0x1d0] sm:$0xf] %vm12896, %v12740
      %13014 = vst.msk [vmem:[%s170 + $0x1d4] sm:$0xf] %vm12896, %v12741
      %13015 = vst.msk [vmem:[%s170 + $0x1d8] sm:$0xf] %vm12896, %v12742
      %13016 = vst.msk [vmem:[%s170 + $0x1dc] sm:$0xf] %vm12896, %v12743
      %13017 = vst.msk [vmem:[%s170 + $0x1e0] sm:$0xf] %vm12896, %v12744
      %13018 = vst.msk [vmem:[%s170 + $0x1e4] sm:$0xf] %vm12896, %v12745
      %13019 = vst.msk [vmem:[%s170 + $0x1e8] sm:$0xf] %vm12896, %v12746
      %13020 = vst.msk [vmem:[%s170 + $0x1ec] sm:$0xf] %vm12896, %v12747
      %13021 = vst.msk [vmem:[%s170 + $0x1f0] sm:$0xf] %vm12896, %v12748
      %13022 = vst.msk [vmem:[%s170 + $0x1f4] sm:$0xf] %vm12896, %v12749
      %13023 = vst.msk [vmem:[%s170 + $0x1f8] sm:$0xf] %vm12896, %v12750
      %13024 = vst.msk [vmem:[%s170 + $0x1fc] sm:$0xf] %vm12896, %v12751
      %13025 = vst.msk [vmem:[%s170 + $0x200] sm:$0xf] %vm12896, %v12752
      %13026 = vst.msk [vmem:[%s170 + $0x204] sm:$0xf] %vm12896, %v12753
      %13027 = vst.msk [vmem:[%s170 + $0x208] sm:$0xf] %vm12896, %v12754
      %13028 = vst.msk [vmem:[%s170 + $0x20c] sm:$0xf] %vm12896, %v12755
      %13029 = vst.msk [vmem:[%s170 + $0x210] sm:$0xf] %vm12896, %v12756
      %13030 = vst.msk [vmem:[%s170 + $0x214] sm:$0xf] %vm12896, %v12757
      %13031 = vst.msk [vmem:[%s170 + $0x218] sm:$0xf] %vm12896, %v12758
      %13032 = vst.msk [vmem:[%s170 + $0x21c] sm:$0xf] %vm12896, %v12759
      %p13033 = scmp.lt.s32.totalorder %s14, 1
      %s13034 = scalar_select %p13033, %s14, 1
      %s13035 = smul.addr %s13034, 136
      %s13036 = smul.addr %s13035, 4
      %s13037 = scalar_lea.vmem %s3, %s13036
      // Predicated region
      $region33: #{tpu_custom_call.1} parent=31 // pred_check
        %p13038 = pneg %p100
      $region34: #{tpu_custom_call.1} parent=31 // pred_check_branch
        %13040 = sbr.rel (%p13038) target = $region36
      $region35: #{tpu_custom_call.1} parent=31 // pred_region
        _
      $region36: #{tpu_custom_call.1} parent=31 // pred_fallthru
        _
    $region32: #{tpu_custom_call.1} parent=5 // pred_fallthru
      _
    %p13041 = scmp.le.s32.totalorder 2, %s9
    // Predicated region
    $region37: #{tpu_custom_call.1} parent=5 // pred_check
      %p13042 = pneg %p13041
    $region38: #{tpu_custom_call.1} parent=5 // pred_check_branch
      %13044 = sbr.rel (%p13042) target = $region40
    $region39: #{tpu_custom_call.1} parent=5 // pred_region
      %s13045 = ssub.s32 %s9, 2
      // Predicated region
      $region41: #{tpu_custom_call.1} parent=39 // pred_check
        %p13046 = pneg %p106
      $region42: #{tpu_custom_call.1} parent=39 // pred_check_branch
        %13048 = sbr.rel (%p13046) target = $region44
      $region43: #{tpu_custom_call.1} parent=39 // pred_region
        %p13049 = scmp.lt.s32.totalorder %s15, 1
        %s13050 = scalar_select %p13049, %s15, 1
        %s13051 = smul.addr %s13050, 136
        %s13052 = smul.addr %s13051, 4
        %s13053 = scalar_lea.vmem %s3, %s13052
      $region44: #{tpu_custom_call.1} parent=39 // pred_fallthru
        _
    $region40: #{tpu_custom_call.1} parent=5 // pred_fallthru
      _
  $region6: #{tpu_custom_call.1} parent=0 // loop_footer
    %s13 = sadd.s32 1, %s9
  $region7: #{tpu_custom_call.1} parent=0 // loop_footer_branch
    %8 = sbr.rel target = $region3
  $region8: #{tpu_custom_call.1} parent=0 // loop_exit
    _

</llo_original>
